<compile_context>
chip_gen: v6e
topology: v6e:2x2x1
jax: 0.10.0
libtpu: 0.0.40
codegen_flags: <defaults>
</compile_context>

<pallas_src>
import functools
import math

import numpy as np
import jax
import jax.numpy as jnp
from jax.experimental import pallas as pl
from jax.experimental.pallas import tpu as pltpu

LN_EPS = 1e-5            # nn.LayerNorm default eps
FFN_DIM = 2048           # nn.TransformerEncoderLayer default dim_feedforward


# ------------------------------ Pallas kernels ------------------------------

def _layer_norm(x, g, b):
    mu = jnp.mean(x, axis=-1, keepdims=True)
    xc = x - mu
    var = jnp.mean(xc * xc, axis=-1, keepdims=True)
    return xc * jax.lax.rsqrt(var + LN_EPS) * g + b


def _stem_kernel(x_ref, wp_ref, bp_ref, pe_ref, tok_ref, o_ref):
    """1x1-conv projection + 2D pos-enc add + [POS]-token concat for one batch element."""
    xb = x_ref[0]                                                      # (HW, C)
    y = jnp.dot(xb, wp_ref[...], preferred_element_type=jnp.float32)   # (HW, H)
    y = y + bp_ref[...] + pe_ref[...]
    o_ref[0] = jnp.concatenate([tok_ref[...], y], axis=0)              # (1+HW, H)


def _encoder_layer_kernel(x_ref, wqkv_ref, bqkv_ref, wo_ref, bo_ref,
                          g1_ref, be1_ref, w1_ref, bf1_ref, w2_ref, bf2_ref,
                          g2_ref, be2_ref, o_ref, *, nhead):
    """Fused post-LN nn.TransformerEncoderLayer for one batch element.

    QKV projection fused into one matmul; attention, out-proj, residual+LayerNorm and the
    feed-forward block all stay in VMEM/vregs inside this single pallas_call.
    """
    x = x_ref[0]                                                       # (S, H)
    hidden = x.shape[-1]
    head_dim = hidden // nhead
    scale = 1.0 / math.sqrt(head_dim)

    # --- multi-head self-attention ---
    qkv = jnp.dot(x, wqkv_ref[...], preferred_element_type=jnp.float32) + bqkv_ref[...]
    heads = []
    for h in range(nhead):                                             # static unroll (nhead=4)
        q = qkv[:, h * head_dim:(h + 1) * head_dim] * scale            # (S, dh)
        k = qkv[:, hidden + h * head_dim:hidden + (h + 1) * head_dim]
        v = qkv[:, 2 * hidden + h * head_dim:2 * hidden + (h + 1) * head_dim]
        s = jax.lax.dot_general(q, k, (((1,), (1,)), ((), ())),
                                preferred_element_type=jnp.float32)    # (S, S)
        s = s - jnp.max(s, axis=-1, keepdims=True)
        p = jnp.exp(s)
        p = p / jnp.sum(p, axis=-1, keepdims=True)
        heads.append(jnp.dot(p, v, preferred_element_type=jnp.float32))  # (S, dh)
    attn = jnp.concatenate(heads, axis=-1)                             # (S, H)
    attn = jnp.dot(attn, wo_ref[...], preferred_element_type=jnp.float32) + bo_ref[...]

    # dropout: identity (eval-mode semantics)
    x = _layer_norm(x + attn, g1_ref[...], be1_ref[...])

    # --- feed-forward ---
    ff = jnp.dot(x, w1_ref[...], preferred_element_type=jnp.float32) + bf1_ref[...]
    ff = jnp.maximum(ff, 0.0)
    ff = jnp.dot(ff, w2_ref[...], preferred_element_type=jnp.float32) + bf2_ref[...]
    x = _layer_norm(x + ff, g2_ref[...], be2_ref[...])

    o_ref[0] = x


def _head_kernel(*refs):
    """Fused DETR-style MLP (ReLU between hidden layers) + fc_out on the [POS] token."""
    x_ref, o_ref = refs[0], refs[-1]
    wb = refs[1:-1]
    n = len(wb) // 2                       # num MLP layers + 1 (fc_out)
    x = x_ref[...]
    for i in range(n):
        x = jnp.dot(x, wb[2 * i][...], preferred_element_type=jnp.float32) + wb[2 * i + 1][...]
        if i < n - 2:                      # ReLU after all MLP layers except the last; none on fc_out
            x = jnp.maximum(x, 0.0)
    o_ref[...] = x


# ------------------------------ pallas_call wrappers ------------------------------

def _stem(x_hw, wp_t, bp, pe, tok):
    B, HW, C = x_hw.shape
    Hd = wp_t.shape[1]
    S = HW + 1
    return pl.pallas_call(
        _stem_kernel,
        out_shape=jax.ShapeDtypeStruct((B, S, Hd), jnp.float32),
        grid=(B,),
        in_specs=[
            pl.BlockSpec((1, HW, C), lambda b: (b, 0, 0)),
            pl.BlockSpec((C, Hd), lambda b: (0, 0)),
            pl.BlockSpec((1, Hd), lambda b: (0, 0)),
            pl.BlockSpec((HW, Hd), lambda b: (0, 0)),
            pl.BlockSpec((1, Hd), lambda b: (0, 0)),
        ],
        out_specs=pl.BlockSpec((1, S, Hd), lambda b: (b, 0, 0)),
        compiler_params=pltpu.CompilerParams(dimension_semantics=("parallel",)),
    )(x_hw, wp_t, bp, pe, tok)


def _encoder_layer(tokens, lp, nhead):
    B, S, Hd = tokens.shape
    F = lp["w1"].shape[1]

    def const(shape):
        return pl.BlockSpec(shape, lambda b: (0,) * len(shape))

    kern = functools.partial(_encoder_layer_kernel, nhead=nhead)
    return pl.pallas_call(
        kern,
        out_shape=jax.ShapeDtypeStruct((B, S, Hd), jnp.float32),
        grid=(B,),
        in_specs=[
            pl.BlockSpec((1, S, Hd), lambda b: (b, 0, 0)),
            const((Hd, 3 * Hd)), const((1, 3 * Hd)),
            const((Hd, Hd)), const((1, Hd)),
            const((1, Hd)), const((1, Hd)),
            const((Hd, F)), const((1, F)),
            const((F, Hd)), const((1, Hd)),
            const((1, Hd)), const((1, Hd)),
        ],
        out_specs=pl.BlockSpec((1, S, Hd), lambda b: (b, 0, 0)),
        compiler_params=pltpu.CompilerParams(dimension_semantics=("parallel",)),
    )(tokens, lp["wqkv"], lp["bqkv"], lp["wo"], lp["bo"],
      lp["ln1_g"], lp["ln1_b"], lp["w1"], lp["b1"], lp["w2"], lp["b2"],
      lp["ln2_g"], lp["ln2_b"])


def _head(cls_tok, head_params):
    B = cls_tok.shape[0]
    out_dim = head_params[-1][0].shape[1]
    flat = []
    for w, b in head_params:
        flat += [w, b]
    return pl.pallas_call(
        _head_kernel,
        out_shape=jax.ShapeDtypeStruct((B, out_dim), jnp.float32),
    )(cls_tok, *flat)


# ------------------------------ model glue ------------------------------

def _positional_encoding_2d(h, w, channels):
    """positional_encodings.PositionalEncoding2D, flattened to (h*w, channels).

    Pure function of static (H, W, channels) -> computed host-side as a trace-time constant.
    """
    ch = int(np.ceil(channels / 4) * 2)
    inv_freq = 1.0 / (10000.0 ** (np.arange(0, ch, 2, dtype=np.float64) / ch))
    pos_x = np.arange(h, dtype=np.float64)[:, None] * inv_freq[None, :]   # (h, ch/2)
    pos_y = np.arange(w, dtype=np.float64)[:, None] * inv_freq[None, :]   # (w, ch/2)
    emb_x = np.stack([np.sin(pos_x), np.cos(pos_x)], axis=-1).reshape(h, ch)
    emb_y = np.stack([np.sin(pos_y), np.cos(pos_y)], axis=-1).reshape(w, ch)
    emb = np.zeros((h, w, 2 * ch), dtype=np.float32)
    emb[:, :, :ch] = emb_x[:, None, :]
    emb[:, :, ch:2 * ch] = emb_y[None, :, :]
    return jnp.asarray(emb[:, :, :channels].reshape(h * w, channels), jnp.float32)


def improved_location_predictor(params, x, *, nhead):
    """x: (B, C, H, W) -> (B, out_dim). Mirrors ImprovedLocationPredictor.forward (eval mode)."""
    B, C, H, W = x.shape
    hidden = params["in_proj_w"].shape[1]
    pe = _positional_encoding_2d(H, W, hidden)                          # trace-time constant
    x_hw = jnp.transpose(x.reshape(B, C, H * W), (0, 2, 1))             # layout glue: NCHW -> (B, HW, C)
    tokens = _stem(x_hw, params["in_proj_w"], params["in_proj_b"], pe, params["pos_token"])
    for lp in params["layers"]:
        tokens = _encoder_layer(tokens, lp, nhead)
    cls_tok = tokens[:, 0, :]                                           # x[:, 0, :]
    return _head(cls_tok, params["head"])


# ------------------------------ parameter init ------------------------------

def _linear_init(key, fan_in, fan_out):
    kw, kb = jax.random.split(key)
    bound = 1.0 / math.sqrt(fan_in)
    w = jax.random.uniform(kw, (fan_in, fan_out), jnp.float32, -bound, bound)   # stored as x @ W
    b = jax.random.uniform(kb, (1, fan_out), jnp.float32, -bound, bound)
    return w, b


def init_params(key, in_dim, hidden_dim, out_dim, nhead, num_layers, ffn_dim=FFN_DIM):
    keys = jax.random.split(key, 4 + num_layers)
    wp, bp = _linear_init(keys[0], in_dim, hidden_dim)          # 1x1 Conv2d == Linear over channels
    pos_token = jax.random.normal(keys[1], (1, hidden_dim), jnp.float32)

    layers = []
    for i in range(num_layers):
        ks = jax.random.split(keys[2 + i], 4)
        wqkv, bqkv = _linear_init(ks[0], hidden_dim, 3 * hidden_dim)
        wo, bo = _linear_init(ks[1], hidden_dim, hidden_dim)
        w1, b1 = _linear_init(ks[2], hidden_dim, ffn_dim)
        w2, b2 = _linear_init(ks[3], ffn_dim, hidden_dim)
        layers.append({
            "wqkv": wqkv, "bqkv": bqkv, "wo": wo, "bo": bo,
            "w1": w1, "b1": b1, "w2": w2, "b2": b2,
            "ln1_g": jnp.ones((1, hidden_dim), jnp.float32),
            "ln1_b": jnp.zeros((1, hidden_dim), jnp.float32),
            "ln2_g": jnp.ones((1, hidden_dim), jnp.float32),
            "ln2_b": jnp.zeros((1, hidden_dim), jnp.float32),
        })

    # DETR-style MLP(hidden, 4*hidden, hidden, num_layers) + fc_out(hidden, out_dim)
    ks = jax.random.split(keys[2 + num_layers], num_layers + 1)
    mlp_dims = [(hidden_dim, 4 * hidden_dim)]
    mlp_dims += [(4 * hidden_dim, 4 * hidden_dim)] * (num_layers - 2)
    mlp_dims += [(4 * hidden_dim, hidden_dim)]
    head = [_linear_init(ks[j], d_in, d_out) for j, (d_in, d_out) in enumerate(mlp_dims)]
    head.append(_linear_init(ks[num_layers], hidden_dim, out_dim))

    return {"in_proj_w": wp, "in_proj_b": bp, "pos_token": pos_token,
            "layers": layers, "head": head}


# ----------------------------------- main -----------------------------------

if __name__ == "__main__":
    IN_DIM, HIDDEN, OUT_DIM, NHEAD, NUM_LAYERS = 4, 32, 2, 4, 3
    B, H, W = 2, 8, 8

    key = jax.random.PRNGKey(0)
    pkey, xkey = jax.random.split(key)
    params = init_params(pkey, IN_DIM, HIDDEN, OUT_DIM, NHEAD, NUM_LAYERS)
    x = jax.random.normal(xkey, (B, IN_DIM, H, W), jnp.float32)

    forward = jax.jit(functools.partial(improved_location_predictor, nhead=NHEAD))
    y = jax.block_until_ready(forward(params, x))

    assert y.shape == (B, OUT_DIM), y.shape
    assert bool(jnp.all(jnp.isfinite(y)))
    print("KERNEL_OK")
</pallas_src>

<mosaic_0001>
module attributes {stable_mosaic.version = 11 : i64} {
  func.func @_encoder_layer_kernel(%arg0: i32, %arg1: memref<1x65x32xf32, #tpu.memory_space<vmem>>, %arg2: memref<32x96xf32, #tpu.memory_space<vmem>>, %arg3: memref<1x96xf32, #tpu.memory_space<vmem>>, %arg4: memref<32x32xf32, #tpu.memory_space<vmem>>, %arg5: memref<1x32xf32, #tpu.memory_space<vmem>>, %arg6: memref<1x32xf32, #tpu.memory_space<vmem>>, %arg7: memref<1x32xf32, #tpu.memory_space<vmem>>, %arg8: memref<32x2048xf32, #tpu.memory_space<vmem>>, %arg9: memref<1x2048xf32, #tpu.memory_space<vmem>>, %arg10: memref<2048x32xf32, #tpu.memory_space<vmem>>, %arg11: memref<1x32xf32, #tpu.memory_space<vmem>>, %arg12: memref<1x32xf32, #tpu.memory_space<vmem>>, %arg13: memref<1x32xf32, #tpu.memory_space<vmem>>, %arg14: memref<1x65x32xf32, #tpu.memory_space<vmem>>) attributes {dimension_semantics = [#tpu.dimension_semantics<parallel>], iteration_bounds = array<i64: 2>, scalar_prefetch = 0 : i64, scratch_operands = 0 : i64, tpu.core_type = #tpu.core_type<tc>, window_params = [{transform_indices = @transform_0, window_bounds = array<i64: 1, 65, 32>}, {pipeline_mode = #tpu.pipeline_mode<synchronous>, transform_indices = @transform_1, window_bounds = array<i64: 32, 96>}, {pipeline_mode = #tpu.pipeline_mode<synchronous>, transform_indices = @transform_2, window_bounds = array<i64: 1, 96>}, {pipeline_mode = #tpu.pipeline_mode<synchronous>, transform_indices = @transform_3, window_bounds = array<i64: 32, 32>}, {pipeline_mode = #tpu.pipeline_mode<synchronous>, transform_indices = @transform_4, window_bounds = array<i64: 1, 32>}, {pipeline_mode = #tpu.pipeline_mode<synchronous>, transform_indices = @transform_5, window_bounds = array<i64: 1, 32>}, {pipeline_mode = #tpu.pipeline_mode<synchronous>, transform_indices = @transform_6, window_bounds = array<i64: 1, 32>}, {pipeline_mode = #tpu.pipeline_mode<synchronous>, transform_indices = @transform_7, window_bounds = array<i64: 32, 2048>}, {pipeline_mode = #tpu.pipeline_mode<synchronous>, transform_indices = @transform_8, window_bounds = array<i64: 1, 2048>}, {pipeline_mode = #tpu.pipeline_mode<synchronous>, transform_indices = @transform_9, window_bounds = array<i64: 2048, 32>}, {pipeline_mode = #tpu.pipeline_mode<synchronous>, transform_indices = @transform_10, window_bounds = array<i64: 1, 32>}, {pipeline_mode = #tpu.pipeline_mode<synchronous>, transform_indices = @transform_11, window_bounds = array<i64: 1, 32>}, {pipeline_mode = #tpu.pipeline_mode<synchronous>, transform_indices = @transform_12, window_bounds = array<i64: 1, 32>}, {transform_indices = @transform_13, window_bounds = array<i64: 1, 65, 32>}]} {
    %c0 = arith.constant 0 : index
    %c0_0 = arith.constant 0 : index
    %c0_1 = arith.constant 0 : index
    %0 = vector.load %arg1[%c0, %c0_0, %c0_1] : memref<1x65x32xf32, #tpu.memory_space<vmem>>, vector<1x65x32xf32>
    %1 = vector.shape_cast %0 : vector<1x65x32xf32> to vector<65x32xf32>
    %c0_2 = arith.constant 0 : index
    %c0_3 = arith.constant 0 : index
    %2 = vector.load %arg2[%c0_2, %c0_3] : memref<32x96xf32, #tpu.memory_space<vmem>>, vector<32x96xf32>
    %cst = arith.constant dense<0.000000e+00> : vector<65x96xf32>
    %3 = tpu.matmul %1, %2, %cst {dimension_numbers = #tpu.dot_dimension_numbers<[1], [0], [0], [1], [0, 0, 1, 1], [], []>} : vector<65x32xf32>, vector<32x96xf32>, vector<65x96xf32> -> vector<65x96xf32>
    %c0_4 = arith.constant 0 : index
    %c0_5 = arith.constant 0 : index
    %4 = vector.load %arg3[%c0_4, %c0_5] : memref<1x96xf32, #tpu.memory_space<vmem>>, vector<1x96xf32>
    %5 = vector.broadcast %4 : vector<1x96xf32> to vector<65x96xf32>
    %6 = arith.addf %3, %5 : vector<65x96xf32>
    %7 = vector.extract_strided_slice %6 {offsets = [0, 0], sizes = [65, 8], strides = [1, 1]} : vector<65x96xf32> to vector<65x8xf32>
    %cst_6 = arith.constant 0.353553385 : f32
    %8 = vector.broadcast %cst_6 : f32 to vector<65x8xf32>
    %9 = arith.mulf %7, %8 : vector<65x8xf32>
    %10 = vector.extract_strided_slice %6 {offsets = [0, 32], sizes = [65, 8], strides = [1, 1]} : vector<65x96xf32> to vector<65x8xf32>
    %11 = vector.extract_strided_slice %6 {offsets = [0, 64], sizes = [65, 8], strides = [1, 1]} : vector<65x96xf32> to vector<65x8xf32>
    %cst_7 = arith.constant dense<0.000000e+00> : vector<65x65xf32>
    %12 = tpu.matmul %9, %10, %cst_7 {dimension_numbers = #tpu.dot_dimension_numbers<[1], [1], [0], [0], [0, 0, 1, 0], [], []>} : vector<65x8xf32>, vector<65x8xf32>, vector<65x65xf32> -> vector<65x65xf32>
    %cst_8 = arith.constant dense<0xFF800000> : vector<65xf32>
    %13 = vector.multi_reduction <maximumf>, %12, %cst_8 [1] : vector<65x65xf32> to vector<65xf32>
    %14 = vector.shape_cast %13 : vector<65xf32> to vector<65x1xf32>
    %15 = vector.broadcast %14 : vector<65x1xf32> to vector<65x65xf32>
    %16 = arith.subf %12, %15 : vector<65x65xf32>
    %17 = math.exp %16 : vector<65x65xf32>
    %cst_9 = arith.constant dense<0.000000e+00> : vector<65xf32>
    %18 = vector.multi_reduction <add>, %17, %cst_9 [1] : vector<65x65xf32> to vector<65xf32>
    %19 = vector.shape_cast %18 : vector<65xf32> to vector<65x1xf32>
    %20 = vector.broadcast %19 : vector<65x1xf32> to vector<65x65xf32>
    %21 = arith.divf %17, %20 : vector<65x65xf32>
    %cst_10 = arith.constant dense<0.000000e+00> : vector<65x8xf32>
    %22 = tpu.matmul %21, %11, %cst_10 {dimension_numbers = #tpu.dot_dimension_numbers<[1], [0], [0], [1], [0, 0, 1, 1], [], []>} : vector<65x65xf32>, vector<65x8xf32>, vector<65x8xf32> -> vector<65x8xf32>
    %23 = vector.extract_strided_slice %6 {offsets = [0, 8], sizes = [65, 8], strides = [1, 1]} : vector<65x96xf32> to vector<65x8xf32>
    %cst_11 = arith.constant 0.353553385 : f32
    %24 = vector.broadcast %cst_11 : f32 to vector<65x8xf32>
    %25 = arith.mulf %23, %24 : vector<65x8xf32>
    %26 = vector.extract_strided_slice %6 {offsets = [0, 40], sizes = [65, 8], strides = [1, 1]} : vector<65x96xf32> to vector<65x8xf32>
    %27 = vector.extract_strided_slice %6 {offsets = [0, 72], sizes = [65, 8], strides = [1, 1]} : vector<65x96xf32> to vector<65x8xf32>
    %cst_12 = arith.constant dense<0.000000e+00> : vector<65x65xf32>
    %28 = tpu.matmul %25, %26, %cst_12 {dimension_numbers = #tpu.dot_dimension_numbers<[1], [1], [0], [0], [0, 0, 1, 0], [], []>} : vector<65x8xf32>, vector<65x8xf32>, vector<65x65xf32> -> vector<65x65xf32>
    %cst_13 = arith.constant dense<0xFF800000> : vector<65xf32>
    %29 = vector.multi_reduction <maximumf>, %28, %cst_13 [1] : vector<65x65xf32> to vector<65xf32>
    %30 = vector.shape_cast %29 : vector<65xf32> to vector<65x1xf32>
    %31 = vector.broadcast %30 : vector<65x1xf32> to vector<65x65xf32>
    %32 = arith.subf %28, %31 : vector<65x65xf32>
    %33 = math.exp %32 : vector<65x65xf32>
    %cst_14 = arith.constant dense<0.000000e+00> : vector<65xf32>
    %34 = vector.multi_reduction <add>, %33, %cst_14 [1] : vector<65x65xf32> to vector<65xf32>
    %35 = vector.shape_cast %34 : vector<65xf32> to vector<65x1xf32>
    %36 = vector.broadcast %35 : vector<65x1xf32> to vector<65x65xf32>
    %37 = arith.divf %33, %36 : vector<65x65xf32>
    %cst_15 = arith.constant dense<0.000000e+00> : vector<65x8xf32>
    %38 = tpu.matmul %37, %27, %cst_15 {dimension_numbers = #tpu.dot_dimension_numbers<[1], [0], [0], [1], [0, 0, 1, 1], [], []>} : vector<65x65xf32>, vector<65x8xf32>, vector<65x8xf32> -> vector<65x8xf32>
    %39 = vector.extract_strided_slice %6 {offsets = [0, 16], sizes = [65, 8], strides = [1, 1]} : vector<65x96xf32> to vector<65x8xf32>
    %cst_16 = arith.constant 0.353553385 : f32
    %40 = vector.broadcast %cst_16 : f32 to vector<65x8xf32>
    %41 = arith.mulf %39, %40 : vector<65x8xf32>
    %42 = vector.extract_strided_slice %6 {offsets = [0, 48], sizes = [65, 8], strides = [1, 1]} : vector<65x96xf32> to vector<65x8xf32>
    %43 = vector.extract_strided_slice %6 {offsets = [0, 80], sizes = [65, 8], strides = [1, 1]} : vector<65x96xf32> to vector<65x8xf32>
    %cst_17 = arith.constant dense<0.000000e+00> : vector<65x65xf32>
    %44 = tpu.matmul %41, %42, %cst_17 {dimension_numbers = #tpu.dot_dimension_numbers<[1], [1], [0], [0], [0, 0, 1, 0], [], []>} : vector<65x8xf32>, vector<65x8xf32>, vector<65x65xf32> -> vector<65x65xf32>
    %cst_18 = arith.constant dense<0xFF800000> : vector<65xf32>
    %45 = vector.multi_reduction <maximumf>, %44, %cst_18 [1] : vector<65x65xf32> to vector<65xf32>
    %46 = vector.shape_cast %45 : vector<65xf32> to vector<65x1xf32>
    %47 = vector.broadcast %46 : vector<65x1xf32> to vector<65x65xf32>
    %48 = arith.subf %44, %47 : vector<65x65xf32>
    %49 = math.exp %48 : vector<65x65xf32>
    %cst_19 = arith.constant dense<0.000000e+00> : vector<65xf32>
    %50 = vector.multi_reduction <add>, %49, %cst_19 [1] : vector<65x65xf32> to vector<65xf32>
    %51 = vector.shape_cast %50 : vector<65xf32> to vector<65x1xf32>
    %52 = vector.broadcast %51 : vector<65x1xf32> to vector<65x65xf32>
    %53 = arith.divf %49, %52 : vector<65x65xf32>
    %cst_20 = arith.constant dense<0.000000e+00> : vector<65x8xf32>
    %54 = tpu.matmul %53, %43, %cst_20 {dimension_numbers = #tpu.dot_dimension_numbers<[1], [0], [0], [1], [0, 0, 1, 1], [], []>} : vector<65x65xf32>, vector<65x8xf32>, vector<65x8xf32> -> vector<65x8xf32>
    %55 = vector.extract_strided_slice %6 {offsets = [0, 24], sizes = [65, 8], strides = [1, 1]} : vector<65x96xf32> to vector<65x8xf32>
    %cst_21 = arith.constant 0.353553385 : f32
    %56 = vector.broadcast %cst_21 : f32 to vector<65x8xf32>
    %57 = arith.mulf %55, %56 : vector<65x8xf32>
    %58 = vector.extract_strided_slice %6 {offsets = [0, 56], sizes = [65, 8], strides = [1, 1]} : vector<65x96xf32> to vector<65x8xf32>
    %59 = vector.extract_strided_slice %6 {offsets = [0, 88], sizes = [65, 8], strides = [1, 1]} : vector<65x96xf32> to vector<65x8xf32>
    %cst_22 = arith.constant dense<0.000000e+00> : vector<65x65xf32>
    %60 = tpu.matmul %57, %58, %cst_22 {dimension_numbers = #tpu.dot_dimension_numbers<[1], [1], [0], [0], [0, 0, 1, 0], [], []>} : vector<65x8xf32>, vector<65x8xf32>, vector<65x65xf32> -> vector<65x65xf32>
    %cst_23 = arith.constant dense<0xFF800000> : vector<65xf32>
    %61 = vector.multi_reduction <maximumf>, %60, %cst_23 [1] : vector<65x65xf32> to vector<65xf32>
    %62 = vector.shape_cast %61 : vector<65xf32> to vector<65x1xf32>
    %63 = vector.broadcast %62 : vector<65x1xf32> to vector<65x65xf32>
    %64 = arith.subf %60, %63 : vector<65x65xf32>
    %65 = math.exp %64 : vector<65x65xf32>
    %cst_24 = arith.constant dense<0.000000e+00> : vector<65xf32>
    %66 = vector.multi_reduction <add>, %65, %cst_24 [1] : vector<65x65xf32> to vector<65xf32>
    %67 = vector.shape_cast %66 : vector<65xf32> to vector<65x1xf32>
    %68 = vector.broadcast %67 : vector<65x1xf32> to vector<65x65xf32>
    %69 = arith.divf %65, %68 : vector<65x65xf32>
    %cst_25 = arith.constant dense<0.000000e+00> : vector<65x8xf32>
    %70 = tpu.matmul %69, %59, %cst_25 {dimension_numbers = #tpu.dot_dimension_numbers<[1], [0], [0], [1], [0, 0, 1, 1], [], []>} : vector<65x65xf32>, vector<65x8xf32>, vector<65x8xf32> -> vector<65x8xf32>
    %71 = tpu.concatenate %22, %38, %54, %70 in 1 : vector<65x8xf32>, vector<65x8xf32>, vector<65x8xf32>, vector<65x8xf32> -> vector<65x32xf32>
    %c0_26 = arith.constant 0 : index
    %c0_27 = arith.constant 0 : index
    %72 = vector.load %arg4[%c0_26, %c0_27] : memref<32x32xf32, #tpu.memory_space<vmem>>, vector<32x32xf32>
    %cst_28 = arith.constant dense<0.000000e+00> : vector<65x32xf32>
    %73 = tpu.matmul %71, %72, %cst_28 {dimension_numbers = #tpu.dot_dimension_numbers<[1], [0], [0], [1], [0, 0, 1, 1], [], []>} : vector<65x32xf32>, vector<32x32xf32>, vector<65x32xf32> -> vector<65x32xf32>
    %c0_29 = arith.constant 0 : index
    %c0_30 = arith.constant 0 : index
    %74 = vector.load %arg5[%c0_29, %c0_30] : memref<1x32xf32, #tpu.memory_space<vmem>>, vector<1x32xf32>
    %75 = vector.broadcast %74 : vector<1x32xf32> to vector<65x32xf32>
    %76 = arith.addf %73, %75 : vector<65x32xf32>
    %77 = arith.addf %1, %76 : vector<65x32xf32>
    %c0_31 = arith.constant 0 : index
    %c0_32 = arith.constant 0 : index
    %78 = vector.load %arg6[%c0_31, %c0_32] : memref<1x32xf32, #tpu.memory_space<vmem>>, vector<1x32xf32>
    %c0_33 = arith.constant 0 : index
    %c0_34 = arith.constant 0 : index
    %79 = vector.load %arg7[%c0_33, %c0_34] : memref<1x32xf32, #tpu.memory_space<vmem>>, vector<1x32xf32>
    %cst_35 = arith.constant dense<0.000000e+00> : vector<65xf32>
    %80 = vector.multi_reduction <add>, %77, %cst_35 [1] : vector<65x32xf32> to vector<65xf32>
    %81 = vector.shape_cast %80 : vector<65xf32> to vector<65x1xf32>
    %cst_36 = arith.constant 3.200000e+01 : f32
    %82 = vector.broadcast %cst_36 : f32 to vector<65x1xf32>
    %83 = arith.divf %81, %82 : vector<65x1xf32>
    %84 = vector.broadcast %83 : vector<65x1xf32> to vector<65x32xf32>
    %85 = arith.subf %77, %84 : vector<65x32xf32>
    %86 = arith.mulf %85, %85 : vector<65x32xf32>
    %cst_37 = arith.constant dense<0.000000e+00> : vector<65xf32>
    %87 = vector.multi_reduction <add>, %86, %cst_37 [1] : vector<65x32xf32> to vector<65xf32>
    %88 = vector.shape_cast %87 : vector<65xf32> to vector<65x1xf32>
    %cst_38 = arith.constant 3.200000e+01 : f32
    %89 = vector.broadcast %cst_38 : f32 to vector<65x1xf32>
    %90 = arith.divf %88, %89 : vector<65x1xf32>
    %cst_39 = arith.constant 9.99999974E-6 : f32
    %91 = vector.broadcast %cst_39 : f32 to vector<65x1xf32>
    %92 = arith.addf %90, %91 : vector<65x1xf32>
    %93 = math.rsqrt %92 : vector<65x1xf32>
    %94 = vector.broadcast %93 : vector<65x1xf32> to vector<65x32xf32>
    %95 = arith.mulf %85, %94 : vector<65x32xf32>
    %96 = vector.broadcast %78 : vector<1x32xf32> to vector<65x32xf32>
    %97 = arith.mulf %95, %96 : vector<65x32xf32>
    %98 = vector.broadcast %79 : vector<1x32xf32> to vector<65x32xf32>
    %99 = arith.addf %97, %98 : vector<65x32xf32>
    %c0_40 = arith.constant 0 : index
    %c0_41 = arith.constant 0 : index
    %100 = vector.load %arg8[%c0_40, %c0_41] : memref<32x2048xf32, #tpu.memory_space<vmem>>, vector<32x2048xf32>
    %cst_42 = arith.constant dense<0.000000e+00> : vector<65x2048xf32>
    %101 = tpu.matmul %99, %100, %cst_42 {dimension_numbers = #tpu.dot_dimension_numbers<[1], [0], [0], [1], [0, 0, 1, 1], [], []>} : vector<65x32xf32>, vector<32x2048xf32>, vector<65x2048xf32> -> vector<65x2048xf32>
    %c0_43 = arith.constant 0 : index
    %c0_44 = arith.constant 0 : index
    %102 = vector.load %arg9[%c0_43, %c0_44] : memref<1x2048xf32, #tpu.memory_space<vmem>>, vector<1x2048xf32>
    %103 = vector.broadcast %102 : vector<1x2048xf32> to vector<65x2048xf32>
    %104 = arith.addf %101, %103 : vector<65x2048xf32>
    %cst_45 = arith.constant 0.000000e+00 : f32
    %105 = vector.broadcast %cst_45 : f32 to vector<65x2048xf32>
    %106 = arith.maximumf %104, %105 : vector<65x2048xf32>
    %c0_46 = arith.constant 0 : index
    %c0_47 = arith.constant 0 : index
    %107 = vector.load %arg10[%c0_46, %c0_47] : memref<2048x32xf32, #tpu.memory_space<vmem>>, vector<2048x32xf32>
    %cst_48 = arith.constant dense<0.000000e+00> : vector<65x32xf32>
    %108 = tpu.matmul %106, %107, %cst_48 {dimension_numbers = #tpu.dot_dimension_numbers<[1], [0], [0], [1], [0, 0, 1, 1], [], []>} : vector<65x2048xf32>, vector<2048x32xf32>, vector<65x32xf32> -> vector<65x32xf32>
    %c0_49 = arith.constant 0 : index
    %c0_50 = arith.constant 0 : index
    %109 = vector.load %arg11[%c0_49, %c0_50] : memref<1x32xf32, #tpu.memory_space<vmem>>, vector<1x32xf32>
    %110 = vector.broadcast %109 : vector<1x32xf32> to vector<65x32xf32>
    %111 = arith.addf %108, %110 : vector<65x32xf32>
    %112 = arith.addf %99, %111 : vector<65x32xf32>
    %c0_51 = arith.constant 0 : index
    %c0_52 = arith.constant 0 : index
    %113 = vector.load %arg12[%c0_51, %c0_52] : memref<1x32xf32, #tpu.memory_space<vmem>>, vector<1x32xf32>
    %c0_53 = arith.constant 0 : index
    %c0_54 = arith.constant 0 : index
    %114 = vector.load %arg13[%c0_53, %c0_54] : memref<1x32xf32, #tpu.memory_space<vmem>>, vector<1x32xf32>
    %cst_55 = arith.constant dense<0.000000e+00> : vector<65xf32>
    %115 = vector.multi_reduction <add>, %112, %cst_55 [1] : vector<65x32xf32> to vector<65xf32>
    %116 = vector.shape_cast %115 : vector<65xf32> to vector<65x1xf32>
    %cst_56 = arith.constant 3.200000e+01 : f32
    %117 = vector.broadcast %cst_56 : f32 to vector<65x1xf32>
    %118 = arith.divf %116, %117 : vector<65x1xf32>
    %119 = vector.broadcast %118 : vector<65x1xf32> to vector<65x32xf32>
    %120 = arith.subf %112, %119 : vector<65x32xf32>
    %121 = arith.mulf %120, %120 : vector<65x32xf32>
    %cst_57 = arith.constant dense<0.000000e+00> : vector<65xf32>
    %122 = vector.multi_reduction <add>, %121, %cst_57 [1] : vector<65x32xf32> to vector<65xf32>
    %123 = vector.shape_cast %122 : vector<65xf32> to vector<65x1xf32>
    %cst_58 = arith.constant 3.200000e+01 : f32
    %124 = vector.broadcast %cst_58 : f32 to vector<65x1xf32>
    %125 = arith.divf %123, %124 : vector<65x1xf32>
    %cst_59 = arith.constant 9.99999974E-6 : f32
    %126 = vector.broadcast %cst_59 : f32 to vector<65x1xf32>
    %127 = arith.addf %125, %126 : vector<65x1xf32>
    %128 = math.rsqrt %127 : vector<65x1xf32>
    %129 = vector.broadcast %128 : vector<65x1xf32> to vector<65x32xf32>
    %130 = arith.mulf %120, %129 : vector<65x32xf32>
    %131 = vector.broadcast %113 : vector<1x32xf32> to vector<65x32xf32>
    %132 = arith.mulf %130, %131 : vector<65x32xf32>
    %133 = vector.broadcast %114 : vector<1x32xf32> to vector<65x32xf32>
    %134 = arith.addf %132, %133 : vector<65x32xf32>
    %c0_60 = arith.constant 0 : index
    %c0_61 = arith.constant 0 : index
    %c0_62 = arith.constant 0 : index
    %135 = vector.load %arg14[%c0_60, %c0_61, %c0_62] : memref<1x65x32xf32, #tpu.memory_space<vmem>>, vector<1x65x32xf32>
    %136 = vector.shape_cast %135 : vector<1x65x32xf32> to vector<65x32xf32>
    %137 = vector.shape_cast %134 : vector<65x32xf32> to vector<1x65x32xf32>
    tpu.vector_store %arg14[%c0_60, %c0_61, %c0_62], %137 {strides = array<i32>} : memref<1x65x32xf32, #tpu.memory_space<vmem>>, vector<1x65x32xf32>,
    return
  }
  func.func @transform_0(%arg0: i32) -> (i32, i32, i32) {
    %c0_i32 = arith.constant 0 : i32
    %c0_i32_0 = arith.constant 0 : i32
    %c0_i32_1 = arith.constant 0 : i32
    return %arg0, %c0_i32, %c0_i32_0 : i32, i32, i32
  }
  func.func @transform_1(%arg0: i32) -> (i32, i32) {
    %c0_i32 = arith.constant 0 : i32
    %c0_i32_0 = arith.constant 0 : i32
    %c0_i32_1 = arith.constant 0 : i32
    return %c0_i32, %c0_i32_0 : i32, i32
  }
  func.func @transform_2(%arg0: i32) -> (i32, i32) {
    %c0_i32 = arith.constant 0 : i32
    %c0_i32_0 = arith.constant 0 : i32
    %c0_i32_1 = arith.constant 0 : i32
    return %c0_i32, %c0_i32_0 : i32, i32
  }
  func.func @transform_3(%arg0: i32) -> (i32, i32) {
    %c0_i32 = arith.constant 0 : i32
    %c0_i32_0 = arith.constant 0 : i32
    %c0_i32_1 = arith.constant 0 : i32
    return %c0_i32, %c0_i32_0 : i32, i32
  }
  func.func @transform_4(%arg0: i32) -> (i32, i32) {
    %c0_i32 = arith.constant 0 : i32
    %c0_i32_0 = arith.constant 0 : i32
    %c0_i32_1 = arith.constant 0 : i32
    return %c0_i32, %c0_i32_0 : i32, i32
  }
  func.func @transform_5(%arg0: i32) -> (i32, i32) {
    %c0_i32 = arith.constant 0 : i32
    %c0_i32_0 = arith.constant 0 : i32
    %c0_i32_1 = arith.constant 0 : i32
    return %c0_i32, %c0_i32_0 : i32, i32
  }
  func.func @transform_6(%arg0: i32) -> (i32, i32) {
    %c0_i32 = arith.constant 0 : i32
    %c0_i32_0 = arith.constant 0 : i32
    %c0_i32_1 = arith.constant 0 : i32
    return %c0_i32, %c0_i32_0 : i32, i32
  }
  func.func @transform_7(%arg0: i32) -> (i32, i32) {
    %c0_i32 = arith.constant 0 : i32
    %c0_i32_0 = arith.constant 0 : i32
    %c0_i32_1 = arith.constant 0 : i32
    return %c0_i32, %c0_i32_0 : i32, i32
  }
  func.func @transform_8(%arg0: i32) -> (i32, i32) {
    %c0_i32 = arith.constant 0 : i32
    %c0_i32_0 = arith.constant 0 : i32
    %c0_i32_1 = arith.constant 0 : i32
    return %c0_i32, %c0_i32_0 : i32, i32
  }
  func.func @transform_9(%arg0: i32) -> (i32, i32) {
    %c0_i32 = arith.constant 0 : i32
    %c0_i32_0 = arith.constant 0 : i32
    %c0_i32_1 = arith.constant 0 : i32
    return %c0_i32, %c0_i32_0 : i32, i32
  }
  func.func @transform_10(%arg0: i32) -> (i32, i32) {
    %c0_i32 = arith.constant 0 : i32
    %c0_i32_0 = arith.constant 0 : i32
    %c0_i32_1 = arith.constant 0 : i32
    return %c0_i32, %c0_i32_0 : i32, i32
  }
  func.func @transform_11(%arg0: i32) -> (i32, i32) {
    %c0_i32 = arith.constant 0 : i32
    %c0_i32_0 = arith.constant 0 : i32
    %c0_i32_1 = arith.constant 0 : i32
    return %c0_i32, %c0_i32_0 : i32, i32
  }
  func.func @transform_12(%arg0: i32) -> (i32, i32) {
    %c0_i32 = arith.constant 0 : i32
    %c0_i32_0 = arith.constant 0 : i32
    %c0_i32_1 = arith.constant 0 : i32
    return %c0_i32, %c0_i32_0 : i32, i32
  }
  func.func @transform_13(%arg0: i32) -> (i32, i32, i32) {
    %c0_i32 = arith.constant 0 : i32
    %c0_i32_0 = arith.constant 0 : i32
    %c0_i32_1 = arith.constant 0 : i32
    return %arg0, %c0_i32, %c0_i32_0 : i32, i32, i32
  }
}

module attributes {stable_mosaic.version = 11 : i64} {
  func.func @_stem_kernel(%arg0: i32, %arg1: memref<1x64x4xf32, #tpu.memory_space<vmem>>, %arg2: memref<4x32xf32, #tpu.memory_space<vmem>>, %arg3: memref<1x32xf32, #tpu.memory_space<vmem>>, %arg4: memref<64x32xf32, #tpu.memory_space<vmem>>, %arg5: memref<1x32xf32, #tpu.memory_space<vmem>>, %arg6: memref<1x65x32xf32, #tpu.memory_space<vmem>>) attributes {dimension_semantics = [#tpu.dimension_semantics<parallel>], iteration_bounds = array<i64: 2>, scalar_prefetch = 0 : i64, scratch_operands = 0 : i64, tpu.core_type = #tpu.core_type<tc>, window_params = [{transform_indices = @transform_0, window_bounds = array<i64: 1, 64, 4>}, {pipeline_mode = #tpu.pipeline_mode<synchronous>, transform_indices = @transform_1, window_bounds = array<i64: 4, 32>}, {pipeline_mode = #tpu.pipeline_mode<synchronous>, transform_indices = @transform_2, window_bounds = array<i64: 1, 32>}, {pipeline_mode = #tpu.pipeline_mode<synchronous>, transform_indices = @transform_3, window_bounds = array<i64: 64, 32>}, {pipeline_mode = #tpu.pipeline_mode<synchronous>, transform_indices = @transform_4, window_bounds = array<i64: 1, 32>}, {transform_indices = @transform_5, window_bounds = array<i64: 1, 65, 32>}]} {
    %c0 = arith.constant 0 : index
    %c0_0 = arith.constant 0 : index
    %c0_1 = arith.constant 0 : index
    %0 = vector.load %arg1[%c0, %c0_0, %c0_1] : memref<1x64x4xf32, #tpu.memory_space<vmem>>, vector<1x64x4xf32>
    %1 = vector.shape_cast %0 : vector<1x64x4xf32> to vector<64x4xf32>
    %c0_2 = arith.constant 0 : index
    %c0_3 = arith.constant 0 : index
    %2 = vector.load %arg2[%c0_2, %c0_3] : memref<4x32xf32, #tpu.memory_space<vmem>>, vector<4x32xf32>
    %cst = arith.constant dense<0.000000e+00> : vector<64x32xf32>
    %3 = tpu.matmul %1, %2, %cst {dimension_numbers = #tpu.dot_dimension_numbers<[1], [0], [0], [1], [0, 0, 1, 1], [], []>} : vector<64x4xf32>, vector<4x32xf32>, vector<64x32xf32> -> vector<64x32xf32>
    %c0_4 = arith.constant 0 : index
    %c0_5 = arith.constant 0 : index
    %4 = vector.load %arg3[%c0_4, %c0_5] : memref<1x32xf32, #tpu.memory_space<vmem>>, vector<1x32xf32>
    %5 = vector.broadcast %4 : vector<1x32xf32> to vector<64x32xf32>
    %6 = arith.addf %3, %5 : vector<64x32xf32>
    %c0_6 = arith.constant 0 : index
    %c0_7 = arith.constant 0 : index
    %7 = vector.load %arg4[%c0_6, %c0_7] : memref<64x32xf32, #tpu.memory_space<vmem>>, vector<64x32xf32>
    %8 = arith.addf %6, %7 : vector<64x32xf32>
    %c0_8 = arith.constant 0 : index
    %c0_9 = arith.constant 0 : index
    %9 = vector.load %arg5[%c0_8, %c0_9] : memref<1x32xf32, #tpu.memory_space<vmem>>, vector<1x32xf32>
    %10 = tpu.concatenate %9, %8 in 0 : vector<1x32xf32>, vector<64x32xf32> -> vector<65x32xf32>
    %c0_10 = arith.constant 0 : index
    %c0_11 = arith.constant 0 : index
    %c0_12 = arith.constant 0 : index
    %11 = vector.load %arg6[%c0_10, %c0_11, %c0_12] : memref<1x65x32xf32, #tpu.memory_space<vmem>>, vector<1x65x32xf32>
    %12 = vector.shape_cast %11 : vector<1x65x32xf32> to vector<65x32xf32>
    %13 = vector.shape_cast %10 : vector<65x32xf32> to vector<1x65x32xf32>
    tpu.vector_store %arg6[%c0_10, %c0_11, %c0_12], %13 {strides = array<i32>} : memref<1x65x32xf32, #tpu.memory_space<vmem>>, vector<1x65x32xf32>,
    return
  }
  func.func @transform_0(%arg0: i32) -> (i32, i32, i32) {
    %c0_i32 = arith.constant 0 : i32
    %c0_i32_0 = arith.constant 0 : i32
    %c0_i32_1 = arith.constant 0 : i32
    return %arg0, %c0_i32, %c0_i32_0 : i32, i32, i32
  }
  func.func @transform_1(%arg0: i32) -> (i32, i32) {
    %c0_i32 = arith.constant 0 : i32
    %c0_i32_0 = arith.constant 0 : i32
    %c0_i32_1 = arith.constant 0 : i32
    return %c0_i32, %c0_i32_0 : i32, i32
  }
  func.func @transform_2(%arg0: i32) -> (i32, i32) {
    %c0_i32 = arith.constant 0 : i32
    %c0_i32_0 = arith.constant 0 : i32
    %c0_i32_1 = arith.constant 0 : i32
    return %c0_i32, %c0_i32_0 : i32, i32
  }
  func.func @transform_3(%arg0: i32) -> (i32, i32) {
    %c0_i32 = arith.constant 0 : i32
    %c0_i32_0 = arith.constant 0 : i32
    %c0_i32_1 = arith.constant 0 : i32
    return %c0_i32, %c0_i32_0 : i32, i32
  }
  func.func @transform_4(%arg0: i32) -> (i32, i32) {
    %c0_i32 = arith.constant 0 : i32
    %c0_i32_0 = arith.constant 0 : i32
    %c0_i32_1 = arith.constant 0 : i32
    return %c0_i32, %c0_i32_0 : i32, i32
  }
  func.func @transform_5(%arg0: i32) -> (i32, i32, i32) {
    %c0_i32 = arith.constant 0 : i32
    %c0_i32_0 = arith.constant 0 : i32
    %c0_i32_1 = arith.constant 0 : i32
    return %arg0, %c0_i32, %c0_i32_0 : i32, i32, i32
  }
}

module attributes {stable_mosaic.version = 11 : i64} {
  func.func @_head_kernel(%arg0: memref<2x32xf32, #tpu.memory_space<vmem>>, %arg1: memref<32x128xf32, #tpu.memory_space<vmem>>, %arg2: memref<1x128xf32, #tpu.memory_space<vmem>>, %arg3: memref<128x128xf32, #tpu.memory_space<vmem>>, %arg4: memref<1x128xf32, #tpu.memory_space<vmem>>, %arg5: memref<128x32xf32, #tpu.memory_space<vmem>>, %arg6: memref<1x32xf32, #tpu.memory_space<vmem>>, %arg7: memref<32x2xf32, #tpu.memory_space<vmem>>, %arg8: memref<1x2xf32, #tpu.memory_space<vmem>>, %arg9: memref<2x2xf32, #tpu.memory_space<vmem>>) attributes {dimension_semantics = [], scalar_prefetch = 0 : i64, scratch_operands = 0 : i64, tpu.core_type = #tpu.core_type<tc>} {
    %c0 = arith.constant 0 : index
    %c0_0 = arith.constant 0 : index
    %0 = vector.load %arg0[%c0, %c0_0] : memref<2x32xf32, #tpu.memory_space<vmem>>, vector<2x32xf32>
    %c0_1 = arith.constant 0 : index
    %c0_2 = arith.constant 0 : index
    %1 = vector.load %arg1[%c0_1, %c0_2] : memref<32x128xf32, #tpu.memory_space<vmem>>, vector<32x128xf32>
    %cst = arith.constant dense<0.000000e+00> : vector<2x128xf32>
    %2 = tpu.matmul %0, %1, %cst {dimension_numbers = #tpu.dot_dimension_numbers<[1], [0], [0], [1], [0, 0, 1, 1], [], []>} : vector<2x32xf32>, vector<32x128xf32>, vector<2x128xf32> -> vector<2x128xf32>
    %c0_3 = arith.constant 0 : index
    %c0_4 = arith.constant 0 : index
    %3 = vector.load %arg2[%c0_3, %c0_4] : memref<1x128xf32, #tpu.memory_space<vmem>>, vector<1x128xf32>
    %4 = vector.broadcast %3 : vector<1x128xf32> to vector<2x128xf32>
    %5 = arith.addf %2, %4 : vector<2x128xf32>
    %cst_5 = arith.constant 0.000000e+00 : f32
    %6 = vector.broadcast %cst_5 : f32 to vector<2x128xf32>
    %7 = arith.maximumf %5, %6 : vector<2x128xf32>
    %c0_6 = arith.constant 0 : index
    %c0_7 = arith.constant 0 : index
    %8 = vector.load %arg3[%c0_6, %c0_7] : memref<128x128xf32, #tpu.memory_space<vmem>>, vector<128x128xf32>
    %cst_8 = arith.constant dense<0.000000e+00> : vector<2x128xf32>
    %9 = tpu.matmul %7, %8, %cst_8 {dimension_numbers = #tpu.dot_dimension_numbers<[1], [0], [0], [1], [0, 0, 1, 1], [], []>} : vector<2x128xf32>, vector<128x128xf32>, vector<2x128xf32> -> vector<2x128xf32>
    %c0_9 = arith.constant 0 : index
    %c0_10 = arith.constant 0 : index
    %10 = vector.load %arg4[%c0_9, %c0_10] : memref<1x128xf32, #tpu.memory_space<vmem>>, vector<1x128xf32>
    %11 = vector.broadcast %10 : vector<1x128xf32> to vector<2x128xf32>
    %12 = arith.addf %9, %11 : vector<2x128xf32>
    %cst_11 = arith.constant 0.000000e+00 : f32
    %13 = vector.broadcast %cst_11 : f32 to vector<2x128xf32>
    %14 = arith.maximumf %12, %13 : vector<2x128xf32>
    %c0_12 = arith.constant 0 : index
    %c0_13 = arith.constant 0 : index
    %15 = vector.load %arg5[%c0_12, %c0_13] : memref<128x32xf32, #tpu.memory_space<vmem>>, vector<128x32xf32>
    %cst_14 = arith.constant dense<0.000000e+00> : vector<2x32xf32>
    %16 = tpu.matmul %14, %15, %cst_14 {dimension_numbers = #tpu.dot_dimension_numbers<[1], [0], [0], [1], [0, 0, 1, 1], [], []>} : vector<2x128xf32>, vector<128x32xf32>, vector<2x32xf32> -> vector<2x32xf32>
    %c0_15 = arith.constant 0 : index
    %c0_16 = arith.constant 0 : index
    %17 = vector.load %arg6[%c0_15, %c0_16] : memref<1x32xf32, #tpu.memory_space<vmem>>, vector<1x32xf32>
    %18 = vector.broadcast %17 : vector<1x32xf32> to vector<2x32xf32>
    %19 = arith.addf %16, %18 : vector<2x32xf32>
    %c0_17 = arith.constant 0 : index
    %c0_18 = arith.constant 0 : index
    %20 = vector.load %arg7[%c0_17, %c0_18] : memref<32x2xf32, #tpu.memory_space<vmem>>, vector<32x2xf32>
    %cst_19 = arith.constant dense<0.000000e+00> : vector<2x2xf32>
    %21 = tpu.matmul %19, %20, %cst_19 {dimension_numbers = #tpu.dot_dimension_numbers<[1], [0], [0], [1], [0, 0, 1, 1], [], []>} : vector<2x32xf32>, vector<32x2xf32>, vector<2x2xf32> -> vector<2x2xf32>
    %c0_20 = arith.constant 0 : index
    %c0_21 = arith.constant 0 : index
    %22 = vector.load %arg8[%c0_20, %c0_21] : memref<1x2xf32, #tpu.memory_space<vmem>>, vector<1x2xf32>
    %23 = vector.broadcast %22 : vector<1x2xf32> to vector<2x2xf32>
    %24 = arith.addf %21, %23 : vector<2x2xf32>
    %c0_22 = arith.constant 0 : index
    %c0_23 = arith.constant 0 : index
    %25 = vector.load %arg9[%c0_22, %c0_23] : memref<2x2xf32, #tpu.memory_space<vmem>>, vector<2x2xf32>
    tpu.vector_store %arg9[%c0_22, %c0_23], %24 {strides = array<i32>} : memref<2x2xf32, #tpu.memory_space<vmem>>, vector<2x2xf32>,
    return
  }
}

</mosaic_0001>

<llo_original>
// kernel: improved_location_predictor.5
$region0: #{improved_location_predictor.5}
  #allocation0 [shape = 'u32[]', space=smem, size = 0x4, offset = 0x4, fixed_abs, tag = 'smem constant byte address 0x4 - core index']
  #allocation1 [shape = 'u32[144,128]{1,0:T(1,128)}', space=vmem, size = 0x12000, scoped, tag = 'internal scratch']
  %s0 = inlined_call_operand.vmem [shape: f32[2,64,4], index: 0, kind: input, shape index: {}]
  %s1 = inlined_call_operand.vmem [shape: f32[4,32], index: 1, kind: input, shape index: {}]
  %s2 = inlined_call_operand.vmem [shape: f32[1,32], index: 2, kind: input, shape index: {}]
  %s3 = inlined_call_operand.vmem [shape: f32[64,32], index: 3, kind: input, shape index: {}]
  %s4 = inlined_call_operand.vmem [shape: f32[1,32], index: 4, kind: input, shape index: {}]
  %s5 = inlined_call_operand.vmem [shape: f32[2,65,32], index: 5, kind: output, shape index: {}]
  %s6 = sld [smem:[#allocation0]]
  $region53: #{improved_location_predictor.5} parent=0
    _
  %s8 = ssub.s32 1, %s6
  %s9 = scalar_select 0, %s8, %s6
  loop: start=0, step=1, limit=4
  $region2: #{improved_location_predictor.5} parent=0 // loop_pre_header
    _
  $region3: #{improved_location_predictor.5} parent=0 // loop_header
    %s11 = sphi 0, %s15
    %p12 = scmp.ge.s32.totalorder %s11, 4
    %s21 = sphi 0, %s23
    %s24 = sphi 0, %s21
    %s25 = sphi 0, %s24
    %s41 = sphi 0, %s25
    %s45 = sphi 0, %s45
    %s47 = sphi 0, %s45
    %s48 = sphi 0, %s47
    %s62 = sphi 0, %s48
    %s66 = sphi 0, %s66
    %s68 = sphi 0, %s66
    %s69 = sphi 0, %s68
    %s83 = sphi 0, %s69
    %s87 = sphi 0, %s87
    %s89 = sphi 0, %s87
    %s90 = sphi 0, %s89
    %s104 = sphi 0, %s90
    %s108 = sphi 0, %s108
    %s110 = sphi 0, %s108
    %s111 = sphi 0, %s110
    %s125 = sphi 0, %s111
    %s131 = sphi 0, %s133
    %s134 = sphi 0, %s131
    %s135 = sphi 0, %s134
    %s151 = sphi 0, %s135
  $region4: #{improved_location_predictor.5} parent=0 // loop_header_branch
    %14 = sbr.rel (%p12) target = $region8
  $region5: #{improved_location_predictor.5} parent=0 // loop_body
    %s16 = ssub.s32 %s11, 1
    %s17 = ssub.s32 %s11, 2
    %s18 = sadd.s32 %s11, 1
    %s19 = ssub.s32 %s11, %s18
    %p20 = scmp.eq.s32.totalorder %s19, 0
    %s22 = sadd.s32 %s21, 1
    %s23 = scalar_select %p20, %s21, %s22
    %p26 = pneg %p20
    %p27 = scmp.eq.s32.totalorder %s11, 1
    %p28 = por %p26, %p27
    %p29 = scmp.ne.s32.totalorder %s21, %s24
    %p30 = scmp.eq.s32.totalorder %s11, 0
    %p31 = por %p29, %p30
    %p32 = scmp.ne.s32.totalorder %s21, %s24
    %p33 = scmp.eq.s32.totalorder %s16, 1
    %p34 = por %p32, %p33
    %p35 = scmp.ne.s32.totalorder %s24, %s25
    %p36 = scmp.eq.s32.totalorder %s16, 0
    %p37 = por %p35, %p36
    %p38 = scmp.ne.s32.totalorder %s24, %s25
    %p39 = scmp.eq.s32.totalorder %s17, 1
    %p40 = por %p38, %p39
    %p42 = scmp.ne.s32.totalorder %s25, %s41
    %p43 = scmp.eq.s32.totalorder %s17, 0
    %p44 = por %p42, %p43
    %s46 = sadd.s32 %s45, 1
    %p49 = scmp.eq.s32.totalorder %s11, 1
    %p50 = scmp.ne.s32.totalorder %s45, %s47
    %p51 = scmp.eq.s32.totalorder %s11, 0
    %p52 = por %p50, %p51
    %p53 = scmp.ne.s32.totalorder %s45, %s47
    %p54 = scmp.eq.s32.totalorder %s16, 1
    %p55 = por %p53, %p54
    %p56 = scmp.ne.s32.totalorder %s47, %s48
    %p57 = scmp.eq.s32.totalorder %s16, 0
    %p58 = por %p56, %p57
    %p59 = scmp.ne.s32.totalorder %s47, %s48
    %p60 = scmp.eq.s32.totalorder %s17, 1
    %p61 = por %p59, %p60
    %p63 = scmp.ne.s32.totalorder %s48, %s62
    %p64 = scmp.eq.s32.totalorder %s17, 0
    %p65 = por %p63, %p64
    %s67 = sadd.s32 %s66, 1
    %p70 = scmp.eq.s32.totalorder %s11, 1
    %p71 = scmp.ne.s32.totalorder %s66, %s68
    %p72 = scmp.eq.s32.totalorder %s11, 0
    %p73 = por %p71, %p72
    %p74 = scmp.ne.s32.totalorder %s66, %s68
    %p75 = scmp.eq.s32.totalorder %s16, 1
    %p76 = por %p74, %p75
    %p77 = scmp.ne.s32.totalorder %s68, %s69
    %p78 = scmp.eq.s32.totalorder %s16, 0
    %p79 = por %p77, %p78
    %p80 = scmp.ne.s32.totalorder %s68, %s69
    %p81 = scmp.eq.s32.totalorder %s17, 1
    %p82 = por %p80, %p81
    %p84 = scmp.ne.s32.totalorder %s69, %s83
    %p85 = scmp.eq.s32.totalorder %s17, 0
    %p86 = por %p84, %p85
    %s88 = sadd.s32 %s87, 1
    %p91 = scmp.eq.s32.totalorder %s11, 1
    %p92 = scmp.ne.s32.totalorder %s87, %s89
    %p93 = scmp.eq.s32.totalorder %s11, 0
    %p94 = por %p92, %p93
    %p95 = scmp.ne.s32.totalorder %s87, %s89
    %p96 = scmp.eq.s32.totalorder %s16, 1
    %p97 = por %p95, %p96
    %p98 = scmp.ne.s32.totalorder %s89, %s90
    %p99 = scmp.eq.s32.totalorder %s16, 0
    %p100 = por %p98, %p99
    %p101 = scmp.ne.s32.totalorder %s89, %s90
    %p102 = scmp.eq.s32.totalorder %s17, 1
    %p103 = por %p101, %p102
    %p105 = scmp.ne.s32.totalorder %s90, %s104
    %p106 = scmp.eq.s32.totalorder %s17, 0
    %p107 = por %p105, %p106
    %s109 = sadd.s32 %s108, 1
    %p112 = scmp.eq.s32.totalorder %s11, 1
    %p113 = scmp.ne.s32.totalorder %s108, %s110
    %p114 = scmp.eq.s32.totalorder %s11, 0
    %p115 = por %p113, %p114
    %p116 = scmp.ne.s32.totalorder %s108, %s110
    %p117 = scmp.eq.s32.totalorder %s16, 1
    %p118 = por %p116, %p117
    %p119 = scmp.ne.s32.totalorder %s110, %s111
    %p120 = scmp.eq.s32.totalorder %s16, 0
    %p121 = por %p119, %p120
    %p122 = scmp.ne.s32.totalorder %s110, %s111
    %p123 = scmp.eq.s32.totalorder %s17, 1
    %p124 = por %p122, %p123
    %p126 = scmp.ne.s32.totalorder %s111, %s125
    %p127 = scmp.eq.s32.totalorder %s17, 0
    %p128 = por %p126, %p127
    %s129 = ssub.s32 %s11, %s18
    %p130 = scmp.eq.s32.totalorder %s129, 0
    %s132 = sadd.s32 %s131, 1
    %s133 = scalar_select %p130, %s131, %s132
    %p136 = pneg %p130
    %p137 = scmp.eq.s32.totalorder %s11, 1
    %p138 = por %p136, %p137
    %p139 = scmp.ne.s32.totalorder %s131, %s134
    %p140 = scmp.eq.s32.totalorder %s11, 0
    %p141 = por %p139, %p140
    %p142 = scmp.ne.s32.totalorder %s131, %s134
    %p143 = scmp.eq.s32.totalorder %s16, 1
    %p144 = por %p142, %p143
    %p145 = scmp.ne.s32.totalorder %s134, %s135
    %p146 = scmp.eq.s32.totalorder %s16, 0
    %p147 = por %p145, %p146
    %p148 = scmp.ne.s32.totalorder %s134, %s135
    %p149 = scmp.eq.s32.totalorder %s17, 1
    %p150 = por %p148, %p149
    %p152 = scmp.ne.s32.totalorder %s135, %s151
    %p153 = scmp.eq.s32.totalorder %s17, 0
    %p154 = por %p152, %p153
    %p155 = scmp.le.s32.totalorder 1, %s11
    %p156 = scmp.lt.s32.totalorder %s11, 3
    %p157 = pnand %p155, %p156
    %p158 = pneg %p157
    // Predicated region
    $region9: #{improved_location_predictor.5} parent=5 // pred_check
      _
    $region10: #{improved_location_predictor.5} parent=5 // pred_check_branch
      %160 = sbr.rel (%p157) target = $region12
    $region11: #{improved_location_predictor.5} parent=5 // pred_region
      %s161 = ssub.s32 %s11, 1
      // Predicated region
      $region13: #{improved_location_predictor.5} parent=11 // pred_check
        %p162 = pneg %p58
      $region14: #{improved_location_predictor.5} parent=11 // pred_check_branch
        %164 = sbr.rel (%p162) target = $region16
      $region15: #{improved_location_predictor.5} parent=11 // pred_region
        _
      $region16: #{improved_location_predictor.5} parent=11 // pred_fallthru
        _
      // Predicated region
      $region17: #{improved_location_predictor.5} parent=11 // pred_check
        %p165 = pneg %p79
      $region18: #{improved_location_predictor.5} parent=11 // pred_check_branch
        %167 = sbr.rel (%p165) target = $region20
      $region19: #{improved_location_predictor.5} parent=11 // pred_region
        _
      $region20: #{improved_location_predictor.5} parent=11 // pred_fallthru
        _
      // Predicated region
      $region21: #{improved_location_predictor.5} parent=11 // pred_check
        %p168 = pneg %p100
      $region22: #{improved_location_predictor.5} parent=11 // pred_check_branch
        %170 = sbr.rel (%p168) target = $region24
      $region23: #{improved_location_predictor.5} parent=11 // pred_region
        _
      $region24: #{improved_location_predictor.5} parent=11 // pred_fallthru
        _
      // Predicated region
      $region25: #{improved_location_predictor.5} parent=11 // pred_check
        %p171 = pneg %p121
      $region26: #{improved_location_predictor.5} parent=11 // pred_check_branch
        %173 = sbr.rel (%p171) target = $region28
      $region27: #{improved_location_predictor.5} parent=11 // pred_region
        _
      $region28: #{improved_location_predictor.5} parent=11 // pred_fallthru
        _
    $region12: #{improved_location_predictor.5} parent=5 // pred_fallthru
      _
    %p174 = scmp.lt.s32.totalorder %s11, 2
    // Predicated region
    $region29: #{improved_location_predictor.5} parent=5 // pred_check
      %p175 = pneg %p174
    $region30: #{improved_location_predictor.5} parent=5 // pred_check_branch
      %177 = sbr.rel (%p175) target = $region32
    $region31: #{improved_location_predictor.5} parent=5 // pred_region
      // Predicated region
      $region33: #{improved_location_predictor.5} parent=31 // pred_check
        %p178 = pneg %p31
      $region34: #{improved_location_predictor.5} parent=31 // pred_check_branch
        %180 = sbr.rel (%p178) target = $region36
      $region35: #{improved_location_predictor.5} parent=31 // pred_region
        %p181 = scmp.lt.s32.totalorder %s11, 1
        %s182 = scalar_select %p181, %s11, 1
        %s183 = smul.addr %s182, 8
        %s184 = smul.addr %s183, 8
        %s185 = scalar_lea.vmem %s0, %s184
      $region36: #{improved_location_predictor.5} parent=31 // pred_fallthru
        _
    $region32: #{improved_location_predictor.5} parent=5 // pred_fallthru
      _
    %p186 = scmp.le.s32.totalorder 1, %s11
    %p187 = scmp.lt.s32.totalorder %s11, 3
    %p188 = pnand %p186, %p187
    %p189 = pneg %p188
    // Predicated region
    $region37: #{improved_location_predictor.5} parent=5 // pred_check
      _
    $region38: #{improved_location_predictor.5} parent=5 // pred_check_branch
      %191 = sbr.rel (%p188) target = $region40
    $region39: #{improved_location_predictor.5} parent=5 // pred_region
      %s192 = ssub.s32 %s11, 1
      %p193 = scmp.lt.s32.totalorder %s16, 1
      %s194 = scalar_select %p193, %s16, 1
      %s195 = smul.addr %s194, 8
      %s196 = smul.addr %s195, 8
      %s197 = scalar_lea.vmem %s0, %s196
      %p198 = pneg %p37
      %p199 = pneg %p34
      %p200 = pneg %p58
      %p201 = pneg %p55
      %p202 = pneg %p79
      %p203 = pneg %p76
      %p204 = pneg %p100
      %p205 = pneg %p97
      %p206 = pneg %p121
      %p207 = pneg %p118
      %p208 = pneg %p147
      %p209 = pneg %p144
      %p210 = scmp.lt.s32.totalorder %s16, 1
      %s211 = scalar_select %p210, %s16, 1
      %s212 = smul.addr %s211, 9
      %s213 = smul.addr %s212, 8
      %s214 = scalar_lea.vmem %s5, %s213
      %p215 = scmp.lt.s32.totalorder %s16, 1
      %s216 = scalar_select %p215, %s16, 1
      %s217 = smul.addr %s216, 8
      %s218 = smul.addr %s217, 8
      %s219 = scalar_lea.vmem %s0, %s218
      %p220 = scmp.lt.s32.totalorder %s16, 1
      %s221 = scalar_select %p220, %s16, 1
      %s222 = smul.addr %s221, 9
      %s223 = smul.addr %s222, 8
      %s224 = scalar_lea.vmem %s5, %s223
      %v225 = vld [vmem:[%s219] sm:$0xff]
      %v226 = vld [vmem:[%s219 + $0x8] sm:$0xff]
      %v227 = vld [vmem:[%s219 + $0x10] sm:$0xff]
      %v228 = vld [vmem:[%s219 + $0x18] sm:$0xff]
      %v229 = vld [vmem:[%s219 + $0x20] sm:$0xff]
      %v230 = vld [vmem:[%s219 + $0x28] sm:$0xff]
      %v231 = vld [vmem:[%s219 + $0x30] sm:$0xff]
      %v232 = vld [vmem:[%s219 + $0x38] sm:$0xff]
      %v233 = vld [vmem:[%s1] sm:$0xf]
      %v234 = vld [vmem:[%s2] sm:$0x1]
      %v236 = vlaneseq
      %v237 = vshrl.u32 %v236, 7
      %v238 = vsub.s32 0, %v237
      %v239 = vrot.slane %v234, %v238
      %vm241 = vcmask 31744
      %v243 = vsel %vm241, %v225, 0
      %v246 = vsel %vm241, %v226, 0
      %v249 = vsel %vm241, %v227, 0
      %v252 = vsel %vm241, %v228, 0
      %v255 = vsel %vm241, %v229, 0
      %v258 = vsel %vm241, %v230, 0
      %v261 = vsel %vm241, %v231, 0
      %v264 = vsel %vm241, %v232, 0
      %vm266 = vcmask 1043456
      %v268 = vsel %vm266, %v233, 0
      %270 = vmatprep.subr.mxu0 0.0
      %271 = vmatpush1.msra.mxu0 0.0
      %272 = vmatprep.subr.mxu0 0.0
      %273 = vmatpush1.msra.mxu0 0.0
      %274 = vmatprep.subr.mxu0 0.0
      %275 = vmatpush1.msra.mxu0 0.0
      %276 = vmatprep.subr.mxu0 0.0
      %277 = vmatpush1.msra.mxu0 0.0
      %278 = vmatprep.subr.mxu0 0.0
      %279 = vmatpush1.msra.mxu0 0.0
      %280 = vmatprep.subr.mxu0 0.0
      %281 = vmatpush1.msra.mxu0 0.0
      %282 = vmatprep.subr.mxu0 0.0
      %283 = vmatpush1.msra.mxu0 0.0
      %284 = vmatprep.subr.mxu0 0.0
      %285 = vmatpush1.msra.mxu0 0.0
      %286 = vmatprep.subr.mxu0 0.0
      %287 = vmatpush1.msra.mxu0 0.0
      %288 = vmatprep.subr.mxu0 0.0
      %289 = vmatpush1.msra.mxu0 0.0
      %290 = vmatprep.subr.mxu0 0.0
      %291 = vmatpush1.msra.mxu0 0.0
      %292 = vmatprep.subr.mxu0 0.0
      %293 = vmatpush1.msra.mxu0 0.0
      %294 = vmatprep.subr.mxu0 0.0
      %295 = vmatpush1.msra.mxu0 0.0
      %296 = vmatprep.subr.mxu0 0.0
      %297 = vmatpush1.msra.mxu0 0.0
      %298 = vmatprep.subr.mxu0 0.0
      %299 = vmatpush1.msra.mxu0 0.0
      %300 = vmatprep.subr.mxu0 0.0
      %301 = vmatpush1.msra.mxu0 %v268
      %302 = vmatprep.subr.mxu0 0.0
      %303 = vmatpush2.msra.mxu0 0.0
      %304 = vmatprep.subr.mxu0 0.0
      %305 = vmatpush2.msra.mxu0 0.0
      %306 = vmatprep.subr.mxu0 0.0
      %307 = vmatpush2.msra.mxu0 0.0
      %308 = vmatprep.subr.mxu0 0.0
      %309 = vmatpush2.msra.mxu0 0.0
      %310 = vmatprep.subr.mxu0 0.0
      %311 = vmatpush2.msra.mxu0 0.0
      %312 = vmatprep.subr.mxu0 0.0
      %313 = vmatpush2.msra.mxu0 0.0
      %314 = vmatprep.subr.mxu0 0.0
      %315 = vmatpush2.msra.mxu0 0.0
      %316 = vmatprep.subr.mxu0 0.0
      %317 = vmatpush2.msra.mxu0 0.0
      %318 = vmatprep.subr.mxu0 0.0
      %319 = vmatpush2.msra.mxu0 0.0
      %320 = vmatprep.subr.mxu0 0.0
      %321 = vmatpush2.msra.mxu0 0.0
      %322 = vmatprep.subr.mxu0 0.0
      %323 = vmatpush2.msra.mxu0 0.0
      %324 = vmatprep.subr.mxu0 0.0
      %325 = vmatpush2.msra.mxu0 0.0
      %326 = vmatprep.subr.mxu0 0.0
      %327 = vmatpush2.msra.mxu0 0.0
      %328 = vmatprep.subr.mxu0 0.0
      %329 = vmatpush2.msra.mxu0 0.0
      %330 = vmatprep.subr.mxu0 0.0
      %331 = vmatpush2.msra.mxu0 0.0
      %332 = vmatprep.subr.mxu0 0.0
      %333 = vmatpush2.msra.mxu0 0.0
      %334 = vmatprep.mubr.f32.mxu0 0.0
      %335 = vmatmul.mubr.f32.gmra.mxu0 %v243
      %v336 = vpop.f32.mrf.mxu0
      %v337 = vadd.f32 %v239, %v336
      %v338 = vpop.f32.mrf.mxu0
      %339 = vmatprep.mubr.f32.mxu0 0.0
      %340 = vmatmul.mubr.f32.gmra.mxu0 %v246
      %v341 = vpop.f32.mrf.mxu0
      %v342 = vadd.f32 %v239, %v341
      %v343 = vpop.f32.mrf.mxu0
      %344 = vmatprep.mubr.f32.mxu0 0.0
      %345 = vmatmul.mubr.f32.gmra.mxu0 %v249
      %v346 = vpop.f32.mrf.mxu0
      %v347 = vadd.f32 %v239, %v346
      %v348 = vpop.f32.mrf.mxu0
      %349 = vmatprep.mubr.f32.mxu0 0.0
      %350 = vmatmul.mubr.f32.gmra.mxu0 %v252
      %v351 = vpop.f32.mrf.mxu0
      %v352 = vadd.f32 %v239, %v351
      %v353 = vpop.f32.mrf.mxu0
      %354 = vmatprep.mubr.f32.mxu0 0.0
      %355 = vmatmul.mubr.f32.gmra.mxu0 %v255
      %v356 = vpop.f32.mrf.mxu0
      %v357 = vadd.f32 %v239, %v356
      %v358 = vpop.f32.mrf.mxu0
      %359 = vmatprep.mubr.f32.mxu0 0.0
      %360 = vmatmul.mubr.f32.gmra.mxu0 %v258
      %v361 = vpop.f32.mrf.mxu0
      %v362 = vadd.f32 %v239, %v361
      %v363 = vpop.f32.mrf.mxu0
      %364 = vmatprep.mubr.f32.mxu0 0.0
      %365 = vmatmul.mubr.f32.gmra.mxu0 %v261
      %v366 = vpop.f32.mrf.mxu0
      %v367 = vadd.f32 %v239, %v366
      %v368 = vpop.f32.mrf.mxu0
      %369 = vmatprep.mubr.f32.mxu0 0.0
      %370 = vmatmul.mubr.f32.gmra.mxu0 %v264
      %v371 = vpop.f32.mrf.mxu0
      %v372 = vadd.f32 %v239, %v371
      %v373 = vpop.f32.mrf.mxu0
      %374 = vdwg.mxu0
      %v375 = vld [vmem:[%s3] sm:$0xff]
      %v376 = vld [vmem:[%s3 + $0x8] sm:$0xff]
      %v377 = vld [vmem:[%s3 + $0x10] sm:$0xff]
      %v378 = vld [vmem:[%s3 + $0x18] sm:$0xff]
      %v379 = vld [vmem:[%s3 + $0x20] sm:$0xff]
      %v380 = vld [vmem:[%s3 + $0x28] sm:$0xff]
      %v381 = vld [vmem:[%s3 + $0x30] sm:$0xff]
      %v382 = vld [vmem:[%s3 + $0x38] sm:$0xff]
      %v383 = vadd.f32 %v337, %v375
      %v384 = vadd.f32 %v342, %v376
      %v385 = vadd.f32 %v347, %v377
      %v386 = vadd.f32 %v352, %v378
      %v387 = vadd.f32 %v357, %v379
      %v388 = vadd.f32 %v362, %v380
      %v389 = vadd.f32 %v367, %v381
      %v390 = vadd.f32 %v372, %v382
      %v391 = vld [vmem:[%s4] sm:$0x1]
      %vm400 = vcmask 1040384
      %v401 = vrot.slane %v383, 7
      %v402 = vrot.slane %v384, 7
      %v403 = vsel %vm400, %v401, %v402
      %v404 = vrot.slane %v385, 7
      %v405 = vsel %vm400, %v402, %v404
      %v406 = vrot.slane %v386, 7
      %v407 = vsel %vm400, %v404, %v406
      %v408 = vrot.slane %v387, 7
      %v409 = vsel %vm400, %v406, %v408
      %v410 = vrot.slane %v388, 7
      %v411 = vsel %vm400, %v408, %v410
      %v412 = vrot.slane %v389, 7
      %v413 = vsel %vm400, %v410, %v412
      %v414 = vrot.slane %v390, 7
      %v415 = vsel %vm400, %v412, %v414
      %v425 = vsel %vm400, %v391, %v401
      %vm426 = vcmask 261120
      %427 = vst.msk [vmem:[%s224] sm:$0xff] %vm426, %v425
      %428 = vst.msk [vmem:[%s224 + $0x8] sm:$0xff] %vm426, %v403
      %429 = vst.msk [vmem:[%s224 + $0x10] sm:$0xff] %vm426, %v405
      %430 = vst.msk [vmem:[%s224 + $0x18] sm:$0xff] %vm426, %v407
      %431 = vst.msk [vmem:[%s224 + $0x20] sm:$0xff] %vm426, %v409
      %432 = vst.msk [vmem:[%s224 + $0x28] sm:$0xff] %vm426, %v411
      %433 = vst.msk [vmem:[%s224 + $0x30] sm:$0xff] %vm426, %v413
      %434 = vst.msk [vmem:[%s224 + $0x38] sm:$0xff] %vm426, %v415
      %vm435 = vcmask 253952
      %436 = vst.msk [vmem:[%s224 + $0x40] sm:$0x1] %vm435, %v414
      %p437 = scmp.lt.s32.totalorder %s16, 1
      %s438 = scalar_select %p437, %s16, 1
      %s439 = smul.addr %s438, 9
      %s440 = smul.addr %s439, 8
      %s441 = scalar_lea.vmem %s5, %s440
      // Predicated region
      $region41: #{improved_location_predictor.5} parent=39 // pred_check
        %p442 = pneg %p144
      $region42: #{improved_location_predictor.5} parent=39 // pred_check_branch
        %444 = sbr.rel (%p442) target = $region44
      $region43: #{improved_location_predictor.5} parent=39 // pred_region
        _
      $region44: #{improved_location_predictor.5} parent=39 // pred_fallthru
        _
    $region40: #{improved_location_predictor.5} parent=5 // pred_fallthru
      _
    %p445 = scmp.le.s32.totalorder 2, %s11
    // Predicated region
    $region45: #{improved_location_predictor.5} parent=5 // pred_check
      %p446 = pneg %p445
    $region46: #{improved_location_predictor.5} parent=5 // pred_check_branch
      %448 = sbr.rel (%p446) target = $region48
    $region47: #{improved_location_predictor.5} parent=5 // pred_region
      %s449 = ssub.s32 %s11, 2
      // Predicated region
      $region49: #{improved_location_predictor.5} parent=47 // pred_check
        %p450 = pneg %p150
      $region50: #{improved_location_predictor.5} parent=47 // pred_check_branch
        %452 = sbr.rel (%p450) target = $region52
      $region51: #{improved_location_predictor.5} parent=47 // pred_region
        %p453 = scmp.lt.s32.totalorder %s17, 1
        %s454 = scalar_select %p453, %s17, 1
        %s455 = smul.addr %s454, 9
        %s456 = smul.addr %s455, 8
        %s457 = scalar_lea.vmem %s5, %s456
      $region52: #{improved_location_predictor.5} parent=47 // pred_fallthru
        _
    $region48: #{improved_location_predictor.5} parent=5 // pred_fallthru
      _
  $region6: #{improved_location_predictor.5} parent=0 // loop_footer
    %s15 = sadd.s32 1, %s11
  $region7: #{improved_location_predictor.5} parent=0 // loop_footer_branch
    %10 = sbr.rel target = $region3
  $region8: #{improved_location_predictor.5} parent=0 // loop_exit
    _

// kernel: improved_location_predictor.9
$region0: #{improved_location_predictor.9}
  #allocation0 [shape = 'u32[]', space=smem, size = 0x4, offset = 0x4, fixed_abs, tag = 'smem constant byte address 0x4 - core index']
  #allocation1 [shape = 'u32[144,128]{1,0:T(1,128)}', space=vmem, size = 0x12000, scoped, tag = 'internal scratch']
  %s0 = inlined_call_operand.vmem [shape: f32[2,32], index: 0, kind: input, shape index: {}]
  %s1 = inlined_call_operand.vmem [shape: f32[32,128], index: 1, kind: input, shape index: {}]
  %s2 = inlined_call_operand.vmem [shape: f32[1,128], index: 2, kind: input, shape index: {}]
  %s3 = inlined_call_operand.vmem [shape: f32[128,128], index: 3, kind: input, shape index: {}]
  %s4 = inlined_call_operand.vmem [shape: f32[1,128], index: 4, kind: input, shape index: {}]
  %s5 = inlined_call_operand.vmem [shape: f32[128,32], index: 5, kind: input, shape index: {}]
  %s6 = inlined_call_operand.vmem [shape: f32[1,32], index: 6, kind: input, shape index: {}]
  %s7 = inlined_call_operand.vmem [shape: f32[32,2], index: 7, kind: input, shape index: {}]
  %s8 = inlined_call_operand.vmem [shape: f32[1,2], index: 8, kind: input, shape index: {}]
  %s9 = inlined_call_operand.hbm [shape: f32[2,2], index: 9, kind: output, shape index: {}]
  %s10 = sld [smem:[#allocation0]]
  $region46: #{improved_location_predictor.9} parent=0
    _
  %s12 = ssub.s32 1, %s10
  %s13 = scalar_select 0, %s12, %s10
  $region1: #{improved_location_predictor.9} parent=0
    #allocation2 [shape = 'u8[1024]{0}', space=vmem, size = 0x400, scoped, tag = 'output window, operand 0, single buffered']
    #allocation3 [shape = 's32[1]{0}', space=sflag, size = 0x4, scoped, tag = 'scoped memory for improved_location_predictor.9']
    %14 = vsyncpa [#allocation3], 0
    // Predicated region
    $region2: #{improved_location_predictor.9} parent=1 // pred_check
      _
    $region3: #{improved_location_predictor.9} parent=1 // pred_check_branch
      %16 = sbr.rel (0) target = $region5
    $region4: #{improved_location_predictor.9} parent=1 // pred_region
      _
    $region5: #{improved_location_predictor.9} parent=1 // pred_fallthru
      _
    // Predicated region
    $region6: #{improved_location_predictor.9} parent=1 // pred_check
      _
    $region7: #{improved_location_predictor.9} parent=1 // pred_check_branch
      %18 = sbr.rel (0) target = $region9
    $region8: #{improved_location_predictor.9} parent=1 // pred_region
      _
    $region9: #{improved_location_predictor.9} parent=1 // pred_fallthru
      _
    // Predicated region
    $region10: #{improved_location_predictor.9} parent=1 // pred_check
      _
    $region11: #{improved_location_predictor.9} parent=1 // pred_check_branch
      %20 = sbr.rel (0) target = $region13
    $region12: #{improved_location_predictor.9} parent=1 // pred_region
      _
    $region13: #{improved_location_predictor.9} parent=1 // pred_fallthru
      _
    // Predicated region
    $region14: #{improved_location_predictor.9} parent=1 // pred_check
      _
    $region15: #{improved_location_predictor.9} parent=1 // pred_check_branch
      %22 = sbr.rel (0) target = $region17
    $region16: #{improved_location_predictor.9} parent=1 // pred_region
      _
    $region17: #{improved_location_predictor.9} parent=1 // pred_fallthru
      _
    // Predicated region
    $region18: #{improved_location_predictor.9} parent=1 // pred_check
      _
    $region19: #{improved_location_predictor.9} parent=1 // pred_check_branch
      %24 = sbr.rel (0) target = $region21
    $region20: #{improved_location_predictor.9} parent=1 // pred_region
      _
    $region21: #{improved_location_predictor.9} parent=1 // pred_fallthru
      _
    // Predicated region
    $region22: #{improved_location_predictor.9} parent=1 // pred_check
      _
    $region23: #{improved_location_predictor.9} parent=1 // pred_check_branch
      %26 = sbr.rel (0) target = $region25
    $region24: #{improved_location_predictor.9} parent=1 // pred_region
      _
    $region25: #{improved_location_predictor.9} parent=1 // pred_fallthru
      _
    // Predicated region
    $region26: #{improved_location_predictor.9} parent=1 // pred_check
      _
    $region27: #{improved_location_predictor.9} parent=1 // pred_check_branch
      %28 = sbr.rel (0) target = $region29
    $region28: #{improved_location_predictor.9} parent=1 // pred_region
      _
    $region29: #{improved_location_predictor.9} parent=1 // pred_fallthru
      _
    // Predicated region
    $region30: #{improved_location_predictor.9} parent=1 // pred_check
      _
    $region31: #{improved_location_predictor.9} parent=1 // pred_check_branch
      %30 = sbr.rel (0) target = $region33
    $region32: #{improved_location_predictor.9} parent=1 // pred_region
      _
    $region33: #{improved_location_predictor.9} parent=1 // pred_fallthru
      _
    // Predicated region
    $region34: #{improved_location_predictor.9} parent=1 // pred_check
      _
    $region35: #{improved_location_predictor.9} parent=1 // pred_check_branch
      %32 = sbr.rel (0) target = $region37
    $region36: #{improved_location_predictor.9} parent=1 // pred_region
      _
    $region37: #{improved_location_predictor.9} parent=1 // pred_fallthru
      _
    %v33 = vld [vmem:[%s0] sm:$0x3]
    %v34 = vld [vmem:[%s1] sm:$0xff]
    %v35 = vld [vmem:[%s1 + $0x8] sm:$0xff]
    %v36 = vld [vmem:[%s1 + $0x10] sm:$0xff]
    %v37 = vld [vmem:[%s1 + $0x18] sm:$0xff]
    %v38 = vld [vmem:[%s2] sm:$0x1]
    %v40 = vlaneseq
    %v41 = vshrl.u32 %v40, 7
    %v42 = vsub.s32 0, %v41
    %v43 = vrot.slane %v38, %v42
    %vm45 = vcmask 261120
    %v47 = vsel %vm45, %v33, 0
    %49 = vmatprep.subr.mxu0 0.0
    %50 = vmatpush1.msra.mxu0 0.0
    %51 = vmatprep.subr.mxu0 0.0
    %52 = vmatpush1.msra.mxu0 0.0
    %53 = vmatprep.subr.mxu0 0.0
    %54 = vmatpush1.msra.mxu0 0.0
    %55 = vmatprep.subr.mxu0 0.0
    %56 = vmatpush1.msra.mxu0 0.0
    %57 = vmatprep.subr.mxu0 0.0
    %58 = vmatpush1.msra.mxu0 0.0
    %59 = vmatprep.subr.mxu0 0.0
    %60 = vmatpush1.msra.mxu0 0.0
    %61 = vmatprep.subr.mxu0 0.0
    %62 = vmatpush1.msra.mxu0 0.0
    %63 = vmatprep.subr.mxu0 0.0
    %64 = vmatpush1.msra.mxu0 0.0
    %65 = vmatprep.subr.mxu0 0.0
    %66 = vmatpush1.msra.mxu0 0.0
    %67 = vmatprep.subr.mxu0 0.0
    %68 = vmatpush1.msra.mxu0 0.0
    %69 = vmatprep.subr.mxu0 0.0
    %70 = vmatpush1.msra.mxu0 0.0
    %71 = vmatprep.subr.mxu0 0.0
    %72 = vmatpush1.msra.mxu0 0.0
    %73 = vmatprep.subr.mxu0 0.0
    %74 = vmatpush1.msra.mxu0 %v37
    %75 = vmatprep.subr.mxu0 0.0
    %76 = vmatpush1.msra.mxu0 %v36
    %77 = vmatprep.subr.mxu0 0.0
    %78 = vmatpush1.msra.mxu0 %v35
    %79 = vmatprep.subr.mxu0 0.0
    %80 = vmatpush1.msra.mxu0 %v34
    %81 = vmatprep.subr.mxu0 0.0
    %82 = vmatpush2.msra.mxu0 0.0
    %83 = vmatprep.subr.mxu0 0.0
    %84 = vmatpush2.msra.mxu0 0.0
    %85 = vmatprep.subr.mxu0 0.0
    %86 = vmatpush2.msra.mxu0 0.0
    %87 = vmatprep.subr.mxu0 0.0
    %88 = vmatpush2.msra.mxu0 0.0
    %89 = vmatprep.subr.mxu0 0.0
    %90 = vmatpush2.msra.mxu0 0.0
    %91 = vmatprep.subr.mxu0 0.0
    %92 = vmatpush2.msra.mxu0 0.0
    %93 = vmatprep.subr.mxu0 0.0
    %94 = vmatpush2.msra.mxu0 0.0
    %95 = vmatprep.subr.mxu0 0.0
    %96 = vmatpush2.msra.mxu0 0.0
    %97 = vmatprep.subr.mxu0 0.0
    %98 = vmatpush2.msra.mxu0 0.0
    %99 = vmatprep.subr.mxu0 0.0
    %100 = vmatpush2.msra.mxu0 0.0
    %101 = vmatprep.subr.mxu0 0.0
    %102 = vmatpush2.msra.mxu0 0.0
    %103 = vmatprep.subr.mxu0 0.0
    %104 = vmatpush2.msra.mxu0 0.0
    %105 = vmatprep.subr.mxu0 0.0
    %106 = vmatpush2.msra.mxu0 0.0
    %107 = vmatprep.subr.mxu0 0.0
    %108 = vmatpush2.msra.mxu0 0.0
    %109 = vmatprep.subr.mxu0 0.0
    %110 = vmatpush2.msra.mxu0 0.0
    %111 = vmatprep.subr.mxu0 0.0
    %112 = vmatpush2.msra.mxu0 0.0
    %113 = vmatprep.mubr.f32.mxu0 0.0
    %114 = vmatmul.mubr.f32.gmra.mxu0 %v47
    %v115 = vpop.f32.mrf.mxu0
    %v116 = vadd.f32 %v43, %v115
    %v117 = vpop.f32.mrf.mxu0
    %118 = vdwg.mxu0
    %v119 = vmax.f32 %v116, 0.0
    %v120 = vld [vmem:[%s3] sm:$0xff]
    %v121 = vld [vmem:[%s3 + $0x8] sm:$0xff]
    %v122 = vld [vmem:[%s3 + $0x10] sm:$0xff]
    %v123 = vld [vmem:[%s3 + $0x18] sm:$0xff]
    %v124 = vld [vmem:[%s3 + $0x20] sm:$0xff]
    %v125 = vld [vmem:[%s3 + $0x28] sm:$0xff]
    %v126 = vld [vmem:[%s3 + $0x30] sm:$0xff]
    %v127 = vld [vmem:[%s3 + $0x38] sm:$0xff]
    %v128 = vld [vmem:[%s3 + $0x40] sm:$0xff]
    %v129 = vld [vmem:[%s3 + $0x48] sm:$0xff]
    %v130 = vld [vmem:[%s3 + $0x50] sm:$0xff]
    %v131 = vld [vmem:[%s3 + $0x58] sm:$0xff]
    %v132 = vld [vmem:[%s3 + $0x60] sm:$0xff]
    %v133 = vld [vmem:[%s3 + $0x68] sm:$0xff]
    %v134 = vld [vmem:[%s3 + $0x70] sm:$0xff]
    %v135 = vld [vmem:[%s3 + $0x78] sm:$0xff]
    %v136 = vld [vmem:[%s4] sm:$0x1]
    %v138 = vlaneseq
    %v139 = vshrl.u32 %v138, 7
    %v140 = vsub.s32 0, %v139
    %v141 = vrot.slane %v136, %v140
    %143 = vmatprep.subr.mxu0 0.0
    %144 = vmatpush1.msra.mxu0 %v135
    %145 = vmatprep.subr.mxu0 0.0
    %146 = vmatpush1.msra.mxu0 %v134
    %147 = vmatprep.subr.mxu0 0.0
    %148 = vmatpush1.msra.mxu0 %v133
    %149 = vmatprep.subr.mxu0 0.0
    %150 = vmatpush1.msra.mxu0 %v132
    %151 = vmatprep.subr.mxu0 0.0
    %152 = vmatpush1.msra.mxu0 %v131
    %153 = vmatprep.subr.mxu0 0.0
    %154 = vmatpush1.msra.mxu0 %v130
    %155 = vmatprep.subr.mxu0 0.0
    %156 = vmatpush1.msra.mxu0 %v129
    %157 = vmatprep.subr.mxu0 0.0
    %158 = vmatpush1.msra.mxu0 %v128
    %159 = vmatprep.subr.mxu0 0.0
    %160 = vmatpush1.msra.mxu0 %v127
    %161 = vmatprep.subr.mxu0 0.0
    %162 = vmatpush1.msra.mxu0 %v126
    %163 = vmatprep.subr.mxu0 0.0
    %164 = vmatpush1.msra.mxu0 %v125
    %165 = vmatprep.subr.mxu0 0.0
    %166 = vmatpush1.msra.mxu0 %v124
    %167 = vmatprep.subr.mxu0 0.0
    %168 = vmatpush1.msra.mxu0 %v123
    %169 = vmatprep.subr.mxu0 0.0
    %170 = vmatpush1.msra.mxu0 %v122
    %171 = vmatprep.subr.mxu0 0.0
    %172 = vmatpush1.msra.mxu0 %v121
    %173 = vmatprep.subr.mxu0 0.0
    %174 = vmatpush1.msra.mxu0 %v120
    %175 = vmatprep.subr.mxu0 0.0
    %176 = vmatpush2.msra.mxu0 0.0
    %177 = vmatprep.subr.mxu0 0.0
    %178 = vmatpush2.msra.mxu0 0.0
    %179 = vmatprep.subr.mxu0 0.0
    %180 = vmatpush2.msra.mxu0 0.0
    %181 = vmatprep.subr.mxu0 0.0
    %182 = vmatpush2.msra.mxu0 0.0
    %183 = vmatprep.subr.mxu0 0.0
    %184 = vmatpush2.msra.mxu0 0.0
    %185 = vmatprep.subr.mxu0 0.0
    %186 = vmatpush2.msra.mxu0 0.0
    %187 = vmatprep.subr.mxu0 0.0
    %188 = vmatpush2.msra.mxu0 0.0
    %189 = vmatprep.subr.mxu0 0.0
    %190 = vmatpush2.msra.mxu0 0.0
    %191 = vmatprep.subr.mxu0 0.0
    %192 = vmatpush2.msra.mxu0 0.0
    %193 = vmatprep.subr.mxu0 0.0
    %194 = vmatpush2.msra.mxu0 0.0
    %195 = vmatprep.subr.mxu0 0.0
    %196 = vmatpush2.msra.mxu0 0.0
    %197 = vmatprep.subr.mxu0 0.0
    %198 = vmatpush2.msra.mxu0 0.0
    %199 = vmatprep.subr.mxu0 0.0
    %200 = vmatpush2.msra.mxu0 0.0
    %201 = vmatprep.subr.mxu0 0.0
    %202 = vmatpush2.msra.mxu0 0.0
    %203 = vmatprep.subr.mxu0 0.0
    %204 = vmatpush2.msra.mxu0 0.0
    %205 = vmatprep.subr.mxu0 0.0
    %206 = vmatpush2.msra.mxu0 0.0
    %207 = vmatprep.mubr.f32.mxu0 0.0
    %208 = vmatmul.mubr.f32.gmra.mxu0 %v119
    %v209 = vpop.f32.mrf.mxu0
    %v210 = vadd.f32 %v141, %v209
    %v211 = vpop.f32.mrf.mxu0
    %212 = vdwg.mxu0
    %v213 = vmax.f32 %v210, 0.0
    %v214 = vld [vmem:[%s5] sm:$0xff]
    %v215 = vld [vmem:[%s5 + $0x8] sm:$0xff]
    %v216 = vld [vmem:[%s5 + $0x10] sm:$0xff]
    %v217 = vld [vmem:[%s5 + $0x18] sm:$0xff]
    %v218 = vld [vmem:[%s5 + $0x20] sm:$0xff]
    %v219 = vld [vmem:[%s5 + $0x28] sm:$0xff]
    %v220 = vld [vmem:[%s5 + $0x30] sm:$0xff]
    %v221 = vld [vmem:[%s5 + $0x38] sm:$0xff]
    %v222 = vld [vmem:[%s5 + $0x40] sm:$0xff]
    %v223 = vld [vmem:[%s5 + $0x48] sm:$0xff]
    %v224 = vld [vmem:[%s5 + $0x50] sm:$0xff]
    %v225 = vld [vmem:[%s5 + $0x58] sm:$0xff]
    %v226 = vld [vmem:[%s5 + $0x60] sm:$0xff]
    %v227 = vld [vmem:[%s5 + $0x68] sm:$0xff]
    %v228 = vld [vmem:[%s5 + $0x70] sm:$0xff]
    %v229 = vld [vmem:[%s5 + $0x78] sm:$0xff]
    %v230 = vld [vmem:[%s6] sm:$0x1]
    %v232 = vlaneseq
    %v233 = vshrl.u32 %v232, 7
    %v234 = vsub.s32 0, %v233
    %v235 = vrot.slane %v230, %v234
    %237 = vmatprep.subr.mxu0 0.0
    %238 = vmatpush1.msra.mxu0 %v229
    %239 = vmatprep.subr.mxu0 0.0
    %240 = vmatpush1.msra.mxu0 %v228
    %241 = vmatprep.subr.mxu0 0.0
    %242 = vmatpush1.msra.mxu0 %v227
    %243 = vmatprep.subr.mxu0 0.0
    %244 = vmatpush1.msra.mxu0 %v226
    %245 = vmatprep.subr.mxu0 0.0
    %246 = vmatpush1.msra.mxu0 %v225
    %247 = vmatprep.subr.mxu0 0.0
    %248 = vmatpush1.msra.mxu0 %v224
    %249 = vmatprep.subr.mxu0 0.0
    %250 = vmatpush1.msra.mxu0 %v223
    %251 = vmatprep.subr.mxu0 0.0
    %252 = vmatpush1.msra.mxu0 %v222
    %253 = vmatprep.subr.mxu0 0.0
    %254 = vmatpush1.msra.mxu0 %v221
    %255 = vmatprep.subr.mxu0 0.0
    %256 = vmatpush1.msra.mxu0 %v220
    %257 = vmatprep.subr.mxu0 0.0
    %258 = vmatpush1.msra.mxu0 %v219
    %259 = vmatprep.subr.mxu0 0.0
    %260 = vmatpush1.msra.mxu0 %v218
    %261 = vmatprep.subr.mxu0 0.0
    %262 = vmatpush1.msra.mxu0 %v217
    %263 = vmatprep.subr.mxu0 0.0
    %264 = vmatpush1.msra.mxu0 %v216
    %265 = vmatprep.subr.mxu0 0.0
    %266 = vmatpush1.msra.mxu0 %v215
    %267 = vmatprep.subr.mxu0 0.0
    %268 = vmatpush1.msra.mxu0 %v214
    %269 = vmatprep.subr.mxu0 0.0
    %270 = vmatpush2.msra.mxu0 0.0
    %271 = vmatprep.subr.mxu0 0.0
    %272 = vmatpush2.msra.mxu0 0.0
    %273 = vmatprep.subr.mxu0 0.0
    %274 = vmatpush2.msra.mxu0 0.0
    %275 = vmatprep.subr.mxu0 0.0
    %276 = vmatpush2.msra.mxu0 0.0
    %277 = vmatprep.subr.mxu0 0.0
    %278 = vmatpush2.msra.mxu0 0.0
    %279 = vmatprep.subr.mxu0 0.0
    %280 = vmatpush2.msra.mxu0 0.0
    %281 = vmatprep.subr.mxu0 0.0
    %282 = vmatpush2.msra.mxu0 0.0
    %283 = vmatprep.subr.mxu0 0.0
    %284 = vmatpush2.msra.mxu0 0.0
    %285 = vmatprep.subr.mxu0 0.0
    %286 = vmatpush2.msra.mxu0 0.0
    %287 = vmatprep.subr.mxu0 0.0
    %288 = vmatpush2.msra.mxu0 0.0
    %289 = vmatprep.subr.mxu0 0.0
    %290 = vmatpush2.msra.mxu0 0.0
    %291 = vmatprep.subr.mxu0 0.0
    %292 = vmatpush2.msra.mxu0 0.0
    %293 = vmatprep.subr.mxu0 0.0
    %294 = vmatpush2.msra.mxu0 0.0
    %295 = vmatprep.subr.mxu0 0.0
    %296 = vmatpush2.msra.mxu0 0.0
    %297 = vmatprep.subr.mxu0 0.0
    %298 = vmatpush2.msra.mxu0 0.0
    %299 = vmatprep.subr.mxu0 0.0
    %300 = vmatpush2.msra.mxu0 0.0
    %301 = vmatprep.mubr.f32.mxu0 0.0
    %302 = vmatmul.mubr.f32.gmra.mxu0 %v213
    %v303 = vpop.f32.mrf.mxu0
    %v304 = vadd.f32 %v235, %v303
    %v305 = vpop.f32.mrf.mxu0
    %306 = vdwg.mxu0
    %v307 = vld [vmem:[%s7] sm:$0xff]
    %v308 = vld [vmem:[%s7 + $0x8] sm:$0xff]
    %v309 = vld [vmem:[%s7 + $0x10] sm:$0xff]
    %v310 = vld [vmem:[%s7 + $0x18] sm:$0xff]
    %v311 = vld [vmem:[%s8] sm:$0x1]
    %v313 = vlaneseq
    %v314 = vshrl.u32 %v313, 7
    %v315 = vsub.s32 0, %v314
    %v316 = vrot.slane %v311, %v315
    %v319 = vsel %vm45, %v304, 0
    %321 = vmatprep.subr.mxu0 0.0
    %322 = vmatpush1.msra.mxu0 0.0
    %323 = vmatprep.subr.mxu0 0.0
    %324 = vmatpush1.msra.mxu0 0.0
    %325 = vmatprep.subr.mxu0 0.0
    %326 = vmatpush1.msra.mxu0 0.0
    %327 = vmatprep.subr.mxu0 0.0
    %328 = vmatpush1.msra.mxu0 0.0
    %329 = vmatprep.subr.mxu0 0.0
    %330 = vmatpush1.msra.mxu0 0.0
    %331 = vmatprep.subr.mxu0 0.0
    %332 = vmatpush1.msra.mxu0 0.0
    %333 = vmatprep.subr.mxu0 0.0
    %334 = vmatpush1.msra.mxu0 0.0
    %335 = vmatprep.subr.mxu0 0.0
    %336 = vmatpush1.msra.mxu0 0.0
    %337 = vmatprep.subr.mxu0 0.0
    %338 = vmatpush1.msra.mxu0 0.0
    %339 = vmatprep.subr.mxu0 0.0
    %340 = vmatpush1.msra.mxu0 0.0
    %341 = vmatprep.subr.mxu0 0.0
    %342 = vmatpush1.msra.mxu0 0.0
    %343 = vmatprep.subr.mxu0 0.0
    %344 = vmatpush1.msra.mxu0 0.0
    %345 = vmatprep.subr.mxu0 0.0
    %346 = vmatpush1.msra.mxu0 %v310
    %347 = vmatprep.subr.mxu0 0.0
    %348 = vmatpush1.msra.mxu0 %v309
    %349 = vmatprep.subr.mxu0 0.0
    %350 = vmatpush1.msra.mxu0 %v308
    %351 = vmatprep.subr.mxu0 0.0
    %352 = vmatpush1.msra.mxu0 %v307
    %353 = vmatprep.subr.mxu0 0.0
    %354 = vmatpush2.msra.mxu0 0.0
    %355 = vmatprep.subr.mxu0 0.0
    %356 = vmatpush2.msra.mxu0 0.0
    %357 = vmatprep.subr.mxu0 0.0
    %358 = vmatpush2.msra.mxu0 0.0
    %359 = vmatprep.subr.mxu0 0.0
    %360 = vmatpush2.msra.mxu0 0.0
    %361 = vmatprep.subr.mxu0 0.0
    %362 = vmatpush2.msra.mxu0 0.0
    %363 = vmatprep.subr.mxu0 0.0
    %364 = vmatpush2.msra.mxu0 0.0
    %365 = vmatprep.subr.mxu0 0.0
    %366 = vmatpush2.msra.mxu0 0.0
    %367 = vmatprep.subr.mxu0 0.0
    %368 = vmatpush2.msra.mxu0 0.0
    %369 = vmatprep.subr.mxu0 0.0
    %370 = vmatpush2.msra.mxu0 0.0
    %371 = vmatprep.subr.mxu0 0.0
    %372 = vmatpush2.msra.mxu0 0.0
    %373 = vmatprep.subr.mxu0 0.0
    %374 = vmatpush2.msra.mxu0 0.0
    %375 = vmatprep.subr.mxu0 0.0
    %376 = vmatpush2.msra.mxu0 0.0
    %377 = vmatprep.subr.mxu0 0.0
    %378 = vmatpush2.msra.mxu0 0.0
    %379 = vmatprep.subr.mxu0 0.0
    %380 = vmatpush2.msra.mxu0 0.0
    %381 = vmatprep.subr.mxu0 0.0
    %382 = vmatpush2.msra.mxu0 0.0
    %383 = vmatprep.subr.mxu0 0.0
    %384 = vmatpush2.msra.mxu0 0.0
    %385 = vmatprep.mubr.f32.mxu0 0.0
    %386 = vmatmul.mubr.f32.gmra.mxu0 %v319
    %v387 = vpop.f32.mrf.mxu0
    %v388 = vadd.f32 %v316, %v387
    %v389 = vpop.f32.mrf.mxu0
    %390 = vdwg.mxu0
    %vm391 = vcmask 9216
    %392 = vst.msk [vmem:[#allocation2] sm:$0x3] %vm391, %v388
    // Predicated region
    $region38: #{improved_location_predictor.9} parent=1 // pred_check
      _
    $region39: #{improved_location_predictor.9} parent=1 // pred_check_branch
      %394 = sbr.rel (0) target = $region41
    $region40: #{improved_location_predictor.9} parent=1 // pred_region
      %s396 = ssub.s32 32, 32
      %397 = vsyncadd [#allocation3], %s396
      %s399 = sshll.u32 [#allocation2], 4
      %s400 = int_to_ptr.vmem [resolvable:$true] %s399
      %402 = dma.vmem_to_hbm [thread:$0]  %s400, 32, %s9, [#allocation3]
    $region41: #{improved_location_predictor.9} parent=1 // pred_fallthru
      _
    // Predicated region
    $region42: #{improved_location_predictor.9} parent=1 // pred_check
      _
    $region43: #{improved_location_predictor.9} parent=1 // pred_check_branch
      %404 = sbr.rel (0) target = $region45
    $region44: #{improved_location_predictor.9} parent=1 // pred_region
      %405 = dma.done [#allocation3], 32
    $region45: #{improved_location_predictor.9} parent=1 // pred_fallthru
      _
    %406 = vsyncpa [#allocation3], 1

// kernel: improved_location_predictor.6
$region0: #{improved_location_predictor.6}
  #allocation0 [shape = 'u32[]', space=smem, size = 0x4, offset = 0x4, fixed_abs, tag = 'smem constant byte address 0x4 - core index']
  #allocation1 [shape = 'u32[144,128]{1,0:T(1,128)}', space=vmem, size = 0x12000, scoped, tag = 'internal scratch']
  %s0 = inlined_call_operand.vmem [shape: f32[2,65,32], index: 0, kind: input, shape index: {}]
  %s1 = inlined_call_operand.vmem [shape: f32[32,96], index: 1, kind: input, shape index: {}]
  %s2 = inlined_call_operand.vmem [shape: f32[1,96], index: 2, kind: input, shape index: {}]
  %s3 = inlined_call_operand.vmem [shape: f32[32,32], index: 3, kind: input, shape index: {}]
  %s4 = inlined_call_operand.vmem [shape: f32[1,32], index: 4, kind: input, shape index: {}]
  %s5 = inlined_call_operand.vmem [shape: f32[1,32], index: 5, kind: input, shape index: {}]
  %s6 = inlined_call_operand.vmem [shape: f32[1,32], index: 6, kind: input, shape index: {}]
  %s7 = inlined_call_operand.vmem [shape: f32[32,2048], index: 7, kind: input, shape index: {}]
  %s8 = inlined_call_operand.vmem [shape: f32[1,2048], index: 8, kind: input, shape index: {}]
  %s9 = inlined_call_operand.vmem [shape: f32[2048,32], index: 9, kind: input, shape index: {}]
  %s10 = inlined_call_operand.vmem [shape: f32[1,32], index: 10, kind: input, shape index: {}]
  %s11 = inlined_call_operand.vmem [shape: f32[1,32], index: 11, kind: input, shape index: {}]
  %s12 = inlined_call_operand.vmem [shape: f32[1,32], index: 12, kind: input, shape index: {}]
  %s13 = inlined_call_operand.vmem [shape: f32[2,65,32], index: 13, kind: output, shape index: {}]
  %s14 = sld [smem:[#allocation0]]
  $region85: #{improved_location_predictor.6} parent=0
    _
  %s16 = ssub.s32 1, %s14
  %s17 = scalar_select 0, %s16, %s14
  loop: start=0, step=1, limit=4
  $region2: #{improved_location_predictor.6} parent=0 // loop_pre_header
    _
  $region3: #{improved_location_predictor.6} parent=0 // loop_header
    %s19 = sphi 0, %s23
    %p20 = scmp.ge.s32.totalorder %s19, 4
    %s29 = sphi 0, %s31
    %s32 = sphi 0, %s29
    %s33 = sphi 0, %s32
    %s49 = sphi 0, %s33
    %s53 = sphi 0, %s53
    %s55 = sphi 0, %s53
    %s56 = sphi 0, %s55
    %s70 = sphi 0, %s56
    %s74 = sphi 0, %s74
    %s76 = sphi 0, %s74
    %s77 = sphi 0, %s76
    %s91 = sphi 0, %s77
    %s95 = sphi 0, %s95
    %s97 = sphi 0, %s95
    %s98 = sphi 0, %s97
    %s112 = sphi 0, %s98
    %s116 = sphi 0, %s116
    %s118 = sphi 0, %s116
    %s119 = sphi 0, %s118
    %s133 = sphi 0, %s119
    %s137 = sphi 0, %s137
    %s139 = sphi 0, %s137
    %s140 = sphi 0, %s139
    %s154 = sphi 0, %s140
    %s158 = sphi 0, %s158
    %s160 = sphi 0, %s158
    %s161 = sphi 0, %s160
    %s175 = sphi 0, %s161
    %s179 = sphi 0, %s179
    %s181 = sphi 0, %s179
    %s182 = sphi 0, %s181
    %s196 = sphi 0, %s182
    %s200 = sphi 0, %s200
    %s202 = sphi 0, %s200
    %s203 = sphi 0, %s202
    %s217 = sphi 0, %s203
    %s221 = sphi 0, %s221
    %s223 = sphi 0, %s221
    %s224 = sphi 0, %s223
    %s238 = sphi 0, %s224
    %s242 = sphi 0, %s242
    %s244 = sphi 0, %s242
    %s245 = sphi 0, %s244
    %s259 = sphi 0, %s245
    %s263 = sphi 0, %s263
    %s265 = sphi 0, %s263
    %s266 = sphi 0, %s265
    %s280 = sphi 0, %s266
    %s284 = sphi 0, %s284
    %s286 = sphi 0, %s284
    %s287 = sphi 0, %s286
    %s301 = sphi 0, %s287
    %s307 = sphi 0, %s309
    %s310 = sphi 0, %s307
    %s311 = sphi 0, %s310
    %s327 = sphi 0, %s311
  $region4: #{improved_location_predictor.6} parent=0 // loop_header_branch
    %22 = sbr.rel (%p20) target = $region8
  $region5: #{improved_location_predictor.6} parent=0 // loop_body
    %s24 = ssub.s32 %s19, 1
    %s25 = ssub.s32 %s19, 2
    %s26 = sadd.s32 %s19, 1
    %s27 = ssub.s32 %s19, %s26
    %p28 = scmp.eq.s32.totalorder %s27, 0
    %s30 = sadd.s32 %s29, 1
    %s31 = scalar_select %p28, %s29, %s30
    %p34 = pneg %p28
    %p35 = scmp.eq.s32.totalorder %s19, 1
    %p36 = por %p34, %p35
    %p37 = scmp.ne.s32.totalorder %s29, %s32
    %p38 = scmp.eq.s32.totalorder %s19, 0
    %p39 = por %p37, %p38
    %p40 = scmp.ne.s32.totalorder %s29, %s32
    %p41 = scmp.eq.s32.totalorder %s24, 1
    %p42 = por %p40, %p41
    %p43 = scmp.ne.s32.totalorder %s32, %s33
    %p44 = scmp.eq.s32.totalorder %s24, 0
    %p45 = por %p43, %p44
    %p46 = scmp.ne.s32.totalorder %s32, %s33
    %p47 = scmp.eq.s32.totalorder %s25, 1
    %p48 = por %p46, %p47
    %p50 = scmp.ne.s32.totalorder %s33, %s49
    %p51 = scmp.eq.s32.totalorder %s25, 0
    %p52 = por %p50, %p51
    %s54 = sadd.s32 %s53, 1
    %p57 = scmp.eq.s32.totalorder %s19, 1
    %p58 = scmp.ne.s32.totalorder %s53, %s55
    %p59 = scmp.eq.s32.totalorder %s19, 0
    %p60 = por %p58, %p59
    %p61 = scmp.ne.s32.totalorder %s53, %s55
    %p62 = scmp.eq.s32.totalorder %s24, 1
    %p63 = por %p61, %p62
    %p64 = scmp.ne.s32.totalorder %s55, %s56
    %p65 = scmp.eq.s32.totalorder %s24, 0
    %p66 = por %p64, %p65
    %p67 = scmp.ne.s32.totalorder %s55, %s56
    %p68 = scmp.eq.s32.totalorder %s25, 1
    %p69 = por %p67, %p68
    %p71 = scmp.ne.s32.totalorder %s56, %s70
    %p72 = scmp.eq.s32.totalorder %s25, 0
    %p73 = por %p71, %p72
    %s75 = sadd.s32 %s74, 1
    %p78 = scmp.eq.s32.totalorder %s19, 1
    %p79 = scmp.ne.s32.totalorder %s74, %s76
    %p80 = scmp.eq.s32.totalorder %s19, 0
    %p81 = por %p79, %p80
    %p82 = scmp.ne.s32.totalorder %s74, %s76
    %p83 = scmp.eq.s32.totalorder %s24, 1
    %p84 = por %p82, %p83
    %p85 = scmp.ne.s32.totalorder %s76, %s77
    %p86 = scmp.eq.s32.totalorder %s24, 0
    %p87 = por %p85, %p86
    %p88 = scmp.ne.s32.totalorder %s76, %s77
    %p89 = scmp.eq.s32.totalorder %s25, 1
    %p90 = por %p88, %p89
    %p92 = scmp.ne.s32.totalorder %s77, %s91
    %p93 = scmp.eq.s32.totalorder %s25, 0
    %p94 = por %p92, %p93
    %s96 = sadd.s32 %s95, 1
    %p99 = scmp.eq.s32.totalorder %s19, 1
    %p100 = scmp.ne.s32.totalorder %s95, %s97
    %p101 = scmp.eq.s32.totalorder %s19, 0
    %p102 = por %p100, %p101
    %p103 = scmp.ne.s32.totalorder %s95, %s97
    %p104 = scmp.eq.s32.totalorder %s24, 1
    %p105 = por %p103, %p104
    %p106 = scmp.ne.s32.totalorder %s97, %s98
    %p107 = scmp.eq.s32.totalorder %s24, 0
    %p108 = por %p106, %p107
    %p109 = scmp.ne.s32.totalorder %s97, %s98
    %p110 = scmp.eq.s32.totalorder %s25, 1
    %p111 = por %p109, %p110
    %p113 = scmp.ne.s32.totalorder %s98, %s112
    %p114 = scmp.eq.s32.totalorder %s25, 0
    %p115 = por %p113, %p114
    %s117 = sadd.s32 %s116, 1
    %p120 = scmp.eq.s32.totalorder %s19, 1
    %p121 = scmp.ne.s32.totalorder %s116, %s118
    %p122 = scmp.eq.s32.totalorder %s19, 0
    %p123 = por %p121, %p122
    %p124 = scmp.ne.s32.totalorder %s116, %s118
    %p125 = scmp.eq.s32.totalorder %s24, 1
    %p126 = por %p124, %p125
    %p127 = scmp.ne.s32.totalorder %s118, %s119
    %p128 = scmp.eq.s32.totalorder %s24, 0
    %p129 = por %p127, %p128
    %p130 = scmp.ne.s32.totalorder %s118, %s119
    %p131 = scmp.eq.s32.totalorder %s25, 1
    %p132 = por %p130, %p131
    %p134 = scmp.ne.s32.totalorder %s119, %s133
    %p135 = scmp.eq.s32.totalorder %s25, 0
    %p136 = por %p134, %p135
    %s138 = sadd.s32 %s137, 1
    %p141 = scmp.eq.s32.totalorder %s19, 1
    %p142 = scmp.ne.s32.totalorder %s137, %s139
    %p143 = scmp.eq.s32.totalorder %s19, 0
    %p144 = por %p142, %p143
    %p145 = scmp.ne.s32.totalorder %s137, %s139
    %p146 = scmp.eq.s32.totalorder %s24, 1
    %p147 = por %p145, %p146
    %p148 = scmp.ne.s32.totalorder %s139, %s140
    %p149 = scmp.eq.s32.totalorder %s24, 0
    %p150 = por %p148, %p149
    %p151 = scmp.ne.s32.totalorder %s139, %s140
    %p152 = scmp.eq.s32.totalorder %s25, 1
    %p153 = por %p151, %p152
    %p155 = scmp.ne.s32.totalorder %s140, %s154
    %p156 = scmp.eq.s32.totalorder %s25, 0
    %p157 = por %p155, %p156
    %s159 = sadd.s32 %s158, 1
    %p162 = scmp.eq.s32.totalorder %s19, 1
    %p163 = scmp.ne.s32.totalorder %s158, %s160
    %p164 = scmp.eq.s32.totalorder %s19, 0
    %p165 = por %p163, %p164
    %p166 = scmp.ne.s32.totalorder %s158, %s160
    %p167 = scmp.eq.s32.totalorder %s24, 1
    %p168 = por %p166, %p167
    %p169 = scmp.ne.s32.totalorder %s160, %s161
    %p170 = scmp.eq.s32.totalorder %s24, 0
    %p171 = por %p169, %p170
    %p172 = scmp.ne.s32.totalorder %s160, %s161
    %p173 = scmp.eq.s32.totalorder %s25, 1
    %p174 = por %p172, %p173
    %p176 = scmp.ne.s32.totalorder %s161, %s175
    %p177 = scmp.eq.s32.totalorder %s25, 0
    %p178 = por %p176, %p177
    %s180 = sadd.s32 %s179, 1
    %p183 = scmp.eq.s32.totalorder %s19, 1
    %p184 = scmp.ne.s32.totalorder %s179, %s181
    %p185 = scmp.eq.s32.totalorder %s19, 0
    %p186 = por %p184, %p185
    %p187 = scmp.ne.s32.totalorder %s179, %s181
    %p188 = scmp.eq.s32.totalorder %s24, 1
    %p189 = por %p187, %p188
    %p190 = scmp.ne.s32.totalorder %s181, %s182
    %p191 = scmp.eq.s32.totalorder %s24, 0
    %p192 = por %p190, %p191
    %p193 = scmp.ne.s32.totalorder %s181, %s182
    %p194 = scmp.eq.s32.totalorder %s25, 1
    %p195 = por %p193, %p194
    %p197 = scmp.ne.s32.totalorder %s182, %s196
    %p198 = scmp.eq.s32.totalorder %s25, 0
    %p199 = por %p197, %p198
    %s201 = sadd.s32 %s200, 1
    %p204 = scmp.eq.s32.totalorder %s19, 1
    %p205 = scmp.ne.s32.totalorder %s200, %s202
    %p206 = scmp.eq.s32.totalorder %s19, 0
    %p207 = por %p205, %p206
    %p208 = scmp.ne.s32.totalorder %s200, %s202
    %p209 = scmp.eq.s32.totalorder %s24, 1
    %p210 = por %p208, %p209
    %p211 = scmp.ne.s32.totalorder %s202, %s203
    %p212 = scmp.eq.s32.totalorder %s24, 0
    %p213 = por %p211, %p212
    %p214 = scmp.ne.s32.totalorder %s202, %s203
    %p215 = scmp.eq.s32.totalorder %s25, 1
    %p216 = por %p214, %p215
    %p218 = scmp.ne.s32.totalorder %s203, %s217
    %p219 = scmp.eq.s32.totalorder %s25, 0
    %p220 = por %p218, %p219
    %s222 = sadd.s32 %s221, 1
    %p225 = scmp.eq.s32.totalorder %s19, 1
    %p226 = scmp.ne.s32.totalorder %s221, %s223
    %p227 = scmp.eq.s32.totalorder %s19, 0
    %p228 = por %p226, %p227
    %p229 = scmp.ne.s32.totalorder %s221, %s223
    %p230 = scmp.eq.s32.totalorder %s24, 1
    %p231 = por %p229, %p230
    %p232 = scmp.ne.s32.totalorder %s223, %s224
    %p233 = scmp.eq.s32.totalorder %s24, 0
    %p234 = por %p232, %p233
    %p235 = scmp.ne.s32.totalorder %s223, %s224
    %p236 = scmp.eq.s32.totalorder %s25, 1
    %p237 = por %p235, %p236
    %p239 = scmp.ne.s32.totalorder %s224, %s238
    %p240 = scmp.eq.s32.totalorder %s25, 0
    %p241 = por %p239, %p240
    %s243 = sadd.s32 %s242, 1
    %p246 = scmp.eq.s32.totalorder %s19, 1
    %p247 = scmp.ne.s32.totalorder %s242, %s244
    %p248 = scmp.eq.s32.totalorder %s19, 0
    %p249 = por %p247, %p248
    %p250 = scmp.ne.s32.totalorder %s242, %s244
    %p251 = scmp.eq.s32.totalorder %s24, 1
    %p252 = por %p250, %p251
    %p253 = scmp.ne.s32.totalorder %s244, %s245
    %p254 = scmp.eq.s32.totalorder %s24, 0
    %p255 = por %p253, %p254
    %p256 = scmp.ne.s32.totalorder %s244, %s245
    %p257 = scmp.eq.s32.totalorder %s25, 1
    %p258 = por %p256, %p257
    %p260 = scmp.ne.s32.totalorder %s245, %s259
    %p261 = scmp.eq.s32.totalorder %s25, 0
    %p262 = por %p260, %p261
    %s264 = sadd.s32 %s263, 1
    %p267 = scmp.eq.s32.totalorder %s19, 1
    %p268 = scmp.ne.s32.totalorder %s263, %s265
    %p269 = scmp.eq.s32.totalorder %s19, 0
    %p270 = por %p268, %p269
    %p271 = scmp.ne.s32.totalorder %s263, %s265
    %p272 = scmp.eq.s32.totalorder %s24, 1
    %p273 = por %p271, %p272
    %p274 = scmp.ne.s32.totalorder %s265, %s266
    %p275 = scmp.eq.s32.totalorder %s24, 0
    %p276 = por %p274, %p275
    %p277 = scmp.ne.s32.totalorder %s265, %s266
    %p278 = scmp.eq.s32.totalorder %s25, 1
    %p279 = por %p277, %p278
    %p281 = scmp.ne.s32.totalorder %s266, %s280
    %p282 = scmp.eq.s32.totalorder %s25, 0
    %p283 = por %p281, %p282
    %s285 = sadd.s32 %s284, 1
    %p288 = scmp.eq.s32.totalorder %s19, 1
    %p289 = scmp.ne.s32.totalorder %s284, %s286
    %p290 = scmp.eq.s32.totalorder %s19, 0
    %p291 = por %p289, %p290
    %p292 = scmp.ne.s32.totalorder %s284, %s286
    %p293 = scmp.eq.s32.totalorder %s24, 1
    %p294 = por %p292, %p293
    %p295 = scmp.ne.s32.totalorder %s286, %s287
    %p296 = scmp.eq.s32.totalorder %s24, 0
    %p297 = por %p295, %p296
    %p298 = scmp.ne.s32.totalorder %s286, %s287
    %p299 = scmp.eq.s32.totalorder %s25, 1
    %p300 = por %p298, %p299
    %p302 = scmp.ne.s32.totalorder %s287, %s301
    %p303 = scmp.eq.s32.totalorder %s25, 0
    %p304 = por %p302, %p303
    %s305 = ssub.s32 %s19, %s26
    %p306 = scmp.eq.s32.totalorder %s305, 0
    %s308 = sadd.s32 %s307, 1
    %s309 = scalar_select %p306, %s307, %s308
    %p312 = pneg %p306
    %p313 = scmp.eq.s32.totalorder %s19, 1
    %p314 = por %p312, %p313
    %p315 = scmp.ne.s32.totalorder %s307, %s310
    %p316 = scmp.eq.s32.totalorder %s19, 0
    %p317 = por %p315, %p316
    %p318 = scmp.ne.s32.totalorder %s307, %s310
    %p319 = scmp.eq.s32.totalorder %s24, 1
    %p320 = por %p318, %p319
    %p321 = scmp.ne.s32.totalorder %s310, %s311
    %p322 = scmp.eq.s32.totalorder %s24, 0
    %p323 = por %p321, %p322
    %p324 = scmp.ne.s32.totalorder %s310, %s311
    %p325 = scmp.eq.s32.totalorder %s25, 1
    %p326 = por %p324, %p325
    %p328 = scmp.ne.s32.totalorder %s311, %s327
    %p329 = scmp.eq.s32.totalorder %s25, 0
    %p330 = por %p328, %p329
    %p331 = scmp.le.s32.totalorder 1, %s19
    %p332 = scmp.lt.s32.totalorder %s19, 3
    %p333 = pnand %p331, %p332
    %p334 = pneg %p333
    // Predicated region
    $region9: #{improved_location_predictor.6} parent=5 // pred_check
      _
    $region10: #{improved_location_predictor.6} parent=5 // pred_check_branch
      %336 = sbr.rel (%p333) target = $region12
    $region11: #{improved_location_predictor.6} parent=5 // pred_region
      %s337 = ssub.s32 %s19, 1
      // Predicated region
      $region13: #{improved_location_predictor.6} parent=11 // pred_check
        %p338 = pneg %p66
      $region14: #{improved_location_predictor.6} parent=11 // pred_check_branch
        %340 = sbr.rel (%p338) target = $region16
      $region15: #{improved_location_predictor.6} parent=11 // pred_region
        _
      $region16: #{improved_location_predictor.6} parent=11 // pred_fallthru
        _
      // Predicated region
      $region17: #{improved_location_predictor.6} parent=11 // pred_check
        %p341 = pneg %p87
      $region18: #{improved_location_predictor.6} parent=11 // pred_check_branch
        %343 = sbr.rel (%p341) target = $region20
      $region19: #{improved_location_predictor.6} parent=11 // pred_region
        _
      $region20: #{improved_location_predictor.6} parent=11 // pred_fallthru
        _
      // Predicated region
      $region21: #{improved_location_predictor.6} parent=11 // pred_check
        %p344 = pneg %p108
      $region22: #{improved_location_predictor.6} parent=11 // pred_check_branch
        %346 = sbr.rel (%p344) target = $region24
      $region23: #{improved_location_predictor.6} parent=11 // pred_region
        _
      $region24: #{improved_location_predictor.6} parent=11 // pred_fallthru
        _
      // Predicated region
      $region25: #{improved_location_predictor.6} parent=11 // pred_check
        %p347 = pneg %p129
      $region26: #{improved_location_predictor.6} parent=11 // pred_check_branch
        %349 = sbr.rel (%p347) target = $region28
      $region27: #{improved_location_predictor.6} parent=11 // pred_region
        _
      $region28: #{improved_location_predictor.6} parent=11 // pred_fallthru
        _
      // Predicated region
      $region29: #{improved_location_predictor.6} parent=11 // pred_check
        %p350 = pneg %p150
      $region30: #{improved_location_predictor.6} parent=11 // pred_check_branch
        %352 = sbr.rel (%p350) target = $region32
      $region31: #{improved_location_predictor.6} parent=11 // pred_region
        _
      $region32: #{improved_location_predictor.6} parent=11 // pred_fallthru
        _
      // Predicated region
      $region33: #{improved_location_predictor.6} parent=11 // pred_check
        %p353 = pneg %p171
      $region34: #{improved_location_predictor.6} parent=11 // pred_check_branch
        %355 = sbr.rel (%p353) target = $region36
      $region35: #{improved_location_predictor.6} parent=11 // pred_region
        _
      $region36: #{improved_location_predictor.6} parent=11 // pred_fallthru
        _
      // Predicated region
      $region37: #{improved_location_predictor.6} parent=11 // pred_check
        %p356 = pneg %p192
      $region38: #{improved_location_predictor.6} parent=11 // pred_check_branch
        %358 = sbr.rel (%p356) target = $region40
      $region39: #{improved_location_predictor.6} parent=11 // pred_region
        _
      $region40: #{improved_location_predictor.6} parent=11 // pred_fallthru
        _
      // Predicated region
      $region41: #{improved_location_predictor.6} parent=11 // pred_check
        %p359 = pneg %p213
      $region42: #{improved_location_predictor.6} parent=11 // pred_check_branch
        %361 = sbr.rel (%p359) target = $region44
      $region43: #{improved_location_predictor.6} parent=11 // pred_region
        _
      $region44: #{improved_location_predictor.6} parent=11 // pred_fallthru
        _
      // Predicated region
      $region45: #{improved_location_predictor.6} parent=11 // pred_check
        %p362 = pneg %p234
      $region46: #{improved_location_predictor.6} parent=11 // pred_check_branch
        %364 = sbr.rel (%p362) target = $region48
      $region47: #{improved_location_predictor.6} parent=11 // pred_region
        _
      $region48: #{improved_location_predictor.6} parent=11 // pred_fallthru
        _
      // Predicated region
      $region49: #{improved_location_predictor.6} parent=11 // pred_check
        %p365 = pneg %p255
      $region50: #{improved_location_predictor.6} parent=11 // pred_check_branch
        %367 = sbr.rel (%p365) target = $region52
      $region51: #{improved_location_predictor.6} parent=11 // pred_region
        _
      $region52: #{improved_location_predictor.6} parent=11 // pred_fallthru
        _
      // Predicated region
      $region53: #{improved_location_predictor.6} parent=11 // pred_check
        %p368 = pneg %p276
      $region54: #{improved_location_predictor.6} parent=11 // pred_check_branch
        %370 = sbr.rel (%p368) target = $region56
      $region55: #{improved_location_predictor.6} parent=11 // pred_region
        _
      $region56: #{improved_location_predictor.6} parent=11 // pred_fallthru
        _
      // Predicated region
      $region57: #{improved_location_predictor.6} parent=11 // pred_check
        %p371 = pneg %p297
      $region58: #{improved_location_predictor.6} parent=11 // pred_check_branch
        %373 = sbr.rel (%p371) target = $region60
      $region59: #{improved_location_predictor.6} parent=11 // pred_region
        _
      $region60: #{improved_location_predictor.6} parent=11 // pred_fallthru
        _
    $region12: #{improved_location_predictor.6} parent=5 // pred_fallthru
      _
    %p374 = scmp.lt.s32.totalorder %s19, 2
    // Predicated region
    $region61: #{improved_location_predictor.6} parent=5 // pred_check
      %p375 = pneg %p374
    $region62: #{improved_location_predictor.6} parent=5 // pred_check_branch
      %377 = sbr.rel (%p375) target = $region64
    $region63: #{improved_location_predictor.6} parent=5 // pred_region
      // Predicated region
      $region65: #{improved_location_predictor.6} parent=63 // pred_check
        %p378 = pneg %p39
      $region66: #{improved_location_predictor.6} parent=63 // pred_check_branch
        %380 = sbr.rel (%p378) target = $region68
      $region67: #{improved_location_predictor.6} parent=63 // pred_region
        %p381 = scmp.lt.s32.totalorder %s19, 1
        %s382 = scalar_select %p381, %s19, 1
        %s383 = smul.addr %s382, 9
        %s384 = smul.addr %s383, 8
        %s385 = scalar_lea.vmem %s0, %s384
      $region68: #{improved_location_predictor.6} parent=63 // pred_fallthru
        _
    $region64: #{improved_location_predictor.6} parent=5 // pred_fallthru
      _
    %p386 = scmp.le.s32.totalorder 1, %s19
    %p387 = scmp.lt.s32.totalorder %s19, 3
    %p388 = pnand %p386, %p387
    %p389 = pneg %p388
    // Predicated region
    $region69: #{improved_location_predictor.6} parent=5 // pred_check
      _
    $region70: #{improved_location_predictor.6} parent=5 // pred_check_branch
      %391 = sbr.rel (%p388) target = $region72
    $region71: #{improved_location_predictor.6} parent=5 // pred_region
      %s392 = ssub.s32 %s19, 1
      %p393 = scmp.lt.s32.totalorder %s24, 1
      %s394 = scalar_select %p393, %s24, 1
      %s395 = smul.addr %s394, 9
      %s396 = smul.addr %s395, 8
      %s397 = scalar_lea.vmem %s0, %s396
      %p398 = pneg %p45
      %p399 = pneg %p42
      %p400 = pneg %p66
      %p401 = pneg %p63
      %p402 = pneg %p87
      %p403 = pneg %p84
      %p404 = pneg %p108
      %p405 = pneg %p105
      %p406 = pneg %p129
      %p407 = pneg %p126
      %p408 = pneg %p150
      %p409 = pneg %p147
      %p410 = pneg %p171
      %p411 = pneg %p168
      %p412 = pneg %p192
      %p413 = pneg %p189
      %p414 = pneg %p213
      %p415 = pneg %p210
      %p416 = pneg %p234
      %p417 = pneg %p231
      %p418 = pneg %p255
      %p419 = pneg %p252
      %p420 = pneg %p276
      %p421 = pneg %p273
      %p422 = pneg %p297
      %p423 = pneg %p294
      %p424 = pneg %p323
      %p425 = pneg %p320
      %p426 = scmp.lt.s32.totalorder %s24, 1
      %s427 = scalar_select %p426, %s24, 1
      %s428 = smul.addr %s427, 9
      %s429 = smul.addr %s428, 8
      %s430 = scalar_lea.vmem %s13, %s429
      %p431 = scmp.lt.s32.totalorder %s24, 1
      %s432 = scalar_select %p431, %s24, 1
      %s433 = smul.addr %s432, 9
      %s434 = smul.addr %s433, 8
      %s435 = scalar_lea.vmem %s0, %s434
      %p436 = scmp.lt.s32.totalorder %s24, 1
      %s437 = scalar_select %p436, %s24, 1
      %s438 = smul.addr %s437, 9
      %s439 = smul.addr %s438, 8
      %s440 = scalar_lea.vmem %s13, %s439
      %v441 = vld [vmem:[%s435] sm:$0xff]
      %v442 = vld [vmem:[%s435 + $0x8] sm:$0xff]
      %v443 = vld [vmem:[%s435 + $0x10] sm:$0xff]
      %v444 = vld [vmem:[%s435 + $0x18] sm:$0xff]
      %v445 = vld [vmem:[%s435 + $0x20] sm:$0xff]
      %v446 = vld [vmem:[%s435 + $0x28] sm:$0xff]
      %v447 = vld [vmem:[%s435 + $0x30] sm:$0xff]
      %v448 = vld [vmem:[%s435 + $0x38] sm:$0xff]
      %v449 = vld [vmem:[%s435 + $0x40] sm:$0x1]
      %v450 = vld [vmem:[%s1] sm:$0xff]
      %v451 = vld [vmem:[%s1 + $0x8] sm:$0xff]
      %v452 = vld [vmem:[%s1 + $0x10] sm:$0xff]
      %v453 = vld [vmem:[%s1 + $0x18] sm:$0xff]
      %v454 = vld [vmem:[%s2] sm:$0x1]
      %v456 = vlaneseq
      %v457 = vshrl.u32 %v456, 7
      %v458 = vsub.s32 0, %v457
      %v459 = vrot.slane %v454, %v458
      %vm461 = vcmask 261120
      %v463 = vsel %vm461, %v441, 0
      %v466 = vsel %vm461, %v442, 0
      %v469 = vsel %vm461, %v443, 0
      %v472 = vsel %vm461, %v444, 0
      %v475 = vsel %vm461, %v445, 0
      %v478 = vsel %vm461, %v446, 0
      %v481 = vsel %vm461, %v447, 0
      %v484 = vsel %vm461, %v448, 0
      %v487 = vsel %vm461, %v449, 0
      %489 = vmatprep.subr.mxu0 0.0
      %490 = vmatpush1.msra.mxu0 0.0
      %491 = vmatprep.subr.mxu0 0.0
      %492 = vmatpush1.msra.mxu0 0.0
      %493 = vmatprep.subr.mxu0 0.0
      %494 = vmatpush1.msra.mxu0 0.0
      %495 = vmatprep.subr.mxu0 0.0
      %496 = vmatpush1.msra.mxu0 0.0
      %497 = vmatprep.subr.mxu0 0.0
      %498 = vmatpush1.msra.mxu0 0.0
      %499 = vmatprep.subr.mxu0 0.0
      %500 = vmatpush1.msra.mxu0 0.0
      %501 = vmatprep.subr.mxu0 0.0
      %502 = vmatpush1.msra.mxu0 0.0
      %503 = vmatprep.subr.mxu0 0.0
      %504 = vmatpush1.msra.mxu0 0.0
      %505 = vmatprep.subr.mxu0 0.0
      %506 = vmatpush1.msra.mxu0 0.0
      %507 = vmatprep.subr.mxu0 0.0
      %508 = vmatpush1.msra.mxu0 0.0
      %509 = vmatprep.subr.mxu0 0.0
      %510 = vmatpush1.msra.mxu0 0.0
      %511 = vmatprep.subr.mxu0 0.0
      %512 = vmatpush1.msra.mxu0 0.0
      %513 = vmatprep.subr.mxu0 0.0
      %514 = vmatpush1.msra.mxu0 %v453
      %515 = vmatprep.subr.mxu0 0.0
      %516 = vmatpush1.msra.mxu0 %v452
      %517 = vmatprep.subr.mxu0 0.0
      %518 = vmatpush1.msra.mxu0 %v451
      %519 = vmatprep.subr.mxu0 0.0
      %520 = vmatpush1.msra.mxu0 %v450
      %521 = vmatprep.subr.mxu0 0.0
      %522 = vmatpush2.msra.mxu0 0.0
      %523 = vmatprep.subr.mxu0 0.0
      %524 = vmatpush2.msra.mxu0 0.0
      %525 = vmatprep.subr.mxu0 0.0
      %526 = vmatpush2.msra.mxu0 0.0
      %527 = vmatprep.subr.mxu0 0.0
      %528 = vmatpush2.msra.mxu0 0.0
      %529 = vmatprep.subr.mxu0 0.0
      %530 = vmatpush2.msra.mxu0 0.0
      %531 = vmatprep.subr.mxu0 0.0
      %532 = vmatpush2.msra.mxu0 0.0
      %533 = vmatprep.subr.mxu0 0.0
      %534 = vmatpush2.msra.mxu0 0.0
      %535 = vmatprep.subr.mxu0 0.0
      %536 = vmatpush2.msra.mxu0 0.0
      %537 = vmatprep.subr.mxu0 0.0
      %538 = vmatpush2.msra.mxu0 0.0
      %539 = vmatprep.subr.mxu0 0.0
      %540 = vmatpush2.msra.mxu0 0.0
      %541 = vmatprep.subr.mxu0 0.0
      %542 = vmatpush2.msra.mxu0 0.0
      %543 = vmatprep.subr.mxu0 0.0
      %544 = vmatpush2.msra.mxu0 0.0
      %545 = vmatprep.subr.mxu0 0.0
      %546 = vmatpush2.msra.mxu0 0.0
      %547 = vmatprep.subr.mxu0 0.0
      %548 = vmatpush2.msra.mxu0 0.0
      %549 = vmatprep.subr.mxu0 0.0
      %550 = vmatpush2.msra.mxu0 0.0
      %551 = vmatprep.subr.mxu0 0.0
      %552 = vmatpush2.msra.mxu0 0.0
      %553 = vmatprep.mubr.f32.mxu0 0.0
      %554 = vmatmul.mubr.f32.gmra.mxu0 %v463
      %v555 = vpop.f32.mrf.mxu0
      %v556 = vadd.f32 %v459, %v555
      %v557 = vpop.f32.mrf.mxu0
      %558 = vmatprep.mubr.f32.mxu0 0.0
      %559 = vmatmul.mubr.f32.gmra.mxu0 %v466
      %v560 = vpop.f32.mrf.mxu0
      %v561 = vadd.f32 %v459, %v560
      %v562 = vpop.f32.mrf.mxu0
      %563 = vmatprep.mubr.f32.mxu0 0.0
      %564 = vmatmul.mubr.f32.gmra.mxu0 %v469
      %v565 = vpop.f32.mrf.mxu0
      %v566 = vadd.f32 %v459, %v565
      %v567 = vpop.f32.mrf.mxu0
      %568 = vmatprep.mubr.f32.mxu0 0.0
      %569 = vmatmul.mubr.f32.gmra.mxu0 %v472
      %v570 = vpop.f32.mrf.mxu0
      %v571 = vadd.f32 %v459, %v570
      %v572 = vpop.f32.mrf.mxu0
      %573 = vmatprep.mubr.f32.mxu0 0.0
      %574 = vmatmul.mubr.f32.gmra.mxu0 %v475
      %v575 = vpop.f32.mrf.mxu0
      %v576 = vadd.f32 %v459, %v575
      %v577 = vpop.f32.mrf.mxu0
      %578 = vmatprep.mubr.f32.mxu0 0.0
      %579 = vmatmul.mubr.f32.gmra.mxu0 %v478
      %v580 = vpop.f32.mrf.mxu0
      %v581 = vadd.f32 %v459, %v580
      %v582 = vpop.f32.mrf.mxu0
      %583 = vmatprep.mubr.f32.mxu0 0.0
      %584 = vmatmul.mubr.f32.gmra.mxu0 %v481
      %v585 = vpop.f32.mrf.mxu0
      %v586 = vadd.f32 %v459, %v585
      %v587 = vpop.f32.mrf.mxu0
      %588 = vmatprep.mubr.f32.mxu0 0.0
      %589 = vmatmul.mubr.f32.gmra.mxu0 %v484
      %v590 = vpop.f32.mrf.mxu0
      %v591 = vadd.f32 %v459, %v590
      %v592 = vpop.f32.mrf.mxu0
      %593 = vmatprep.mubr.f32.mxu0 0.0
      %594 = vmatmul.mubr.f32.gmra.mxu0 %v487
      %v595 = vpop.f32.mrf.mxu0
      %v596 = vadd.f32 %v459, %v595
      %v597 = vpop.f32.mrf.mxu0
      %598 = vdwg.mxu0
      %v599 = vmul.f32 %v556, 0.35355338
      %v600 = vmul.f32 %v561, 0.35355338
      %v601 = vmul.f32 %v566, 0.35355338
      %v602 = vmul.f32 %v571, 0.35355338
      %v603 = vmul.f32 %v576, 0.35355338
      %v604 = vmul.f32 %v581, 0.35355338
      %v605 = vmul.f32 %v586, 0.35355338
      %v606 = vmul.f32 %v591, 0.35355338
      %v607 = vmul.f32 %v596, 0.35355338
      %617 = vrot.lane.b32.xlu0 %v556, 96
      %v618 = vpop.permute.xlu0 %617
      %619 = vrot.lane.b32.xlu0 %v561, 96
      %v620 = vpop.permute.xlu0 %619
      %621 = vrot.lane.b32.xlu0 %v566, 96
      %v622 = vpop.permute.xlu0 %621
      %623 = vrot.lane.b32.xlu0 %v571, 96
      %v624 = vpop.permute.xlu0 %623
      %625 = vrot.lane.b32.xlu0 %v576, 96
      %v626 = vpop.permute.xlu0 %625
      %627 = vrot.lane.b32.xlu0 %v581, 96
      %v628 = vpop.permute.xlu0 %627
      %629 = vrot.lane.b32.xlu0 %v586, 96
      %v630 = vpop.permute.xlu0 %629
      %631 = vrot.lane.b32.xlu0 %v591, 96
      %v632 = vpop.permute.xlu0 %631
      %633 = vrot.lane.b32.xlu0 %v596, 96
      %v634 = vpop.permute.xlu0 %633
      %vm635 = vcmask 64512
      %v637 = vsel %vm635, %v599, 0
      %v640 = vsel %vm635, %v600, 0
      %v643 = vsel %vm635, %v601, 0
      %v646 = vsel %vm635, %v602, 0
      %v649 = vsel %vm635, %v603, 0
      %v652 = vsel %vm635, %v604, 0
      %v655 = vsel %vm635, %v605, 0
      %v658 = vsel %vm635, %v606, 0
      %v661 = vsel %vm635, %v607, 0
      %v663 = vsel %vm635, %v618, 0
      %v665 = vsel %vm635, %v620, 0
      %v667 = vsel %vm635, %v622, 0
      %v669 = vsel %vm635, %v624, 0
      %v671 = vsel %vm635, %v626, 0
      %v673 = vsel %vm635, %v628, 0
      %v675 = vsel %vm635, %v630, 0
      %v677 = vsel %vm635, %v632, 0
      %v679 = vsel %vm635, %v634, 0
      %681 = vmatprep.subr.mxu0 0.0
      %682 = vmatpush1.xpose.msra.mxu0 0.0
      %683 = vmatprep.subr.mxu0 0.0
      %684 = vmatpush1.xpose.msra.mxu0 0.0
      %685 = vmatprep.subr.mxu0 0.0
      %686 = vmatpush1.xpose.msra.mxu0 0.0
      %687 = vmatprep.subr.mxu0 0.0
      %688 = vmatpush1.xpose.msra.mxu0 0.0
      %689 = vmatprep.subr.mxu0 0.0
      %690 = vmatpush1.xpose.msra.mxu0 0.0
      %691 = vmatprep.subr.mxu0 0.0
      %692 = vmatpush1.xpose.msra.mxu0 0.0
      %693 = vmatprep.subr.mxu0 0.0
      %694 = vmatpush1.xpose.msra.mxu0 0.0
      %695 = vmatprep.subr.mxu0 0.0
      %696 = vmatpush1.xpose.msra.mxu0 %v679
      %697 = vmatprep.subr.mxu0 0.0
      %698 = vmatpush1.xpose.msra.mxu0 %v677
      %699 = vmatprep.subr.mxu0 0.0
      %700 = vmatpush1.xpose.msra.mxu0 %v675
      %701 = vmatprep.subr.mxu0 0.0
      %702 = vmatpush1.xpose.msra.mxu0 %v673
      %703 = vmatprep.subr.mxu0 0.0
      %704 = vmatpush1.xpose.msra.mxu0 %v671
      %705 = vmatprep.subr.mxu0 0.0
      %706 = vmatpush1.xpose.msra.mxu0 %v669
      %707 = vmatprep.subr.mxu0 0.0
      %708 = vmatpush1.xpose.msra.mxu0 %v667
      %709 = vmatprep.subr.mxu0 0.0
      %710 = vmatpush1.xpose.msra.mxu0 %v665
      %711 = vmatprep.subr.mxu0 0.0
      %712 = vmatpush1.xpose.msra.mxu0 %v663
      %713 = vmatprep.subr.mxu0 0.0
      %714 = vmatpush2.xpose.msra.mxu0 0.0
      %715 = vmatprep.subr.mxu0 0.0
      %716 = vmatpush2.xpose.msra.mxu0 0.0
      %717 = vmatprep.subr.mxu0 0.0
      %718 = vmatpush2.xpose.msra.mxu0 0.0
      %719 = vmatprep.subr.mxu0 0.0
      %720 = vmatpush2.xpose.msra.mxu0 0.0
      %721 = vmatprep.subr.mxu0 0.0
      %722 = vmatpush2.xpose.msra.mxu0 0.0
      %723 = vmatprep.subr.mxu0 0.0
      %724 = vmatpush2.xpose.msra.mxu0 0.0
      %725 = vmatprep.subr.mxu0 0.0
      %726 = vmatpush2.xpose.msra.mxu0 0.0
      %727 = vmatprep.subr.mxu0 0.0
      %728 = vmatpush2.xpose.msra.mxu0 0.0
      %729 = vmatprep.subr.mxu0 0.0
      %730 = vmatpush2.xpose.msra.mxu0 0.0
      %731 = vmatprep.subr.mxu0 0.0
      %732 = vmatpush2.xpose.msra.mxu0 0.0
      %733 = vmatprep.subr.mxu0 0.0
      %734 = vmatpush2.xpose.msra.mxu0 0.0
      %735 = vmatprep.subr.mxu0 0.0
      %736 = vmatpush2.xpose.msra.mxu0 0.0
      %737 = vmatprep.subr.mxu0 0.0
      %738 = vmatpush2.xpose.msra.mxu0 0.0
      %739 = vmatprep.subr.mxu0 0.0
      %740 = vmatpush2.xpose.msra.mxu0 0.0
      %741 = vmatprep.subr.mxu0 0.0
      %742 = vmatpush2.xpose.msra.mxu0 0.0
      %743 = vmatprep.subr.mxu0 0.0
      %744 = vmatpush2.xpose.msra.mxu0 0.0
      %745 = vmatprep.mubr.f32.mxu0 0.0
      %746 = vmatmul.mubr.f32.gmra.mxu0 %v637
      %v747 = vpop.f32.mrf.mxu0
      %v748 = vadd.f32 0.0, %v747
      %v749 = vpop.f32.mrf.mxu0
      %750 = vmatprep.mubr.f32.mxu0 0.0
      %751 = vmatmul.mubr.f32.gmra.mxu0 %v640
      %v752 = vpop.f32.mrf.mxu0
      %v753 = vadd.f32 0.0, %v752
      %v754 = vpop.f32.mrf.mxu0
      %755 = vmatprep.mubr.f32.mxu0 0.0
      %756 = vmatmul.mubr.f32.gmra.mxu0 %v643
      %v757 = vpop.f32.mrf.mxu0
      %v758 = vadd.f32 0.0, %v757
      %v759 = vpop.f32.mrf.mxu0
      %760 = vmatprep.mubr.f32.mxu0 0.0
      %761 = vmatmul.mubr.f32.gmra.mxu0 %v646
      %v762 = vpop.f32.mrf.mxu0
      %v763 = vadd.f32 0.0, %v762
      %v764 = vpop.f32.mrf.mxu0
      %765 = vmatprep.mubr.f32.mxu0 0.0
      %766 = vmatmul.mubr.f32.gmra.mxu0 %v649
      %v767 = vpop.f32.mrf.mxu0
      %v768 = vadd.f32 0.0, %v767
      %v769 = vpop.f32.mrf.mxu0
      %770 = vmatprep.mubr.f32.mxu0 0.0
      %771 = vmatmul.mubr.f32.gmra.mxu0 %v652
      %v772 = vpop.f32.mrf.mxu0
      %v773 = vadd.f32 0.0, %v772
      %v774 = vpop.f32.mrf.mxu0
      %775 = vmatprep.mubr.f32.mxu0 0.0
      %776 = vmatmul.mubr.f32.gmra.mxu0 %v655
      %v777 = vpop.f32.mrf.mxu0
      %v778 = vadd.f32 0.0, %v777
      %v779 = vpop.f32.mrf.mxu0
      %780 = vmatprep.mubr.f32.mxu0 0.0
      %781 = vmatmul.mubr.f32.gmra.mxu0 %v658
      %v782 = vpop.f32.mrf.mxu0
      %v783 = vadd.f32 0.0, %v782
      %v784 = vpop.f32.mrf.mxu0
      %785 = vmatprep.mubr.f32.mxu0 0.0
      %786 = vmatmul.mubr.f32.gmra.mxu0 %v661
      %v787 = vpop.f32.mrf.mxu0
      %v788 = vadd.f32 0.0, %v787
      %v789 = vpop.f32.mrf.mxu0
      %790 = vdwg.mxu0
      %vm791 = vcmask 531456
      %v792 = vsel %vm791, %v748, -inf
      %793 = vmax.xlane.f32.xlu0 %v792
      %v794 = vpop.xlane.xlu0 %793
      %v795 = vsel %vm791, %v753, -inf
      %796 = vmax.xlane.f32.xlu0 %v795
      %v797 = vpop.xlane.xlu0 %796
      %v798 = vsel %vm791, %v758, -inf
      %799 = vmax.xlane.f32.xlu0 %v798
      %v800 = vpop.xlane.xlu0 %799
      %v801 = vsel %vm791, %v763, -inf
      %802 = vmax.xlane.f32.xlu0 %v801
      %v803 = vpop.xlane.xlu0 %802
      %v804 = vsel %vm791, %v768, -inf
      %805 = vmax.xlane.f32.xlu0 %v804
      %v806 = vpop.xlane.xlu0 %805
      %v807 = vsel %vm791, %v773, -inf
      %808 = vmax.xlane.f32.xlu0 %v807
      %v809 = vpop.xlane.xlu0 %808
      %v810 = vsel %vm791, %v778, -inf
      %811 = vmax.xlane.f32.xlu0 %v810
      %v812 = vpop.xlane.xlu0 %811
      %v813 = vsel %vm791, %v783, -inf
      %814 = vmax.xlane.f32.xlu0 %v813
      %v815 = vpop.xlane.xlu0 %814
      %vm816 = vcmask 524288
      %v817 = vsel %vm816, %v788, -inf
      %818 = vmax.xlane.f32.xlu0 %v817
      %v819 = vpop.xlane.xlu0 %818
      %v820 = vsub.f32 %v748, %v794
      %v821 = vsub.f32 %v753, %v797
      %v822 = vsub.f32 %v758, %v800
      %v823 = vsub.f32 %v763, %v803
      %v824 = vsub.f32 %v768, %v806
      %v825 = vsub.f32 %v773, %v809
      %v826 = vsub.f32 %v778, %v812
      %v827 = vsub.f32 %v783, %v815
      %v828 = vsub.f32 %v788, %v819
      %v829 = vmul.f32 %v820, 1.442695
      %v830 = vpow.pop %v829
      %v831 = vmul.f32 %v821, 1.442695
      %v832 = vpow.pop %v831
      %v833 = vmul.f32 %v822, 1.442695
      %v834 = vpow.pop %v833
      %v835 = vmul.f32 %v823, 1.442695
      %v836 = vpow.pop %v835
      %v837 = vmul.f32 %v824, 1.442695
      %v838 = vpow.pop %v837
      %v839 = vmul.f32 %v825, 1.442695
      %v840 = vpow.pop %v839
      %v841 = vmul.f32 %v826, 1.442695
      %v842 = vpow.pop %v841
      %v843 = vmul.f32 %v827, 1.442695
      %v844 = vpow.pop %v843
      %v845 = vmul.f32 %v828, 1.442695
      %v846 = vpow.pop %v845
      %v847 = vsel %vm791, %v830, 0.0
      %848 = vadd.xlane.f32.xlu0 %v847
      %v849 = vpop.xlane.xlu0 %848
      %v850 = vsel %vm791, %v832, 0.0
      %851 = vadd.xlane.f32.xlu0 %v850
      %v852 = vpop.xlane.xlu0 %851
      %v853 = vsel %vm791, %v834, 0.0
      %854 = vadd.xlane.f32.xlu0 %v853
      %v855 = vpop.xlane.xlu0 %854
      %v856 = vsel %vm791, %v836, 0.0
      %857 = vadd.xlane.f32.xlu0 %v856
      %v858 = vpop.xlane.xlu0 %857
      %v859 = vsel %vm791, %v838, 0.0
      %860 = vadd.xlane.f32.xlu0 %v859
      %v861 = vpop.xlane.xlu0 %860
      %v862 = vsel %vm791, %v840, 0.0
      %863 = vadd.xlane.f32.xlu0 %v862
      %v864 = vpop.xlane.xlu0 %863
      %v865 = vsel %vm791, %v842, 0.0
      %866 = vadd.xlane.f32.xlu0 %v865
      %v867 = vpop.xlane.xlu0 %866
      %v868 = vsel %vm791, %v844, 0.0
      %869 = vadd.xlane.f32.xlu0 %v868
      %v870 = vpop.xlane.xlu0 %869
      %v871 = vsel %vm816, %v846, 0.0
      %872 = vadd.xlane.f32.xlu0 %v871
      %v873 = vpop.xlane.xlu0 %872
      %v874 = vrcp.pop %v849
      %v875 = vmul.f32 %v830, %v874
      %v876 = vrcp.pop %v852
      %v877 = vmul.f32 %v832, %v876
      %v878 = vrcp.pop %v855
      %v879 = vmul.f32 %v834, %v878
      %v880 = vrcp.pop %v858
      %v881 = vmul.f32 %v836, %v880
      %v882 = vrcp.pop %v861
      %v883 = vmul.f32 %v838, %v882
      %v884 = vrcp.pop %v864
      %v885 = vmul.f32 %v840, %v884
      %v886 = vrcp.pop %v867
      %v887 = vmul.f32 %v842, %v886
      %v888 = vrcp.pop %v870
      %v889 = vmul.f32 %v844, %v888
      %v890 = vrcp.pop %v873
      %v891 = vmul.f32 %v846, %v890
      %892 = vrot.lane.b32.xlu0 %v556, 64
      %v893 = vpop.permute.xlu0 %892
      %894 = vrot.lane.b32.xlu0 %v561, 64
      %v895 = vpop.permute.xlu0 %894
      %896 = vrot.lane.b32.xlu0 %v566, 64
      %v897 = vpop.permute.xlu0 %896
      %898 = vrot.lane.b32.xlu0 %v571, 64
      %v899 = vpop.permute.xlu0 %898
      %900 = vrot.lane.b32.xlu0 %v576, 64
      %v901 = vpop.permute.xlu0 %900
      %902 = vrot.lane.b32.xlu0 %v581, 64
      %v903 = vpop.permute.xlu0 %902
      %904 = vrot.lane.b32.xlu0 %v586, 64
      %v905 = vpop.permute.xlu0 %904
      %906 = vrot.lane.b32.xlu0 %v591, 64
      %v907 = vpop.permute.xlu0 %906
      %908 = vrot.lane.b32.xlu0 %v596, 64
      %v909 = vpop.permute.xlu0 %908
      %v919 = vsel %vm791, %v875, 0
      %v922 = vsel %vm791, %v877, 0
      %v925 = vsel %vm791, %v879, 0
      %v928 = vsel %vm791, %v881, 0
      %v931 = vsel %vm791, %v883, 0
      %v934 = vsel %vm791, %v885, 0
      %v937 = vsel %vm791, %v887, 0
      %v940 = vsel %vm791, %v889, 0
      %v943 = vsel %vm791, %v891, 0
      %vm945 = vcmask 1040384
      %v946 = vsel %vm945, %v909, 0
      %948 = vmatprep.subr.mxu0 0.0
      %949 = vmatpush1.msra.mxu0 0.0
      %950 = vmatprep.subr.mxu0 0.0
      %951 = vmatpush1.msra.mxu0 0.0
      %952 = vmatprep.subr.mxu0 0.0
      %953 = vmatpush1.msra.mxu0 0.0
      %954 = vmatprep.subr.mxu0 0.0
      %955 = vmatpush1.msra.mxu0 0.0
      %956 = vmatprep.subr.mxu0 0.0
      %957 = vmatpush1.msra.mxu0 0.0
      %958 = vmatprep.subr.mxu0 0.0
      %959 = vmatpush1.msra.mxu0 0.0
      %960 = vmatprep.subr.mxu0 0.0
      %961 = vmatpush1.msra.mxu0 0.0
      %962 = vmatprep.subr.mxu0 0.0
      %963 = vmatpush1.msra.mxu0 %v946
      %964 = vmatprep.subr.mxu0 0.0
      %965 = vmatpush1.msra.mxu0 %v907
      %966 = vmatprep.subr.mxu0 0.0
      %967 = vmatpush1.msra.mxu0 %v905
      %968 = vmatprep.subr.mxu0 0.0
      %969 = vmatpush1.msra.mxu0 %v903
      %970 = vmatprep.subr.mxu0 0.0
      %971 = vmatpush1.msra.mxu0 %v901
      %972 = vmatprep.subr.mxu0 0.0
      %973 = vmatpush1.msra.mxu0 %v899
      %974 = vmatprep.subr.mxu0 0.0
      %975 = vmatpush1.msra.mxu0 %v897
      %976 = vmatprep.subr.mxu0 0.0
      %977 = vmatpush1.msra.mxu0 %v895
      %978 = vmatprep.subr.mxu0 0.0
      %979 = vmatpush1.msra.mxu0 %v893
      %980 = vmatprep.subr.mxu0 0.0
      %981 = vmatpush2.msra.mxu0 0.0
      %982 = vmatprep.subr.mxu0 0.0
      %983 = vmatpush2.msra.mxu0 0.0
      %984 = vmatprep.subr.mxu0 0.0
      %985 = vmatpush2.msra.mxu0 0.0
      %986 = vmatprep.subr.mxu0 0.0
      %987 = vmatpush2.msra.mxu0 0.0
      %988 = vmatprep.subr.mxu0 0.0
      %989 = vmatpush2.msra.mxu0 0.0
      %990 = vmatprep.subr.mxu0 0.0
      %991 = vmatpush2.msra.mxu0 0.0
      %992 = vmatprep.subr.mxu0 0.0
      %993 = vmatpush2.msra.mxu0 0.0
      %994 = vmatprep.subr.mxu0 0.0
      %995 = vmatpush2.msra.mxu0 0.0
      %996 = vmatprep.subr.mxu0 0.0
      %997 = vmatpush2.msra.mxu0 0.0
      %998 = vmatprep.subr.mxu0 0.0
      %999 = vmatpush2.msra.mxu0 0.0
      %1000 = vmatprep.subr.mxu0 0.0
      %1001 = vmatpush2.msra.mxu0 0.0
      %1002 = vmatprep.subr.mxu0 0.0
      %1003 = vmatpush2.msra.mxu0 0.0
      %1004 = vmatprep.subr.mxu0 0.0
      %1005 = vmatpush2.msra.mxu0 0.0
      %1006 = vmatprep.subr.mxu0 0.0
      %1007 = vmatpush2.msra.mxu0 0.0
      %1008 = vmatprep.subr.mxu0 0.0
      %1009 = vmatpush2.msra.mxu0 0.0
      %1010 = vmatprep.subr.mxu0 0.0
      %1011 = vmatpush2.msra.mxu0 0.0
      %1012 = vmatprep.mubr.f32.mxu0 0.0
      %1013 = vmatmul.mubr.f32.gmra.mxu0 %v919
      %v1014 = vpop.f32.mrf.mxu0
      %v1015 = vadd.f32 0.0, %v1014
      %v1016 = vpop.f32.mrf.mxu0
      %1017 = vmatprep.mubr.f32.mxu0 0.0
      %1018 = vmatmul.mubr.f32.gmra.mxu0 %v922
      %v1019 = vpop.f32.mrf.mxu0
      %v1020 = vadd.f32 0.0, %v1019
      %v1021 = vpop.f32.mrf.mxu0
      %1022 = vmatprep.mubr.f32.mxu0 0.0
      %1023 = vmatmul.mubr.f32.gmra.mxu0 %v925
      %v1024 = vpop.f32.mrf.mxu0
      %v1025 = vadd.f32 0.0, %v1024
      %v1026 = vpop.f32.mrf.mxu0
      %1027 = vmatprep.mubr.f32.mxu0 0.0
      %1028 = vmatmul.mubr.f32.gmra.mxu0 %v928
      %v1029 = vpop.f32.mrf.mxu0
      %v1030 = vadd.f32 0.0, %v1029
      %v1031 = vpop.f32.mrf.mxu0
      %1032 = vmatprep.mubr.f32.mxu0 0.0
      %1033 = vmatmul.mubr.f32.gmra.mxu0 %v931
      %v1034 = vpop.f32.mrf.mxu0
      %v1035 = vadd.f32 0.0, %v1034
      %v1036 = vpop.f32.mrf.mxu0
      %1037 = vmatprep.mubr.f32.mxu0 0.0
      %1038 = vmatmul.mubr.f32.gmra.mxu0 %v934
      %v1039 = vpop.f32.mrf.mxu0
      %v1040 = vadd.f32 0.0, %v1039
      %v1041 = vpop.f32.mrf.mxu0
      %1042 = vmatprep.mubr.f32.mxu0 0.0
      %1043 = vmatmul.mubr.f32.gmra.mxu0 %v937
      %v1044 = vpop.f32.mrf.mxu0
      %v1045 = vadd.f32 0.0, %v1044
      %v1046 = vpop.f32.mrf.mxu0
      %1047 = vmatprep.mubr.f32.mxu0 0.0
      %1048 = vmatmul.mubr.f32.gmra.mxu0 %v940
      %v1049 = vpop.f32.mrf.mxu0
      %v1050 = vadd.f32 0.0, %v1049
      %v1051 = vpop.f32.mrf.mxu0
      %1052 = vmatprep.mubr.f32.mxu0 0.0
      %1053 = vmatmul.mubr.f32.gmra.mxu0 %v943
      %v1054 = vpop.f32.mrf.mxu0
      %v1055 = vadd.f32 0.0, %v1054
      %v1056 = vpop.f32.mrf.mxu0
      %1057 = vdwg.mxu0
      %1058 = vrot.lane.b32.xlu0 %v599, 120
      %v1059 = vpop.permute.xlu0 %1058
      %1060 = vrot.lane.b32.xlu0 %v600, 120
      %v1061 = vpop.permute.xlu0 %1060
      %1062 = vrot.lane.b32.xlu0 %v601, 120
      %v1063 = vpop.permute.xlu0 %1062
      %1064 = vrot.lane.b32.xlu0 %v602, 120
      %v1065 = vpop.permute.xlu0 %1064
      %1066 = vrot.lane.b32.xlu0 %v603, 120
      %v1067 = vpop.permute.xlu0 %1066
      %1068 = vrot.lane.b32.xlu0 %v604, 120
      %v1069 = vpop.permute.xlu0 %1068
      %1070 = vrot.lane.b32.xlu0 %v605, 120
      %v1071 = vpop.permute.xlu0 %1070
      %1072 = vrot.lane.b32.xlu0 %v606, 120
      %v1073 = vpop.permute.xlu0 %1072
      %1074 = vrot.lane.b32.xlu0 %v607, 120
      %v1075 = vpop.permute.xlu0 %1074
      %1076 = vrot.lane.b32.xlu0 %v556, 88
      %v1077 = vpop.permute.xlu0 %1076
      %1078 = vrot.lane.b32.xlu0 %v561, 88
      %v1079 = vpop.permute.xlu0 %1078
      %1080 = vrot.lane.b32.xlu0 %v566, 88
      %v1081 = vpop.permute.xlu0 %1080
      %1082 = vrot.lane.b32.xlu0 %v571, 88
      %v1083 = vpop.permute.xlu0 %1082
      %1084 = vrot.lane.b32.xlu0 %v576, 88
      %v1085 = vpop.permute.xlu0 %1084
      %1086 = vrot.lane.b32.xlu0 %v581, 88
      %v1087 = vpop.permute.xlu0 %1086
      %1088 = vrot.lane.b32.xlu0 %v586, 88
      %v1089 = vpop.permute.xlu0 %1088
      %1090 = vrot.lane.b32.xlu0 %v591, 88
      %v1091 = vpop.permute.xlu0 %1090
      %1092 = vrot.lane.b32.xlu0 %v596, 88
      %v1093 = vpop.permute.xlu0 %1092
      %v1094 = vsel %vm635, %v1059, 0
      %v1096 = vsel %vm635, %v1061, 0
      %v1098 = vsel %vm635, %v1063, 0
      %v1100 = vsel %vm635, %v1065, 0
      %v1102 = vsel %vm635, %v1067, 0
      %v1104 = vsel %vm635, %v1069, 0
      %v1106 = vsel %vm635, %v1071, 0
      %v1108 = vsel %vm635, %v1073, 0
      %v1110 = vsel %vm635, %v1075, 0
      %v1112 = vsel %vm635, %v1077, 0
      %v1114 = vsel %vm635, %v1079, 0
      %v1116 = vsel %vm635, %v1081, 0
      %v1118 = vsel %vm635, %v1083, 0
      %v1120 = vsel %vm635, %v1085, 0
      %v1122 = vsel %vm635, %v1087, 0
      %v1124 = vsel %vm635, %v1089, 0
      %v1126 = vsel %vm635, %v1091, 0
      %v1128 = vsel %vm635, %v1093, 0
      %1130 = vmatprep.subr.mxu0 0.0
      %1131 = vmatpush1.xpose.msra.mxu0 0.0
      %1132 = vmatprep.subr.mxu0 0.0
      %1133 = vmatpush1.xpose.msra.mxu0 0.0
      %1134 = vmatprep.subr.mxu0 0.0
      %1135 = vmatpush1.xpose.msra.mxu0 0.0
      %1136 = vmatprep.subr.mxu0 0.0
      %1137 = vmatpush1.xpose.msra.mxu0 0.0
      %1138 = vmatprep.subr.mxu0 0.0
      %1139 = vmatpush1.xpose.msra.mxu0 0.0
      %1140 = vmatprep.subr.mxu0 0.0
      %1141 = vmatpush1.xpose.msra.mxu0 0.0
      %1142 = vmatprep.subr.mxu0 0.0
      %1143 = vmatpush1.xpose.msra.mxu0 0.0
      %1144 = vmatprep.subr.mxu0 0.0
      %1145 = vmatpush1.xpose.msra.mxu0 %v1128
      %1146 = vmatprep.subr.mxu0 0.0
      %1147 = vmatpush1.xpose.msra.mxu0 %v1126
      %1148 = vmatprep.subr.mxu0 0.0
      %1149 = vmatpush1.xpose.msra.mxu0 %v1124
      %1150 = vmatprep.subr.mxu0 0.0
      %1151 = vmatpush1.xpose.msra.mxu0 %v1122
      %1152 = vmatprep.subr.mxu0 0.0
      %1153 = vmatpush1.xpose.msra.mxu0 %v1120
      %1154 = vmatprep.subr.mxu0 0.0
      %1155 = vmatpush1.xpose.msra.mxu0 %v1118
      %1156 = vmatprep.subr.mxu0 0.0
      %1157 = vmatpush1.xpose.msra.mxu0 %v1116
      %1158 = vmatprep.subr.mxu0 0.0
      %1159 = vmatpush1.xpose.msra.mxu0 %v1114
      %1160 = vmatprep.subr.mxu0 0.0
      %1161 = vmatpush1.xpose.msra.mxu0 %v1112
      %1162 = vmatprep.subr.mxu0 0.0
      %1163 = vmatpush2.xpose.msra.mxu0 0.0
      %1164 = vmatprep.subr.mxu0 0.0
      %1165 = vmatpush2.xpose.msra.mxu0 0.0
      %1166 = vmatprep.subr.mxu0 0.0
      %1167 = vmatpush2.xpose.msra.mxu0 0.0
      %1168 = vmatprep.subr.mxu0 0.0
      %1169 = vmatpush2.xpose.msra.mxu0 0.0
      %1170 = vmatprep.subr.mxu0 0.0
      %1171 = vmatpush2.xpose.msra.mxu0 0.0
      %1172 = vmatprep.subr.mxu0 0.0
      %1173 = vmatpush2.xpose.msra.mxu0 0.0
      %1174 = vmatprep.subr.mxu0 0.0
      %1175 = vmatpush2.xpose.msra.mxu0 0.0
      %1176 = vmatprep.subr.mxu0 0.0
      %1177 = vmatpush2.xpose.msra.mxu0 0.0
      %1178 = vmatprep.subr.mxu0 0.0
      %1179 = vmatpush2.xpose.msra.mxu0 0.0
      %1180 = vmatprep.subr.mxu0 0.0
      %1181 = vmatpush2.xpose.msra.mxu0 0.0
      %1182 = vmatprep.subr.mxu0 0.0
      %1183 = vmatpush2.xpose.msra.mxu0 0.0
      %1184 = vmatprep.subr.mxu0 0.0
      %1185 = vmatpush2.xpose.msra.mxu0 0.0
      %1186 = vmatprep.subr.mxu0 0.0
      %1187 = vmatpush2.xpose.msra.mxu0 0.0
      %1188 = vmatprep.subr.mxu0 0.0
      %1189 = vmatpush2.xpose.msra.mxu0 0.0
      %1190 = vmatprep.subr.mxu0 0.0
      %1191 = vmatpush2.xpose.msra.mxu0 0.0
      %1192 = vmatprep.subr.mxu0 0.0
      %1193 = vmatpush2.xpose.msra.mxu0 0.0
      %1194 = vmatprep.mubr.f32.mxu0 0.0
      %1195 = vmatmul.mubr.f32.gmra.mxu0 %v1094
      %v1196 = vpop.f32.mrf.mxu0
      %v1197 = vadd.f32 0.0, %v1196
      %v1198 = vpop.f32.mrf.mxu0
      %1199 = vmatprep.mubr.f32.mxu0 0.0
      %1200 = vmatmul.mubr.f32.gmra.mxu0 %v1096
      %v1201 = vpop.f32.mrf.mxu0
      %v1202 = vadd.f32 0.0, %v1201
      %v1203 = vpop.f32.mrf.mxu0
      %1204 = vmatprep.mubr.f32.mxu0 0.0
      %1205 = vmatmul.mubr.f32.gmra.mxu0 %v1098
      %v1206 = vpop.f32.mrf.mxu0
      %v1207 = vadd.f32 0.0, %v1206
      %v1208 = vpop.f32.mrf.mxu0
      %1209 = vmatprep.mubr.f32.mxu0 0.0
      %1210 = vmatmul.mubr.f32.gmra.mxu0 %v1100
      %v1211 = vpop.f32.mrf.mxu0
      %v1212 = vadd.f32 0.0, %v1211
      %v1213 = vpop.f32.mrf.mxu0
      %1214 = vmatprep.mubr.f32.mxu0 0.0
      %1215 = vmatmul.mubr.f32.gmra.mxu0 %v1102
      %v1216 = vpop.f32.mrf.mxu0
      %v1217 = vadd.f32 0.0, %v1216
      %v1218 = vpop.f32.mrf.mxu0
      %1219 = vmatprep.mubr.f32.mxu0 0.0
      %1220 = vmatmul.mubr.f32.gmra.mxu0 %v1104
      %v1221 = vpop.f32.mrf.mxu0
      %v1222 = vadd.f32 0.0, %v1221
      %v1223 = vpop.f32.mrf.mxu0
      %1224 = vmatprep.mubr.f32.mxu0 0.0
      %1225 = vmatmul.mubr.f32.gmra.mxu0 %v1106
      %v1226 = vpop.f32.mrf.mxu0
      %v1227 = vadd.f32 0.0, %v1226
      %v1228 = vpop.f32.mrf.mxu0
      %1229 = vmatprep.mubr.f32.mxu0 0.0
      %1230 = vmatmul.mubr.f32.gmra.mxu0 %v1108
      %v1231 = vpop.f32.mrf.mxu0
      %v1232 = vadd.f32 0.0, %v1231
      %v1233 = vpop.f32.mrf.mxu0
      %1234 = vmatprep.mubr.f32.mxu0 0.0
      %1235 = vmatmul.mubr.f32.gmra.mxu0 %v1110
      %v1236 = vpop.f32.mrf.mxu0
      %v1237 = vadd.f32 0.0, %v1236
      %v1238 = vpop.f32.mrf.mxu0
      %1239 = vdwg.mxu0
      %v1240 = vsel %vm791, %v1197, -inf
      %1241 = vmax.xlane.f32.xlu0 %v1240
      %v1242 = vpop.xlane.xlu0 %1241
      %v1243 = vsel %vm791, %v1202, -inf
      %1244 = vmax.xlane.f32.xlu0 %v1243
      %v1245 = vpop.xlane.xlu0 %1244
      %v1246 = vsel %vm791, %v1207, -inf
      %1247 = vmax.xlane.f32.xlu0 %v1246
      %v1248 = vpop.xlane.xlu0 %1247
      %v1249 = vsel %vm791, %v1212, -inf
      %1250 = vmax.xlane.f32.xlu0 %v1249
      %v1251 = vpop.xlane.xlu0 %1250
      %v1252 = vsel %vm791, %v1217, -inf
      %1253 = vmax.xlane.f32.xlu0 %v1252
      %v1254 = vpop.xlane.xlu0 %1253
      %v1255 = vsel %vm791, %v1222, -inf
      %1256 = vmax.xlane.f32.xlu0 %v1255
      %v1257 = vpop.xlane.xlu0 %1256
      %v1258 = vsel %vm791, %v1227, -inf
      %1259 = vmax.xlane.f32.xlu0 %v1258
      %v1260 = vpop.xlane.xlu0 %1259
      %v1261 = vsel %vm791, %v1232, -inf
      %1262 = vmax.xlane.f32.xlu0 %v1261
      %v1263 = vpop.xlane.xlu0 %1262
      %v1264 = vsel %vm816, %v1237, -inf
      %1265 = vmax.xlane.f32.xlu0 %v1264
      %v1266 = vpop.xlane.xlu0 %1265
      %v1267 = vsub.f32 %v1197, %v1242
      %v1268 = vsub.f32 %v1202, %v1245
      %v1269 = vsub.f32 %v1207, %v1248
      %v1270 = vsub.f32 %v1212, %v1251
      %v1271 = vsub.f32 %v1217, %v1254
      %v1272 = vsub.f32 %v1222, %v1257
      %v1273 = vsub.f32 %v1227, %v1260
      %v1274 = vsub.f32 %v1232, %v1263
      %v1275 = vsub.f32 %v1237, %v1266
      %v1276 = vmul.f32 %v1267, 1.442695
      %v1277 = vpow.pop %v1276
      %v1278 = vmul.f32 %v1268, 1.442695
      %v1279 = vpow.pop %v1278
      %v1280 = vmul.f32 %v1269, 1.442695
      %v1281 = vpow.pop %v1280
      %v1282 = vmul.f32 %v1270, 1.442695
      %v1283 = vpow.pop %v1282
      %v1284 = vmul.f32 %v1271, 1.442695
      %v1285 = vpow.pop %v1284
      %v1286 = vmul.f32 %v1272, 1.442695
      %v1287 = vpow.pop %v1286
      %v1288 = vmul.f32 %v1273, 1.442695
      %v1289 = vpow.pop %v1288
      %v1290 = vmul.f32 %v1274, 1.442695
      %v1291 = vpow.pop %v1290
      %v1292 = vmul.f32 %v1275, 1.442695
      %v1293 = vpow.pop %v1292
      %v1294 = vsel %vm791, %v1277, 0.0
      %1295 = vadd.xlane.f32.xlu0 %v1294
      %v1296 = vpop.xlane.xlu0 %1295
      %v1297 = vsel %vm791, %v1279, 0.0
      %1298 = vadd.xlane.f32.xlu0 %v1297
      %v1299 = vpop.xlane.xlu0 %1298
      %v1300 = vsel %vm791, %v1281, 0.0
      %1301 = vadd.xlane.f32.xlu0 %v1300
      %v1302 = vpop.xlane.xlu0 %1301
      %v1303 = vsel %vm791, %v1283, 0.0
      %1304 = vadd.xlane.f32.xlu0 %v1303
      %v1305 = vpop.xlane.xlu0 %1304
      %v1306 = vsel %vm791, %v1285, 0.0
      %1307 = vadd.xlane.f32.xlu0 %v1306
      %v1308 = vpop.xlane.xlu0 %1307
      %v1309 = vsel %vm791, %v1287, 0.0
      %1310 = vadd.xlane.f32.xlu0 %v1309
      %v1311 = vpop.xlane.xlu0 %1310
      %v1312 = vsel %vm791, %v1289, 0.0
      %1313 = vadd.xlane.f32.xlu0 %v1312
      %v1314 = vpop.xlane.xlu0 %1313
      %v1315 = vsel %vm791, %v1291, 0.0
      %1316 = vadd.xlane.f32.xlu0 %v1315
      %v1317 = vpop.xlane.xlu0 %1316
      %v1318 = vsel %vm816, %v1293, 0.0
      %1319 = vadd.xlane.f32.xlu0 %v1318
      %v1320 = vpop.xlane.xlu0 %1319
      %v1321 = vrcp.pop %v1296
      %v1322 = vmul.f32 %v1277, %v1321
      %v1323 = vrcp.pop %v1299
      %v1324 = vmul.f32 %v1279, %v1323
      %v1325 = vrcp.pop %v1302
      %v1326 = vmul.f32 %v1281, %v1325
      %v1327 = vrcp.pop %v1305
      %v1328 = vmul.f32 %v1283, %v1327
      %v1329 = vrcp.pop %v1308
      %v1330 = vmul.f32 %v1285, %v1329
      %v1331 = vrcp.pop %v1311
      %v1332 = vmul.f32 %v1287, %v1331
      %v1333 = vrcp.pop %v1314
      %v1334 = vmul.f32 %v1289, %v1333
      %v1335 = vrcp.pop %v1317
      %v1336 = vmul.f32 %v1291, %v1335
      %v1337 = vrcp.pop %v1320
      %v1338 = vmul.f32 %v1293, %v1337
      %1339 = vrot.lane.b32.xlu0 %v556, 56
      %v1340 = vpop.permute.xlu0 %1339
      %1341 = vrot.lane.b32.xlu0 %v561, 56
      %v1342 = vpop.permute.xlu0 %1341
      %1343 = vrot.lane.b32.xlu0 %v566, 56
      %v1344 = vpop.permute.xlu0 %1343
      %1345 = vrot.lane.b32.xlu0 %v571, 56
      %v1346 = vpop.permute.xlu0 %1345
      %1347 = vrot.lane.b32.xlu0 %v576, 56
      %v1348 = vpop.permute.xlu0 %1347
      %1349 = vrot.lane.b32.xlu0 %v581, 56
      %v1350 = vpop.permute.xlu0 %1349
      %1351 = vrot.lane.b32.xlu0 %v586, 56
      %v1352 = vpop.permute.xlu0 %1351
      %1353 = vrot.lane.b32.xlu0 %v591, 56
      %v1354 = vpop.permute.xlu0 %1353
      %1355 = vrot.lane.b32.xlu0 %v596, 56
      %v1356 = vpop.permute.xlu0 %1355
      %v1366 = vsel %vm791, %v1322, 0
      %v1369 = vsel %vm791, %v1324, 0
      %v1372 = vsel %vm791, %v1326, 0
      %v1375 = vsel %vm791, %v1328, 0
      %v1378 = vsel %vm791, %v1330, 0
      %v1381 = vsel %vm791, %v1332, 0
      %v1384 = vsel %vm791, %v1334, 0
      %v1387 = vsel %vm791, %v1336, 0
      %v1390 = vsel %vm791, %v1338, 0
      %v1392 = vsel %vm945, %v1356, 0
      %1394 = vmatprep.subr.mxu0 0.0
      %1395 = vmatpush1.msra.mxu0 0.0
      %1396 = vmatprep.subr.mxu0 0.0
      %1397 = vmatpush1.msra.mxu0 0.0
      %1398 = vmatprep.subr.mxu0 0.0
      %1399 = vmatpush1.msra.mxu0 0.0
      %1400 = vmatprep.subr.mxu0 0.0
      %1401 = vmatpush1.msra.mxu0 0.0
      %1402 = vmatprep.subr.mxu0 0.0
      %1403 = vmatpush1.msra.mxu0 0.0
      %1404 = vmatprep.subr.mxu0 0.0
      %1405 = vmatpush1.msra.mxu0 0.0
      %1406 = vmatprep.subr.mxu0 0.0
      %1407 = vmatpush1.msra.mxu0 0.0
      %1408 = vmatprep.subr.mxu0 0.0
      %1409 = vmatpush1.msra.mxu0 %v1392
      %1410 = vmatprep.subr.mxu0 0.0
      %1411 = vmatpush1.msra.mxu0 %v1354
      %1412 = vmatprep.subr.mxu0 0.0
      %1413 = vmatpush1.msra.mxu0 %v1352
      %1414 = vmatprep.subr.mxu0 0.0
      %1415 = vmatpush1.msra.mxu0 %v1350
      %1416 = vmatprep.subr.mxu0 0.0
      %1417 = vmatpush1.msra.mxu0 %v1348
      %1418 = vmatprep.subr.mxu0 0.0
      %1419 = vmatpush1.msra.mxu0 %v1346
      %1420 = vmatprep.subr.mxu0 0.0
      %1421 = vmatpush1.msra.mxu0 %v1344
      %1422 = vmatprep.subr.mxu0 0.0
      %1423 = vmatpush1.msra.mxu0 %v1342
      %1424 = vmatprep.subr.mxu0 0.0
      %1425 = vmatpush1.msra.mxu0 %v1340
      %1426 = vmatprep.subr.mxu0 0.0
      %1427 = vmatpush2.msra.mxu0 0.0
      %1428 = vmatprep.subr.mxu0 0.0
      %1429 = vmatpush2.msra.mxu0 0.0
      %1430 = vmatprep.subr.mxu0 0.0
      %1431 = vmatpush2.msra.mxu0 0.0
      %1432 = vmatprep.subr.mxu0 0.0
      %1433 = vmatpush2.msra.mxu0 0.0
      %1434 = vmatprep.subr.mxu0 0.0
      %1435 = vmatpush2.msra.mxu0 0.0
      %1436 = vmatprep.subr.mxu0 0.0
      %1437 = vmatpush2.msra.mxu0 0.0
      %1438 = vmatprep.subr.mxu0 0.0
      %1439 = vmatpush2.msra.mxu0 0.0
      %1440 = vmatprep.subr.mxu0 0.0
      %1441 = vmatpush2.msra.mxu0 0.0
      %1442 = vmatprep.subr.mxu0 0.0
      %1443 = vmatpush2.msra.mxu0 0.0
      %1444 = vmatprep.subr.mxu0 0.0
      %1445 = vmatpush2.msra.mxu0 0.0
      %1446 = vmatprep.subr.mxu0 0.0
      %1447 = vmatpush2.msra.mxu0 0.0
      %1448 = vmatprep.subr.mxu0 0.0
      %1449 = vmatpush2.msra.mxu0 0.0
      %1450 = vmatprep.subr.mxu0 0.0
      %1451 = vmatpush2.msra.mxu0 0.0
      %1452 = vmatprep.subr.mxu0 0.0
      %1453 = vmatpush2.msra.mxu0 0.0
      %1454 = vmatprep.subr.mxu0 0.0
      %1455 = vmatpush2.msra.mxu0 0.0
      %1456 = vmatprep.subr.mxu0 0.0
      %1457 = vmatpush2.msra.mxu0 0.0
      %1458 = vmatprep.mubr.f32.mxu0 0.0
      %1459 = vmatmul.mubr.f32.gmra.mxu0 %v1366
      %v1460 = vpop.f32.mrf.mxu0
      %v1461 = vadd.f32 0.0, %v1460
      %v1462 = vpop.f32.mrf.mxu0
      %1463 = vmatprep.mubr.f32.mxu0 0.0
      %1464 = vmatmul.mubr.f32.gmra.mxu0 %v1369
      %v1465 = vpop.f32.mrf.mxu0
      %v1466 = vadd.f32 0.0, %v1465
      %v1467 = vpop.f32.mrf.mxu0
      %1468 = vmatprep.mubr.f32.mxu0 0.0
      %1469 = vmatmul.mubr.f32.gmra.mxu0 %v1372
      %v1470 = vpop.f32.mrf.mxu0
      %v1471 = vadd.f32 0.0, %v1470
      %v1472 = vpop.f32.mrf.mxu0
      %1473 = vmatprep.mubr.f32.mxu0 0.0
      %1474 = vmatmul.mubr.f32.gmra.mxu0 %v1375
      %v1475 = vpop.f32.mrf.mxu0
      %v1476 = vadd.f32 0.0, %v1475
      %v1477 = vpop.f32.mrf.mxu0
      %1478 = vmatprep.mubr.f32.mxu0 0.0
      %1479 = vmatmul.mubr.f32.gmra.mxu0 %v1378
      %v1480 = vpop.f32.mrf.mxu0
      %v1481 = vadd.f32 0.0, %v1480
      %v1482 = vpop.f32.mrf.mxu0
      %1483 = vmatprep.mubr.f32.mxu0 0.0
      %1484 = vmatmul.mubr.f32.gmra.mxu0 %v1381
      %v1485 = vpop.f32.mrf.mxu0
      %v1486 = vadd.f32 0.0, %v1485
      %v1487 = vpop.f32.mrf.mxu0
      %1488 = vmatprep.mubr.f32.mxu0 0.0
      %1489 = vmatmul.mubr.f32.gmra.mxu0 %v1384
      %v1490 = vpop.f32.mrf.mxu0
      %v1491 = vadd.f32 0.0, %v1490
      %v1492 = vpop.f32.mrf.mxu0
      %1493 = vmatprep.mubr.f32.mxu0 0.0
      %1494 = vmatmul.mubr.f32.gmra.mxu0 %v1387
      %v1495 = vpop.f32.mrf.mxu0
      %v1496 = vadd.f32 0.0, %v1495
      %v1497 = vpop.f32.mrf.mxu0
      %1498 = vmatprep.mubr.f32.mxu0 0.0
      %1499 = vmatmul.mubr.f32.gmra.mxu0 %v1390
      %v1500 = vpop.f32.mrf.mxu0
      %v1501 = vadd.f32 0.0, %v1500
      %v1502 = vpop.f32.mrf.mxu0
      %1503 = vdwg.mxu0
      %1504 = vrot.lane.b32.xlu0 %v599, 112
      %v1505 = vpop.permute.xlu0 %1504
      %1506 = vrot.lane.b32.xlu0 %v600, 112
      %v1507 = vpop.permute.xlu0 %1506
      %1508 = vrot.lane.b32.xlu0 %v601, 112
      %v1509 = vpop.permute.xlu0 %1508
      %1510 = vrot.lane.b32.xlu0 %v602, 112
      %v1511 = vpop.permute.xlu0 %1510
      %1512 = vrot.lane.b32.xlu0 %v603, 112
      %v1513 = vpop.permute.xlu0 %1512
      %1514 = vrot.lane.b32.xlu0 %v604, 112
      %v1515 = vpop.permute.xlu0 %1514
      %1516 = vrot.lane.b32.xlu0 %v605, 112
      %v1517 = vpop.permute.xlu0 %1516
      %1518 = vrot.lane.b32.xlu0 %v606, 112
      %v1519 = vpop.permute.xlu0 %1518
      %1520 = vrot.lane.b32.xlu0 %v607, 112
      %v1521 = vpop.permute.xlu0 %1520
      %1522 = vrot.lane.b32.xlu0 %v556, 80
      %v1523 = vpop.permute.xlu0 %1522
      %1524 = vrot.lane.b32.xlu0 %v561, 80
      %v1525 = vpop.permute.xlu0 %1524
      %1526 = vrot.lane.b32.xlu0 %v566, 80
      %v1527 = vpop.permute.xlu0 %1526
      %1528 = vrot.lane.b32.xlu0 %v571, 80
      %v1529 = vpop.permute.xlu0 %1528
      %1530 = vrot.lane.b32.xlu0 %v576, 80
      %v1531 = vpop.permute.xlu0 %1530
      %1532 = vrot.lane.b32.xlu0 %v581, 80
      %v1533 = vpop.permute.xlu0 %1532
      %1534 = vrot.lane.b32.xlu0 %v586, 80
      %v1535 = vpop.permute.xlu0 %1534
      %1536 = vrot.lane.b32.xlu0 %v591, 80
      %v1537 = vpop.permute.xlu0 %1536
      %1538 = vrot.lane.b32.xlu0 %v596, 80
      %v1539 = vpop.permute.xlu0 %1538
      %v1540 = vsel %vm635, %v1505, 0
      %v1542 = vsel %vm635, %v1507, 0
      %v1544 = vsel %vm635, %v1509, 0
      %v1546 = vsel %vm635, %v1511, 0
      %v1548 = vsel %vm635, %v1513, 0
      %v1550 = vsel %vm635, %v1515, 0
      %v1552 = vsel %vm635, %v1517, 0
      %v1554 = vsel %vm635, %v1519, 0
      %v1556 = vsel %vm635, %v1521, 0
      %v1558 = vsel %vm635, %v1523, 0
      %v1560 = vsel %vm635, %v1525, 0
      %v1562 = vsel %vm635, %v1527, 0
      %v1564 = vsel %vm635, %v1529, 0
      %v1566 = vsel %vm635, %v1531, 0
      %v1568 = vsel %vm635, %v1533, 0
      %v1570 = vsel %vm635, %v1535, 0
      %v1572 = vsel %vm635, %v1537, 0
      %v1574 = vsel %vm635, %v1539, 0
      %1576 = vmatprep.subr.mxu0 0.0
      %1577 = vmatpush1.xpose.msra.mxu0 0.0
      %1578 = vmatprep.subr.mxu0 0.0
      %1579 = vmatpush1.xpose.msra.mxu0 0.0
      %1580 = vmatprep.subr.mxu0 0.0
      %1581 = vmatpush1.xpose.msra.mxu0 0.0
      %1582 = vmatprep.subr.mxu0 0.0
      %1583 = vmatpush1.xpose.msra.mxu0 0.0
      %1584 = vmatprep.subr.mxu0 0.0
      %1585 = vmatpush1.xpose.msra.mxu0 0.0
      %1586 = vmatprep.subr.mxu0 0.0
      %1587 = vmatpush1.xpose.msra.mxu0 0.0
      %1588 = vmatprep.subr.mxu0 0.0
      %1589 = vmatpush1.xpose.msra.mxu0 0.0
      %1590 = vmatprep.subr.mxu0 0.0
      %1591 = vmatpush1.xpose.msra.mxu0 %v1574
      %1592 = vmatprep.subr.mxu0 0.0
      %1593 = vmatpush1.xpose.msra.mxu0 %v1572
      %1594 = vmatprep.subr.mxu0 0.0
      %1595 = vmatpush1.xpose.msra.mxu0 %v1570
      %1596 = vmatprep.subr.mxu0 0.0
      %1597 = vmatpush1.xpose.msra.mxu0 %v1568
      %1598 = vmatprep.subr.mxu0 0.0
      %1599 = vmatpush1.xpose.msra.mxu0 %v1566
      %1600 = vmatprep.subr.mxu0 0.0
      %1601 = vmatpush1.xpose.msra.mxu0 %v1564
      %1602 = vmatprep.subr.mxu0 0.0
      %1603 = vmatpush1.xpose.msra.mxu0 %v1562
      %1604 = vmatprep.subr.mxu0 0.0
      %1605 = vmatpush1.xpose.msra.mxu0 %v1560
      %1606 = vmatprep.subr.mxu0 0.0
      %1607 = vmatpush1.xpose.msra.mxu0 %v1558
      %1608 = vmatprep.subr.mxu0 0.0
      %1609 = vmatpush2.xpose.msra.mxu0 0.0
      %1610 = vmatprep.subr.mxu0 0.0
      %1611 = vmatpush2.xpose.msra.mxu0 0.0
      %1612 = vmatprep.subr.mxu0 0.0
      %1613 = vmatpush2.xpose.msra.mxu0 0.0
      %1614 = vmatprep.subr.mxu0 0.0
      %1615 = vmatpush2.xpose.msra.mxu0 0.0
      %1616 = vmatprep.subr.mxu0 0.0
      %1617 = vmatpush2.xpose.msra.mxu0 0.0
      %1618 = vmatprep.subr.mxu0 0.0
      %1619 = vmatpush2.xpose.msra.mxu0 0.0
      %1620 = vmatprep.subr.mxu0 0.0
      %1621 = vmatpush2.xpose.msra.mxu0 0.0
      %1622 = vmatprep.subr.mxu0 0.0
      %1623 = vmatpush2.xpose.msra.mxu0 0.0
      %1624 = vmatprep.subr.mxu0 0.0
      %1625 = vmatpush2.xpose.msra.mxu0 0.0
      %1626 = vmatprep.subr.mxu0 0.0
      %1627 = vmatpush2.xpose.msra.mxu0 0.0
      %1628 = vmatprep.subr.mxu0 0.0
      %1629 = vmatpush2.xpose.msra.mxu0 0.0
      %1630 = vmatprep.subr.mxu0 0.0
      %1631 = vmatpush2.xpose.msra.mxu0 0.0
      %1632 = vmatprep.subr.mxu0 0.0
      %1633 = vmatpush2.xpose.msra.mxu0 0.0
      %1634 = vmatprep.subr.mxu0 0.0
      %1635 = vmatpush2.xpose.msra.mxu0 0.0
      %1636 = vmatprep.subr.mxu0 0.0
      %1637 = vmatpush2.xpose.msra.mxu0 0.0
      %1638 = vmatprep.subr.mxu0 0.0
      %1639 = vmatpush2.xpose.msra.mxu0 0.0
      %1640 = vmatprep.mubr.f32.mxu0 0.0
      %1641 = vmatmul.mubr.f32.gmra.mxu0 %v1540
      %v1642 = vpop.f32.mrf.mxu0
      %v1643 = vadd.f32 0.0, %v1642
      %v1644 = vpop.f32.mrf.mxu0
      %1645 = vmatprep.mubr.f32.mxu0 0.0
      %1646 = vmatmul.mubr.f32.gmra.mxu0 %v1542
      %v1647 = vpop.f32.mrf.mxu0
      %v1648 = vadd.f32 0.0, %v1647
      %v1649 = vpop.f32.mrf.mxu0
      %1650 = vmatprep.mubr.f32.mxu0 0.0
      %1651 = vmatmul.mubr.f32.gmra.mxu0 %v1544
      %v1652 = vpop.f32.mrf.mxu0
      %v1653 = vadd.f32 0.0, %v1652
      %v1654 = vpop.f32.mrf.mxu0
      %1655 = vmatprep.mubr.f32.mxu0 0.0
      %1656 = vmatmul.mubr.f32.gmra.mxu0 %v1546
      %v1657 = vpop.f32.mrf.mxu0
      %v1658 = vadd.f32 0.0, %v1657
      %v1659 = vpop.f32.mrf.mxu0
      %1660 = vmatprep.mubr.f32.mxu0 0.0
      %1661 = vmatmul.mubr.f32.gmra.mxu0 %v1548
      %v1662 = vpop.f32.mrf.mxu0
      %v1663 = vadd.f32 0.0, %v1662
      %v1664 = vpop.f32.mrf.mxu0
      %1665 = vmatprep.mubr.f32.mxu0 0.0
      %1666 = vmatmul.mubr.f32.gmra.mxu0 %v1550
      %v1667 = vpop.f32.mrf.mxu0
      %v1668 = vadd.f32 0.0, %v1667
      %v1669 = vpop.f32.mrf.mxu0
      %1670 = vmatprep.mubr.f32.mxu0 0.0
      %1671 = vmatmul.mubr.f32.gmra.mxu0 %v1552
      %v1672 = vpop.f32.mrf.mxu0
      %v1673 = vadd.f32 0.0, %v1672
      %v1674 = vpop.f32.mrf.mxu0
      %1675 = vmatprep.mubr.f32.mxu0 0.0
      %1676 = vmatmul.mubr.f32.gmra.mxu0 %v1554
      %v1677 = vpop.f32.mrf.mxu0
      %v1678 = vadd.f32 0.0, %v1677
      %v1679 = vpop.f32.mrf.mxu0
      %1680 = vmatprep.mubr.f32.mxu0 0.0
      %1681 = vmatmul.mubr.f32.gmra.mxu0 %v1556
      %v1682 = vpop.f32.mrf.mxu0
      %v1683 = vadd.f32 0.0, %v1682
      %v1684 = vpop.f32.mrf.mxu0
      %1685 = vdwg.mxu0
      %v1686 = vsel %vm791, %v1643, -inf
      %1687 = vmax.xlane.f32.xlu0 %v1686
      %v1688 = vpop.xlane.xlu0 %1687
      %v1689 = vsel %vm791, %v1648, -inf
      %1690 = vmax.xlane.f32.xlu0 %v1689
      %v1691 = vpop.xlane.xlu0 %1690
      %v1692 = vsel %vm791, %v1653, -inf
      %1693 = vmax.xlane.f32.xlu0 %v1692
      %v1694 = vpop.xlane.xlu0 %1693
      %v1695 = vsel %vm791, %v1658, -inf
      %1696 = vmax.xlane.f32.xlu0 %v1695
      %v1697 = vpop.xlane.xlu0 %1696
      %v1698 = vsel %vm791, %v1663, -inf
      %1699 = vmax.xlane.f32.xlu0 %v1698
      %v1700 = vpop.xlane.xlu0 %1699
      %v1701 = vsel %vm791, %v1668, -inf
      %1702 = vmax.xlane.f32.xlu0 %v1701
      %v1703 = vpop.xlane.xlu0 %1702
      %v1704 = vsel %vm791, %v1673, -inf
      %1705 = vmax.xlane.f32.xlu0 %v1704
      %v1706 = vpop.xlane.xlu0 %1705
      %v1707 = vsel %vm791, %v1678, -inf
      %1708 = vmax.xlane.f32.xlu0 %v1707
      %v1709 = vpop.xlane.xlu0 %1708
      %v1710 = vsel %vm816, %v1683, -inf
      %1711 = vmax.xlane.f32.xlu0 %v1710
      %v1712 = vpop.xlane.xlu0 %1711
      %v1713 = vsub.f32 %v1643, %v1688
      %v1714 = vsub.f32 %v1648, %v1691
      %v1715 = vsub.f32 %v1653, %v1694
      %v1716 = vsub.f32 %v1658, %v1697
      %v1717 = vsub.f32 %v1663, %v1700
      %v1718 = vsub.f32 %v1668, %v1703
      %v1719 = vsub.f32 %v1673, %v1706
      %v1720 = vsub.f32 %v1678, %v1709
      %v1721 = vsub.f32 %v1683, %v1712
      %v1722 = vmul.f32 %v1713, 1.442695
      %v1723 = vpow.pop %v1722
      %v1724 = vmul.f32 %v1714, 1.442695
      %v1725 = vpow.pop %v1724
      %v1726 = vmul.f32 %v1715, 1.442695
      %v1727 = vpow.pop %v1726
      %v1728 = vmul.f32 %v1716, 1.442695
      %v1729 = vpow.pop %v1728
      %v1730 = vmul.f32 %v1717, 1.442695
      %v1731 = vpow.pop %v1730
      %v1732 = vmul.f32 %v1718, 1.442695
      %v1733 = vpow.pop %v1732
      %v1734 = vmul.f32 %v1719, 1.442695
      %v1735 = vpow.pop %v1734
      %v1736 = vmul.f32 %v1720, 1.442695
      %v1737 = vpow.pop %v1736
      %v1738 = vmul.f32 %v1721, 1.442695
      %v1739 = vpow.pop %v1738
      %v1740 = vsel %vm791, %v1723, 0.0
      %1741 = vadd.xlane.f32.xlu0 %v1740
      %v1742 = vpop.xlane.xlu0 %1741
      %v1743 = vsel %vm791, %v1725, 0.0
      %1744 = vadd.xlane.f32.xlu0 %v1743
      %v1745 = vpop.xlane.xlu0 %1744
      %v1746 = vsel %vm791, %v1727, 0.0
      %1747 = vadd.xlane.f32.xlu0 %v1746
      %v1748 = vpop.xlane.xlu0 %1747
      %v1749 = vsel %vm791, %v1729, 0.0
      %1750 = vadd.xlane.f32.xlu0 %v1749
      %v1751 = vpop.xlane.xlu0 %1750
      %v1752 = vsel %vm791, %v1731, 0.0
      %1753 = vadd.xlane.f32.xlu0 %v1752
      %v1754 = vpop.xlane.xlu0 %1753
      %v1755 = vsel %vm791, %v1733, 0.0
      %1756 = vadd.xlane.f32.xlu0 %v1755
      %v1757 = vpop.xlane.xlu0 %1756
      %v1758 = vsel %vm791, %v1735, 0.0
      %1759 = vadd.xlane.f32.xlu0 %v1758
      %v1760 = vpop.xlane.xlu0 %1759
      %v1761 = vsel %vm791, %v1737, 0.0
      %1762 = vadd.xlane.f32.xlu0 %v1761
      %v1763 = vpop.xlane.xlu0 %1762
      %v1764 = vsel %vm816, %v1739, 0.0
      %1765 = vadd.xlane.f32.xlu0 %v1764
      %v1766 = vpop.xlane.xlu0 %1765
      %v1767 = vrcp.pop %v1742
      %v1768 = vmul.f32 %v1723, %v1767
      %v1769 = vrcp.pop %v1745
      %v1770 = vmul.f32 %v1725, %v1769
      %v1771 = vrcp.pop %v1748
      %v1772 = vmul.f32 %v1727, %v1771
      %v1773 = vrcp.pop %v1751
      %v1774 = vmul.f32 %v1729, %v1773
      %v1775 = vrcp.pop %v1754
      %v1776 = vmul.f32 %v1731, %v1775
      %v1777 = vrcp.pop %v1757
      %v1778 = vmul.f32 %v1733, %v1777
      %v1779 = vrcp.pop %v1760
      %v1780 = vmul.f32 %v1735, %v1779
      %v1781 = vrcp.pop %v1763
      %v1782 = vmul.f32 %v1737, %v1781
      %v1783 = vrcp.pop %v1766
      %v1784 = vmul.f32 %v1739, %v1783
      %1785 = vrot.lane.b32.xlu0 %v556, 48
      %v1786 = vpop.permute.xlu0 %1785
      %1787 = vrot.lane.b32.xlu0 %v561, 48
      %v1788 = vpop.permute.xlu0 %1787
      %1789 = vrot.lane.b32.xlu0 %v566, 48
      %v1790 = vpop.permute.xlu0 %1789
      %1791 = vrot.lane.b32.xlu0 %v571, 48
      %v1792 = vpop.permute.xlu0 %1791
      %1793 = vrot.lane.b32.xlu0 %v576, 48
      %v1794 = vpop.permute.xlu0 %1793
      %1795 = vrot.lane.b32.xlu0 %v581, 48
      %v1796 = vpop.permute.xlu0 %1795
      %1797 = vrot.lane.b32.xlu0 %v586, 48
      %v1798 = vpop.permute.xlu0 %1797
      %1799 = vrot.lane.b32.xlu0 %v591, 48
      %v1800 = vpop.permute.xlu0 %1799
      %1801 = vrot.lane.b32.xlu0 %v596, 48
      %v1802 = vpop.permute.xlu0 %1801
      %v1812 = vsel %vm791, %v1768, 0
      %v1815 = vsel %vm791, %v1770, 0
      %v1818 = vsel %vm791, %v1772, 0
      %v1821 = vsel %vm791, %v1774, 0
      %v1824 = vsel %vm791, %v1776, 0
      %v1827 = vsel %vm791, %v1778, 0
      %v1830 = vsel %vm791, %v1780, 0
      %v1833 = vsel %vm791, %v1782, 0
      %v1836 = vsel %vm791, %v1784, 0
      %v1838 = vsel %vm945, %v1802, 0
      %1840 = vmatprep.subr.mxu0 0.0
      %1841 = vmatpush1.msra.mxu0 0.0
      %1842 = vmatprep.subr.mxu0 0.0
      %1843 = vmatpush1.msra.mxu0 0.0
      %1844 = vmatprep.subr.mxu0 0.0
      %1845 = vmatpush1.msra.mxu0 0.0
      %1846 = vmatprep.subr.mxu0 0.0
      %1847 = vmatpush1.msra.mxu0 0.0
      %1848 = vmatprep.subr.mxu0 0.0
      %1849 = vmatpush1.msra.mxu0 0.0
      %1850 = vmatprep.subr.mxu0 0.0
      %1851 = vmatpush1.msra.mxu0 0.0
      %1852 = vmatprep.subr.mxu0 0.0
      %1853 = vmatpush1.msra.mxu0 0.0
      %1854 = vmatprep.subr.mxu0 0.0
      %1855 = vmatpush1.msra.mxu0 %v1838
      %1856 = vmatprep.subr.mxu0 0.0
      %1857 = vmatpush1.msra.mxu0 %v1800
      %1858 = vmatprep.subr.mxu0 0.0
      %1859 = vmatpush1.msra.mxu0 %v1798
      %1860 = vmatprep.subr.mxu0 0.0
      %1861 = vmatpush1.msra.mxu0 %v1796
      %1862 = vmatprep.subr.mxu0 0.0
      %1863 = vmatpush1.msra.mxu0 %v1794
      %1864 = vmatprep.subr.mxu0 0.0
      %1865 = vmatpush1.msra.mxu0 %v1792
      %1866 = vmatprep.subr.mxu0 0.0
      %1867 = vmatpush1.msra.mxu0 %v1790
      %1868 = vmatprep.subr.mxu0 0.0
      %1869 = vmatpush1.msra.mxu0 %v1788
      %1870 = vmatprep.subr.mxu0 0.0
      %1871 = vmatpush1.msra.mxu0 %v1786
      %1872 = vmatprep.subr.mxu0 0.0
      %1873 = vmatpush2.msra.mxu0 0.0
      %1874 = vmatprep.subr.mxu0 0.0
      %1875 = vmatpush2.msra.mxu0 0.0
      %1876 = vmatprep.subr.mxu0 0.0
      %1877 = vmatpush2.msra.mxu0 0.0
      %1878 = vmatprep.subr.mxu0 0.0
      %1879 = vmatpush2.msra.mxu0 0.0
      %1880 = vmatprep.subr.mxu0 0.0
      %1881 = vmatpush2.msra.mxu0 0.0
      %1882 = vmatprep.subr.mxu0 0.0
      %1883 = vmatpush2.msra.mxu0 0.0
      %1884 = vmatprep.subr.mxu0 0.0
      %1885 = vmatpush2.msra.mxu0 0.0
      %1886 = vmatprep.subr.mxu0 0.0
      %1887 = vmatpush2.msra.mxu0 0.0
      %1888 = vmatprep.subr.mxu0 0.0
      %1889 = vmatpush2.msra.mxu0 0.0
      %1890 = vmatprep.subr.mxu0 0.0
      %1891 = vmatpush2.msra.mxu0 0.0
      %1892 = vmatprep.subr.mxu0 0.0
      %1893 = vmatpush2.msra.mxu0 0.0
      %1894 = vmatprep.subr.mxu0 0.0
      %1895 = vmatpush2.msra.mxu0 0.0
      %1896 = vmatprep.subr.mxu0 0.0
      %1897 = vmatpush2.msra.mxu0 0.0
      %1898 = vmatprep.subr.mxu0 0.0
      %1899 = vmatpush2.msra.mxu0 0.0
      %1900 = vmatprep.subr.mxu0 0.0
      %1901 = vmatpush2.msra.mxu0 0.0
      %1902 = vmatprep.subr.mxu0 0.0
      %1903 = vmatpush2.msra.mxu0 0.0
      %1904 = vmatprep.mubr.f32.mxu0 0.0
      %1905 = vmatmul.mubr.f32.gmra.mxu0 %v1812
      %v1906 = vpop.f32.mrf.mxu0
      %v1907 = vadd.f32 0.0, %v1906
      %v1908 = vpop.f32.mrf.mxu0
      %1909 = vmatprep.mubr.f32.mxu0 0.0
      %1910 = vmatmul.mubr.f32.gmra.mxu0 %v1815
      %v1911 = vpop.f32.mrf.mxu0
      %v1912 = vadd.f32 0.0, %v1911
      %v1913 = vpop.f32.mrf.mxu0
      %1914 = vmatprep.mubr.f32.mxu0 0.0
      %1915 = vmatmul.mubr.f32.gmra.mxu0 %v1818
      %v1916 = vpop.f32.mrf.mxu0
      %v1917 = vadd.f32 0.0, %v1916
      %v1918 = vpop.f32.mrf.mxu0
      %1919 = vmatprep.mubr.f32.mxu0 0.0
      %1920 = vmatmul.mubr.f32.gmra.mxu0 %v1821
      %v1921 = vpop.f32.mrf.mxu0
      %v1922 = vadd.f32 0.0, %v1921
      %v1923 = vpop.f32.mrf.mxu0
      %1924 = vmatprep.mubr.f32.mxu0 0.0
      %1925 = vmatmul.mubr.f32.gmra.mxu0 %v1824
      %v1926 = vpop.f32.mrf.mxu0
      %v1927 = vadd.f32 0.0, %v1926
      %v1928 = vpop.f32.mrf.mxu0
      %1929 = vmatprep.mubr.f32.mxu0 0.0
      %1930 = vmatmul.mubr.f32.gmra.mxu0 %v1827
      %v1931 = vpop.f32.mrf.mxu0
      %v1932 = vadd.f32 0.0, %v1931
      %v1933 = vpop.f32.mrf.mxu0
      %1934 = vmatprep.mubr.f32.mxu0 0.0
      %1935 = vmatmul.mubr.f32.gmra.mxu0 %v1830
      %v1936 = vpop.f32.mrf.mxu0
      %v1937 = vadd.f32 0.0, %v1936
      %v1938 = vpop.f32.mrf.mxu0
      %1939 = vmatprep.mubr.f32.mxu0 0.0
      %1940 = vmatmul.mubr.f32.gmra.mxu0 %v1833
      %v1941 = vpop.f32.mrf.mxu0
      %v1942 = vadd.f32 0.0, %v1941
      %v1943 = vpop.f32.mrf.mxu0
      %1944 = vmatprep.mubr.f32.mxu0 0.0
      %1945 = vmatmul.mubr.f32.gmra.mxu0 %v1836
      %v1946 = vpop.f32.mrf.mxu0
      %v1947 = vadd.f32 0.0, %v1946
      %v1948 = vpop.f32.mrf.mxu0
      %1949 = vdwg.mxu0
      %1950 = vrot.lane.b32.xlu0 %v599, 104
      %v1951 = vpop.permute.xlu0 %1950
      %1952 = vrot.lane.b32.xlu0 %v600, 104
      %v1953 = vpop.permute.xlu0 %1952
      %1954 = vrot.lane.b32.xlu0 %v601, 104
      %v1955 = vpop.permute.xlu0 %1954
      %1956 = vrot.lane.b32.xlu0 %v602, 104
      %v1957 = vpop.permute.xlu0 %1956
      %1958 = vrot.lane.b32.xlu0 %v603, 104
      %v1959 = vpop.permute.xlu0 %1958
      %1960 = vrot.lane.b32.xlu0 %v604, 104
      %v1961 = vpop.permute.xlu0 %1960
      %1962 = vrot.lane.b32.xlu0 %v605, 104
      %v1963 = vpop.permute.xlu0 %1962
      %1964 = vrot.lane.b32.xlu0 %v606, 104
      %v1965 = vpop.permute.xlu0 %1964
      %1966 = vrot.lane.b32.xlu0 %v607, 104
      %v1967 = vpop.permute.xlu0 %1966
      %1968 = vrot.lane.b32.xlu0 %v556, 72
      %v1969 = vpop.permute.xlu0 %1968
      %1970 = vrot.lane.b32.xlu0 %v561, 72
      %v1971 = vpop.permute.xlu0 %1970
      %1972 = vrot.lane.b32.xlu0 %v566, 72
      %v1973 = vpop.permute.xlu0 %1972
      %1974 = vrot.lane.b32.xlu0 %v571, 72
      %v1975 = vpop.permute.xlu0 %1974
      %1976 = vrot.lane.b32.xlu0 %v576, 72
      %v1977 = vpop.permute.xlu0 %1976
      %1978 = vrot.lane.b32.xlu0 %v581, 72
      %v1979 = vpop.permute.xlu0 %1978
      %1980 = vrot.lane.b32.xlu0 %v586, 72
      %v1981 = vpop.permute.xlu0 %1980
      %1982 = vrot.lane.b32.xlu0 %v591, 72
      %v1983 = vpop.permute.xlu0 %1982
      %1984 = vrot.lane.b32.xlu0 %v596, 72
      %v1985 = vpop.permute.xlu0 %1984
      %v1986 = vsel %vm635, %v1951, 0
      %v1988 = vsel %vm635, %v1953, 0
      %v1990 = vsel %vm635, %v1955, 0
      %v1992 = vsel %vm635, %v1957, 0
      %v1994 = vsel %vm635, %v1959, 0
      %v1996 = vsel %vm635, %v1961, 0
      %v1998 = vsel %vm635, %v1963, 0
      %v2000 = vsel %vm635, %v1965, 0
      %v2002 = vsel %vm635, %v1967, 0
      %v2004 = vsel %vm635, %v1969, 0
      %v2006 = vsel %vm635, %v1971, 0
      %v2008 = vsel %vm635, %v1973, 0
      %v2010 = vsel %vm635, %v1975, 0
      %v2012 = vsel %vm635, %v1977, 0
      %v2014 = vsel %vm635, %v1979, 0
      %v2016 = vsel %vm635, %v1981, 0
      %v2018 = vsel %vm635, %v1983, 0
      %v2020 = vsel %vm635, %v1985, 0
      %2022 = vmatprep.subr.mxu0 0.0
      %2023 = vmatpush1.xpose.msra.mxu0 0.0
      %2024 = vmatprep.subr.mxu0 0.0
      %2025 = vmatpush1.xpose.msra.mxu0 0.0
      %2026 = vmatprep.subr.mxu0 0.0
      %2027 = vmatpush1.xpose.msra.mxu0 0.0
      %2028 = vmatprep.subr.mxu0 0.0
      %2029 = vmatpush1.xpose.msra.mxu0 0.0
      %2030 = vmatprep.subr.mxu0 0.0
      %2031 = vmatpush1.xpose.msra.mxu0 0.0
      %2032 = vmatprep.subr.mxu0 0.0
      %2033 = vmatpush1.xpose.msra.mxu0 0.0
      %2034 = vmatprep.subr.mxu0 0.0
      %2035 = vmatpush1.xpose.msra.mxu0 0.0
      %2036 = vmatprep.subr.mxu0 0.0
      %2037 = vmatpush1.xpose.msra.mxu0 %v2020
      %2038 = vmatprep.subr.mxu0 0.0
      %2039 = vmatpush1.xpose.msra.mxu0 %v2018
      %2040 = vmatprep.subr.mxu0 0.0
      %2041 = vmatpush1.xpose.msra.mxu0 %v2016
      %2042 = vmatprep.subr.mxu0 0.0
      %2043 = vmatpush1.xpose.msra.mxu0 %v2014
      %2044 = vmatprep.subr.mxu0 0.0
      %2045 = vmatpush1.xpose.msra.mxu0 %v2012
      %2046 = vmatprep.subr.mxu0 0.0
      %2047 = vmatpush1.xpose.msra.mxu0 %v2010
      %2048 = vmatprep.subr.mxu0 0.0
      %2049 = vmatpush1.xpose.msra.mxu0 %v2008
      %2050 = vmatprep.subr.mxu0 0.0
      %2051 = vmatpush1.xpose.msra.mxu0 %v2006
      %2052 = vmatprep.subr.mxu0 0.0
      %2053 = vmatpush1.xpose.msra.mxu0 %v2004
      %2054 = vmatprep.subr.mxu0 0.0
      %2055 = vmatpush2.xpose.msra.mxu0 0.0
      %2056 = vmatprep.subr.mxu0 0.0
      %2057 = vmatpush2.xpose.msra.mxu0 0.0
      %2058 = vmatprep.subr.mxu0 0.0
      %2059 = vmatpush2.xpose.msra.mxu0 0.0
      %2060 = vmatprep.subr.mxu0 0.0
      %2061 = vmatpush2.xpose.msra.mxu0 0.0
      %2062 = vmatprep.subr.mxu0 0.0
      %2063 = vmatpush2.xpose.msra.mxu0 0.0
      %2064 = vmatprep.subr.mxu0 0.0
      %2065 = vmatpush2.xpose.msra.mxu0 0.0
      %2066 = vmatprep.subr.mxu0 0.0
      %2067 = vmatpush2.xpose.msra.mxu0 0.0
      %2068 = vmatprep.subr.mxu0 0.0
      %2069 = vmatpush2.xpose.msra.mxu0 0.0
      %2070 = vmatprep.subr.mxu0 0.0
      %2071 = vmatpush2.xpose.msra.mxu0 0.0
      %2072 = vmatprep.subr.mxu0 0.0
      %2073 = vmatpush2.xpose.msra.mxu0 0.0
      %2074 = vmatprep.subr.mxu0 0.0
      %2075 = vmatpush2.xpose.msra.mxu0 0.0
      %2076 = vmatprep.subr.mxu0 0.0
      %2077 = vmatpush2.xpose.msra.mxu0 0.0
      %2078 = vmatprep.subr.mxu0 0.0
      %2079 = vmatpush2.xpose.msra.mxu0 0.0
      %2080 = vmatprep.subr.mxu0 0.0
      %2081 = vmatpush2.xpose.msra.mxu0 0.0
      %2082 = vmatprep.subr.mxu0 0.0
      %2083 = vmatpush2.xpose.msra.mxu0 0.0
      %2084 = vmatprep.subr.mxu0 0.0
      %2085 = vmatpush2.xpose.msra.mxu0 0.0
      %2086 = vmatprep.mubr.f32.mxu0 0.0
      %2087 = vmatmul.mubr.f32.gmra.mxu0 %v1986
      %v2088 = vpop.f32.mrf.mxu0
      %v2089 = vadd.f32 0.0, %v2088
      %v2090 = vpop.f32.mrf.mxu0
      %2091 = vmatprep.mubr.f32.mxu0 0.0
      %2092 = vmatmul.mubr.f32.gmra.mxu0 %v1988
      %v2093 = vpop.f32.mrf.mxu0
      %v2094 = vadd.f32 0.0, %v2093
      %v2095 = vpop.f32.mrf.mxu0
      %2096 = vmatprep.mubr.f32.mxu0 0.0
      %2097 = vmatmul.mubr.f32.gmra.mxu0 %v1990
      %v2098 = vpop.f32.mrf.mxu0
      %v2099 = vadd.f32 0.0, %v2098
      %v2100 = vpop.f32.mrf.mxu0
      %2101 = vmatprep.mubr.f32.mxu0 0.0
      %2102 = vmatmul.mubr.f32.gmra.mxu0 %v1992
      %v2103 = vpop.f32.mrf.mxu0
      %v2104 = vadd.f32 0.0, %v2103
      %v2105 = vpop.f32.mrf.mxu0
      %2106 = vmatprep.mubr.f32.mxu0 0.0
      %2107 = vmatmul.mubr.f32.gmra.mxu0 %v1994
      %v2108 = vpop.f32.mrf.mxu0
      %v2109 = vadd.f32 0.0, %v2108
      %v2110 = vpop.f32.mrf.mxu0
      %2111 = vmatprep.mubr.f32.mxu0 0.0
      %2112 = vmatmul.mubr.f32.gmra.mxu0 %v1996
      %v2113 = vpop.f32.mrf.mxu0
      %v2114 = vadd.f32 0.0, %v2113
      %v2115 = vpop.f32.mrf.mxu0
      %2116 = vmatprep.mubr.f32.mxu0 0.0
      %2117 = vmatmul.mubr.f32.gmra.mxu0 %v1998
      %v2118 = vpop.f32.mrf.mxu0
      %v2119 = vadd.f32 0.0, %v2118
      %v2120 = vpop.f32.mrf.mxu0
      %2121 = vmatprep.mubr.f32.mxu0 0.0
      %2122 = vmatmul.mubr.f32.gmra.mxu0 %v2000
      %v2123 = vpop.f32.mrf.mxu0
      %v2124 = vadd.f32 0.0, %v2123
      %v2125 = vpop.f32.mrf.mxu0
      %2126 = vmatprep.mubr.f32.mxu0 0.0
      %2127 = vmatmul.mubr.f32.gmra.mxu0 %v2002
      %v2128 = vpop.f32.mrf.mxu0
      %v2129 = vadd.f32 0.0, %v2128
      %v2130 = vpop.f32.mrf.mxu0
      %2131 = vdwg.mxu0
      %v2132 = vsel %vm791, %v2089, -inf
      %2133 = vmax.xlane.f32.xlu0 %v2132
      %v2134 = vpop.xlane.xlu0 %2133
      %v2135 = vsel %vm791, %v2094, -inf
      %2136 = vmax.xlane.f32.xlu0 %v2135
      %v2137 = vpop.xlane.xlu0 %2136
      %v2138 = vsel %vm791, %v2099, -inf
      %2139 = vmax.xlane.f32.xlu0 %v2138
      %v2140 = vpop.xlane.xlu0 %2139
      %v2141 = vsel %vm791, %v2104, -inf
      %2142 = vmax.xlane.f32.xlu0 %v2141
      %v2143 = vpop.xlane.xlu0 %2142
      %v2144 = vsel %vm791, %v2109, -inf
      %2145 = vmax.xlane.f32.xlu0 %v2144
      %v2146 = vpop.xlane.xlu0 %2145
      %v2147 = vsel %vm791, %v2114, -inf
      %2148 = vmax.xlane.f32.xlu0 %v2147
      %v2149 = vpop.xlane.xlu0 %2148
      %v2150 = vsel %vm791, %v2119, -inf
      %2151 = vmax.xlane.f32.xlu0 %v2150
      %v2152 = vpop.xlane.xlu0 %2151
      %v2153 = vsel %vm791, %v2124, -inf
      %2154 = vmax.xlane.f32.xlu0 %v2153
      %v2155 = vpop.xlane.xlu0 %2154
      %v2156 = vsel %vm816, %v2129, -inf
      %2157 = vmax.xlane.f32.xlu0 %v2156
      %v2158 = vpop.xlane.xlu0 %2157
      %v2159 = vsub.f32 %v2089, %v2134
      %v2160 = vsub.f32 %v2094, %v2137
      %v2161 = vsub.f32 %v2099, %v2140
      %v2162 = vsub.f32 %v2104, %v2143
      %v2163 = vsub.f32 %v2109, %v2146
      %v2164 = vsub.f32 %v2114, %v2149
      %v2165 = vsub.f32 %v2119, %v2152
      %v2166 = vsub.f32 %v2124, %v2155
      %v2167 = vsub.f32 %v2129, %v2158
      %v2168 = vmul.f32 %v2159, 1.442695
      %v2169 = vpow.pop %v2168
      %v2170 = vmul.f32 %v2160, 1.442695
      %v2171 = vpow.pop %v2170
      %v2172 = vmul.f32 %v2161, 1.442695
      %v2173 = vpow.pop %v2172
      %v2174 = vmul.f32 %v2162, 1.442695
      %v2175 = vpow.pop %v2174
      %v2176 = vmul.f32 %v2163, 1.442695
      %v2177 = vpow.pop %v2176
      %v2178 = vmul.f32 %v2164, 1.442695
      %v2179 = vpow.pop %v2178
      %v2180 = vmul.f32 %v2165, 1.442695
      %v2181 = vpow.pop %v2180
      %v2182 = vmul.f32 %v2166, 1.442695
      %v2183 = vpow.pop %v2182
      %v2184 = vmul.f32 %v2167, 1.442695
      %v2185 = vpow.pop %v2184
      %v2186 = vsel %vm791, %v2169, 0.0
      %2187 = vadd.xlane.f32.xlu0 %v2186
      %v2188 = vpop.xlane.xlu0 %2187
      %v2189 = vsel %vm791, %v2171, 0.0
      %2190 = vadd.xlane.f32.xlu0 %v2189
      %v2191 = vpop.xlane.xlu0 %2190
      %v2192 = vsel %vm791, %v2173, 0.0
      %2193 = vadd.xlane.f32.xlu0 %v2192
      %v2194 = vpop.xlane.xlu0 %2193
      %v2195 = vsel %vm791, %v2175, 0.0
      %2196 = vadd.xlane.f32.xlu0 %v2195
      %v2197 = vpop.xlane.xlu0 %2196
      %v2198 = vsel %vm791, %v2177, 0.0
      %2199 = vadd.xlane.f32.xlu0 %v2198
      %v2200 = vpop.xlane.xlu0 %2199
      %v2201 = vsel %vm791, %v2179, 0.0
      %2202 = vadd.xlane.f32.xlu0 %v2201
      %v2203 = vpop.xlane.xlu0 %2202
      %v2204 = vsel %vm791, %v2181, 0.0
      %2205 = vadd.xlane.f32.xlu0 %v2204
      %v2206 = vpop.xlane.xlu0 %2205
      %v2207 = vsel %vm791, %v2183, 0.0
      %2208 = vadd.xlane.f32.xlu0 %v2207
      %v2209 = vpop.xlane.xlu0 %2208
      %v2210 = vsel %vm816, %v2185, 0.0
      %2211 = vadd.xlane.f32.xlu0 %v2210
      %v2212 = vpop.xlane.xlu0 %2211
      %v2213 = vrcp.pop %v2188
      %v2214 = vmul.f32 %v2169, %v2213
      %v2215 = vrcp.pop %v2191
      %v2216 = vmul.f32 %v2171, %v2215
      %v2217 = vrcp.pop %v2194
      %v2218 = vmul.f32 %v2173, %v2217
      %v2219 = vrcp.pop %v2197
      %v2220 = vmul.f32 %v2175, %v2219
      %v2221 = vrcp.pop %v2200
      %v2222 = vmul.f32 %v2177, %v2221
      %v2223 = vrcp.pop %v2203
      %v2224 = vmul.f32 %v2179, %v2223
      %v2225 = vrcp.pop %v2206
      %v2226 = vmul.f32 %v2181, %v2225
      %v2227 = vrcp.pop %v2209
      %v2228 = vmul.f32 %v2183, %v2227
      %v2229 = vrcp.pop %v2212
      %v2230 = vmul.f32 %v2185, %v2229
      %2231 = vrot.lane.b32.xlu0 %v556, 40
      %v2232 = vpop.permute.xlu0 %2231
      %2233 = vrot.lane.b32.xlu0 %v561, 40
      %v2234 = vpop.permute.xlu0 %2233
      %2235 = vrot.lane.b32.xlu0 %v566, 40
      %v2236 = vpop.permute.xlu0 %2235
      %2237 = vrot.lane.b32.xlu0 %v571, 40
      %v2238 = vpop.permute.xlu0 %2237
      %2239 = vrot.lane.b32.xlu0 %v576, 40
      %v2240 = vpop.permute.xlu0 %2239
      %2241 = vrot.lane.b32.xlu0 %v581, 40
      %v2242 = vpop.permute.xlu0 %2241
      %2243 = vrot.lane.b32.xlu0 %v586, 40
      %v2244 = vpop.permute.xlu0 %2243
      %2245 = vrot.lane.b32.xlu0 %v591, 40
      %v2246 = vpop.permute.xlu0 %2245
      %2247 = vrot.lane.b32.xlu0 %v596, 40
      %v2248 = vpop.permute.xlu0 %2247
      %v2258 = vsel %vm791, %v2214, 0
      %v2261 = vsel %vm791, %v2216, 0
      %v2264 = vsel %vm791, %v2218, 0
      %v2267 = vsel %vm791, %v2220, 0
      %v2270 = vsel %vm791, %v2222, 0
      %v2273 = vsel %vm791, %v2224, 0
      %v2276 = vsel %vm791, %v2226, 0
      %v2279 = vsel %vm791, %v2228, 0
      %v2282 = vsel %vm791, %v2230, 0
      %v2284 = vsel %vm945, %v2248, 0
      %2286 = vmatprep.subr.mxu0 0.0
      %2287 = vmatpush1.msra.mxu0 0.0
      %2288 = vmatprep.subr.mxu0 0.0
      %2289 = vmatpush1.msra.mxu0 0.0
      %2290 = vmatprep.subr.mxu0 0.0
      %2291 = vmatpush1.msra.mxu0 0.0
      %2292 = vmatprep.subr.mxu0 0.0
      %2293 = vmatpush1.msra.mxu0 0.0
      %2294 = vmatprep.subr.mxu0 0.0
      %2295 = vmatpush1.msra.mxu0 0.0
      %2296 = vmatprep.subr.mxu0 0.0
      %2297 = vmatpush1.msra.mxu0 0.0
      %2298 = vmatprep.subr.mxu0 0.0
      %2299 = vmatpush1.msra.mxu0 0.0
      %2300 = vmatprep.subr.mxu0 0.0
      %2301 = vmatpush1.msra.mxu0 %v2284
      %2302 = vmatprep.subr.mxu0 0.0
      %2303 = vmatpush1.msra.mxu0 %v2246
      %2304 = vmatprep.subr.mxu0 0.0
      %2305 = vmatpush1.msra.mxu0 %v2244
      %2306 = vmatprep.subr.mxu0 0.0
      %2307 = vmatpush1.msra.mxu0 %v2242
      %2308 = vmatprep.subr.mxu0 0.0
      %2309 = vmatpush1.msra.mxu0 %v2240
      %2310 = vmatprep.subr.mxu0 0.0
      %2311 = vmatpush1.msra.mxu0 %v2238
      %2312 = vmatprep.subr.mxu0 0.0
      %2313 = vmatpush1.msra.mxu0 %v2236
      %2314 = vmatprep.subr.mxu0 0.0
      %2315 = vmatpush1.msra.mxu0 %v2234
      %2316 = vmatprep.subr.mxu0 0.0
      %2317 = vmatpush1.msra.mxu0 %v2232
      %2318 = vmatprep.subr.mxu0 0.0
      %2319 = vmatpush2.msra.mxu0 0.0
      %2320 = vmatprep.subr.mxu0 0.0
      %2321 = vmatpush2.msra.mxu0 0.0
      %2322 = vmatprep.subr.mxu0 0.0
      %2323 = vmatpush2.msra.mxu0 0.0
      %2324 = vmatprep.subr.mxu0 0.0
      %2325 = vmatpush2.msra.mxu0 0.0
      %2326 = vmatprep.subr.mxu0 0.0
      %2327 = vmatpush2.msra.mxu0 0.0
      %2328 = vmatprep.subr.mxu0 0.0
      %2329 = vmatpush2.msra.mxu0 0.0
      %2330 = vmatprep.subr.mxu0 0.0
      %2331 = vmatpush2.msra.mxu0 0.0
      %2332 = vmatprep.subr.mxu0 0.0
      %2333 = vmatpush2.msra.mxu0 0.0
      %2334 = vmatprep.subr.mxu0 0.0
      %2335 = vmatpush2.msra.mxu0 0.0
      %2336 = vmatprep.subr.mxu0 0.0
      %2337 = vmatpush2.msra.mxu0 0.0
      %2338 = vmatprep.subr.mxu0 0.0
      %2339 = vmatpush2.msra.mxu0 0.0
      %2340 = vmatprep.subr.mxu0 0.0
      %2341 = vmatpush2.msra.mxu0 0.0
      %2342 = vmatprep.subr.mxu0 0.0
      %2343 = vmatpush2.msra.mxu0 0.0
      %2344 = vmatprep.subr.mxu0 0.0
      %2345 = vmatpush2.msra.mxu0 0.0
      %2346 = vmatprep.subr.mxu0 0.0
      %2347 = vmatpush2.msra.mxu0 0.0
      %2348 = vmatprep.subr.mxu0 0.0
      %2349 = vmatpush2.msra.mxu0 0.0
      %2350 = vmatprep.mubr.f32.mxu0 0.0
      %2351 = vmatmul.mubr.f32.gmra.mxu0 %v2258
      %v2352 = vpop.f32.mrf.mxu0
      %v2353 = vadd.f32 0.0, %v2352
      %v2354 = vpop.f32.mrf.mxu0
      %2355 = vmatprep.mubr.f32.mxu0 0.0
      %2356 = vmatmul.mubr.f32.gmra.mxu0 %v2261
      %v2357 = vpop.f32.mrf.mxu0
      %v2358 = vadd.f32 0.0, %v2357
      %v2359 = vpop.f32.mrf.mxu0
      %2360 = vmatprep.mubr.f32.mxu0 0.0
      %2361 = vmatmul.mubr.f32.gmra.mxu0 %v2264
      %v2362 = vpop.f32.mrf.mxu0
      %v2363 = vadd.f32 0.0, %v2362
      %v2364 = vpop.f32.mrf.mxu0
      %2365 = vmatprep.mubr.f32.mxu0 0.0
      %2366 = vmatmul.mubr.f32.gmra.mxu0 %v2267
      %v2367 = vpop.f32.mrf.mxu0
      %v2368 = vadd.f32 0.0, %v2367
      %v2369 = vpop.f32.mrf.mxu0
      %2370 = vmatprep.mubr.f32.mxu0 0.0
      %2371 = vmatmul.mubr.f32.gmra.mxu0 %v2270
      %v2372 = vpop.f32.mrf.mxu0
      %v2373 = vadd.f32 0.0, %v2372
      %v2374 = vpop.f32.mrf.mxu0
      %2375 = vmatprep.mubr.f32.mxu0 0.0
      %2376 = vmatmul.mubr.f32.gmra.mxu0 %v2273
      %v2377 = vpop.f32.mrf.mxu0
      %v2378 = vadd.f32 0.0, %v2377
      %v2379 = vpop.f32.mrf.mxu0
      %2380 = vmatprep.mubr.f32.mxu0 0.0
      %2381 = vmatmul.mubr.f32.gmra.mxu0 %v2276
      %v2382 = vpop.f32.mrf.mxu0
      %v2383 = vadd.f32 0.0, %v2382
      %v2384 = vpop.f32.mrf.mxu0
      %2385 = vmatprep.mubr.f32.mxu0 0.0
      %2386 = vmatmul.mubr.f32.gmra.mxu0 %v2279
      %v2387 = vpop.f32.mrf.mxu0
      %v2388 = vadd.f32 0.0, %v2387
      %v2389 = vpop.f32.mrf.mxu0
      %2390 = vmatprep.mubr.f32.mxu0 0.0
      %2391 = vmatmul.mubr.f32.gmra.mxu0 %v2282
      %v2392 = vpop.f32.mrf.mxu0
      %v2393 = vadd.f32 0.0, %v2392
      %v2394 = vpop.f32.mrf.mxu0
      %2395 = vdwg.mxu0
      %2405 = vrot.lane.b32.xlu0 %v1461, 8
      %v2406 = vpop.permute.xlu0 %2405
      %2407 = vrot.lane.b32.xlu0 %v1466, 8
      %v2408 = vpop.permute.xlu0 %2407
      %2409 = vrot.lane.b32.xlu0 %v1471, 8
      %v2410 = vpop.permute.xlu0 %2409
      %2411 = vrot.lane.b32.xlu0 %v1476, 8
      %v2412 = vpop.permute.xlu0 %2411
      %2413 = vrot.lane.b32.xlu0 %v1481, 8
      %v2414 = vpop.permute.xlu0 %2413
      %2415 = vrot.lane.b32.xlu0 %v1486, 8
      %v2416 = vpop.permute.xlu0 %2415
      %2417 = vrot.lane.b32.xlu0 %v1491, 8
      %v2418 = vpop.permute.xlu0 %2417
      %2419 = vrot.lane.b32.xlu0 %v1496, 8
      %v2420 = vpop.permute.xlu0 %2419
      %2421 = vrot.lane.b32.xlu0 %v1501, 8
      %v2422 = vpop.permute.xlu0 %2421
      %2441 = vrot.lane.b32.xlu0 %v1907, 16
      %v2442 = vpop.permute.xlu0 %2441
      %2443 = vrot.lane.b32.xlu0 %v1912, 16
      %v2444 = vpop.permute.xlu0 %2443
      %2445 = vrot.lane.b32.xlu0 %v1917, 16
      %v2446 = vpop.permute.xlu0 %2445
      %2447 = vrot.lane.b32.xlu0 %v1922, 16
      %v2448 = vpop.permute.xlu0 %2447
      %2449 = vrot.lane.b32.xlu0 %v1927, 16
      %v2450 = vpop.permute.xlu0 %2449
      %2451 = vrot.lane.b32.xlu0 %v1932, 16
      %v2452 = vpop.permute.xlu0 %2451
      %2453 = vrot.lane.b32.xlu0 %v1937, 16
      %v2454 = vpop.permute.xlu0 %2453
      %2455 = vrot.lane.b32.xlu0 %v1942, 16
      %v2456 = vpop.permute.xlu0 %2455
      %2457 = vrot.lane.b32.xlu0 %v1947, 16
      %v2458 = vpop.permute.xlu0 %2457
      %2477 = vrot.lane.b32.xlu0 %v2353, 24
      %v2478 = vpop.permute.xlu0 %2477
      %2479 = vrot.lane.b32.xlu0 %v2358, 24
      %v2480 = vpop.permute.xlu0 %2479
      %2481 = vrot.lane.b32.xlu0 %v2363, 24
      %v2482 = vpop.permute.xlu0 %2481
      %2483 = vrot.lane.b32.xlu0 %v2368, 24
      %v2484 = vpop.permute.xlu0 %2483
      %2485 = vrot.lane.b32.xlu0 %v2373, 24
      %v2486 = vpop.permute.xlu0 %2485
      %2487 = vrot.lane.b32.xlu0 %v2378, 24
      %v2488 = vpop.permute.xlu0 %2487
      %2489 = vrot.lane.b32.xlu0 %v2383, 24
      %v2490 = vpop.permute.xlu0 %2489
      %2491 = vrot.lane.b32.xlu0 %v2388, 24
      %v2492 = vpop.permute.xlu0 %2491
      %2493 = vrot.lane.b32.xlu0 %v2393, 24
      %v2494 = vpop.permute.xlu0 %2493
      %v2504 = vsel %vm635, %v1015, %v2406
      %v2505 = vsel %vm635, %v1020, %v2408
      %v2506 = vsel %vm635, %v1025, %v2410
      %v2507 = vsel %vm635, %v1030, %v2412
      %v2508 = vsel %vm635, %v1035, %v2414
      %v2509 = vsel %vm635, %v1040, %v2416
      %v2510 = vsel %vm635, %v1045, %v2418
      %v2511 = vsel %vm635, %v1050, %v2420
      %v2512 = vsel %vm635, %v1055, %v2422
      %vm2513 = vcmask 130048
      %v2514 = vsel %vm2513, %v2504, %v2442
      %v2515 = vsel %vm2513, %v2505, %v2444
      %v2516 = vsel %vm2513, %v2506, %v2446
      %v2517 = vsel %vm2513, %v2507, %v2448
      %v2518 = vsel %vm2513, %v2508, %v2450
      %v2519 = vsel %vm2513, %v2509, %v2452
      %v2520 = vsel %vm2513, %v2510, %v2454
      %v2521 = vsel %vm2513, %v2511, %v2456
      %v2522 = vsel %vm2513, %v2512, %v2458
      %vm2523 = vcmask 195584
      %v2524 = vsel %vm2523, %v2514, %v2478
      %v2525 = vsel %vm2523, %v2515, %v2480
      %v2526 = vsel %vm2523, %v2516, %v2482
      %v2527 = vsel %vm2523, %v2517, %v2484
      %v2528 = vsel %vm2523, %v2518, %v2486
      %v2529 = vsel %vm2523, %v2519, %v2488
      %v2530 = vsel %vm2523, %v2520, %v2490
      %v2531 = vsel %vm2523, %v2521, %v2492
      %v2532 = vsel %vm2523, %v2522, %v2494
      %v2533 = vld [vmem:[%s3] sm:$0xff]
      %v2534 = vld [vmem:[%s3 + $0x8] sm:$0xff]
      %v2535 = vld [vmem:[%s3 + $0x10] sm:$0xff]
      %v2536 = vld [vmem:[%s3 + $0x18] sm:$0xff]
      %v2537 = vld [vmem:[%s4] sm:$0x1]
      %v2539 = vlaneseq
      %v2540 = vshrl.u32 %v2539, 7
      %v2541 = vsub.s32 0, %v2540
      %v2542 = vrot.slane %v2537, %v2541
      %v2545 = vsel %vm461, %v2524, 0
      %v2548 = vsel %vm461, %v2525, 0
      %v2551 = vsel %vm461, %v2526, 0
      %v2554 = vsel %vm461, %v2527, 0
      %v2557 = vsel %vm461, %v2528, 0
      %v2560 = vsel %vm461, %v2529, 0
      %v2563 = vsel %vm461, %v2530, 0
      %v2566 = vsel %vm461, %v2531, 0
      %v2569 = vsel %vm461, %v2532, 0
      %2571 = vmatprep.subr.mxu0 0.0
      %2572 = vmatpush1.msra.mxu0 0.0
      %2573 = vmatprep.subr.mxu0 0.0
      %2574 = vmatpush1.msra.mxu0 0.0
      %2575 = vmatprep.subr.mxu0 0.0
      %2576 = vmatpush1.msra.mxu0 0.0
      %2577 = vmatprep.subr.mxu0 0.0
      %2578 = vmatpush1.msra.mxu0 0.0
      %2579 = vmatprep.subr.mxu0 0.0
      %2580 = vmatpush1.msra.mxu0 0.0
      %2581 = vmatprep.subr.mxu0 0.0
      %2582 = vmatpush1.msra.mxu0 0.0
      %2583 = vmatprep.subr.mxu0 0.0
      %2584 = vmatpush1.msra.mxu0 0.0
      %2585 = vmatprep.subr.mxu0 0.0
      %2586 = vmatpush1.msra.mxu0 0.0
      %2587 = vmatprep.subr.mxu0 0.0
      %2588 = vmatpush1.msra.mxu0 0.0
      %2589 = vmatprep.subr.mxu0 0.0
      %2590 = vmatpush1.msra.mxu0 0.0
      %2591 = vmatprep.subr.mxu0 0.0
      %2592 = vmatpush1.msra.mxu0 0.0
      %2593 = vmatprep.subr.mxu0 0.0
      %2594 = vmatpush1.msra.mxu0 0.0
      %2595 = vmatprep.subr.mxu0 0.0
      %2596 = vmatpush1.msra.mxu0 %v2536
      %2597 = vmatprep.subr.mxu0 0.0
      %2598 = vmatpush1.msra.mxu0 %v2535
      %2599 = vmatprep.subr.mxu0 0.0
      %2600 = vmatpush1.msra.mxu0 %v2534
      %2601 = vmatprep.subr.mxu0 0.0
      %2602 = vmatpush1.msra.mxu0 %v2533
      %2603 = vmatprep.subr.mxu0 0.0
      %2604 = vmatpush2.msra.mxu0 0.0
      %2605 = vmatprep.subr.mxu0 0.0
      %2606 = vmatpush2.msra.mxu0 0.0
      %2607 = vmatprep.subr.mxu0 0.0
      %2608 = vmatpush2.msra.mxu0 0.0
      %2609 = vmatprep.subr.mxu0 0.0
      %2610 = vmatpush2.msra.mxu0 0.0
      %2611 = vmatprep.subr.mxu0 0.0
      %2612 = vmatpush2.msra.mxu0 0.0
      %2613 = vmatprep.subr.mxu0 0.0
      %2614 = vmatpush2.msra.mxu0 0.0
      %2615 = vmatprep.subr.mxu0 0.0
      %2616 = vmatpush2.msra.mxu0 0.0
      %2617 = vmatprep.subr.mxu0 0.0
      %2618 = vmatpush2.msra.mxu0 0.0
      %2619 = vmatprep.subr.mxu0 0.0
      %2620 = vmatpush2.msra.mxu0 0.0
      %2621 = vmatprep.subr.mxu0 0.0
      %2622 = vmatpush2.msra.mxu0 0.0
      %2623 = vmatprep.subr.mxu0 0.0
      %2624 = vmatpush2.msra.mxu0 0.0
      %2625 = vmatprep.subr.mxu0 0.0
      %2626 = vmatpush2.msra.mxu0 0.0
      %2627 = vmatprep.subr.mxu0 0.0
      %2628 = vmatpush2.msra.mxu0 0.0
      %2629 = vmatprep.subr.mxu0 0.0
      %2630 = vmatpush2.msra.mxu0 0.0
      %2631 = vmatprep.subr.mxu0 0.0
      %2632 = vmatpush2.msra.mxu0 0.0
      %2633 = vmatprep.subr.mxu0 0.0
      %2634 = vmatpush2.msra.mxu0 0.0
      %2635 = vmatprep.mubr.f32.mxu0 0.0
      %2636 = vmatmul.mubr.f32.gmra.mxu0 %v2545
      %v2637 = vpop.f32.mrf.mxu0
      %v2638 = vadd.f32 %v2542, %v2637
      %v2639 = vpop.f32.mrf.mxu0
      %2640 = vmatprep.mubr.f32.mxu0 0.0
      %2641 = vmatmul.mubr.f32.gmra.mxu0 %v2548
      %v2642 = vpop.f32.mrf.mxu0
      %v2643 = vadd.f32 %v2542, %v2642
      %v2644 = vpop.f32.mrf.mxu0
      %2645 = vmatprep.mubr.f32.mxu0 0.0
      %2646 = vmatmul.mubr.f32.gmra.mxu0 %v2551
      %v2647 = vpop.f32.mrf.mxu0
      %v2648 = vadd.f32 %v2542, %v2647
      %v2649 = vpop.f32.mrf.mxu0
      %2650 = vmatprep.mubr.f32.mxu0 0.0
      %2651 = vmatmul.mubr.f32.gmra.mxu0 %v2554
      %v2652 = vpop.f32.mrf.mxu0
      %v2653 = vadd.f32 %v2542, %v2652
      %v2654 = vpop.f32.mrf.mxu0
      %2655 = vmatprep.mubr.f32.mxu0 0.0
      %2656 = vmatmul.mubr.f32.gmra.mxu0 %v2557
      %v2657 = vpop.f32.mrf.mxu0
      %v2658 = vadd.f32 %v2542, %v2657
      %v2659 = vpop.f32.mrf.mxu0
      %2660 = vmatprep.mubr.f32.mxu0 0.0
      %2661 = vmatmul.mubr.f32.gmra.mxu0 %v2560
      %v2662 = vpop.f32.mrf.mxu0
      %v2663 = vadd.f32 %v2542, %v2662
      %v2664 = vpop.f32.mrf.mxu0
      %2665 = vmatprep.mubr.f32.mxu0 0.0
      %2666 = vmatmul.mubr.f32.gmra.mxu0 %v2563
      %v2667 = vpop.f32.mrf.mxu0
      %v2668 = vadd.f32 %v2542, %v2667
      %v2669 = vpop.f32.mrf.mxu0
      %2670 = vmatprep.mubr.f32.mxu0 0.0
      %2671 = vmatmul.mubr.f32.gmra.mxu0 %v2566
      %v2672 = vpop.f32.mrf.mxu0
      %v2673 = vadd.f32 %v2542, %v2672
      %v2674 = vpop.f32.mrf.mxu0
      %2675 = vmatprep.mubr.f32.mxu0 0.0
      %2676 = vmatmul.mubr.f32.gmra.mxu0 %v2569
      %v2677 = vpop.f32.mrf.mxu0
      %v2678 = vadd.f32 %v2542, %v2677
      %v2679 = vpop.f32.mrf.mxu0
      %2680 = vdwg.mxu0
      %v2681 = vadd.f32 %v441, %v2638
      %v2682 = vadd.f32 %v442, %v2643
      %v2683 = vadd.f32 %v443, %v2648
      %v2684 = vadd.f32 %v444, %v2653
      %v2685 = vadd.f32 %v445, %v2658
      %v2686 = vadd.f32 %v446, %v2663
      %v2687 = vadd.f32 %v447, %v2668
      %v2688 = vadd.f32 %v448, %v2673
      %v2689 = vadd.f32 %v449, %v2678
      %v2690 = vld [vmem:[%s5] sm:$0x1]
      %v2691 = vld [vmem:[%s6] sm:$0x1]
      %v2692 = vsel %vm461, %v2681, 0.0
      %2693 = vadd.xlane.f32.xlu0 %v2692
      %v2694 = vpop.xlane.xlu0 %2693
      %v2695 = vsel %vm461, %v2682, 0.0
      %2696 = vadd.xlane.f32.xlu0 %v2695
      %v2697 = vpop.xlane.xlu0 %2696
      %v2698 = vsel %vm461, %v2683, 0.0
      %2699 = vadd.xlane.f32.xlu0 %v2698
      %v2700 = vpop.xlane.xlu0 %2699
      %v2701 = vsel %vm461, %v2684, 0.0
      %2702 = vadd.xlane.f32.xlu0 %v2701
      %v2703 = vpop.xlane.xlu0 %2702
      %v2704 = vsel %vm461, %v2685, 0.0
      %2705 = vadd.xlane.f32.xlu0 %v2704
      %v2706 = vpop.xlane.xlu0 %2705
      %v2707 = vsel %vm461, %v2686, 0.0
      %2708 = vadd.xlane.f32.xlu0 %v2707
      %v2709 = vpop.xlane.xlu0 %2708
      %v2710 = vsel %vm461, %v2687, 0.0
      %2711 = vadd.xlane.f32.xlu0 %v2710
      %v2712 = vpop.xlane.xlu0 %2711
      %v2713 = vsel %vm461, %v2688, 0.0
      %2714 = vadd.xlane.f32.xlu0 %v2713
      %v2715 = vpop.xlane.xlu0 %2714
      %vm2716 = vcmask 253952
      %v2717 = vsel %vm2716, %v2689, 0.0
      %2718 = vadd.xlane.f32.xlu0 %v2717
      %v2719 = vpop.xlane.xlu0 %2718
      %v2720 = vrcp.pop 32.0
      %v2721 = vmul.f32 %v2694, %v2720
      %v2722 = vmul.f32 %v2697, %v2720
      %v2723 = vmul.f32 %v2700, %v2720
      %v2724 = vmul.f32 %v2703, %v2720
      %v2725 = vmul.f32 %v2706, %v2720
      %v2726 = vmul.f32 %v2709, %v2720
      %v2727 = vmul.f32 %v2712, %v2720
      %v2728 = vmul.f32 %v2715, %v2720
      %v2729 = vmul.f32 %v2719, %v2720
      %v2730 = vsub.f32 %v2681, %v2721
      %v2731 = vsub.f32 %v2682, %v2722
      %v2732 = vsub.f32 %v2683, %v2723
      %v2733 = vsub.f32 %v2684, %v2724
      %v2734 = vsub.f32 %v2685, %v2725
      %v2735 = vsub.f32 %v2686, %v2726
      %v2736 = vsub.f32 %v2687, %v2727
      %v2737 = vsub.f32 %v2688, %v2728
      %v2738 = vsub.f32 %v2689, %v2729
      %v2739 = vmul.f32 %v2730, %v2730
      %v2740 = vmul.f32 %v2731, %v2731
      %v2741 = vmul.f32 %v2732, %v2732
      %v2742 = vmul.f32 %v2733, %v2733
      %v2743 = vmul.f32 %v2734, %v2734
      %v2744 = vmul.f32 %v2735, %v2735
      %v2745 = vmul.f32 %v2736, %v2736
      %v2746 = vmul.f32 %v2737, %v2737
      %v2747 = vmul.f32 %v2738, %v2738
      %v2748 = vsel %vm461, %v2739, 0.0
      %2749 = vadd.xlane.f32.xlu0 %v2748
      %v2750 = vpop.xlane.xlu0 %2749
      %v2751 = vsel %vm461, %v2740, 0.0
      %2752 = vadd.xlane.f32.xlu0 %v2751
      %v2753 = vpop.xlane.xlu0 %2752
      %v2754 = vsel %vm461, %v2741, 0.0
      %2755 = vadd.xlane.f32.xlu0 %v2754
      %v2756 = vpop.xlane.xlu0 %2755
      %v2757 = vsel %vm461, %v2742, 0.0
      %2758 = vadd.xlane.f32.xlu0 %v2757
      %v2759 = vpop.xlane.xlu0 %2758
      %v2760 = vsel %vm461, %v2743, 0.0
      %2761 = vadd.xlane.f32.xlu0 %v2760
      %v2762 = vpop.xlane.xlu0 %2761
      %v2763 = vsel %vm461, %v2744, 0.0
      %2764 = vadd.xlane.f32.xlu0 %v2763
      %v2765 = vpop.xlane.xlu0 %2764
      %v2766 = vsel %vm461, %v2745, 0.0
      %2767 = vadd.xlane.f32.xlu0 %v2766
      %v2768 = vpop.xlane.xlu0 %2767
      %v2769 = vsel %vm461, %v2746, 0.0
      %2770 = vadd.xlane.f32.xlu0 %v2769
      %v2771 = vpop.xlane.xlu0 %2770
      %v2772 = vsel %vm2716, %v2747, 0.0
      %2773 = vadd.xlane.f32.xlu0 %v2772
      %v2774 = vpop.xlane.xlu0 %2773
      %v2775 = vmul.f32 %v2750, %v2720
      %v2776 = vmul.f32 %v2753, %v2720
      %v2777 = vmul.f32 %v2756, %v2720
      %v2778 = vmul.f32 %v2759, %v2720
      %v2779 = vmul.f32 %v2762, %v2720
      %v2780 = vmul.f32 %v2765, %v2720
      %v2781 = vmul.f32 %v2768, %v2720
      %v2782 = vmul.f32 %v2771, %v2720
      %v2783 = vmul.f32 %v2774, %v2720
      %v2784 = vadd.f32 %v2775, 1e-05
      %v2785 = vadd.f32 %v2776, 1e-05
      %v2786 = vadd.f32 %v2777, 1e-05
      %v2787 = vadd.f32 %v2778, 1e-05
      %v2788 = vadd.f32 %v2779, 1e-05
      %v2789 = vadd.f32 %v2780, 1e-05
      %v2790 = vadd.f32 %v2781, 1e-05
      %v2791 = vadd.f32 %v2782, 1e-05
      %v2792 = vadd.f32 %v2783, 1e-05
      %v2793 = vrsqrt.pop %v2784
      %v2794 = vrsqrt.pop %v2785
      %v2795 = vrsqrt.pop %v2786
      %v2796 = vrsqrt.pop %v2787
      %v2797 = vrsqrt.pop %v2788
      %v2798 = vrsqrt.pop %v2789
      %v2799 = vrsqrt.pop %v2790
      %v2800 = vrsqrt.pop %v2791
      %v2801 = vrsqrt.pop %v2792
      %v2802 = vmul.f32 %v2730, %v2793
      %v2803 = vmul.f32 %v2731, %v2794
      %v2804 = vmul.f32 %v2732, %v2795
      %v2805 = vmul.f32 %v2733, %v2796
      %v2806 = vmul.f32 %v2734, %v2797
      %v2807 = vmul.f32 %v2735, %v2798
      %v2808 = vmul.f32 %v2736, %v2799
      %v2809 = vmul.f32 %v2737, %v2800
      %v2810 = vmul.f32 %v2738, %v2801
      %v2812 = vlaneseq
      %v2813 = vshrl.u32 %v2812, 7
      %v2814 = vsub.s32 0, %v2813
      %v2815 = vrot.slane %v2690, %v2814
      %v2817 = vmul.f32 %v2802, %v2815
      %v2818 = vmul.f32 %v2803, %v2815
      %v2819 = vmul.f32 %v2804, %v2815
      %v2820 = vmul.f32 %v2805, %v2815
      %v2821 = vmul.f32 %v2806, %v2815
      %v2822 = vmul.f32 %v2807, %v2815
      %v2823 = vmul.f32 %v2808, %v2815
      %v2824 = vmul.f32 %v2809, %v2815
      %v2825 = vmul.f32 %v2810, %v2815
      %v2827 = vlaneseq
      %v2828 = vshrl.u32 %v2827, 7
      %v2829 = vsub.s32 0, %v2828
      %v2830 = vrot.slane %v2691, %v2829
      %v2832 = vadd.f32 %v2817, %v2830
      %v2833 = vadd.f32 %v2818, %v2830
      %v2834 = vadd.f32 %v2819, %v2830
      %v2835 = vadd.f32 %v2820, %v2830
      %v2836 = vadd.f32 %v2821, %v2830
      %v2837 = vadd.f32 %v2822, %v2830
      %v2838 = vadd.f32 %v2823, %v2830
      %v2839 = vadd.f32 %v2824, %v2830
      %v2840 = vadd.f32 %v2825, %v2830
      %v2841 = vld [vmem:[%s7] sm:$0xff]
      %v2842 = vld [vmem:[%s7 + $0x8] sm:$0xff]
      %v2843 = vld [vmem:[%s7 + $0x10] sm:$0xff]
      %v2844 = vld [vmem:[%s7 + $0x18] sm:$0xff]
      %v2845 = vld [vmem:[%s7 + $0x20] sm:$0xff]
      %v2846 = vld [vmem:[%s7 + $0x28] sm:$0xff]
      %v2847 = vld [vmem:[%s7 + $0x30] sm:$0xff]
      %v2848 = vld [vmem:[%s7 + $0x38] sm:$0xff]
      %v2849 = vld [vmem:[%s7 + $0x40] sm:$0xff]
      %v2850 = vld [vmem:[%s7 + $0x48] sm:$0xff]
      %v2851 = vld [vmem:[%s7 + $0x50] sm:$0xff]
      %v2852 = vld [vmem:[%s7 + $0x58] sm:$0xff]
      %v2853 = vld [vmem:[%s7 + $0x60] sm:$0xff]
      %v2854 = vld [vmem:[%s7 + $0x68] sm:$0xff]
      %v2855 = vld [vmem:[%s7 + $0x70] sm:$0xff]
      %v2856 = vld [vmem:[%s7 + $0x78] sm:$0xff]
      %v2857 = vld [vmem:[%s7 + $0x80] sm:$0xff]
      %v2858 = vld [vmem:[%s7 + $0x88] sm:$0xff]
      %v2859 = vld [vmem:[%s7 + $0x90] sm:$0xff]
      %v2860 = vld [vmem:[%s7 + $0x98] sm:$0xff]
      %v2861 = vld [vmem:[%s7 + $0xa0] sm:$0xff]
      %v2862 = vld [vmem:[%s7 + $0xa8] sm:$0xff]
      %v2863 = vld [vmem:[%s7 + $0xb0] sm:$0xff]
      %v2864 = vld [vmem:[%s7 + $0xb8] sm:$0xff]
      %v2865 = vld [vmem:[%s7 + $0xc0] sm:$0xff]
      %v2866 = vld [vmem:[%s7 + $0xc8] sm:$0xff]
      %v2867 = vld [vmem:[%s7 + $0xd0] sm:$0xff]
      %v2868 = vld [vmem:[%s7 + $0xd8] sm:$0xff]
      %v2869 = vld [vmem:[%s7 + $0xe0] sm:$0xff]
      %v2870 = vld [vmem:[%s7 + $0xe8] sm:$0xff]
      %v2871 = vld [vmem:[%s7 + $0xf0] sm:$0xff]
      %v2872 = vld [vmem:[%s7 + $0xf8] sm:$0xff]
      %v2873 = vld [vmem:[%s7 + $0x100] sm:$0xff]
      %v2874 = vld [vmem:[%s7 + $0x108] sm:$0xff]
      %v2875 = vld [vmem:[%s7 + $0x110] sm:$0xff]
      %v2876 = vld [vmem:[%s7 + $0x118] sm:$0xff]
      %v2877 = vld [vmem:[%s7 + $0x120] sm:$0xff]
      %v2878 = vld [vmem:[%s7 + $0x128] sm:$0xff]
      %v2879 = vld [vmem:[%s7 + $0x130] sm:$0xff]
      %v2880 = vld [vmem:[%s7 + $0x138] sm:$0xff]
      %v2881 = vld [vmem:[%s7 + $0x140] sm:$0xff]
      %v2882 = vld [vmem:[%s7 + $0x148] sm:$0xff]
      %v2883 = vld [vmem:[%s7 + $0x150] sm:$0xff]
      %v2884 = vld [vmem:[%s7 + $0x158] sm:$0xff]
      %v2885 = vld [vmem:[%s7 + $0x160] sm:$0xff]
      %v2886 = vld [vmem:[%s7 + $0x168] sm:$0xff]
      %v2887 = vld [vmem:[%s7 + $0x170] sm:$0xff]
      %v2888 = vld [vmem:[%s7 + $0x178] sm:$0xff]
      %v2889 = vld [vmem:[%s7 + $0x180] sm:$0xff]
      %v2890 = vld [vmem:[%s7 + $0x188] sm:$0xff]
      %v2891 = vld [vmem:[%s7 + $0x190] sm:$0xff]
      %v2892 = vld [vmem:[%s7 + $0x198] sm:$0xff]
      %v2893 = vld [vmem:[%s7 + $0x1a0] sm:$0xff]
      %v2894 = vld [vmem:[%s7 + $0x1a8] sm:$0xff]
      %v2895 = vld [vmem:[%s7 + $0x1b0] sm:$0xff]
      %v2896 = vld [vmem:[%s7 + $0x1b8] sm:$0xff]
      %v2897 = vld [vmem:[%s7 + $0x1c0] sm:$0xff]
      %v2898 = vld [vmem:[%s7 + $0x1c8] sm:$0xff]
      %v2899 = vld [vmem:[%s7 + $0x1d0] sm:$0xff]
      %v2900 = vld [vmem:[%s7 + $0x1d8] sm:$0xff]
      %v2901 = vld [vmem:[%s7 + $0x1e0] sm:$0xff]
      %v2902 = vld [vmem:[%s7 + $0x1e8] sm:$0xff]
      %v2903 = vld [vmem:[%s7 + $0x1f0] sm:$0xff]
      %v2904 = vld [vmem:[%s7 + $0x1f8] sm:$0xff]
      %v2905 = vld [vmem:[%s8] sm:$0xff]
      %v2906 = vld [vmem:[%s8 + $0x8] sm:$0xff]
      %v2909 = vlaneseq
      %v2910 = vshrl.u32 %v2909, 7
      %v2911 = vsub.s32 0, %v2910
      %v2912 = vrot.slane %v2905, %v2911
      %v2913 = vlaneseq
      %v2914 = vshrl.u32 %v2913, 7
      %v2915 = vsub.s32 1, %v2914
      %v2916 = vrot.slane %v2905, %v2915
      %v2917 = vlaneseq
      %v2918 = vshrl.u32 %v2917, 7
      %v2919 = vsub.s32 2, %v2918
      %v2920 = vrot.slane %v2905, %v2919
      %v2921 = vlaneseq
      %v2922 = vshrl.u32 %v2921, 7
      %v2923 = vsub.s32 3, %v2922
      %v2924 = vrot.slane %v2905, %v2923
      %v2925 = vlaneseq
      %v2926 = vshrl.u32 %v2925, 7
      %v2927 = vsub.s32 4, %v2926
      %v2928 = vrot.slane %v2905, %v2927
      %v2929 = vlaneseq
      %v2930 = vshrl.u32 %v2929, 7
      %v2931 = vsub.s32 5, %v2930
      %v2932 = vrot.slane %v2905, %v2931
      %v2933 = vlaneseq
      %v2934 = vshrl.u32 %v2933, 7
      %v2935 = vsub.s32 6, %v2934
      %v2936 = vrot.slane %v2905, %v2935
      %v2937 = vlaneseq
      %v2938 = vshrl.u32 %v2937, 7
      %v2939 = vsub.s32 7, %v2938
      %v2940 = vrot.slane %v2905, %v2939
      %v2941 = vlaneseq
      %v2942 = vshrl.u32 %v2941, 7
      %v2943 = vsub.s32 0, %v2942
      %v2944 = vrot.slane %v2906, %v2943
      %v2945 = vlaneseq
      %v2946 = vshrl.u32 %v2945, 7
      %v2947 = vsub.s32 1, %v2946
      %v2948 = vrot.slane %v2906, %v2947
      %v2949 = vlaneseq
      %v2950 = vshrl.u32 %v2949, 7
      %v2951 = vsub.s32 2, %v2950
      %v2952 = vrot.slane %v2906, %v2951
      %v2953 = vlaneseq
      %v2954 = vshrl.u32 %v2953, 7
      %v2955 = vsub.s32 3, %v2954
      %v2956 = vrot.slane %v2906, %v2955
      %v2957 = vlaneseq
      %v2958 = vshrl.u32 %v2957, 7
      %v2959 = vsub.s32 4, %v2958
      %v2960 = vrot.slane %v2906, %v2959
      %v2961 = vlaneseq
      %v2962 = vshrl.u32 %v2961, 7
      %v2963 = vsub.s32 5, %v2962
      %v2964 = vrot.slane %v2906, %v2963
      %v2965 = vlaneseq
      %v2966 = vshrl.u32 %v2965, 7
      %v2967 = vsub.s32 6, %v2966
      %v2968 = vrot.slane %v2906, %v2967
      %v2969 = vlaneseq
      %v2970 = vshrl.u32 %v2969, 7
      %v2971 = vsub.s32 7, %v2970
      %v2972 = vrot.slane %v2906, %v2971
      %v2990 = vsel %vm461, %v2832, 0
      %v2993 = vsel %vm461, %v2833, 0
      %v2996 = vsel %vm461, %v2834, 0
      %v2999 = vsel %vm461, %v2835, 0
      %v3002 = vsel %vm461, %v2836, 0
      %v3005 = vsel %vm461, %v2837, 0
      %v3008 = vsel %vm461, %v2838, 0
      %v3011 = vsel %vm461, %v2839, 0
      %v3014 = vsel %vm461, %v2840, 0
      %3016 = vmatprep.subr.mxu0 0.0
      %3017 = vmatpush1.msra.mxu0 0.0
      %3018 = vmatprep.subr.mxu0 0.0
      %3019 = vmatpush1.msra.mxu0 0.0
      %3020 = vmatprep.subr.mxu0 0.0
      %3021 = vmatpush1.msra.mxu0 0.0
      %3022 = vmatprep.subr.mxu0 0.0
      %3023 = vmatpush1.msra.mxu0 0.0
      %3024 = vmatprep.subr.mxu0 0.0
      %3025 = vmatpush1.msra.mxu0 0.0
      %3026 = vmatprep.subr.mxu0 0.0
      %3027 = vmatpush1.msra.mxu0 0.0
      %3028 = vmatprep.subr.mxu0 0.0
      %3029 = vmatpush1.msra.mxu0 0.0
      %3030 = vmatprep.subr.mxu0 0.0
      %3031 = vmatpush1.msra.mxu0 0.0
      %3032 = vmatprep.subr.mxu0 0.0
      %3033 = vmatpush1.msra.mxu0 0.0
      %3034 = vmatprep.subr.mxu0 0.0
      %3035 = vmatpush1.msra.mxu0 0.0
      %3036 = vmatprep.subr.mxu0 0.0
      %3037 = vmatpush1.msra.mxu0 0.0
      %3038 = vmatprep.subr.mxu0 0.0
      %3039 = vmatpush1.msra.mxu0 0.0
      %3040 = vmatprep.subr.mxu0 %v2890
      %3041 = vmatpush1.msra.mxu0 %v2889
      %3042 = vmatprep.subr.mxu0 %v2874
      %3043 = vmatpush1.msra.mxu0 %v2873
      %3044 = vmatprep.subr.mxu0 %v2858
      %3045 = vmatpush1.msra.mxu0 %v2857
      %3046 = vmatprep.subr.mxu0 %v2842
      %3047 = vmatpush1.msra.mxu0 %v2841
      %3048 = vmatprep.subr.mxu0 0.0
      %3049 = vmatpush2.msra.mxu0 0.0
      %3050 = vmatprep.subr.mxu0 0.0
      %3051 = vmatpush2.msra.mxu0 0.0
      %3052 = vmatprep.subr.mxu0 0.0
      %3053 = vmatpush2.msra.mxu0 0.0
      %3054 = vmatprep.subr.mxu0 0.0
      %3055 = vmatpush2.msra.mxu0 0.0
      %3056 = vmatprep.subr.mxu0 0.0
      %3057 = vmatpush2.msra.mxu0 0.0
      %3058 = vmatprep.subr.mxu0 0.0
      %3059 = vmatpush2.msra.mxu0 0.0
      %3060 = vmatprep.subr.mxu0 0.0
      %3061 = vmatpush2.msra.mxu0 0.0
      %3062 = vmatprep.subr.mxu0 0.0
      %3063 = vmatpush2.msra.mxu0 0.0
      %3064 = vmatprep.subr.mxu0 0.0
      %3065 = vmatpush2.msra.mxu0 0.0
      %3066 = vmatprep.subr.mxu0 0.0
      %3067 = vmatpush2.msra.mxu0 0.0
      %3068 = vmatprep.subr.mxu0 0.0
      %3069 = vmatpush2.msra.mxu0 0.0
      %3070 = vmatprep.subr.mxu0 0.0
      %3071 = vmatpush2.msra.mxu0 0.0
      %3072 = vmatprep.subr.mxu0 0.0
      %3073 = vmatpush2.msra.mxu0 0.0
      %3074 = vmatprep.subr.mxu0 0.0
      %3075 = vmatpush2.msra.mxu0 0.0
      %3076 = vmatprep.subr.mxu0 0.0
      %3077 = vmatpush2.msra.mxu0 0.0
      %3078 = vmatprep.subr.mxu0 0.0
      %3079 = vmatpush2.msra.mxu0 0.0
      %3080 = vmatprep.mubr.f32.mxu0 0.0
      %3081 = vmatmul.mubr.f32.gmra.mxu0 %v2990
      %v3082 = vpop.f32.mrf.mxu0
      %v3083 = vadd.f32 %v2912, %v3082
      %v3084 = vpop.f32.mrf.mxu0
      %v3085 = vadd.f32 %v2916, %v3084
      %3086 = vmatprep.mubr.f32.mxu0 0.0
      %3087 = vmatmul.mubr.f32.gmra.mxu0 %v2993
      %v3088 = vpop.f32.mrf.mxu0
      %v3089 = vadd.f32 %v2912, %v3088
      %v3090 = vpop.f32.mrf.mxu0
      %v3091 = vadd.f32 %v2916, %v3090
      %3092 = vmatprep.mubr.f32.mxu0 0.0
      %3093 = vmatmul.mubr.f32.gmra.mxu0 %v2996
      %v3094 = vpop.f32.mrf.mxu0
      %v3095 = vadd.f32 %v2912, %v3094
      %v3096 = vpop.f32.mrf.mxu0
      %v3097 = vadd.f32 %v2916, %v3096
      %3098 = vmatprep.mubr.f32.mxu0 0.0
      %3099 = vmatmul.mubr.f32.gmra.mxu0 %v2999
      %v3100 = vpop.f32.mrf.mxu0
      %v3101 = vadd.f32 %v2912, %v3100
      %v3102 = vpop.f32.mrf.mxu0
      %v3103 = vadd.f32 %v2916, %v3102
      %3104 = vmatprep.mubr.f32.mxu0 0.0
      %3105 = vmatmul.mubr.f32.gmra.mxu0 %v3002
      %v3106 = vpop.f32.mrf.mxu0
      %v3107 = vadd.f32 %v2912, %v3106
      %v3108 = vpop.f32.mrf.mxu0
      %v3109 = vadd.f32 %v2916, %v3108
      %3110 = vmatprep.mubr.f32.mxu0 0.0
      %3111 = vmatmul.mubr.f32.gmra.mxu0 %v3005
      %v3112 = vpop.f32.mrf.mxu0
      %v3113 = vadd.f32 %v2912, %v3112
      %v3114 = vpop.f32.mrf.mxu0
      %v3115 = vadd.f32 %v2916, %v3114
      %3116 = vmatprep.mubr.f32.mxu0 0.0
      %3117 = vmatmul.mubr.f32.gmra.mxu0 %v3008
      %v3118 = vpop.f32.mrf.mxu0
      %v3119 = vadd.f32 %v2912, %v3118
      %v3120 = vpop.f32.mrf.mxu0
      %v3121 = vadd.f32 %v2916, %v3120
      %3122 = vmatprep.mubr.f32.mxu0 0.0
      %3123 = vmatmul.mubr.f32.gmra.mxu0 %v3011
      %v3124 = vpop.f32.mrf.mxu0
      %v3125 = vadd.f32 %v2912, %v3124
      %v3126 = vpop.f32.mrf.mxu0
      %v3127 = vadd.f32 %v2916, %v3126
      %3128 = vmatprep.mubr.f32.mxu0 0.0
      %3129 = vmatmul.mubr.f32.gmra.mxu0 %v3014
      %v3130 = vpop.f32.mrf.mxu0
      %v3131 = vadd.f32 %v2912, %v3130
      %v3132 = vpop.f32.mrf.mxu0
      %v3133 = vadd.f32 %v2916, %v3132
      %3134 = vdwg.mxu0
      %3135 = vmatprep.subr.mxu0 0.0
      %3136 = vmatpush1.msra.mxu0 0.0
      %3137 = vmatprep.subr.mxu0 0.0
      %3138 = vmatpush1.msra.mxu0 0.0
      %3139 = vmatprep.subr.mxu0 0.0
      %3140 = vmatpush1.msra.mxu0 0.0
      %3141 = vmatprep.subr.mxu0 0.0
      %3142 = vmatpush1.msra.mxu0 0.0
      %3143 = vmatprep.subr.mxu0 0.0
      %3144 = vmatpush1.msra.mxu0 0.0
      %3145 = vmatprep.subr.mxu0 0.0
      %3146 = vmatpush1.msra.mxu0 0.0
      %3147 = vmatprep.subr.mxu0 0.0
      %3148 = vmatpush1.msra.mxu0 0.0
      %3149 = vmatprep.subr.mxu0 0.0
      %3150 = vmatpush1.msra.mxu0 0.0
      %3151 = vmatprep.subr.mxu0 0.0
      %3152 = vmatpush1.msra.mxu0 0.0
      %3153 = vmatprep.subr.mxu0 0.0
      %3154 = vmatpush1.msra.mxu0 0.0
      %3155 = vmatprep.subr.mxu0 0.0
      %3156 = vmatpush1.msra.mxu0 0.0
      %3157 = vmatprep.subr.mxu0 0.0
      %3158 = vmatpush1.msra.mxu0 0.0
      %3159 = vmatprep.subr.mxu0 %v2892
      %3160 = vmatpush1.msra.mxu0 %v2891
      %3161 = vmatprep.subr.mxu0 %v2876
      %3162 = vmatpush1.msra.mxu0 %v2875
      %3163 = vmatprep.subr.mxu0 %v2860
      %3164 = vmatpush1.msra.mxu0 %v2859
      %3165 = vmatprep.subr.mxu0 %v2844
      %3166 = vmatpush1.msra.mxu0 %v2843
      %3167 = vmatprep.subr.mxu0 0.0
      %3168 = vmatpush2.msra.mxu0 0.0
      %3169 = vmatprep.subr.mxu0 0.0
      %3170 = vmatpush2.msra.mxu0 0.0
      %3171 = vmatprep.subr.mxu0 0.0
      %3172 = vmatpush2.msra.mxu0 0.0
      %3173 = vmatprep.subr.mxu0 0.0
      %3174 = vmatpush2.msra.mxu0 0.0
      %3175 = vmatprep.subr.mxu0 0.0
      %3176 = vmatpush2.msra.mxu0 0.0
      %3177 = vmatprep.subr.mxu0 0.0
      %3178 = vmatpush2.msra.mxu0 0.0
      %3179 = vmatprep.subr.mxu0 0.0
      %3180 = vmatpush2.msra.mxu0 0.0
      %3181 = vmatprep.subr.mxu0 0.0
      %3182 = vmatpush2.msra.mxu0 0.0
      %3183 = vmatprep.subr.mxu0 0.0
      %3184 = vmatpush2.msra.mxu0 0.0
      %3185 = vmatprep.subr.mxu0 0.0
      %3186 = vmatpush2.msra.mxu0 0.0
      %3187 = vmatprep.subr.mxu0 0.0
      %3188 = vmatpush2.msra.mxu0 0.0
      %3189 = vmatprep.subr.mxu0 0.0
      %3190 = vmatpush2.msra.mxu0 0.0
      %3191 = vmatprep.subr.mxu0 0.0
      %3192 = vmatpush2.msra.mxu0 0.0
      %3193 = vmatprep.subr.mxu0 0.0
      %3194 = vmatpush2.msra.mxu0 0.0
      %3195 = vmatprep.subr.mxu0 0.0
      %3196 = vmatpush2.msra.mxu0 0.0
      %3197 = vmatprep.subr.mxu0 0.0
      %3198 = vmatpush2.msra.mxu0 0.0
      %3199 = vmatprep.mubr.f32.mxu0 0.0
      %3200 = vmatmul.mubr.f32.gmra.mxu0 %v2990
      %v3201 = vpop.f32.mrf.mxu0
      %v3202 = vadd.f32 %v2920, %v3201
      %v3203 = vpop.f32.mrf.mxu0
      %v3204 = vadd.f32 %v2924, %v3203
      %3205 = vmatprep.mubr.f32.mxu0 0.0
      %3206 = vmatmul.mubr.f32.gmra.mxu0 %v2993
      %v3207 = vpop.f32.mrf.mxu0
      %v3208 = vadd.f32 %v2920, %v3207
      %v3209 = vpop.f32.mrf.mxu0
      %v3210 = vadd.f32 %v2924, %v3209
      %3211 = vmatprep.mubr.f32.mxu0 0.0
      %3212 = vmatmul.mubr.f32.gmra.mxu0 %v2996
      %v3213 = vpop.f32.mrf.mxu0
      %v3214 = vadd.f32 %v2920, %v3213
      %v3215 = vpop.f32.mrf.mxu0
      %v3216 = vadd.f32 %v2924, %v3215
      %3217 = vmatprep.mubr.f32.mxu0 0.0
      %3218 = vmatmul.mubr.f32.gmra.mxu0 %v2999
      %v3219 = vpop.f32.mrf.mxu0
      %v3220 = vadd.f32 %v2920, %v3219
      %v3221 = vpop.f32.mrf.mxu0
      %v3222 = vadd.f32 %v2924, %v3221
      %3223 = vmatprep.mubr.f32.mxu0 0.0
      %3224 = vmatmul.mubr.f32.gmra.mxu0 %v3002
      %v3225 = vpop.f32.mrf.mxu0
      %v3226 = vadd.f32 %v2920, %v3225
      %v3227 = vpop.f32.mrf.mxu0
      %v3228 = vadd.f32 %v2924, %v3227
      %3229 = vmatprep.mubr.f32.mxu0 0.0
      %3230 = vmatmul.mubr.f32.gmra.mxu0 %v3005
      %v3231 = vpop.f32.mrf.mxu0
      %v3232 = vadd.f32 %v2920, %v3231
      %v3233 = vpop.f32.mrf.mxu0
      %v3234 = vadd.f32 %v2924, %v3233
      %3235 = vmatprep.mubr.f32.mxu0 0.0
      %3236 = vmatmul.mubr.f32.gmra.mxu0 %v3008
      %v3237 = vpop.f32.mrf.mxu0
      %v3238 = vadd.f32 %v2920, %v3237
      %v3239 = vpop.f32.mrf.mxu0
      %v3240 = vadd.f32 %v2924, %v3239
      %3241 = vmatprep.mubr.f32.mxu0 0.0
      %3242 = vmatmul.mubr.f32.gmra.mxu0 %v3011
      %v3243 = vpop.f32.mrf.mxu0
      %v3244 = vadd.f32 %v2920, %v3243
      %v3245 = vpop.f32.mrf.mxu0
      %v3246 = vadd.f32 %v2924, %v3245
      %3247 = vmatprep.mubr.f32.mxu0 0.0
      %3248 = vmatmul.mubr.f32.gmra.mxu0 %v3014
      %v3249 = vpop.f32.mrf.mxu0
      %v3250 = vadd.f32 %v2920, %v3249
      %v3251 = vpop.f32.mrf.mxu0
      %v3252 = vadd.f32 %v2924, %v3251
      %3253 = vdwg.mxu0
      %3254 = vmatprep.subr.mxu0 0.0
      %3255 = vmatpush1.msra.mxu0 0.0
      %3256 = vmatprep.subr.mxu0 0.0
      %3257 = vmatpush1.msra.mxu0 0.0
      %3258 = vmatprep.subr.mxu0 0.0
      %3259 = vmatpush1.msra.mxu0 0.0
      %3260 = vmatprep.subr.mxu0 0.0
      %3261 = vmatpush1.msra.mxu0 0.0
      %3262 = vmatprep.subr.mxu0 0.0
      %3263 = vmatpush1.msra.mxu0 0.0
      %3264 = vmatprep.subr.mxu0 0.0
      %3265 = vmatpush1.msra.mxu0 0.0
      %3266 = vmatprep.subr.mxu0 0.0
      %3267 = vmatpush1.msra.mxu0 0.0
      %3268 = vmatprep.subr.mxu0 0.0
      %3269 = vmatpush1.msra.mxu0 0.0
      %3270 = vmatprep.subr.mxu0 0.0
      %3271 = vmatpush1.msra.mxu0 0.0
      %3272 = vmatprep.subr.mxu0 0.0
      %3273 = vmatpush1.msra.mxu0 0.0
      %3274 = vmatprep.subr.mxu0 0.0
      %3275 = vmatpush1.msra.mxu0 0.0
      %3276 = vmatprep.subr.mxu0 0.0
      %3277 = vmatpush1.msra.mxu0 0.0
      %3278 = vmatprep.subr.mxu0 %v2894
      %3279 = vmatpush1.msra.mxu0 %v2893
      %3280 = vmatprep.subr.mxu0 %v2878
      %3281 = vmatpush1.msra.mxu0 %v2877
      %3282 = vmatprep.subr.mxu0 %v2862
      %3283 = vmatpush1.msra.mxu0 %v2861
      %3284 = vmatprep.subr.mxu0 %v2846
      %3285 = vmatpush1.msra.mxu0 %v2845
      %3286 = vmatprep.subr.mxu0 0.0
      %3287 = vmatpush2.msra.mxu0 0.0
      %3288 = vmatprep.subr.mxu0 0.0
      %3289 = vmatpush2.msra.mxu0 0.0
      %3290 = vmatprep.subr.mxu0 0.0
      %3291 = vmatpush2.msra.mxu0 0.0
      %3292 = vmatprep.subr.mxu0 0.0
      %3293 = vmatpush2.msra.mxu0 0.0
      %3294 = vmatprep.subr.mxu0 0.0
      %3295 = vmatpush2.msra.mxu0 0.0
      %3296 = vmatprep.subr.mxu0 0.0
      %3297 = vmatpush2.msra.mxu0 0.0
      %3298 = vmatprep.subr.mxu0 0.0
      %3299 = vmatpush2.msra.mxu0 0.0
      %3300 = vmatprep.subr.mxu0 0.0
      %3301 = vmatpush2.msra.mxu0 0.0
      %3302 = vmatprep.subr.mxu0 0.0
      %3303 = vmatpush2.msra.mxu0 0.0
      %3304 = vmatprep.subr.mxu0 0.0
      %3305 = vmatpush2.msra.mxu0 0.0
      %3306 = vmatprep.subr.mxu0 0.0
      %3307 = vmatpush2.msra.mxu0 0.0
      %3308 = vmatprep.subr.mxu0 0.0
      %3309 = vmatpush2.msra.mxu0 0.0
      %3310 = vmatprep.subr.mxu0 0.0
      %3311 = vmatpush2.msra.mxu0 0.0
      %3312 = vmatprep.subr.mxu0 0.0
      %3313 = vmatpush2.msra.mxu0 0.0
      %3314 = vmatprep.subr.mxu0 0.0
      %3315 = vmatpush2.msra.mxu0 0.0
      %3316 = vmatprep.subr.mxu0 0.0
      %3317 = vmatpush2.msra.mxu0 0.0
      %3318 = vmatprep.mubr.f32.mxu0 0.0
      %3319 = vmatmul.mubr.f32.gmra.mxu0 %v2990
      %v3320 = vpop.f32.mrf.mxu0
      %v3321 = vadd.f32 %v2928, %v3320
      %v3322 = vpop.f32.mrf.mxu0
      %v3323 = vadd.f32 %v2932, %v3322
      %3324 = vmatprep.mubr.f32.mxu0 0.0
      %3325 = vmatmul.mubr.f32.gmra.mxu0 %v2993
      %v3326 = vpop.f32.mrf.mxu0
      %v3327 = vadd.f32 %v2928, %v3326
      %v3328 = vpop.f32.mrf.mxu0
      %v3329 = vadd.f32 %v2932, %v3328
      %3330 = vmatprep.mubr.f32.mxu0 0.0
      %3331 = vmatmul.mubr.f32.gmra.mxu0 %v2996
      %v3332 = vpop.f32.mrf.mxu0
      %v3333 = vadd.f32 %v2928, %v3332
      %v3334 = vpop.f32.mrf.mxu0
      %v3335 = vadd.f32 %v2932, %v3334
      %3336 = vmatprep.mubr.f32.mxu0 0.0
      %3337 = vmatmul.mubr.f32.gmra.mxu0 %v2999
      %v3338 = vpop.f32.mrf.mxu0
      %v3339 = vadd.f32 %v2928, %v3338
      %v3340 = vpop.f32.mrf.mxu0
      %v3341 = vadd.f32 %v2932, %v3340
      %3342 = vmatprep.mubr.f32.mxu0 0.0
      %3343 = vmatmul.mubr.f32.gmra.mxu0 %v3002
      %v3344 = vpop.f32.mrf.mxu0
      %v3345 = vadd.f32 %v2928, %v3344
      %v3346 = vpop.f32.mrf.mxu0
      %v3347 = vadd.f32 %v2932, %v3346
      %3348 = vmatprep.mubr.f32.mxu0 0.0
      %3349 = vmatmul.mubr.f32.gmra.mxu0 %v3005
      %v3350 = vpop.f32.mrf.mxu0
      %v3351 = vadd.f32 %v2928, %v3350
      %v3352 = vpop.f32.mrf.mxu0
      %v3353 = vadd.f32 %v2932, %v3352
      %3354 = vmatprep.mubr.f32.mxu0 0.0
      %3355 = vmatmul.mubr.f32.gmra.mxu0 %v3008
      %v3356 = vpop.f32.mrf.mxu0
      %v3357 = vadd.f32 %v2928, %v3356
      %v3358 = vpop.f32.mrf.mxu0
      %v3359 = vadd.f32 %v2932, %v3358
      %3360 = vmatprep.mubr.f32.mxu0 0.0
      %3361 = vmatmul.mubr.f32.gmra.mxu0 %v3011
      %v3362 = vpop.f32.mrf.mxu0
      %v3363 = vadd.f32 %v2928, %v3362
      %v3364 = vpop.f32.mrf.mxu0
      %v3365 = vadd.f32 %v2932, %v3364
      %3366 = vmatprep.mubr.f32.mxu0 0.0
      %3367 = vmatmul.mubr.f32.gmra.mxu0 %v3014
      %v3368 = vpop.f32.mrf.mxu0
      %v3369 = vadd.f32 %v2928, %v3368
      %v3370 = vpop.f32.mrf.mxu0
      %v3371 = vadd.f32 %v2932, %v3370
      %3372 = vdwg.mxu0
      %3373 = vmatprep.subr.mxu0 0.0
      %3374 = vmatpush1.msra.mxu0 0.0
      %3375 = vmatprep.subr.mxu0 0.0
      %3376 = vmatpush1.msra.mxu0 0.0
      %3377 = vmatprep.subr.mxu0 0.0
      %3378 = vmatpush1.msra.mxu0 0.0
      %3379 = vmatprep.subr.mxu0 0.0
      %3380 = vmatpush1.msra.mxu0 0.0
      %3381 = vmatprep.subr.mxu0 0.0
      %3382 = vmatpush1.msra.mxu0 0.0
      %3383 = vmatprep.subr.mxu0 0.0
      %3384 = vmatpush1.msra.mxu0 0.0
      %3385 = vmatprep.subr.mxu0 0.0
      %3386 = vmatpush1.msra.mxu0 0.0
      %3387 = vmatprep.subr.mxu0 0.0
      %3388 = vmatpush1.msra.mxu0 0.0
      %3389 = vmatprep.subr.mxu0 0.0
      %3390 = vmatpush1.msra.mxu0 0.0
      %3391 = vmatprep.subr.mxu0 0.0
      %3392 = vmatpush1.msra.mxu0 0.0
      %3393 = vmatprep.subr.mxu0 0.0
      %3394 = vmatpush1.msra.mxu0 0.0
      %3395 = vmatprep.subr.mxu0 0.0
      %3396 = vmatpush1.msra.mxu0 0.0
      %3397 = vmatprep.subr.mxu0 %v2896
      %3398 = vmatpush1.msra.mxu0 %v2895
      %3399 = vmatprep.subr.mxu0 %v2880
      %3400 = vmatpush1.msra.mxu0 %v2879
      %3401 = vmatprep.subr.mxu0 %v2864
      %3402 = vmatpush1.msra.mxu0 %v2863
      %3403 = vmatprep.subr.mxu0 %v2848
      %3404 = vmatpush1.msra.mxu0 %v2847
      %3405 = vmatprep.subr.mxu0 0.0
      %3406 = vmatpush2.msra.mxu0 0.0
      %3407 = vmatprep.subr.mxu0 0.0
      %3408 = vmatpush2.msra.mxu0 0.0
      %3409 = vmatprep.subr.mxu0 0.0
      %3410 = vmatpush2.msra.mxu0 0.0
      %3411 = vmatprep.subr.mxu0 0.0
      %3412 = vmatpush2.msra.mxu0 0.0
      %3413 = vmatprep.subr.mxu0 0.0
      %3414 = vmatpush2.msra.mxu0 0.0
      %3415 = vmatprep.subr.mxu0 0.0
      %3416 = vmatpush2.msra.mxu0 0.0
      %3417 = vmatprep.subr.mxu0 0.0
      %3418 = vmatpush2.msra.mxu0 0.0
      %3419 = vmatprep.subr.mxu0 0.0
      %3420 = vmatpush2.msra.mxu0 0.0
      %3421 = vmatprep.subr.mxu0 0.0
      %3422 = vmatpush2.msra.mxu0 0.0
      %3423 = vmatprep.subr.mxu0 0.0
      %3424 = vmatpush2.msra.mxu0 0.0
      %3425 = vmatprep.subr.mxu0 0.0
      %3426 = vmatpush2.msra.mxu0 0.0
      %3427 = vmatprep.subr.mxu0 0.0
      %3428 = vmatpush2.msra.mxu0 0.0
      %3429 = vmatprep.subr.mxu0 0.0
      %3430 = vmatpush2.msra.mxu0 0.0
      %3431 = vmatprep.subr.mxu0 0.0
      %3432 = vmatpush2.msra.mxu0 0.0
      %3433 = vmatprep.subr.mxu0 0.0
      %3434 = vmatpush2.msra.mxu0 0.0
      %3435 = vmatprep.subr.mxu0 0.0
      %3436 = vmatpush2.msra.mxu0 0.0
      %3437 = vmatprep.mubr.f32.mxu0 0.0
      %3438 = vmatmul.mubr.f32.gmra.mxu0 %v2990
      %v3439 = vpop.f32.mrf.mxu0
      %v3440 = vadd.f32 %v2936, %v3439
      %v3441 = vpop.f32.mrf.mxu0
      %v3442 = vadd.f32 %v2940, %v3441
      %3443 = vmatprep.mubr.f32.mxu0 0.0
      %3444 = vmatmul.mubr.f32.gmra.mxu0 %v2993
      %v3445 = vpop.f32.mrf.mxu0
      %v3446 = vadd.f32 %v2936, %v3445
      %v3447 = vpop.f32.mrf.mxu0
      %v3448 = vadd.f32 %v2940, %v3447
      %3449 = vmatprep.mubr.f32.mxu0 0.0
      %3450 = vmatmul.mubr.f32.gmra.mxu0 %v2996
      %v3451 = vpop.f32.mrf.mxu0
      %v3452 = vadd.f32 %v2936, %v3451
      %v3453 = vpop.f32.mrf.mxu0
      %v3454 = vadd.f32 %v2940, %v3453
      %3455 = vmatprep.mubr.f32.mxu0 0.0
      %3456 = vmatmul.mubr.f32.gmra.mxu0 %v2999
      %v3457 = vpop.f32.mrf.mxu0
      %v3458 = vadd.f32 %v2936, %v3457
      %v3459 = vpop.f32.mrf.mxu0
      %v3460 = vadd.f32 %v2940, %v3459
      %3461 = vmatprep.mubr.f32.mxu0 0.0
      %3462 = vmatmul.mubr.f32.gmra.mxu0 %v3002
      %v3463 = vpop.f32.mrf.mxu0
      %v3464 = vadd.f32 %v2936, %v3463
      %v3465 = vpop.f32.mrf.mxu0
      %v3466 = vadd.f32 %v2940, %v3465
      %3467 = vmatprep.mubr.f32.mxu0 0.0
      %3468 = vmatmul.mubr.f32.gmra.mxu0 %v3005
      %v3469 = vpop.f32.mrf.mxu0
      %v3470 = vadd.f32 %v2936, %v3469
      %v3471 = vpop.f32.mrf.mxu0
      %v3472 = vadd.f32 %v2940, %v3471
      %3473 = vmatprep.mubr.f32.mxu0 0.0
      %3474 = vmatmul.mubr.f32.gmra.mxu0 %v3008
      %v3475 = vpop.f32.mrf.mxu0
      %v3476 = vadd.f32 %v2936, %v3475
      %v3477 = vpop.f32.mrf.mxu0
      %v3478 = vadd.f32 %v2940, %v3477
      %3479 = vmatprep.mubr.f32.mxu0 0.0
      %3480 = vmatmul.mubr.f32.gmra.mxu0 %v3011
      %v3481 = vpop.f32.mrf.mxu0
      %v3482 = vadd.f32 %v2936, %v3481
      %v3483 = vpop.f32.mrf.mxu0
      %v3484 = vadd.f32 %v2940, %v3483
      %3485 = vmatprep.mubr.f32.mxu0 0.0
      %3486 = vmatmul.mubr.f32.gmra.mxu0 %v3014
      %v3487 = vpop.f32.mrf.mxu0
      %v3488 = vadd.f32 %v2936, %v3487
      %v3489 = vpop.f32.mrf.mxu0
      %v3490 = vadd.f32 %v2940, %v3489
      %3491 = vdwg.mxu0
      %3492 = vmatprep.subr.mxu0 0.0
      %3493 = vmatpush1.msra.mxu0 0.0
      %3494 = vmatprep.subr.mxu0 0.0
      %3495 = vmatpush1.msra.mxu0 0.0
      %3496 = vmatprep.subr.mxu0 0.0
      %3497 = vmatpush1.msra.mxu0 0.0
      %3498 = vmatprep.subr.mxu0 0.0
      %3499 = vmatpush1.msra.mxu0 0.0
      %3500 = vmatprep.subr.mxu0 0.0
      %3501 = vmatpush1.msra.mxu0 0.0
      %3502 = vmatprep.subr.mxu0 0.0
      %3503 = vmatpush1.msra.mxu0 0.0
      %3504 = vmatprep.subr.mxu0 0.0
      %3505 = vmatpush1.msra.mxu0 0.0
      %3506 = vmatprep.subr.mxu0 0.0
      %3507 = vmatpush1.msra.mxu0 0.0
      %3508 = vmatprep.subr.mxu0 0.0
      %3509 = vmatpush1.msra.mxu0 0.0
      %3510 = vmatprep.subr.mxu0 0.0
      %3511 = vmatpush1.msra.mxu0 0.0
      %3512 = vmatprep.subr.mxu0 0.0
      %3513 = vmatpush1.msra.mxu0 0.0
      %3514 = vmatprep.subr.mxu0 0.0
      %3515 = vmatpush1.msra.mxu0 0.0
      %3516 = vmatprep.subr.mxu0 %v2898
      %3517 = vmatpush1.msra.mxu0 %v2897
      %3518 = vmatprep.subr.mxu0 %v2882
      %3519 = vmatpush1.msra.mxu0 %v2881
      %3520 = vmatprep.subr.mxu0 %v2866
      %3521 = vmatpush1.msra.mxu0 %v2865
      %3522 = vmatprep.subr.mxu0 %v2850
      %3523 = vmatpush1.msra.mxu0 %v2849
      %3524 = vmatprep.subr.mxu0 0.0
      %3525 = vmatpush2.msra.mxu0 0.0
      %3526 = vmatprep.subr.mxu0 0.0
      %3527 = vmatpush2.msra.mxu0 0.0
      %3528 = vmatprep.subr.mxu0 0.0
      %3529 = vmatpush2.msra.mxu0 0.0
      %3530 = vmatprep.subr.mxu0 0.0
      %3531 = vmatpush2.msra.mxu0 0.0
      %3532 = vmatprep.subr.mxu0 0.0
      %3533 = vmatpush2.msra.mxu0 0.0
      %3534 = vmatprep.subr.mxu0 0.0
      %3535 = vmatpush2.msra.mxu0 0.0
      %3536 = vmatprep.subr.mxu0 0.0
      %3537 = vmatpush2.msra.mxu0 0.0
      %3538 = vmatprep.subr.mxu0 0.0
      %3539 = vmatpush2.msra.mxu0 0.0
      %3540 = vmatprep.subr.mxu0 0.0
      %3541 = vmatpush2.msra.mxu0 0.0
      %3542 = vmatprep.subr.mxu0 0.0
      %3543 = vmatpush2.msra.mxu0 0.0
      %3544 = vmatprep.subr.mxu0 0.0
      %3545 = vmatpush2.msra.mxu0 0.0
      %3546 = vmatprep.subr.mxu0 0.0
      %3547 = vmatpush2.msra.mxu0 0.0
      %3548 = vmatprep.subr.mxu0 0.0
      %3549 = vmatpush2.msra.mxu0 0.0
      %3550 = vmatprep.subr.mxu0 0.0
      %3551 = vmatpush2.msra.mxu0 0.0
      %3552 = vmatprep.subr.mxu0 0.0
      %3553 = vmatpush2.msra.mxu0 0.0
      %3554 = vmatprep.subr.mxu0 0.0
      %3555 = vmatpush2.msra.mxu0 0.0
      %3556 = vmatprep.mubr.f32.mxu0 0.0
      %3557 = vmatmul.mubr.f32.gmra.mxu0 %v2990
      %v3558 = vpop.f32.mrf.mxu0
      %v3559 = vadd.f32 %v2944, %v3558
      %v3560 = vpop.f32.mrf.mxu0
      %v3561 = vadd.f32 %v2948, %v3560
      %3562 = vmatprep.mubr.f32.mxu0 0.0
      %3563 = vmatmul.mubr.f32.gmra.mxu0 %v2993
      %v3564 = vpop.f32.mrf.mxu0
      %v3565 = vadd.f32 %v2944, %v3564
      %v3566 = vpop.f32.mrf.mxu0
      %v3567 = vadd.f32 %v2948, %v3566
      %3568 = vmatprep.mubr.f32.mxu0 0.0
      %3569 = vmatmul.mubr.f32.gmra.mxu0 %v2996
      %v3570 = vpop.f32.mrf.mxu0
      %v3571 = vadd.f32 %v2944, %v3570
      %v3572 = vpop.f32.mrf.mxu0
      %v3573 = vadd.f32 %v2948, %v3572
      %3574 = vmatprep.mubr.f32.mxu0 0.0
      %3575 = vmatmul.mubr.f32.gmra.mxu0 %v2999
      %v3576 = vpop.f32.mrf.mxu0
      %v3577 = vadd.f32 %v2944, %v3576
      %v3578 = vpop.f32.mrf.mxu0
      %v3579 = vadd.f32 %v2948, %v3578
      %3580 = vmatprep.mubr.f32.mxu0 0.0
      %3581 = vmatmul.mubr.f32.gmra.mxu0 %v3002
      %v3582 = vpop.f32.mrf.mxu0
      %v3583 = vadd.f32 %v2944, %v3582
      %v3584 = vpop.f32.mrf.mxu0
      %v3585 = vadd.f32 %v2948, %v3584
      %3586 = vmatprep.mubr.f32.mxu0 0.0
      %3587 = vmatmul.mubr.f32.gmra.mxu0 %v3005
      %v3588 = vpop.f32.mrf.mxu0
      %v3589 = vadd.f32 %v2944, %v3588
      %v3590 = vpop.f32.mrf.mxu0
      %v3591 = vadd.f32 %v2948, %v3590
      %3592 = vmatprep.mubr.f32.mxu0 0.0
      %3593 = vmatmul.mubr.f32.gmra.mxu0 %v3008
      %v3594 = vpop.f32.mrf.mxu0
      %v3595 = vadd.f32 %v2944, %v3594
      %v3596 = vpop.f32.mrf.mxu0
      %v3597 = vadd.f32 %v2948, %v3596
      %3598 = vmatprep.mubr.f32.mxu0 0.0
      %3599 = vmatmul.mubr.f32.gmra.mxu0 %v3011
      %v3600 = vpop.f32.mrf.mxu0
      %v3601 = vadd.f32 %v2944, %v3600
      %v3602 = vpop.f32.mrf.mxu0
      %v3603 = vadd.f32 %v2948, %v3602
      %3604 = vmatprep.mubr.f32.mxu0 0.0
      %3605 = vmatmul.mubr.f32.gmra.mxu0 %v3014
      %v3606 = vpop.f32.mrf.mxu0
      %v3607 = vadd.f32 %v2944, %v3606
      %v3608 = vpop.f32.mrf.mxu0
      %v3609 = vadd.f32 %v2948, %v3608
      %3610 = vdwg.mxu0
      %3611 = vmatprep.subr.mxu0 0.0
      %3612 = vmatpush1.msra.mxu0 0.0
      %3613 = vmatprep.subr.mxu0 0.0
      %3614 = vmatpush1.msra.mxu0 0.0
      %3615 = vmatprep.subr.mxu0 0.0
      %3616 = vmatpush1.msra.mxu0 0.0
      %3617 = vmatprep.subr.mxu0 0.0
      %3618 = vmatpush1.msra.mxu0 0.0
      %3619 = vmatprep.subr.mxu0 0.0
      %3620 = vmatpush1.msra.mxu0 0.0
      %3621 = vmatprep.subr.mxu0 0.0
      %3622 = vmatpush1.msra.mxu0 0.0
      %3623 = vmatprep.subr.mxu0 0.0
      %3624 = vmatpush1.msra.mxu0 0.0
      %3625 = vmatprep.subr.mxu0 0.0
      %3626 = vmatpush1.msra.mxu0 0.0
      %3627 = vmatprep.subr.mxu0 0.0
      %3628 = vmatpush1.msra.mxu0 0.0
      %3629 = vmatprep.subr.mxu0 0.0
      %3630 = vmatpush1.msra.mxu0 0.0
      %3631 = vmatprep.subr.mxu0 0.0
      %3632 = vmatpush1.msra.mxu0 0.0
      %3633 = vmatprep.subr.mxu0 0.0
      %3634 = vmatpush1.msra.mxu0 0.0
      %3635 = vmatprep.subr.mxu0 %v2900
      %3636 = vmatpush1.msra.mxu0 %v2899
      %3637 = vmatprep.subr.mxu0 %v2884
      %3638 = vmatpush1.msra.mxu0 %v2883
      %3639 = vmatprep.subr.mxu0 %v2868
      %3640 = vmatpush1.msra.mxu0 %v2867
      %3641 = vmatprep.subr.mxu0 %v2852
      %3642 = vmatpush1.msra.mxu0 %v2851
      %3643 = vmatprep.subr.mxu0 0.0
      %3644 = vmatpush2.msra.mxu0 0.0
      %3645 = vmatprep.subr.mxu0 0.0
      %3646 = vmatpush2.msra.mxu0 0.0
      %3647 = vmatprep.subr.mxu0 0.0
      %3648 = vmatpush2.msra.mxu0 0.0
      %3649 = vmatprep.subr.mxu0 0.0
      %3650 = vmatpush2.msra.mxu0 0.0
      %3651 = vmatprep.subr.mxu0 0.0
      %3652 = vmatpush2.msra.mxu0 0.0
      %3653 = vmatprep.subr.mxu0 0.0
      %3654 = vmatpush2.msra.mxu0 0.0
      %3655 = vmatprep.subr.mxu0 0.0
      %3656 = vmatpush2.msra.mxu0 0.0
      %3657 = vmatprep.subr.mxu0 0.0
      %3658 = vmatpush2.msra.mxu0 0.0
      %3659 = vmatprep.subr.mxu0 0.0
      %3660 = vmatpush2.msra.mxu0 0.0
      %3661 = vmatprep.subr.mxu0 0.0
      %3662 = vmatpush2.msra.mxu0 0.0
      %3663 = vmatprep.subr.mxu0 0.0
      %3664 = vmatpush2.msra.mxu0 0.0
      %3665 = vmatprep.subr.mxu0 0.0
      %3666 = vmatpush2.msra.mxu0 0.0
      %3667 = vmatprep.subr.mxu0 0.0
      %3668 = vmatpush2.msra.mxu0 0.0
      %3669 = vmatprep.subr.mxu0 0.0
      %3670 = vmatpush2.msra.mxu0 0.0
      %3671 = vmatprep.subr.mxu0 0.0
      %3672 = vmatpush2.msra.mxu0 0.0
      %3673 = vmatprep.subr.mxu0 0.0
      %3674 = vmatpush2.msra.mxu0 0.0
      %3675 = vmatprep.mubr.f32.mxu0 0.0
      %3676 = vmatmul.mubr.f32.gmra.mxu0 %v2990
      %v3677 = vpop.f32.mrf.mxu0
      %v3678 = vadd.f32 %v2952, %v3677
      %v3679 = vpop.f32.mrf.mxu0
      %v3680 = vadd.f32 %v2956, %v3679
      %3681 = vmatprep.mubr.f32.mxu0 0.0
      %3682 = vmatmul.mubr.f32.gmra.mxu0 %v2993
      %v3683 = vpop.f32.mrf.mxu0
      %v3684 = vadd.f32 %v2952, %v3683
      %v3685 = vpop.f32.mrf.mxu0
      %v3686 = vadd.f32 %v2956, %v3685
      %3687 = vmatprep.mubr.f32.mxu0 0.0
      %3688 = vmatmul.mubr.f32.gmra.mxu0 %v2996
      %v3689 = vpop.f32.mrf.mxu0
      %v3690 = vadd.f32 %v2952, %v3689
      %v3691 = vpop.f32.mrf.mxu0
      %v3692 = vadd.f32 %v2956, %v3691
      %3693 = vmatprep.mubr.f32.mxu0 0.0
      %3694 = vmatmul.mubr.f32.gmra.mxu0 %v2999
      %v3695 = vpop.f32.mrf.mxu0
      %v3696 = vadd.f32 %v2952, %v3695
      %v3697 = vpop.f32.mrf.mxu0
      %v3698 = vadd.f32 %v2956, %v3697
      %3699 = vmatprep.mubr.f32.mxu0 0.0
      %3700 = vmatmul.mubr.f32.gmra.mxu0 %v3002
      %v3701 = vpop.f32.mrf.mxu0
      %v3702 = vadd.f32 %v2952, %v3701
      %v3703 = vpop.f32.mrf.mxu0
      %v3704 = vadd.f32 %v2956, %v3703
      %3705 = vmatprep.mubr.f32.mxu0 0.0
      %3706 = vmatmul.mubr.f32.gmra.mxu0 %v3005
      %v3707 = vpop.f32.mrf.mxu0
      %v3708 = vadd.f32 %v2952, %v3707
      %v3709 = vpop.f32.mrf.mxu0
      %v3710 = vadd.f32 %v2956, %v3709
      %3711 = vmatprep.mubr.f32.mxu0 0.0
      %3712 = vmatmul.mubr.f32.gmra.mxu0 %v3008
      %v3713 = vpop.f32.mrf.mxu0
      %v3714 = vadd.f32 %v2952, %v3713
      %v3715 = vpop.f32.mrf.mxu0
      %v3716 = vadd.f32 %v2956, %v3715
      %3717 = vmatprep.mubr.f32.mxu0 0.0
      %3718 = vmatmul.mubr.f32.gmra.mxu0 %v3011
      %v3719 = vpop.f32.mrf.mxu0
      %v3720 = vadd.f32 %v2952, %v3719
      %v3721 = vpop.f32.mrf.mxu0
      %v3722 = vadd.f32 %v2956, %v3721
      %3723 = vmatprep.mubr.f32.mxu0 0.0
      %3724 = vmatmul.mubr.f32.gmra.mxu0 %v3014
      %v3725 = vpop.f32.mrf.mxu0
      %v3726 = vadd.f32 %v2952, %v3725
      %v3727 = vpop.f32.mrf.mxu0
      %v3728 = vadd.f32 %v2956, %v3727
      %3729 = vdwg.mxu0
      %3730 = vmatprep.subr.mxu0 0.0
      %3731 = vmatpush1.msra.mxu0 0.0
      %3732 = vmatprep.subr.mxu0 0.0
      %3733 = vmatpush1.msra.mxu0 0.0
      %3734 = vmatprep.subr.mxu0 0.0
      %3735 = vmatpush1.msra.mxu0 0.0
      %3736 = vmatprep.subr.mxu0 0.0
      %3737 = vmatpush1.msra.mxu0 0.0
      %3738 = vmatprep.subr.mxu0 0.0
      %3739 = vmatpush1.msra.mxu0 0.0
      %3740 = vmatprep.subr.mxu0 0.0
      %3741 = vmatpush1.msra.mxu0 0.0
      %3742 = vmatprep.subr.mxu0 0.0
      %3743 = vmatpush1.msra.mxu0 0.0
      %3744 = vmatprep.subr.mxu0 0.0
      %3745 = vmatpush1.msra.mxu0 0.0
      %3746 = vmatprep.subr.mxu0 0.0
      %3747 = vmatpush1.msra.mxu0 0.0
      %3748 = vmatprep.subr.mxu0 0.0
      %3749 = vmatpush1.msra.mxu0 0.0
      %3750 = vmatprep.subr.mxu0 0.0
      %3751 = vmatpush1.msra.mxu0 0.0
      %3752 = vmatprep.subr.mxu0 0.0
      %3753 = vmatpush1.msra.mxu0 0.0
      %3754 = vmatprep.subr.mxu0 %v2902
      %3755 = vmatpush1.msra.mxu0 %v2901
      %3756 = vmatprep.subr.mxu0 %v2886
      %3757 = vmatpush1.msra.mxu0 %v2885
      %3758 = vmatprep.subr.mxu0 %v2870
      %3759 = vmatpush1.msra.mxu0 %v2869
      %3760 = vmatprep.subr.mxu0 %v2854
      %3761 = vmatpush1.msra.mxu0 %v2853
      %3762 = vmatprep.subr.mxu0 0.0
      %3763 = vmatpush2.msra.mxu0 0.0
      %3764 = vmatprep.subr.mxu0 0.0
      %3765 = vmatpush2.msra.mxu0 0.0
      %3766 = vmatprep.subr.mxu0 0.0
      %3767 = vmatpush2.msra.mxu0 0.0
      %3768 = vmatprep.subr.mxu0 0.0
      %3769 = vmatpush2.msra.mxu0 0.0
      %3770 = vmatprep.subr.mxu0 0.0
      %3771 = vmatpush2.msra.mxu0 0.0
      %3772 = vmatprep.subr.mxu0 0.0
      %3773 = vmatpush2.msra.mxu0 0.0
      %3774 = vmatprep.subr.mxu0 0.0
      %3775 = vmatpush2.msra.mxu0 0.0
      %3776 = vmatprep.subr.mxu0 0.0
      %3777 = vmatpush2.msra.mxu0 0.0
      %3778 = vmatprep.subr.mxu0 0.0
      %3779 = vmatpush2.msra.mxu0 0.0
      %3780 = vmatprep.subr.mxu0 0.0
      %3781 = vmatpush2.msra.mxu0 0.0
      %3782 = vmatprep.subr.mxu0 0.0
      %3783 = vmatpush2.msra.mxu0 0.0
      %3784 = vmatprep.subr.mxu0 0.0
      %3785 = vmatpush2.msra.mxu0 0.0
      %3786 = vmatprep.subr.mxu0 0.0
      %3787 = vmatpush2.msra.mxu0 0.0
      %3788 = vmatprep.subr.mxu0 0.0
      %3789 = vmatpush2.msra.mxu0 0.0
      %3790 = vmatprep.subr.mxu0 0.0
      %3791 = vmatpush2.msra.mxu0 0.0
      %3792 = vmatprep.subr.mxu0 0.0
      %3793 = vmatpush2.msra.mxu0 0.0
      %3794 = vmatprep.mubr.f32.mxu0 0.0
      %3795 = vmatmul.mubr.f32.gmra.mxu0 %v2990
      %v3796 = vpop.f32.mrf.mxu0
      %v3797 = vadd.f32 %v2960, %v3796
      %v3798 = vpop.f32.mrf.mxu0
      %v3799 = vadd.f32 %v2964, %v3798
      %3800 = vmatprep.mubr.f32.mxu0 0.0
      %3801 = vmatmul.mubr.f32.gmra.mxu0 %v2993
      %v3802 = vpop.f32.mrf.mxu0
      %v3803 = vadd.f32 %v2960, %v3802
      %v3804 = vpop.f32.mrf.mxu0
      %v3805 = vadd.f32 %v2964, %v3804
      %3806 = vmatprep.mubr.f32.mxu0 0.0
      %3807 = vmatmul.mubr.f32.gmra.mxu0 %v2996
      %v3808 = vpop.f32.mrf.mxu0
      %v3809 = vadd.f32 %v2960, %v3808
      %v3810 = vpop.f32.mrf.mxu0
      %v3811 = vadd.f32 %v2964, %v3810
      %3812 = vmatprep.mubr.f32.mxu0 0.0
      %3813 = vmatmul.mubr.f32.gmra.mxu0 %v2999
      %v3814 = vpop.f32.mrf.mxu0
      %v3815 = vadd.f32 %v2960, %v3814
      %v3816 = vpop.f32.mrf.mxu0
      %v3817 = vadd.f32 %v2964, %v3816
      %3818 = vmatprep.mubr.f32.mxu0 0.0
      %3819 = vmatmul.mubr.f32.gmra.mxu0 %v3002
      %v3820 = vpop.f32.mrf.mxu0
      %v3821 = vadd.f32 %v2960, %v3820
      %v3822 = vpop.f32.mrf.mxu0
      %v3823 = vadd.f32 %v2964, %v3822
      %3824 = vmatprep.mubr.f32.mxu0 0.0
      %3825 = vmatmul.mubr.f32.gmra.mxu0 %v3005
      %v3826 = vpop.f32.mrf.mxu0
      %v3827 = vadd.f32 %v2960, %v3826
      %v3828 = vpop.f32.mrf.mxu0
      %v3829 = vadd.f32 %v2964, %v3828
      %3830 = vmatprep.mubr.f32.mxu0 0.0
      %3831 = vmatmul.mubr.f32.gmra.mxu0 %v3008
      %v3832 = vpop.f32.mrf.mxu0
      %v3833 = vadd.f32 %v2960, %v3832
      %v3834 = vpop.f32.mrf.mxu0
      %v3835 = vadd.f32 %v2964, %v3834
      %3836 = vmatprep.mubr.f32.mxu0 0.0
      %3837 = vmatmul.mubr.f32.gmra.mxu0 %v3011
      %v3838 = vpop.f32.mrf.mxu0
      %v3839 = vadd.f32 %v2960, %v3838
      %v3840 = vpop.f32.mrf.mxu0
      %v3841 = vadd.f32 %v2964, %v3840
      %3842 = vmatprep.mubr.f32.mxu0 0.0
      %3843 = vmatmul.mubr.f32.gmra.mxu0 %v3014
      %v3844 = vpop.f32.mrf.mxu0
      %v3845 = vadd.f32 %v2960, %v3844
      %v3846 = vpop.f32.mrf.mxu0
      %v3847 = vadd.f32 %v2964, %v3846
      %3848 = vdwg.mxu0
      %3849 = vmatprep.subr.mxu0 0.0
      %3850 = vmatpush1.msra.mxu0 0.0
      %3851 = vmatprep.subr.mxu0 0.0
      %3852 = vmatpush1.msra.mxu0 0.0
      %3853 = vmatprep.subr.mxu0 0.0
      %3854 = vmatpush1.msra.mxu0 0.0
      %3855 = vmatprep.subr.mxu0 0.0
      %3856 = vmatpush1.msra.mxu0 0.0
      %3857 = vmatprep.subr.mxu0 0.0
      %3858 = vmatpush1.msra.mxu0 0.0
      %3859 = vmatprep.subr.mxu0 0.0
      %3860 = vmatpush1.msra.mxu0 0.0
      %3861 = vmatprep.subr.mxu0 0.0
      %3862 = vmatpush1.msra.mxu0 0.0
      %3863 = vmatprep.subr.mxu0 0.0
      %3864 = vmatpush1.msra.mxu0 0.0
      %3865 = vmatprep.subr.mxu0 0.0
      %3866 = vmatpush1.msra.mxu0 0.0
      %3867 = vmatprep.subr.mxu0 0.0
      %3868 = vmatpush1.msra.mxu0 0.0
      %3869 = vmatprep.subr.mxu0 0.0
      %3870 = vmatpush1.msra.mxu0 0.0
      %3871 = vmatprep.subr.mxu0 0.0
      %3872 = vmatpush1.msra.mxu0 0.0
      %3873 = vmatprep.subr.mxu0 %v2904
      %3874 = vmatpush1.msra.mxu0 %v2903
      %3875 = vmatprep.subr.mxu0 %v2888
      %3876 = vmatpush1.msra.mxu0 %v2887
      %3877 = vmatprep.subr.mxu0 %v2872
      %3878 = vmatpush1.msra.mxu0 %v2871
      %3879 = vmatprep.subr.mxu0 %v2856
      %3880 = vmatpush1.msra.mxu0 %v2855
      %3881 = vmatprep.subr.mxu0 0.0
      %3882 = vmatpush2.msra.mxu0 0.0
      %3883 = vmatprep.subr.mxu0 0.0
      %3884 = vmatpush2.msra.mxu0 0.0
      %3885 = vmatprep.subr.mxu0 0.0
      %3886 = vmatpush2.msra.mxu0 0.0
      %3887 = vmatprep.subr.mxu0 0.0
      %3888 = vmatpush2.msra.mxu0 0.0
      %3889 = vmatprep.subr.mxu0 0.0
      %3890 = vmatpush2.msra.mxu0 0.0
      %3891 = vmatprep.subr.mxu0 0.0
      %3892 = vmatpush2.msra.mxu0 0.0
      %3893 = vmatprep.subr.mxu0 0.0
      %3894 = vmatpush2.msra.mxu0 0.0
      %3895 = vmatprep.subr.mxu0 0.0
      %3896 = vmatpush2.msra.mxu0 0.0
      %3897 = vmatprep.subr.mxu0 0.0
      %3898 = vmatpush2.msra.mxu0 0.0
      %3899 = vmatprep.subr.mxu0 0.0
      %3900 = vmatpush2.msra.mxu0 0.0
      %3901 = vmatprep.subr.mxu0 0.0
      %3902 = vmatpush2.msra.mxu0 0.0
      %3903 = vmatprep.subr.mxu0 0.0
      %3904 = vmatpush2.msra.mxu0 0.0
      %3905 = vmatprep.subr.mxu0 0.0
      %3906 = vmatpush2.msra.mxu0 0.0
      %3907 = vmatprep.subr.mxu0 0.0
      %3908 = vmatpush2.msra.mxu0 0.0
      %3909 = vmatprep.subr.mxu0 0.0
      %3910 = vmatpush2.msra.mxu0 0.0
      %3911 = vmatprep.subr.mxu0 0.0
      %3912 = vmatpush2.msra.mxu0 0.0
      %3913 = vmatprep.mubr.f32.mxu0 0.0
      %3914 = vmatmul.mubr.f32.gmra.mxu0 %v2990
      %v3915 = vpop.f32.mrf.mxu0
      %v3916 = vadd.f32 %v2968, %v3915
      %v3917 = vpop.f32.mrf.mxu0
      %v3918 = vadd.f32 %v2972, %v3917
      %3919 = vmatprep.mubr.f32.mxu0 0.0
      %3920 = vmatmul.mubr.f32.gmra.mxu0 %v2993
      %v3921 = vpop.f32.mrf.mxu0
      %v3922 = vadd.f32 %v2968, %v3921
      %v3923 = vpop.f32.mrf.mxu0
      %v3924 = vadd.f32 %v2972, %v3923
      %3925 = vmatprep.mubr.f32.mxu0 0.0
      %3926 = vmatmul.mubr.f32.gmra.mxu0 %v2996
      %v3927 = vpop.f32.mrf.mxu0
      %v3928 = vadd.f32 %v2968, %v3927
      %v3929 = vpop.f32.mrf.mxu0
      %v3930 = vadd.f32 %v2972, %v3929
      %3931 = vmatprep.mubr.f32.mxu0 0.0
      %3932 = vmatmul.mubr.f32.gmra.mxu0 %v2999
      %v3933 = vpop.f32.mrf.mxu0
      %v3934 = vadd.f32 %v2968, %v3933
      %v3935 = vpop.f32.mrf.mxu0
      %v3936 = vadd.f32 %v2972, %v3935
      %3937 = vmatprep.mubr.f32.mxu0 0.0
      %3938 = vmatmul.mubr.f32.gmra.mxu0 %v3002
      %v3939 = vpop.f32.mrf.mxu0
      %v3940 = vadd.f32 %v2968, %v3939
      %v3941 = vpop.f32.mrf.mxu0
      %v3942 = vadd.f32 %v2972, %v3941
      %3943 = vmatprep.mubr.f32.mxu0 0.0
      %3944 = vmatmul.mubr.f32.gmra.mxu0 %v3005
      %v3945 = vpop.f32.mrf.mxu0
      %v3946 = vadd.f32 %v2968, %v3945
      %v3947 = vpop.f32.mrf.mxu0
      %v3948 = vadd.f32 %v2972, %v3947
      %3949 = vmatprep.mubr.f32.mxu0 0.0
      %3950 = vmatmul.mubr.f32.gmra.mxu0 %v3008
      %v3951 = vpop.f32.mrf.mxu0
      %v3952 = vadd.f32 %v2968, %v3951
      %v3953 = vpop.f32.mrf.mxu0
      %v3954 = vadd.f32 %v2972, %v3953
      %3955 = vmatprep.mubr.f32.mxu0 0.0
      %3956 = vmatmul.mubr.f32.gmra.mxu0 %v3011
      %v3957 = vpop.f32.mrf.mxu0
      %v3958 = vadd.f32 %v2968, %v3957
      %v3959 = vpop.f32.mrf.mxu0
      %v3960 = vadd.f32 %v2972, %v3959
      %3961 = vmatprep.mubr.f32.mxu0 0.0
      %3962 = vmatmul.mubr.f32.gmra.mxu0 %v3014
      %v3963 = vpop.f32.mrf.mxu0
      %v3964 = vadd.f32 %v2968, %v3963
      %v3965 = vpop.f32.mrf.mxu0
      %v3966 = vadd.f32 %v2972, %v3965
      %3967 = vdwg.mxu0
      %v3968 = vmax.f32 %v3083, 0.0
      %v3969 = vmax.f32 %v3085, 0.0
      %v3970 = vmax.f32 %v3202, 0.0
      %v3971 = vmax.f32 %v3204, 0.0
      %v3972 = vmax.f32 %v3321, 0.0
      %v3973 = vmax.f32 %v3323, 0.0
      %v3974 = vmax.f32 %v3440, 0.0
      %v3975 = vmax.f32 %v3442, 0.0
      %v3976 = vmax.f32 %v3559, 0.0
      %v3977 = vmax.f32 %v3561, 0.0
      %v3978 = vmax.f32 %v3678, 0.0
      %v3979 = vmax.f32 %v3680, 0.0
      %v3980 = vmax.f32 %v3797, 0.0
      %v3981 = vmax.f32 %v3799, 0.0
      %v3982 = vmax.f32 %v3916, 0.0
      %v3983 = vmax.f32 %v3918, 0.0
      %v3984 = vmax.f32 %v3089, 0.0
      %v3985 = vmax.f32 %v3091, 0.0
      %v3986 = vmax.f32 %v3208, 0.0
      %v3987 = vmax.f32 %v3210, 0.0
      %v3988 = vmax.f32 %v3327, 0.0
      %v3989 = vmax.f32 %v3329, 0.0
      %v3990 = vmax.f32 %v3446, 0.0
      %v3991 = vmax.f32 %v3448, 0.0
      %v3992 = vmax.f32 %v3565, 0.0
      %v3993 = vmax.f32 %v3567, 0.0
      %v3994 = vmax.f32 %v3684, 0.0
      %v3995 = vmax.f32 %v3686, 0.0
      %v3996 = vmax.f32 %v3803, 0.0
      %v3997 = vmax.f32 %v3805, 0.0
      %v3998 = vmax.f32 %v3922, 0.0
      %v3999 = vmax.f32 %v3924, 0.0
      %v4000 = vmax.f32 %v3095, 0.0
      %v4001 = vmax.f32 %v3097, 0.0
      %v4002 = vmax.f32 %v3214, 0.0
      %v4003 = vmax.f32 %v3216, 0.0
      %v4004 = vmax.f32 %v3333, 0.0
      %v4005 = vmax.f32 %v3335, 0.0
      %v4006 = vmax.f32 %v3452, 0.0
      %v4007 = vmax.f32 %v3454, 0.0
      %v4008 = vmax.f32 %v3571, 0.0
      %v4009 = vmax.f32 %v3573, 0.0
      %v4010 = vmax.f32 %v3690, 0.0
      %v4011 = vmax.f32 %v3692, 0.0
      %v4012 = vmax.f32 %v3809, 0.0
      %v4013 = vmax.f32 %v3811, 0.0
      %v4014 = vmax.f32 %v3928, 0.0
      %v4015 = vmax.f32 %v3930, 0.0
      %v4016 = vmax.f32 %v3101, 0.0
      %v4017 = vmax.f32 %v3103, 0.0
      %v4018 = vmax.f32 %v3220, 0.0
      %v4019 = vmax.f32 %v3222, 0.0
      %v4020 = vmax.f32 %v3339, 0.0
      %v4021 = vmax.f32 %v3341, 0.0
      %v4022 = vmax.f32 %v3458, 0.0
      %v4023 = vmax.f32 %v3460, 0.0
      %v4024 = vmax.f32 %v3577, 0.0
      %v4025 = vmax.f32 %v3579, 0.0
      %v4026 = vmax.f32 %v3696, 0.0
      %v4027 = vmax.f32 %v3698, 0.0
      %v4028 = vmax.f32 %v3815, 0.0
      %v4029 = vmax.f32 %v3817, 0.0
      %v4030 = vmax.f32 %v3934, 0.0
      %v4031 = vmax.f32 %v3936, 0.0
      %v4032 = vmax.f32 %v3107, 0.0
      %v4033 = vmax.f32 %v3109, 0.0
      %v4034 = vmax.f32 %v3226, 0.0
      %v4035 = vmax.f32 %v3228, 0.0
      %v4036 = vmax.f32 %v3345, 0.0
      %v4037 = vmax.f32 %v3347, 0.0
      %v4038 = vmax.f32 %v3464, 0.0
      %v4039 = vmax.f32 %v3466, 0.0
      %v4040 = vmax.f32 %v3583, 0.0
      %v4041 = vmax.f32 %v3585, 0.0
      %v4042 = vmax.f32 %v3702, 0.0
      %v4043 = vmax.f32 %v3704, 0.0
      %v4044 = vmax.f32 %v3821, 0.0
      %v4045 = vmax.f32 %v3823, 0.0
      %v4046 = vmax.f32 %v3940, 0.0
      %v4047 = vmax.f32 %v3942, 0.0
      %v4048 = vmax.f32 %v3113, 0.0
      %v4049 = vmax.f32 %v3115, 0.0
      %v4050 = vmax.f32 %v3232, 0.0
      %v4051 = vmax.f32 %v3234, 0.0
      %v4052 = vmax.f32 %v3351, 0.0
      %v4053 = vmax.f32 %v3353, 0.0
      %v4054 = vmax.f32 %v3470, 0.0
      %v4055 = vmax.f32 %v3472, 0.0
      %v4056 = vmax.f32 %v3589, 0.0
      %v4057 = vmax.f32 %v3591, 0.0
      %v4058 = vmax.f32 %v3708, 0.0
      %v4059 = vmax.f32 %v3710, 0.0
      %v4060 = vmax.f32 %v3827, 0.0
      %v4061 = vmax.f32 %v3829, 0.0
      %v4062 = vmax.f32 %v3946, 0.0
      %v4063 = vmax.f32 %v3948, 0.0
      %v4064 = vmax.f32 %v3119, 0.0
      %v4065 = vmax.f32 %v3121, 0.0
      %v4066 = vmax.f32 %v3238, 0.0
      %v4067 = vmax.f32 %v3240, 0.0
      %v4068 = vmax.f32 %v3357, 0.0
      %v4069 = vmax.f32 %v3359, 0.0
      %v4070 = vmax.f32 %v3476, 0.0
      %v4071 = vmax.f32 %v3478, 0.0
      %v4072 = vmax.f32 %v3595, 0.0
      %v4073 = vmax.f32 %v3597, 0.0
      %v4074 = vmax.f32 %v3714, 0.0
      %v4075 = vmax.f32 %v3716, 0.0
      %v4076 = vmax.f32 %v3833, 0.0
      %v4077 = vmax.f32 %v3835, 0.0
      %v4078 = vmax.f32 %v3952, 0.0
      %v4079 = vmax.f32 %v3954, 0.0
      %v4080 = vmax.f32 %v3125, 0.0
      %v4081 = vmax.f32 %v3127, 0.0
      %v4082 = vmax.f32 %v3244, 0.0
      %v4083 = vmax.f32 %v3246, 0.0
      %v4084 = vmax.f32 %v3363, 0.0
      %v4085 = vmax.f32 %v3365, 0.0
      %v4086 = vmax.f32 %v3482, 0.0
      %v4087 = vmax.f32 %v3484, 0.0
      %v4088 = vmax.f32 %v3601, 0.0
      %v4089 = vmax.f32 %v3603, 0.0
      %v4090 = vmax.f32 %v3720, 0.0
      %v4091 = vmax.f32 %v3722, 0.0
      %v4092 = vmax.f32 %v3839, 0.0
      %v4093 = vmax.f32 %v3841, 0.0
      %v4094 = vmax.f32 %v3958, 0.0
      %v4095 = vmax.f32 %v3960, 0.0
      %v4096 = vmax.f32 %v3131, 0.0
      %v4097 = vmax.f32 %v3133, 0.0
      %v4098 = vmax.f32 %v3250, 0.0
      %v4099 = vmax.f32 %v3252, 0.0
      %v4100 = vmax.f32 %v3369, 0.0
      %v4101 = vmax.f32 %v3371, 0.0
      %v4102 = vmax.f32 %v3488, 0.0
      %v4103 = vmax.f32 %v3490, 0.0
      %v4104 = vmax.f32 %v3607, 0.0
      %v4105 = vmax.f32 %v3609, 0.0
      %v4106 = vmax.f32 %v3726, 0.0
      %v4107 = vmax.f32 %v3728, 0.0
      %v4108 = vmax.f32 %v3845, 0.0
      %v4109 = vmax.f32 %v3847, 0.0
      %v4110 = vmax.f32 %v3964, 0.0
      %v4111 = vmax.f32 %v3966, 0.0
      %v4112 = vld [vmem:[%s9] sm:$0xff]
      %v4113 = vld [vmem:[%s9 + $0x8] sm:$0xff]
      %v4114 = vld [vmem:[%s9 + $0x10] sm:$0xff]
      %v4115 = vld [vmem:[%s9 + $0x18] sm:$0xff]
      %v4116 = vld [vmem:[%s9 + $0x20] sm:$0xff]
      %v4117 = vld [vmem:[%s9 + $0x28] sm:$0xff]
      %v4118 = vld [vmem:[%s9 + $0x30] sm:$0xff]
      %v4119 = vld [vmem:[%s9 + $0x38] sm:$0xff]
      %v4120 = vld [vmem:[%s9 + $0x40] sm:$0xff]
      %v4121 = vld [vmem:[%s9 + $0x48] sm:$0xff]
      %v4122 = vld [vmem:[%s9 + $0x50] sm:$0xff]
      %v4123 = vld [vmem:[%s9 + $0x58] sm:$0xff]
      %v4124 = vld [vmem:[%s9 + $0x60] sm:$0xff]
      %v4125 = vld [vmem:[%s9 + $0x68] sm:$0xff]
      %v4126 = vld [vmem:[%s9 + $0x70] sm:$0xff]
      %v4127 = vld [vmem:[%s9 + $0x78] sm:$0xff]
      %v4128 = vld [vmem:[%s9 + $0x80] sm:$0xff]
      %v4129 = vld [vmem:[%s9 + $0x88] sm:$0xff]
      %v4130 = vld [vmem:[%s9 + $0x90] sm:$0xff]
      %v4131 = vld [vmem:[%s9 + $0x98] sm:$0xff]
      %v4132 = vld [vmem:[%s9 + $0xa0] sm:$0xff]
      %v4133 = vld [vmem:[%s9 + $0xa8] sm:$0xff]
      %v4134 = vld [vmem:[%s9 + $0xb0] sm:$0xff]
      %v4135 = vld [vmem:[%s9 + $0xb8] sm:$0xff]
      %v4136 = vld [vmem:[%s9 + $0xc0] sm:$0xff]
      %v4137 = vld [vmem:[%s9 + $0xc8] sm:$0xff]
      %v4138 = vld [vmem:[%s9 + $0xd0] sm:$0xff]
      %v4139 = vld [vmem:[%s9 + $0xd8] sm:$0xff]
      %v4140 = vld [vmem:[%s9 + $0xe0] sm:$0xff]
      %v4141 = vld [vmem:[%s9 + $0xe8] sm:$0xff]
      %v4142 = vld [vmem:[%s9 + $0xf0] sm:$0xff]
      %v4143 = vld [vmem:[%s9 + $0xf8] sm:$0xff]
      %v4144 = vld [vmem:[%s9 + $0x100] sm:$0xff]
      %v4145 = vld [vmem:[%s9 + $0x108] sm:$0xff]
      %v4146 = vld [vmem:[%s9 + $0x110] sm:$0xff]
      %v4147 = vld [vmem:[%s9 + $0x118] sm:$0xff]
      %v4148 = vld [vmem:[%s9 + $0x120] sm:$0xff]
      %v4149 = vld [vmem:[%s9 + $0x128] sm:$0xff]
      %v4150 = vld [vmem:[%s9 + $0x130] sm:$0xff]
      %v4151 = vld [vmem:[%s9 + $0x138] sm:$0xff]
      %v4152 = vld [vmem:[%s9 + $0x140] sm:$0xff]
      %v4153 = vld [vmem:[%s9 + $0x148] sm:$0xff]
      %v4154 = vld [vmem:[%s9 + $0x150] sm:$0xff]
      %v4155 = vld [vmem:[%s9 + $0x158] sm:$0xff]
      %v4156 = vld [vmem:[%s9 + $0x160] sm:$0xff]
      %v4157 = vld [vmem:[%s9 + $0x168] sm:$0xff]
      %v4158 = vld [vmem:[%s9 + $0x170] sm:$0xff]
      %v4159 = vld [vmem:[%s9 + $0x178] sm:$0xff]
      %v4160 = vld [vmem:[%s9 + $0x180] sm:$0xff]
      %v4161 = vld [vmem:[%s9 + $0x188] sm:$0xff]
      %v4162 = vld [vmem:[%s9 + $0x190] sm:$0xff]
      %v4163 = vld [vmem:[%s9 + $0x198] sm:$0xff]
      %v4164 = vld [vmem:[%s9 + $0x1a0] sm:$0xff]
      %v4165 = vld [vmem:[%s9 + $0x1a8] sm:$0xff]
      %v4166 = vld [vmem:[%s9 + $0x1b0] sm:$0xff]
      %v4167 = vld [vmem:[%s9 + $0x1b8] sm:$0xff]
      %v4168 = vld [vmem:[%s9 + $0x1c0] sm:$0xff]
      %v4169 = vld [vmem:[%s9 + $0x1c8] sm:$0xff]
      %v4170 = vld [vmem:[%s9 + $0x1d0] sm:$0xff]
      %v4171 = vld [vmem:[%s9 + $0x1d8] sm:$0xff]
      %v4172 = vld [vmem:[%s9 + $0x1e0] sm:$0xff]
      %v4173 = vld [vmem:[%s9 + $0x1e8] sm:$0xff]
      %v4174 = vld [vmem:[%s9 + $0x1f0] sm:$0xff]
      %v4175 = vld [vmem:[%s9 + $0x1f8] sm:$0xff]
      %v4176 = vld [vmem:[%s9 + $0x200] sm:$0xff]
      %v4177 = vld [vmem:[%s9 + $0x208] sm:$0xff]
      %v4178 = vld [vmem:[%s9 + $0x210] sm:$0xff]
      %v4179 = vld [vmem:[%s9 + $0x218] sm:$0xff]
      %v4180 = vld [vmem:[%s9 + $0x220] sm:$0xff]
      %v4181 = vld [vmem:[%s9 + $0x228] sm:$0xff]
      %v4182 = vld [vmem:[%s9 + $0x230] sm:$0xff]
      %v4183 = vld [vmem:[%s9 + $0x238] sm:$0xff]
      %v4184 = vld [vmem:[%s9 + $0x240] sm:$0xff]
      %v4185 = vld [vmem:[%s9 + $0x248] sm:$0xff]
      %v4186 = vld [vmem:[%s9 + $0x250] sm:$0xff]
      %v4187 = vld [vmem:[%s9 + $0x258] sm:$0xff]
      %v4188 = vld [vmem:[%s9 + $0x260] sm:$0xff]
      %v4189 = vld [vmem:[%s9 + $0x268] sm:$0xff]
      %v4190 = vld [vmem:[%s9 + $0x270] sm:$0xff]
      %v4191 = vld [vmem:[%s9 + $0x278] sm:$0xff]
      %v4192 = vld [vmem:[%s9 + $0x280] sm:$0xff]
      %v4193 = vld [vmem:[%s9 + $0x288] sm:$0xff]
      %v4194 = vld [vmem:[%s9 + $0x290] sm:$0xff]
      %v4195 = vld [vmem:[%s9 + $0x298] sm:$0xff]
      %v4196 = vld [vmem:[%s9 + $0x2a0] sm:$0xff]
      %v4197 = vld [vmem:[%s9 + $0x2a8] sm:$0xff]
      %v4198 = vld [vmem:[%s9 + $0x2b0] sm:$0xff]
      %v4199 = vld [vmem:[%s9 + $0x2b8] sm:$0xff]
      %v4200 = vld [vmem:[%s9 + $0x2c0] sm:$0xff]
      %v4201 = vld [vmem:[%s9 + $0x2c8] sm:$0xff]
      %v4202 = vld [vmem:[%s9 + $0x2d0] sm:$0xff]
      %v4203 = vld [vmem:[%s9 + $0x2d8] sm:$0xff]
      %v4204 = vld [vmem:[%s9 + $0x2e0] sm:$0xff]
      %v4205 = vld [vmem:[%s9 + $0x2e8] sm:$0xff]
      %v4206 = vld [vmem:[%s9 + $0x2f0] sm:$0xff]
      %v4207 = vld [vmem:[%s9 + $0x2f8] sm:$0xff]
      %v4208 = vld [vmem:[%s9 + $0x300] sm:$0xff]
      %v4209 = vld [vmem:[%s9 + $0x308] sm:$0xff]
      %v4210 = vld [vmem:[%s9 + $0x310] sm:$0xff]
      %v4211 = vld [vmem:[%s9 + $0x318] sm:$0xff]
      %v4212 = vld [vmem:[%s9 + $0x320] sm:$0xff]
      %v4213 = vld [vmem:[%s9 + $0x328] sm:$0xff]
      %v4214 = vld [vmem:[%s9 + $0x330] sm:$0xff]
      %v4215 = vld [vmem:[%s9 + $0x338] sm:$0xff]
      %v4216 = vld [vmem:[%s9 + $0x340] sm:$0xff]
      %v4217 = vld [vmem:[%s9 + $0x348] sm:$0xff]
      %v4218 = vld [vmem:[%s9 + $0x350] sm:$0xff]
      %v4219 = vld [vmem:[%s9 + $0x358] sm:$0xff]
      %v4220 = vld [vmem:[%s9 + $0x360] sm:$0xff]
      %v4221 = vld [vmem:[%s9 + $0x368] sm:$0xff]
      %v4222 = vld [vmem:[%s9 + $0x370] sm:$0xff]
      %v4223 = vld [vmem:[%s9 + $0x378] sm:$0xff]
      %v4224 = vld [vmem:[%s9 + $0x380] sm:$0xff]
      %v4225 = vld [vmem:[%s9 + $0x388] sm:$0xff]
      %v4226 = vld [vmem:[%s9 + $0x390] sm:$0xff]
      %v4227 = vld [vmem:[%s9 + $0x398] sm:$0xff]
      %v4228 = vld [vmem:[%s9 + $0x3a0] sm:$0xff]
      %v4229 = vld [vmem:[%s9 + $0x3a8] sm:$0xff]
      %v4230 = vld [vmem:[%s9 + $0x3b0] sm:$0xff]
      %v4231 = vld [vmem:[%s9 + $0x3b8] sm:$0xff]
      %v4232 = vld [vmem:[%s9 + $0x3c0] sm:$0xff]
      %v4233 = vld [vmem:[%s9 + $0x3c8] sm:$0xff]
      %v4234 = vld [vmem:[%s9 + $0x3d0] sm:$0xff]
      %v4235 = vld [vmem:[%s9 + $0x3d8] sm:$0xff]
      %v4236 = vld [vmem:[%s9 + $0x3e0] sm:$0xff]
      %v4237 = vld [vmem:[%s9 + $0x3e8] sm:$0xff]
      %v4238 = vld [vmem:[%s9 + $0x3f0] sm:$0xff]
      %v4239 = vld [vmem:[%s9 + $0x3f8] sm:$0xff]
      %v4240 = vld [vmem:[%s9 + $0x400] sm:$0xff]
      %v4241 = vld [vmem:[%s9 + $0x408] sm:$0xff]
      %v4242 = vld [vmem:[%s9 + $0x410] sm:$0xff]
      %v4243 = vld [vmem:[%s9 + $0x418] sm:$0xff]
      %v4244 = vld [vmem:[%s9 + $0x420] sm:$0xff]
      %v4245 = vld [vmem:[%s9 + $0x428] sm:$0xff]
      %v4246 = vld [vmem:[%s9 + $0x430] sm:$0xff]
      %v4247 = vld [vmem:[%s9 + $0x438] sm:$0xff]
      %v4248 = vld [vmem:[%s9 + $0x440] sm:$0xff]
      %v4249 = vld [vmem:[%s9 + $0x448] sm:$0xff]
      %v4250 = vld [vmem:[%s9 + $0x450] sm:$0xff]
      %v4251 = vld [vmem:[%s9 + $0x458] sm:$0xff]
      %v4252 = vld [vmem:[%s9 + $0x460] sm:$0xff]
      %v4253 = vld [vmem:[%s9 + $0x468] sm:$0xff]
      %v4254 = vld [vmem:[%s9 + $0x470] sm:$0xff]
      %v4255 = vld [vmem:[%s9 + $0x478] sm:$0xff]
      %v4256 = vld [vmem:[%s9 + $0x480] sm:$0xff]
      %v4257 = vld [vmem:[%s9 + $0x488] sm:$0xff]
      %v4258 = vld [vmem:[%s9 + $0x490] sm:$0xff]
      %v4259 = vld [vmem:[%s9 + $0x498] sm:$0xff]
      %v4260 = vld [vmem:[%s9 + $0x4a0] sm:$0xff]
      %v4261 = vld [vmem:[%s9 + $0x4a8] sm:$0xff]
      %v4262 = vld [vmem:[%s9 + $0x4b0] sm:$0xff]
      %v4263 = vld [vmem:[%s9 + $0x4b8] sm:$0xff]
      %v4264 = vld [vmem:[%s9 + $0x4c0] sm:$0xff]
      %v4265 = vld [vmem:[%s9 + $0x4c8] sm:$0xff]
      %v4266 = vld [vmem:[%s9 + $0x4d0] sm:$0xff]
      %v4267 = vld [vmem:[%s9 + $0x4d8] sm:$0xff]
      %v4268 = vld [vmem:[%s9 + $0x4e0] sm:$0xff]
      %v4269 = vld [vmem:[%s9 + $0x4e8] sm:$0xff]
      %v4270 = vld [vmem:[%s9 + $0x4f0] sm:$0xff]
      %v4271 = vld [vmem:[%s9 + $0x4f8] sm:$0xff]
      %v4272 = vld [vmem:[%s9 + $0x500] sm:$0xff]
      %v4273 = vld [vmem:[%s9 + $0x508] sm:$0xff]
      %v4274 = vld [vmem:[%s9 + $0x510] sm:$0xff]
      %v4275 = vld [vmem:[%s9 + $0x518] sm:$0xff]
      %v4276 = vld [vmem:[%s9 + $0x520] sm:$0xff]
      %v4277 = vld [vmem:[%s9 + $0x528] sm:$0xff]
      %v4278 = vld [vmem:[%s9 + $0x530] sm:$0xff]
      %v4279 = vld [vmem:[%s9 + $0x538] sm:$0xff]
      %v4280 = vld [vmem:[%s9 + $0x540] sm:$0xff]
      %v4281 = vld [vmem:[%s9 + $0x548] sm:$0xff]
      %v4282 = vld [vmem:[%s9 + $0x550] sm:$0xff]
      %v4283 = vld [vmem:[%s9 + $0x558] sm:$0xff]
      %v4284 = vld [vmem:[%s9 + $0x560] sm:$0xff]
      %v4285 = vld [vmem:[%s9 + $0x568] sm:$0xff]
      %v4286 = vld [vmem:[%s9 + $0x570] sm:$0xff]
      %v4287 = vld [vmem:[%s9 + $0x578] sm:$0xff]
      %v4288 = vld [vmem:[%s9 + $0x580] sm:$0xff]
      %v4289 = vld [vmem:[%s9 + $0x588] sm:$0xff]
      %v4290 = vld [vmem:[%s9 + $0x590] sm:$0xff]
      %v4291 = vld [vmem:[%s9 + $0x598] sm:$0xff]
      %v4292 = vld [vmem:[%s9 + $0x5a0] sm:$0xff]
      %v4293 = vld [vmem:[%s9 + $0x5a8] sm:$0xff]
      %v4294 = vld [vmem:[%s9 + $0x5b0] sm:$0xff]
      %v4295 = vld [vmem:[%s9 + $0x5b8] sm:$0xff]
      %v4296 = vld [vmem:[%s9 + $0x5c0] sm:$0xff]
      %v4297 = vld [vmem:[%s9 + $0x5c8] sm:$0xff]
      %v4298 = vld [vmem:[%s9 + $0x5d0] sm:$0xff]
      %v4299 = vld [vmem:[%s9 + $0x5d8] sm:$0xff]
      %v4300 = vld [vmem:[%s9 + $0x5e0] sm:$0xff]
      %v4301 = vld [vmem:[%s9 + $0x5e8] sm:$0xff]
      %v4302 = vld [vmem:[%s9 + $0x5f0] sm:$0xff]
      %v4303 = vld [vmem:[%s9 + $0x5f8] sm:$0xff]
      %v4304 = vld [vmem:[%s9 + $0x600] sm:$0xff]
      %v4305 = vld [vmem:[%s9 + $0x608] sm:$0xff]
      %v4306 = vld [vmem:[%s9 + $0x610] sm:$0xff]
      %v4307 = vld [vmem:[%s9 + $0x618] sm:$0xff]
      %v4308 = vld [vmem:[%s9 + $0x620] sm:$0xff]
      %v4309 = vld [vmem:[%s9 + $0x628] sm:$0xff]
      %v4310 = vld [vmem:[%s9 + $0x630] sm:$0xff]
      %v4311 = vld [vmem:[%s9 + $0x638] sm:$0xff]
      %v4312 = vld [vmem:[%s9 + $0x640] sm:$0xff]
      %v4313 = vld [vmem:[%s9 + $0x648] sm:$0xff]
      %v4314 = vld [vmem:[%s9 + $0x650] sm:$0xff]
      %v4315 = vld [vmem:[%s9 + $0x658] sm:$0xff]
      %v4316 = vld [vmem:[%s9 + $0x660] sm:$0xff]
      %v4317 = vld [vmem:[%s9 + $0x668] sm:$0xff]
      %v4318 = vld [vmem:[%s9 + $0x670] sm:$0xff]
      %v4319 = vld [vmem:[%s9 + $0x678] sm:$0xff]
      %v4320 = vld [vmem:[%s9 + $0x680] sm:$0xff]
      %v4321 = vld [vmem:[%s9 + $0x688] sm:$0xff]
      %v4322 = vld [vmem:[%s9 + $0x690] sm:$0xff]
      %v4323 = vld [vmem:[%s9 + $0x698] sm:$0xff]
      %v4324 = vld [vmem:[%s9 + $0x6a0] sm:$0xff]
      %v4325 = vld [vmem:[%s9 + $0x6a8] sm:$0xff]
      %v4326 = vld [vmem:[%s9 + $0x6b0] sm:$0xff]
      %v4327 = vld [vmem:[%s9 + $0x6b8] sm:$0xff]
      %v4328 = vld [vmem:[%s9 + $0x6c0] sm:$0xff]
      %v4329 = vld [vmem:[%s9 + $0x6c8] sm:$0xff]
      %v4330 = vld [vmem:[%s9 + $0x6d0] sm:$0xff]
      %v4331 = vld [vmem:[%s9 + $0x6d8] sm:$0xff]
      %v4332 = vld [vmem:[%s9 + $0x6e0] sm:$0xff]
      %v4333 = vld [vmem:[%s9 + $0x6e8] sm:$0xff]
      %v4334 = vld [vmem:[%s9 + $0x6f0] sm:$0xff]
      %v4335 = vld [vmem:[%s9 + $0x6f8] sm:$0xff]
      %v4336 = vld [vmem:[%s9 + $0x700] sm:$0xff]
      %v4337 = vld [vmem:[%s9 + $0x708] sm:$0xff]
      %v4338 = vld [vmem:[%s9 + $0x710] sm:$0xff]
      %v4339 = vld [vmem:[%s9 + $0x718] sm:$0xff]
      %v4340 = vld [vmem:[%s9 + $0x720] sm:$0xff]
      %v4341 = vld [vmem:[%s9 + $0x728] sm:$0xff]
      %v4342 = vld [vmem:[%s9 + $0x730] sm:$0xff]
      %v4343 = vld [vmem:[%s9 + $0x738] sm:$0xff]
      %v4344 = vld [vmem:[%s9 + $0x740] sm:$0xff]
      %v4345 = vld [vmem:[%s9 + $0x748] sm:$0xff]
      %v4346 = vld [vmem:[%s9 + $0x750] sm:$0xff]
      %v4347 = vld [vmem:[%s9 + $0x758] sm:$0xff]
      %v4348 = vld [vmem:[%s9 + $0x760] sm:$0xff]
      %v4349 = vld [vmem:[%s9 + $0x768] sm:$0xff]
      %v4350 = vld [vmem:[%s9 + $0x770] sm:$0xff]
      %v4351 = vld [vmem:[%s9 + $0x778] sm:$0xff]
      %v4352 = vld [vmem:[%s9 + $0x780] sm:$0xff]
      %v4353 = vld [vmem:[%s9 + $0x788] sm:$0xff]
      %v4354 = vld [vmem:[%s9 + $0x790] sm:$0xff]
      %v4355 = vld [vmem:[%s9 + $0x798] sm:$0xff]
      %v4356 = vld [vmem:[%s9 + $0x7a0] sm:$0xff]
      %v4357 = vld [vmem:[%s9 + $0x7a8] sm:$0xff]
      %v4358 = vld [vmem:[%s9 + $0x7b0] sm:$0xff]
      %v4359 = vld [vmem:[%s9 + $0x7b8] sm:$0xff]
      %v4360 = vld [vmem:[%s9 + $0x7c0] sm:$0xff]
      %v4361 = vld [vmem:[%s9 + $0x7c8] sm:$0xff]
      %v4362 = vld [vmem:[%s9 + $0x7d0] sm:$0xff]
      %v4363 = vld [vmem:[%s9 + $0x7d8] sm:$0xff]
      %v4364 = vld [vmem:[%s9 + $0x7e0] sm:$0xff]
      %v4365 = vld [vmem:[%s9 + $0x7e8] sm:$0xff]
      %v4366 = vld [vmem:[%s9 + $0x7f0] sm:$0xff]
      %v4367 = vld [vmem:[%s9 + $0x7f8] sm:$0xff]
      %v4368 = vld [vmem:[%s10] sm:$0x1]
      %v4370 = vlaneseq
      %v4371 = vshrl.u32 %v4370, 7
      %v4372 = vsub.s32 0, %v4371
      %v4373 = vrot.slane %v4368, %v4372
      %4375 = vmatprep.subr.mxu0 0.0
      %4376 = vmatpush1.msra.mxu0 %v4127
      %4377 = vmatprep.subr.mxu0 0.0
      %4378 = vmatpush1.msra.mxu0 %v4126
      %4379 = vmatprep.subr.mxu0 0.0
      %4380 = vmatpush1.msra.mxu0 %v4125
      %4381 = vmatprep.subr.mxu0 0.0
      %4382 = vmatpush1.msra.mxu0 %v4124
      %4383 = vmatprep.subr.mxu0 0.0
      %4384 = vmatpush1.msra.mxu0 %v4123
      %4385 = vmatprep.subr.mxu0 0.0
      %4386 = vmatpush1.msra.mxu0 %v4122
      %4387 = vmatprep.subr.mxu0 0.0
      %4388 = vmatpush1.msra.mxu0 %v4121
      %4389 = vmatprep.subr.mxu0 0.0
      %4390 = vmatpush1.msra.mxu0 %v4120
      %4391 = vmatprep.subr.mxu0 0.0
      %4392 = vmatpush1.msra.mxu0 %v4119
      %4393 = vmatprep.subr.mxu0 0.0
      %4394 = vmatpush1.msra.mxu0 %v4118
      %4395 = vmatprep.subr.mxu0 0.0
      %4396 = vmatpush1.msra.mxu0 %v4117
      %4397 = vmatprep.subr.mxu0 0.0
      %4398 = vmatpush1.msra.mxu0 %v4116
      %4399 = vmatprep.subr.mxu0 0.0
      %4400 = vmatpush1.msra.mxu0 %v4115
      %4401 = vmatprep.subr.mxu0 0.0
      %4402 = vmatpush1.msra.mxu0 %v4114
      %4403 = vmatprep.subr.mxu0 0.0
      %4404 = vmatpush1.msra.mxu0 %v4113
      %4405 = vmatprep.subr.mxu0 0.0
      %4406 = vmatpush1.msra.mxu0 %v4112
      %4407 = vmatprep.subr.mxu0 0.0
      %4408 = vmatpush2.msra.mxu0 %v4143
      %4409 = vmatprep.subr.mxu0 0.0
      %4410 = vmatpush2.msra.mxu0 %v4142
      %4411 = vmatprep.subr.mxu0 0.0
      %4412 = vmatpush2.msra.mxu0 %v4141
      %4413 = vmatprep.subr.mxu0 0.0
      %4414 = vmatpush2.msra.mxu0 %v4140
      %4415 = vmatprep.subr.mxu0 0.0
      %4416 = vmatpush2.msra.mxu0 %v4139
      %4417 = vmatprep.subr.mxu0 0.0
      %4418 = vmatpush2.msra.mxu0 %v4138
      %4419 = vmatprep.subr.mxu0 0.0
      %4420 = vmatpush2.msra.mxu0 %v4137
      %4421 = vmatprep.subr.mxu0 0.0
      %4422 = vmatpush2.msra.mxu0 %v4136
      %4423 = vmatprep.subr.mxu0 0.0
      %4424 = vmatpush2.msra.mxu0 %v4135
      %4425 = vmatprep.subr.mxu0 0.0
      %4426 = vmatpush2.msra.mxu0 %v4134
      %4427 = vmatprep.subr.mxu0 0.0
      %4428 = vmatpush2.msra.mxu0 %v4133
      %4429 = vmatprep.subr.mxu0 0.0
      %4430 = vmatpush2.msra.mxu0 %v4132
      %4431 = vmatprep.subr.mxu0 0.0
      %4432 = vmatpush2.msra.mxu0 %v4131
      %4433 = vmatprep.subr.mxu0 0.0
      %4434 = vmatpush2.msra.mxu0 %v4130
      %4435 = vmatprep.subr.mxu0 0.0
      %4436 = vmatpush2.msra.mxu0 %v4129
      %4437 = vmatprep.subr.mxu0 0.0
      %4438 = vmatpush2.msra.mxu0 %v4128
      %4439 = vmatprep.mubr.f32.mxu0 %v3969
      %4440 = vmatmul.mubr.f32.gmra.mxu0 %v3968
      %v4441 = vpop.f32.mrf.mxu0
      %v4442 = vadd.f32 %v4373, %v4441
      %v4443 = vpop.f32.mrf.mxu0
      %4444 = vmatprep.mubr.f32.mxu0 %v3985
      %4445 = vmatmul.mubr.f32.gmra.mxu0 %v3984
      %v4446 = vpop.f32.mrf.mxu0
      %v4447 = vadd.f32 %v4373, %v4446
      %v4448 = vpop.f32.mrf.mxu0
      %4449 = vmatprep.mubr.f32.mxu0 %v4001
      %4450 = vmatmul.mubr.f32.gmra.mxu0 %v4000
      %v4451 = vpop.f32.mrf.mxu0
      %v4452 = vadd.f32 %v4373, %v4451
      %v4453 = vpop.f32.mrf.mxu0
      %4454 = vmatprep.mubr.f32.mxu0 %v4017
      %4455 = vmatmul.mubr.f32.gmra.mxu0 %v4016
      %v4456 = vpop.f32.mrf.mxu0
      %v4457 = vadd.f32 %v4373, %v4456
      %v4458 = vpop.f32.mrf.mxu0
      %4459 = vmatprep.mubr.f32.mxu0 %v4033
      %4460 = vmatmul.mubr.f32.gmra.mxu0 %v4032
      %v4461 = vpop.f32.mrf.mxu0
      %v4462 = vadd.f32 %v4373, %v4461
      %v4463 = vpop.f32.mrf.mxu0
      %4464 = vmatprep.mubr.f32.mxu0 %v4049
      %4465 = vmatmul.mubr.f32.gmra.mxu0 %v4048
      %v4466 = vpop.f32.mrf.mxu0
      %v4467 = vadd.f32 %v4373, %v4466
      %v4468 = vpop.f32.mrf.mxu0
      %4469 = vmatprep.mubr.f32.mxu0 %v4065
      %4470 = vmatmul.mubr.f32.gmra.mxu0 %v4064
      %v4471 = vpop.f32.mrf.mxu0
      %v4472 = vadd.f32 %v4373, %v4471
      %v4473 = vpop.f32.mrf.mxu0
      %4474 = vmatprep.mubr.f32.mxu0 %v4081
      %4475 = vmatmul.mubr.f32.gmra.mxu0 %v4080
      %v4476 = vpop.f32.mrf.mxu0
      %v4477 = vadd.f32 %v4373, %v4476
      %v4478 = vpop.f32.mrf.mxu0
      %4479 = vmatprep.mubr.f32.mxu0 %v4097
      %4480 = vmatmul.mubr.f32.gmra.mxu0 %v4096
      %v4481 = vpop.f32.mrf.mxu0
      %v4482 = vadd.f32 %v4373, %v4481
      %v4483 = vpop.f32.mrf.mxu0
      %4484 = vdwg.mxu0
      %4485 = vmatprep.subr.mxu0 0.0
      %4486 = vmatpush1.msra.mxu0 %v4159
      %4487 = vmatprep.subr.mxu0 0.0
      %4488 = vmatpush1.msra.mxu0 %v4158
      %4489 = vmatprep.subr.mxu0 0.0
      %4490 = vmatpush1.msra.mxu0 %v4157
      %4491 = vmatprep.subr.mxu0 0.0
      %4492 = vmatpush1.msra.mxu0 %v4156
      %4493 = vmatprep.subr.mxu0 0.0
      %4494 = vmatpush1.msra.mxu0 %v4155
      %4495 = vmatprep.subr.mxu0 0.0
      %4496 = vmatpush1.msra.mxu0 %v4154
      %4497 = vmatprep.subr.mxu0 0.0
      %4498 = vmatpush1.msra.mxu0 %v4153
      %4499 = vmatprep.subr.mxu0 0.0
      %4500 = vmatpush1.msra.mxu0 %v4152
      %4501 = vmatprep.subr.mxu0 0.0
      %4502 = vmatpush1.msra.mxu0 %v4151
      %4503 = vmatprep.subr.mxu0 0.0
      %4504 = vmatpush1.msra.mxu0 %v4150
      %4505 = vmatprep.subr.mxu0 0.0
      %4506 = vmatpush1.msra.mxu0 %v4149
      %4507 = vmatprep.subr.mxu0 0.0
      %4508 = vmatpush1.msra.mxu0 %v4148
      %4509 = vmatprep.subr.mxu0 0.0
      %4510 = vmatpush1.msra.mxu0 %v4147
      %4511 = vmatprep.subr.mxu0 0.0
      %4512 = vmatpush1.msra.mxu0 %v4146
      %4513 = vmatprep.subr.mxu0 0.0
      %4514 = vmatpush1.msra.mxu0 %v4145
      %4515 = vmatprep.subr.mxu0 0.0
      %4516 = vmatpush1.msra.mxu0 %v4144
      %4517 = vmatprep.subr.mxu0 0.0
      %4518 = vmatpush2.msra.mxu0 %v4175
      %4519 = vmatprep.subr.mxu0 0.0
      %4520 = vmatpush2.msra.mxu0 %v4174
      %4521 = vmatprep.subr.mxu0 0.0
      %4522 = vmatpush2.msra.mxu0 %v4173
      %4523 = vmatprep.subr.mxu0 0.0
      %4524 = vmatpush2.msra.mxu0 %v4172
      %4525 = vmatprep.subr.mxu0 0.0
      %4526 = vmatpush2.msra.mxu0 %v4171
      %4527 = vmatprep.subr.mxu0 0.0
      %4528 = vmatpush2.msra.mxu0 %v4170
      %4529 = vmatprep.subr.mxu0 0.0
      %4530 = vmatpush2.msra.mxu0 %v4169
      %4531 = vmatprep.subr.mxu0 0.0
      %4532 = vmatpush2.msra.mxu0 %v4168
      %4533 = vmatprep.subr.mxu0 0.0
      %4534 = vmatpush2.msra.mxu0 %v4167
      %4535 = vmatprep.subr.mxu0 0.0
      %4536 = vmatpush2.msra.mxu0 %v4166
      %4537 = vmatprep.subr.mxu0 0.0
      %4538 = vmatpush2.msra.mxu0 %v4165
      %4539 = vmatprep.subr.mxu0 0.0
      %4540 = vmatpush2.msra.mxu0 %v4164
      %4541 = vmatprep.subr.mxu0 0.0
      %4542 = vmatpush2.msra.mxu0 %v4163
      %4543 = vmatprep.subr.mxu0 0.0
      %4544 = vmatpush2.msra.mxu0 %v4162
      %4545 = vmatprep.subr.mxu0 0.0
      %4546 = vmatpush2.msra.mxu0 %v4161
      %4547 = vmatprep.subr.mxu0 0.0
      %4548 = vmatpush2.msra.mxu0 %v4160
      %4549 = vmatprep.mubr.f32.mxu0 %v3971
      %4550 = vmatmul.mubr.f32.gmra.mxu0 %v3970
      %v4551 = vpop.f32.mrf.mxu0
      %v4552 = vadd.f32 %v4442, %v4551
      %v4553 = vpop.f32.mrf.mxu0
      %4554 = vmatprep.mubr.f32.mxu0 %v3987
      %4555 = vmatmul.mubr.f32.gmra.mxu0 %v3986
      %v4556 = vpop.f32.mrf.mxu0
      %v4557 = vadd.f32 %v4447, %v4556
      %v4558 = vpop.f32.mrf.mxu0
      %4559 = vmatprep.mubr.f32.mxu0 %v4003
      %4560 = vmatmul.mubr.f32.gmra.mxu0 %v4002
      %v4561 = vpop.f32.mrf.mxu0
      %v4562 = vadd.f32 %v4452, %v4561
      %v4563 = vpop.f32.mrf.mxu0
      %4564 = vmatprep.mubr.f32.mxu0 %v4019
      %4565 = vmatmul.mubr.f32.gmra.mxu0 %v4018
      %v4566 = vpop.f32.mrf.mxu0
      %v4567 = vadd.f32 %v4457, %v4566
      %v4568 = vpop.f32.mrf.mxu0
      %4569 = vmatprep.mubr.f32.mxu0 %v4035
      %4570 = vmatmul.mubr.f32.gmra.mxu0 %v4034
      %v4571 = vpop.f32.mrf.mxu0
      %v4572 = vadd.f32 %v4462, %v4571
      %v4573 = vpop.f32.mrf.mxu0
      %4574 = vmatprep.mubr.f32.mxu0 %v4051
      %4575 = vmatmul.mubr.f32.gmra.mxu0 %v4050
      %v4576 = vpop.f32.mrf.mxu0
      %v4577 = vadd.f32 %v4467, %v4576
      %v4578 = vpop.f32.mrf.mxu0
      %4579 = vmatprep.mubr.f32.mxu0 %v4067
      %4580 = vmatmul.mubr.f32.gmra.mxu0 %v4066
      %v4581 = vpop.f32.mrf.mxu0
      %v4582 = vadd.f32 %v4472, %v4581
      %v4583 = vpop.f32.mrf.mxu0
      %4584 = vmatprep.mubr.f32.mxu0 %v4083
      %4585 = vmatmul.mubr.f32.gmra.mxu0 %v4082
      %v4586 = vpop.f32.mrf.mxu0
      %v4587 = vadd.f32 %v4477, %v4586
      %v4588 = vpop.f32.mrf.mxu0
      %4589 = vmatprep.mubr.f32.mxu0 %v4099
      %4590 = vmatmul.mubr.f32.gmra.mxu0 %v4098
      %v4591 = vpop.f32.mrf.mxu0
      %v4592 = vadd.f32 %v4482, %v4591
      %v4593 = vpop.f32.mrf.mxu0
      %4594 = vdwg.mxu0
      %4595 = vmatprep.subr.mxu0 0.0
      %4596 = vmatpush1.msra.mxu0 %v4191
      %4597 = vmatprep.subr.mxu0 0.0
      %4598 = vmatpush1.msra.mxu0 %v4190
      %4599 = vmatprep.subr.mxu0 0.0
      %4600 = vmatpush1.msra.mxu0 %v4189
      %4601 = vmatprep.subr.mxu0 0.0
      %4602 = vmatpush1.msra.mxu0 %v4188
      %4603 = vmatprep.subr.mxu0 0.0
      %4604 = vmatpush1.msra.mxu0 %v4187
      %4605 = vmatprep.subr.mxu0 0.0
      %4606 = vmatpush1.msra.mxu0 %v4186
      %4607 = vmatprep.subr.mxu0 0.0
      %4608 = vmatpush1.msra.mxu0 %v4185
      %4609 = vmatprep.subr.mxu0 0.0
      %4610 = vmatpush1.msra.mxu0 %v4184
      %4611 = vmatprep.subr.mxu0 0.0
      %4612 = vmatpush1.msra.mxu0 %v4183
      %4613 = vmatprep.subr.mxu0 0.0
      %4614 = vmatpush1.msra.mxu0 %v4182
      %4615 = vmatprep.subr.mxu0 0.0
      %4616 = vmatpush1.msra.mxu0 %v4181
      %4617 = vmatprep.subr.mxu0 0.0
      %4618 = vmatpush1.msra.mxu0 %v4180
      %4619 = vmatprep.subr.mxu0 0.0
      %4620 = vmatpush1.msra.mxu0 %v4179
      %4621 = vmatprep.subr.mxu0 0.0
      %4622 = vmatpush1.msra.mxu0 %v4178
      %4623 = vmatprep.subr.mxu0 0.0
      %4624 = vmatpush1.msra.mxu0 %v4177
      %4625 = vmatprep.subr.mxu0 0.0
      %4626 = vmatpush1.msra.mxu0 %v4176
      %4627 = vmatprep.subr.mxu0 0.0
      %4628 = vmatpush2.msra.mxu0 %v4207
      %4629 = vmatprep.subr.mxu0 0.0
      %4630 = vmatpush2.msra.mxu0 %v4206
      %4631 = vmatprep.subr.mxu0 0.0
      %4632 = vmatpush2.msra.mxu0 %v4205
      %4633 = vmatprep.subr.mxu0 0.0
      %4634 = vmatpush2.msra.mxu0 %v4204
      %4635 = vmatprep.subr.mxu0 0.0
      %4636 = vmatpush2.msra.mxu0 %v4203
      %4637 = vmatprep.subr.mxu0 0.0
      %4638 = vmatpush2.msra.mxu0 %v4202
      %4639 = vmatprep.subr.mxu0 0.0
      %4640 = vmatpush2.msra.mxu0 %v4201
      %4641 = vmatprep.subr.mxu0 0.0
      %4642 = vmatpush2.msra.mxu0 %v4200
      %4643 = vmatprep.subr.mxu0 0.0
      %4644 = vmatpush2.msra.mxu0 %v4199
      %4645 = vmatprep.subr.mxu0 0.0
      %4646 = vmatpush2.msra.mxu0 %v4198
      %4647 = vmatprep.subr.mxu0 0.0
      %4648 = vmatpush2.msra.mxu0 %v4197
      %4649 = vmatprep.subr.mxu0 0.0
      %4650 = vmatpush2.msra.mxu0 %v4196
      %4651 = vmatprep.subr.mxu0 0.0
      %4652 = vmatpush2.msra.mxu0 %v4195
      %4653 = vmatprep.subr.mxu0 0.0
      %4654 = vmatpush2.msra.mxu0 %v4194
      %4655 = vmatprep.subr.mxu0 0.0
      %4656 = vmatpush2.msra.mxu0 %v4193
      %4657 = vmatprep.subr.mxu0 0.0
      %4658 = vmatpush2.msra.mxu0 %v4192
      %4659 = vmatprep.mubr.f32.mxu0 %v3973
      %4660 = vmatmul.mubr.f32.gmra.mxu0 %v3972
      %v4661 = vpop.f32.mrf.mxu0
      %v4662 = vadd.f32 %v4552, %v4661
      %v4663 = vpop.f32.mrf.mxu0
      %4664 = vmatprep.mubr.f32.mxu0 %v3989
      %4665 = vmatmul.mubr.f32.gmra.mxu0 %v3988
      %v4666 = vpop.f32.mrf.mxu0
      %v4667 = vadd.f32 %v4557, %v4666
      %v4668 = vpop.f32.mrf.mxu0
      %4669 = vmatprep.mubr.f32.mxu0 %v4005
      %4670 = vmatmul.mubr.f32.gmra.mxu0 %v4004
      %v4671 = vpop.f32.mrf.mxu0
      %v4672 = vadd.f32 %v4562, %v4671
      %v4673 = vpop.f32.mrf.mxu0
      %4674 = vmatprep.mubr.f32.mxu0 %v4021
      %4675 = vmatmul.mubr.f32.gmra.mxu0 %v4020
      %v4676 = vpop.f32.mrf.mxu0
      %v4677 = vadd.f32 %v4567, %v4676
      %v4678 = vpop.f32.mrf.mxu0
      %4679 = vmatprep.mubr.f32.mxu0 %v4037
      %4680 = vmatmul.mubr.f32.gmra.mxu0 %v4036
      %v4681 = vpop.f32.mrf.mxu0
      %v4682 = vadd.f32 %v4572, %v4681
      %v4683 = vpop.f32.mrf.mxu0
      %4684 = vmatprep.mubr.f32.mxu0 %v4053
      %4685 = vmatmul.mubr.f32.gmra.mxu0 %v4052
      %v4686 = vpop.f32.mrf.mxu0
      %v4687 = vadd.f32 %v4577, %v4686
      %v4688 = vpop.f32.mrf.mxu0
      %4689 = vmatprep.mubr.f32.mxu0 %v4069
      %4690 = vmatmul.mubr.f32.gmra.mxu0 %v4068
      %v4691 = vpop.f32.mrf.mxu0
      %v4692 = vadd.f32 %v4582, %v4691
      %v4693 = vpop.f32.mrf.mxu0
      %4694 = vmatprep.mubr.f32.mxu0 %v4085
      %4695 = vmatmul.mubr.f32.gmra.mxu0 %v4084
      %v4696 = vpop.f32.mrf.mxu0
      %v4697 = vadd.f32 %v4587, %v4696
      %v4698 = vpop.f32.mrf.mxu0
      %4699 = vmatprep.mubr.f32.mxu0 %v4101
      %4700 = vmatmul.mubr.f32.gmra.mxu0 %v4100
      %v4701 = vpop.f32.mrf.mxu0
      %v4702 = vadd.f32 %v4592, %v4701
      %v4703 = vpop.f32.mrf.mxu0
      %4704 = vdwg.mxu0
      %4705 = vmatprep.subr.mxu0 0.0
      %4706 = vmatpush1.msra.mxu0 %v4223
      %4707 = vmatprep.subr.mxu0 0.0
      %4708 = vmatpush1.msra.mxu0 %v4222
      %4709 = vmatprep.subr.mxu0 0.0
      %4710 = vmatpush1.msra.mxu0 %v4221
      %4711 = vmatprep.subr.mxu0 0.0
      %4712 = vmatpush1.msra.mxu0 %v4220
      %4713 = vmatprep.subr.mxu0 0.0
      %4714 = vmatpush1.msra.mxu0 %v4219
      %4715 = vmatprep.subr.mxu0 0.0
      %4716 = vmatpush1.msra.mxu0 %v4218
      %4717 = vmatprep.subr.mxu0 0.0
      %4718 = vmatpush1.msra.mxu0 %v4217
      %4719 = vmatprep.subr.mxu0 0.0
      %4720 = vmatpush1.msra.mxu0 %v4216
      %4721 = vmatprep.subr.mxu0 0.0
      %4722 = vmatpush1.msra.mxu0 %v4215
      %4723 = vmatprep.subr.mxu0 0.0
      %4724 = vmatpush1.msra.mxu0 %v4214
      %4725 = vmatprep.subr.mxu0 0.0
      %4726 = vmatpush1.msra.mxu0 %v4213
      %4727 = vmatprep.subr.mxu0 0.0
      %4728 = vmatpush1.msra.mxu0 %v4212
      %4729 = vmatprep.subr.mxu0 0.0
      %4730 = vmatpush1.msra.mxu0 %v4211
      %4731 = vmatprep.subr.mxu0 0.0
      %4732 = vmatpush1.msra.mxu0 %v4210
      %4733 = vmatprep.subr.mxu0 0.0
      %4734 = vmatpush1.msra.mxu0 %v4209
      %4735 = vmatprep.subr.mxu0 0.0
      %4736 = vmatpush1.msra.mxu0 %v4208
      %4737 = vmatprep.subr.mxu0 0.0
      %4738 = vmatpush2.msra.mxu0 %v4239
      %4739 = vmatprep.subr.mxu0 0.0
      %4740 = vmatpush2.msra.mxu0 %v4238
      %4741 = vmatprep.subr.mxu0 0.0
      %4742 = vmatpush2.msra.mxu0 %v4237
      %4743 = vmatprep.subr.mxu0 0.0
      %4744 = vmatpush2.msra.mxu0 %v4236
      %4745 = vmatprep.subr.mxu0 0.0
      %4746 = vmatpush2.msra.mxu0 %v4235
      %4747 = vmatprep.subr.mxu0 0.0
      %4748 = vmatpush2.msra.mxu0 %v4234
      %4749 = vmatprep.subr.mxu0 0.0
      %4750 = vmatpush2.msra.mxu0 %v4233
      %4751 = vmatprep.subr.mxu0 0.0
      %4752 = vmatpush2.msra.mxu0 %v4232
      %4753 = vmatprep.subr.mxu0 0.0
      %4754 = vmatpush2.msra.mxu0 %v4231
      %4755 = vmatprep.subr.mxu0 0.0
      %4756 = vmatpush2.msra.mxu0 %v4230
      %4757 = vmatprep.subr.mxu0 0.0
      %4758 = vmatpush2.msra.mxu0 %v4229
      %4759 = vmatprep.subr.mxu0 0.0
      %4760 = vmatpush2.msra.mxu0 %v4228
      %4761 = vmatprep.subr.mxu0 0.0
      %4762 = vmatpush2.msra.mxu0 %v4227
      %4763 = vmatprep.subr.mxu0 0.0
      %4764 = vmatpush2.msra.mxu0 %v4226
      %4765 = vmatprep.subr.mxu0 0.0
      %4766 = vmatpush2.msra.mxu0 %v4225
      %4767 = vmatprep.subr.mxu0 0.0
      %4768 = vmatpush2.msra.mxu0 %v4224
      %4769 = vmatprep.mubr.f32.mxu0 %v3975
      %4770 = vmatmul.mubr.f32.gmra.mxu0 %v3974
      %v4771 = vpop.f32.mrf.mxu0
      %v4772 = vadd.f32 %v4662, %v4771
      %v4773 = vpop.f32.mrf.mxu0
      %4774 = vmatprep.mubr.f32.mxu0 %v3991
      %4775 = vmatmul.mubr.f32.gmra.mxu0 %v3990
      %v4776 = vpop.f32.mrf.mxu0
      %v4777 = vadd.f32 %v4667, %v4776
      %v4778 = vpop.f32.mrf.mxu0
      %4779 = vmatprep.mubr.f32.mxu0 %v4007
      %4780 = vmatmul.mubr.f32.gmra.mxu0 %v4006
      %v4781 = vpop.f32.mrf.mxu0
      %v4782 = vadd.f32 %v4672, %v4781
      %v4783 = vpop.f32.mrf.mxu0
      %4784 = vmatprep.mubr.f32.mxu0 %v4023
      %4785 = vmatmul.mubr.f32.gmra.mxu0 %v4022
      %v4786 = vpop.f32.mrf.mxu0
      %v4787 = vadd.f32 %v4677, %v4786
      %v4788 = vpop.f32.mrf.mxu0
      %4789 = vmatprep.mubr.f32.mxu0 %v4039
      %4790 = vmatmul.mubr.f32.gmra.mxu0 %v4038
      %v4791 = vpop.f32.mrf.mxu0
      %v4792 = vadd.f32 %v4682, %v4791
      %v4793 = vpop.f32.mrf.mxu0
      %4794 = vmatprep.mubr.f32.mxu0 %v4055
      %4795 = vmatmul.mubr.f32.gmra.mxu0 %v4054
      %v4796 = vpop.f32.mrf.mxu0
      %v4797 = vadd.f32 %v4687, %v4796
      %v4798 = vpop.f32.mrf.mxu0
      %4799 = vmatprep.mubr.f32.mxu0 %v4071
      %4800 = vmatmul.mubr.f32.gmra.mxu0 %v4070
      %v4801 = vpop.f32.mrf.mxu0
      %v4802 = vadd.f32 %v4692, %v4801
      %v4803 = vpop.f32.mrf.mxu0
      %4804 = vmatprep.mubr.f32.mxu0 %v4087
      %4805 = vmatmul.mubr.f32.gmra.mxu0 %v4086
      %v4806 = vpop.f32.mrf.mxu0
      %v4807 = vadd.f32 %v4697, %v4806
      %v4808 = vpop.f32.mrf.mxu0
      %4809 = vmatprep.mubr.f32.mxu0 %v4103
      %4810 = vmatmul.mubr.f32.gmra.mxu0 %v4102
      %v4811 = vpop.f32.mrf.mxu0
      %v4812 = vadd.f32 %v4702, %v4811
      %v4813 = vpop.f32.mrf.mxu0
      %4814 = vdwg.mxu0
      %4815 = vmatprep.subr.mxu0 0.0
      %4816 = vmatpush1.msra.mxu0 %v4255
      %4817 = vmatprep.subr.mxu0 0.0
      %4818 = vmatpush1.msra.mxu0 %v4254
      %4819 = vmatprep.subr.mxu0 0.0
      %4820 = vmatpush1.msra.mxu0 %v4253
      %4821 = vmatprep.subr.mxu0 0.0
      %4822 = vmatpush1.msra.mxu0 %v4252
      %4823 = vmatprep.subr.mxu0 0.0
      %4824 = vmatpush1.msra.mxu0 %v4251
      %4825 = vmatprep.subr.mxu0 0.0
      %4826 = vmatpush1.msra.mxu0 %v4250
      %4827 = vmatprep.subr.mxu0 0.0
      %4828 = vmatpush1.msra.mxu0 %v4249
      %4829 = vmatprep.subr.mxu0 0.0
      %4830 = vmatpush1.msra.mxu0 %v4248
      %4831 = vmatprep.subr.mxu0 0.0
      %4832 = vmatpush1.msra.mxu0 %v4247
      %4833 = vmatprep.subr.mxu0 0.0
      %4834 = vmatpush1.msra.mxu0 %v4246
      %4835 = vmatprep.subr.mxu0 0.0
      %4836 = vmatpush1.msra.mxu0 %v4245
      %4837 = vmatprep.subr.mxu0 0.0
      %4838 = vmatpush1.msra.mxu0 %v4244
      %4839 = vmatprep.subr.mxu0 0.0
      %4840 = vmatpush1.msra.mxu0 %v4243
      %4841 = vmatprep.subr.mxu0 0.0
      %4842 = vmatpush1.msra.mxu0 %v4242
      %4843 = vmatprep.subr.mxu0 0.0
      %4844 = vmatpush1.msra.mxu0 %v4241
      %4845 = vmatprep.subr.mxu0 0.0
      %4846 = vmatpush1.msra.mxu0 %v4240
      %4847 = vmatprep.subr.mxu0 0.0
      %4848 = vmatpush2.msra.mxu0 %v4271
      %4849 = vmatprep.subr.mxu0 0.0
      %4850 = vmatpush2.msra.mxu0 %v4270
      %4851 = vmatprep.subr.mxu0 0.0
      %4852 = vmatpush2.msra.mxu0 %v4269
      %4853 = vmatprep.subr.mxu0 0.0
      %4854 = vmatpush2.msra.mxu0 %v4268
      %4855 = vmatprep.subr.mxu0 0.0
      %4856 = vmatpush2.msra.mxu0 %v4267
      %4857 = vmatprep.subr.mxu0 0.0
      %4858 = vmatpush2.msra.mxu0 %v4266
      %4859 = vmatprep.subr.mxu0 0.0
      %4860 = vmatpush2.msra.mxu0 %v4265
      %4861 = vmatprep.subr.mxu0 0.0
      %4862 = vmatpush2.msra.mxu0 %v4264
      %4863 = vmatprep.subr.mxu0 0.0
      %4864 = vmatpush2.msra.mxu0 %v4263
      %4865 = vmatprep.subr.mxu0 0.0
      %4866 = vmatpush2.msra.mxu0 %v4262
      %4867 = vmatprep.subr.mxu0 0.0
      %4868 = vmatpush2.msra.mxu0 %v4261
      %4869 = vmatprep.subr.mxu0 0.0
      %4870 = vmatpush2.msra.mxu0 %v4260
      %4871 = vmatprep.subr.mxu0 0.0
      %4872 = vmatpush2.msra.mxu0 %v4259
      %4873 = vmatprep.subr.mxu0 0.0
      %4874 = vmatpush2.msra.mxu0 %v4258
      %4875 = vmatprep.subr.mxu0 0.0
      %4876 = vmatpush2.msra.mxu0 %v4257
      %4877 = vmatprep.subr.mxu0 0.0
      %4878 = vmatpush2.msra.mxu0 %v4256
      %4879 = vmatprep.mubr.f32.mxu0 %v3977
      %4880 = vmatmul.mubr.f32.gmra.mxu0 %v3976
      %v4881 = vpop.f32.mrf.mxu0
      %v4882 = vadd.f32 %v4772, %v4881
      %v4883 = vpop.f32.mrf.mxu0
      %4884 = vmatprep.mubr.f32.mxu0 %v3993
      %4885 = vmatmul.mubr.f32.gmra.mxu0 %v3992
      %v4886 = vpop.f32.mrf.mxu0
      %v4887 = vadd.f32 %v4777, %v4886
      %v4888 = vpop.f32.mrf.mxu0
      %4889 = vmatprep.mubr.f32.mxu0 %v4009
      %4890 = vmatmul.mubr.f32.gmra.mxu0 %v4008
      %v4891 = vpop.f32.mrf.mxu0
      %v4892 = vadd.f32 %v4782, %v4891
      %v4893 = vpop.f32.mrf.mxu0
      %4894 = vmatprep.mubr.f32.mxu0 %v4025
      %4895 = vmatmul.mubr.f32.gmra.mxu0 %v4024
      %v4896 = vpop.f32.mrf.mxu0
      %v4897 = vadd.f32 %v4787, %v4896
      %v4898 = vpop.f32.mrf.mxu0
      %4899 = vmatprep.mubr.f32.mxu0 %v4041
      %4900 = vmatmul.mubr.f32.gmra.mxu0 %v4040
      %v4901 = vpop.f32.mrf.mxu0
      %v4902 = vadd.f32 %v4792, %v4901
      %v4903 = vpop.f32.mrf.mxu0
      %4904 = vmatprep.mubr.f32.mxu0 %v4057
      %4905 = vmatmul.mubr.f32.gmra.mxu0 %v4056
      %v4906 = vpop.f32.mrf.mxu0
      %v4907 = vadd.f32 %v4797, %v4906
      %v4908 = vpop.f32.mrf.mxu0
      %4909 = vmatprep.mubr.f32.mxu0 %v4073
      %4910 = vmatmul.mubr.f32.gmra.mxu0 %v4072
      %v4911 = vpop.f32.mrf.mxu0
      %v4912 = vadd.f32 %v4802, %v4911
      %v4913 = vpop.f32.mrf.mxu0
      %4914 = vmatprep.mubr.f32.mxu0 %v4089
      %4915 = vmatmul.mubr.f32.gmra.mxu0 %v4088
      %v4916 = vpop.f32.mrf.mxu0
      %v4917 = vadd.f32 %v4807, %v4916
      %v4918 = vpop.f32.mrf.mxu0
      %4919 = vmatprep.mubr.f32.mxu0 %v4105
      %4920 = vmatmul.mubr.f32.gmra.mxu0 %v4104
      %v4921 = vpop.f32.mrf.mxu0
      %v4922 = vadd.f32 %v4812, %v4921
      %v4923 = vpop.f32.mrf.mxu0
      %4924 = vdwg.mxu0
      %4925 = vmatprep.subr.mxu0 0.0
      %4926 = vmatpush1.msra.mxu0 %v4287
      %4927 = vmatprep.subr.mxu0 0.0
      %4928 = vmatpush1.msra.mxu0 %v4286
      %4929 = vmatprep.subr.mxu0 0.0
      %4930 = vmatpush1.msra.mxu0 %v4285
      %4931 = vmatprep.subr.mxu0 0.0
      %4932 = vmatpush1.msra.mxu0 %v4284
      %4933 = vmatprep.subr.mxu0 0.0
      %4934 = vmatpush1.msra.mxu0 %v4283
      %4935 = vmatprep.subr.mxu0 0.0
      %4936 = vmatpush1.msra.mxu0 %v4282
      %4937 = vmatprep.subr.mxu0 0.0
      %4938 = vmatpush1.msra.mxu0 %v4281
      %4939 = vmatprep.subr.mxu0 0.0
      %4940 = vmatpush1.msra.mxu0 %v4280
      %4941 = vmatprep.subr.mxu0 0.0
      %4942 = vmatpush1.msra.mxu0 %v4279
      %4943 = vmatprep.subr.mxu0 0.0
      %4944 = vmatpush1.msra.mxu0 %v4278
      %4945 = vmatprep.subr.mxu0 0.0
      %4946 = vmatpush1.msra.mxu0 %v4277
      %4947 = vmatprep.subr.mxu0 0.0
      %4948 = vmatpush1.msra.mxu0 %v4276
      %4949 = vmatprep.subr.mxu0 0.0
      %4950 = vmatpush1.msra.mxu0 %v4275
      %4951 = vmatprep.subr.mxu0 0.0
      %4952 = vmatpush1.msra.mxu0 %v4274
      %4953 = vmatprep.subr.mxu0 0.0
      %4954 = vmatpush1.msra.mxu0 %v4273
      %4955 = vmatprep.subr.mxu0 0.0
      %4956 = vmatpush1.msra.mxu0 %v4272
      %4957 = vmatprep.subr.mxu0 0.0
      %4958 = vmatpush2.msra.mxu0 %v4303
      %4959 = vmatprep.subr.mxu0 0.0
      %4960 = vmatpush2.msra.mxu0 %v4302
      %4961 = vmatprep.subr.mxu0 0.0
      %4962 = vmatpush2.msra.mxu0 %v4301
      %4963 = vmatprep.subr.mxu0 0.0
      %4964 = vmatpush2.msra.mxu0 %v4300
      %4965 = vmatprep.subr.mxu0 0.0
      %4966 = vmatpush2.msra.mxu0 %v4299
      %4967 = vmatprep.subr.mxu0 0.0
      %4968 = vmatpush2.msra.mxu0 %v4298
      %4969 = vmatprep.subr.mxu0 0.0
      %4970 = vmatpush2.msra.mxu0 %v4297
      %4971 = vmatprep.subr.mxu0 0.0
      %4972 = vmatpush2.msra.mxu0 %v4296
      %4973 = vmatprep.subr.mxu0 0.0
      %4974 = vmatpush2.msra.mxu0 %v4295
      %4975 = vmatprep.subr.mxu0 0.0
      %4976 = vmatpush2.msra.mxu0 %v4294
      %4977 = vmatprep.subr.mxu0 0.0
      %4978 = vmatpush2.msra.mxu0 %v4293
      %4979 = vmatprep.subr.mxu0 0.0
      %4980 = vmatpush2.msra.mxu0 %v4292
      %4981 = vmatprep.subr.mxu0 0.0
      %4982 = vmatpush2.msra.mxu0 %v4291
      %4983 = vmatprep.subr.mxu0 0.0
      %4984 = vmatpush2.msra.mxu0 %v4290
      %4985 = vmatprep.subr.mxu0 0.0
      %4986 = vmatpush2.msra.mxu0 %v4289
      %4987 = vmatprep.subr.mxu0 0.0
      %4988 = vmatpush2.msra.mxu0 %v4288
      %4989 = vmatprep.mubr.f32.mxu0 %v3979
      %4990 = vmatmul.mubr.f32.gmra.mxu0 %v3978
      %v4991 = vpop.f32.mrf.mxu0
      %v4992 = vadd.f32 %v4882, %v4991
      %v4993 = vpop.f32.mrf.mxu0
      %4994 = vmatprep.mubr.f32.mxu0 %v3995
      %4995 = vmatmul.mubr.f32.gmra.mxu0 %v3994
      %v4996 = vpop.f32.mrf.mxu0
      %v4997 = vadd.f32 %v4887, %v4996
      %v4998 = vpop.f32.mrf.mxu0
      %4999 = vmatprep.mubr.f32.mxu0 %v4011
      %5000 = vmatmul.mubr.f32.gmra.mxu0 %v4010
      %v5001 = vpop.f32.mrf.mxu0
      %v5002 = vadd.f32 %v4892, %v5001
      %v5003 = vpop.f32.mrf.mxu0
      %5004 = vmatprep.mubr.f32.mxu0 %v4027
      %5005 = vmatmul.mubr.f32.gmra.mxu0 %v4026
      %v5006 = vpop.f32.mrf.mxu0
      %v5007 = vadd.f32 %v4897, %v5006
      %v5008 = vpop.f32.mrf.mxu0
      %5009 = vmatprep.mubr.f32.mxu0 %v4043
      %5010 = vmatmul.mubr.f32.gmra.mxu0 %v4042
      %v5011 = vpop.f32.mrf.mxu0
      %v5012 = vadd.f32 %v4902, %v5011
      %v5013 = vpop.f32.mrf.mxu0
      %5014 = vmatprep.mubr.f32.mxu0 %v4059
      %5015 = vmatmul.mubr.f32.gmra.mxu0 %v4058
      %v5016 = vpop.f32.mrf.mxu0
      %v5017 = vadd.f32 %v4907, %v5016
      %v5018 = vpop.f32.mrf.mxu0
      %5019 = vmatprep.mubr.f32.mxu0 %v4075
      %5020 = vmatmul.mubr.f32.gmra.mxu0 %v4074
      %v5021 = vpop.f32.mrf.mxu0
      %v5022 = vadd.f32 %v4912, %v5021
      %v5023 = vpop.f32.mrf.mxu0
      %5024 = vmatprep.mubr.f32.mxu0 %v4091
      %5025 = vmatmul.mubr.f32.gmra.mxu0 %v4090
      %v5026 = vpop.f32.mrf.mxu0
      %v5027 = vadd.f32 %v4917, %v5026
      %v5028 = vpop.f32.mrf.mxu0
      %5029 = vmatprep.mubr.f32.mxu0 %v4107
      %5030 = vmatmul.mubr.f32.gmra.mxu0 %v4106
      %v5031 = vpop.f32.mrf.mxu0
      %v5032 = vadd.f32 %v4922, %v5031
      %v5033 = vpop.f32.mrf.mxu0
      %5034 = vdwg.mxu0
      %5035 = vmatprep.subr.mxu0 0.0
      %5036 = vmatpush1.msra.mxu0 %v4319
      %5037 = vmatprep.subr.mxu0 0.0
      %5038 = vmatpush1.msra.mxu0 %v4318
      %5039 = vmatprep.subr.mxu0 0.0
      %5040 = vmatpush1.msra.mxu0 %v4317
      %5041 = vmatprep.subr.mxu0 0.0
      %5042 = vmatpush1.msra.mxu0 %v4316
      %5043 = vmatprep.subr.mxu0 0.0
      %5044 = vmatpush1.msra.mxu0 %v4315
      %5045 = vmatprep.subr.mxu0 0.0
      %5046 = vmatpush1.msra.mxu0 %v4314
      %5047 = vmatprep.subr.mxu0 0.0
      %5048 = vmatpush1.msra.mxu0 %v4313
      %5049 = vmatprep.subr.mxu0 0.0
      %5050 = vmatpush1.msra.mxu0 %v4312
      %5051 = vmatprep.subr.mxu0 0.0
      %5052 = vmatpush1.msra.mxu0 %v4311
      %5053 = vmatprep.subr.mxu0 0.0
      %5054 = vmatpush1.msra.mxu0 %v4310
      %5055 = vmatprep.subr.mxu0 0.0
      %5056 = vmatpush1.msra.mxu0 %v4309
      %5057 = vmatprep.subr.mxu0 0.0
      %5058 = vmatpush1.msra.mxu0 %v4308
      %5059 = vmatprep.subr.mxu0 0.0
      %5060 = vmatpush1.msra.mxu0 %v4307
      %5061 = vmatprep.subr.mxu0 0.0
      %5062 = vmatpush1.msra.mxu0 %v4306
      %5063 = vmatprep.subr.mxu0 0.0
      %5064 = vmatpush1.msra.mxu0 %v4305
      %5065 = vmatprep.subr.mxu0 0.0
      %5066 = vmatpush1.msra.mxu0 %v4304
      %5067 = vmatprep.subr.mxu0 0.0
      %5068 = vmatpush2.msra.mxu0 %v4335
      %5069 = vmatprep.subr.mxu0 0.0
      %5070 = vmatpush2.msra.mxu0 %v4334
      %5071 = vmatprep.subr.mxu0 0.0
      %5072 = vmatpush2.msra.mxu0 %v4333
      %5073 = vmatprep.subr.mxu0 0.0
      %5074 = vmatpush2.msra.mxu0 %v4332
      %5075 = vmatprep.subr.mxu0 0.0
      %5076 = vmatpush2.msra.mxu0 %v4331
      %5077 = vmatprep.subr.mxu0 0.0
      %5078 = vmatpush2.msra.mxu0 %v4330
      %5079 = vmatprep.subr.mxu0 0.0
      %5080 = vmatpush2.msra.mxu0 %v4329
      %5081 = vmatprep.subr.mxu0 0.0
      %5082 = vmatpush2.msra.mxu0 %v4328
      %5083 = vmatprep.subr.mxu0 0.0
      %5084 = vmatpush2.msra.mxu0 %v4327
      %5085 = vmatprep.subr.mxu0 0.0
      %5086 = vmatpush2.msra.mxu0 %v4326
      %5087 = vmatprep.subr.mxu0 0.0
      %5088 = vmatpush2.msra.mxu0 %v4325
      %5089 = vmatprep.subr.mxu0 0.0
      %5090 = vmatpush2.msra.mxu0 %v4324
      %5091 = vmatprep.subr.mxu0 0.0
      %5092 = vmatpush2.msra.mxu0 %v4323
      %5093 = vmatprep.subr.mxu0 0.0
      %5094 = vmatpush2.msra.mxu0 %v4322
      %5095 = vmatprep.subr.mxu0 0.0
      %5096 = vmatpush2.msra.mxu0 %v4321
      %5097 = vmatprep.subr.mxu0 0.0
      %5098 = vmatpush2.msra.mxu0 %v4320
      %5099 = vmatprep.mubr.f32.mxu0 %v3981
      %5100 = vmatmul.mubr.f32.gmra.mxu0 %v3980
      %v5101 = vpop.f32.mrf.mxu0
      %v5102 = vadd.f32 %v4992, %v5101
      %v5103 = vpop.f32.mrf.mxu0
      %5104 = vmatprep.mubr.f32.mxu0 %v3997
      %5105 = vmatmul.mubr.f32.gmra.mxu0 %v3996
      %v5106 = vpop.f32.mrf.mxu0
      %v5107 = vadd.f32 %v4997, %v5106
      %v5108 = vpop.f32.mrf.mxu0
      %5109 = vmatprep.mubr.f32.mxu0 %v4013
      %5110 = vmatmul.mubr.f32.gmra.mxu0 %v4012
      %v5111 = vpop.f32.mrf.mxu0
      %v5112 = vadd.f32 %v5002, %v5111
      %v5113 = vpop.f32.mrf.mxu0
      %5114 = vmatprep.mubr.f32.mxu0 %v4029
      %5115 = vmatmul.mubr.f32.gmra.mxu0 %v4028
      %v5116 = vpop.f32.mrf.mxu0
      %v5117 = vadd.f32 %v5007, %v5116
      %v5118 = vpop.f32.mrf.mxu0
      %5119 = vmatprep.mubr.f32.mxu0 %v4045
      %5120 = vmatmul.mubr.f32.gmra.mxu0 %v4044
      %v5121 = vpop.f32.mrf.mxu0
      %v5122 = vadd.f32 %v5012, %v5121
      %v5123 = vpop.f32.mrf.mxu0
      %5124 = vmatprep.mubr.f32.mxu0 %v4061
      %5125 = vmatmul.mubr.f32.gmra.mxu0 %v4060
      %v5126 = vpop.f32.mrf.mxu0
      %v5127 = vadd.f32 %v5017, %v5126
      %v5128 = vpop.f32.mrf.mxu0
      %5129 = vmatprep.mubr.f32.mxu0 %v4077
      %5130 = vmatmul.mubr.f32.gmra.mxu0 %v4076
      %v5131 = vpop.f32.mrf.mxu0
      %v5132 = vadd.f32 %v5022, %v5131
      %v5133 = vpop.f32.mrf.mxu0
      %5134 = vmatprep.mubr.f32.mxu0 %v4093
      %5135 = vmatmul.mubr.f32.gmra.mxu0 %v4092
      %v5136 = vpop.f32.mrf.mxu0
      %v5137 = vadd.f32 %v5027, %v5136
      %v5138 = vpop.f32.mrf.mxu0
      %5139 = vmatprep.mubr.f32.mxu0 %v4109
      %5140 = vmatmul.mubr.f32.gmra.mxu0 %v4108
      %v5141 = vpop.f32.mrf.mxu0
      %v5142 = vadd.f32 %v5032, %v5141
      %v5143 = vpop.f32.mrf.mxu0
      %5144 = vdwg.mxu0
      %5145 = vmatprep.subr.mxu0 0.0
      %5146 = vmatpush1.msra.mxu0 %v4351
      %5147 = vmatprep.subr.mxu0 0.0
      %5148 = vmatpush1.msra.mxu0 %v4350
      %5149 = vmatprep.subr.mxu0 0.0
      %5150 = vmatpush1.msra.mxu0 %v4349
      %5151 = vmatprep.subr.mxu0 0.0
      %5152 = vmatpush1.msra.mxu0 %v4348
      %5153 = vmatprep.subr.mxu0 0.0
      %5154 = vmatpush1.msra.mxu0 %v4347
      %5155 = vmatprep.subr.mxu0 0.0
      %5156 = vmatpush1.msra.mxu0 %v4346
      %5157 = vmatprep.subr.mxu0 0.0
      %5158 = vmatpush1.msra.mxu0 %v4345
      %5159 = vmatprep.subr.mxu0 0.0
      %5160 = vmatpush1.msra.mxu0 %v4344
      %5161 = vmatprep.subr.mxu0 0.0
      %5162 = vmatpush1.msra.mxu0 %v4343
      %5163 = vmatprep.subr.mxu0 0.0
      %5164 = vmatpush1.msra.mxu0 %v4342
      %5165 = vmatprep.subr.mxu0 0.0
      %5166 = vmatpush1.msra.mxu0 %v4341
      %5167 = vmatprep.subr.mxu0 0.0
      %5168 = vmatpush1.msra.mxu0 %v4340
      %5169 = vmatprep.subr.mxu0 0.0
      %5170 = vmatpush1.msra.mxu0 %v4339
      %5171 = vmatprep.subr.mxu0 0.0
      %5172 = vmatpush1.msra.mxu0 %v4338
      %5173 = vmatprep.subr.mxu0 0.0
      %5174 = vmatpush1.msra.mxu0 %v4337
      %5175 = vmatprep.subr.mxu0 0.0
      %5176 = vmatpush1.msra.mxu0 %v4336
      %5177 = vmatprep.subr.mxu0 0.0
      %5178 = vmatpush2.msra.mxu0 %v4367
      %5179 = vmatprep.subr.mxu0 0.0
      %5180 = vmatpush2.msra.mxu0 %v4366
      %5181 = vmatprep.subr.mxu0 0.0
      %5182 = vmatpush2.msra.mxu0 %v4365
      %5183 = vmatprep.subr.mxu0 0.0
      %5184 = vmatpush2.msra.mxu0 %v4364
      %5185 = vmatprep.subr.mxu0 0.0
      %5186 = vmatpush2.msra.mxu0 %v4363
      %5187 = vmatprep.subr.mxu0 0.0
      %5188 = vmatpush2.msra.mxu0 %v4362
      %5189 = vmatprep.subr.mxu0 0.0
      %5190 = vmatpush2.msra.mxu0 %v4361
      %5191 = vmatprep.subr.mxu0 0.0
      %5192 = vmatpush2.msra.mxu0 %v4360
      %5193 = vmatprep.subr.mxu0 0.0
      %5194 = vmatpush2.msra.mxu0 %v4359
      %5195 = vmatprep.subr.mxu0 0.0
      %5196 = vmatpush2.msra.mxu0 %v4358
      %5197 = vmatprep.subr.mxu0 0.0
      %5198 = vmatpush2.msra.mxu0 %v4357
      %5199 = vmatprep.subr.mxu0 0.0
      %5200 = vmatpush2.msra.mxu0 %v4356
      %5201 = vmatprep.subr.mxu0 0.0
      %5202 = vmatpush2.msra.mxu0 %v4355
      %5203 = vmatprep.subr.mxu0 0.0
      %5204 = vmatpush2.msra.mxu0 %v4354
      %5205 = vmatprep.subr.mxu0 0.0
      %5206 = vmatpush2.msra.mxu0 %v4353
      %5207 = vmatprep.subr.mxu0 0.0
      %5208 = vmatpush2.msra.mxu0 %v4352
      %5209 = vmatprep.mubr.f32.mxu0 %v3983
      %5210 = vmatmul.mubr.f32.gmra.mxu0 %v3982
      %v5211 = vpop.f32.mrf.mxu0
      %v5212 = vadd.f32 %v5102, %v5211
      %v5213 = vpop.f32.mrf.mxu0
      %5214 = vmatprep.mubr.f32.mxu0 %v3999
      %5215 = vmatmul.mubr.f32.gmra.mxu0 %v3998
      %v5216 = vpop.f32.mrf.mxu0
      %v5217 = vadd.f32 %v5107, %v5216
      %v5218 = vpop.f32.mrf.mxu0
      %5219 = vmatprep.mubr.f32.mxu0 %v4015
      %5220 = vmatmul.mubr.f32.gmra.mxu0 %v4014
      %v5221 = vpop.f32.mrf.mxu0
      %v5222 = vadd.f32 %v5112, %v5221
      %v5223 = vpop.f32.mrf.mxu0
      %5224 = vmatprep.mubr.f32.mxu0 %v4031
      %5225 = vmatmul.mubr.f32.gmra.mxu0 %v4030
      %v5226 = vpop.f32.mrf.mxu0
      %v5227 = vadd.f32 %v5117, %v5226
      %v5228 = vpop.f32.mrf.mxu0
      %5229 = vmatprep.mubr.f32.mxu0 %v4047
      %5230 = vmatmul.mubr.f32.gmra.mxu0 %v4046
      %v5231 = vpop.f32.mrf.mxu0
      %v5232 = vadd.f32 %v5122, %v5231
      %v5233 = vpop.f32.mrf.mxu0
      %5234 = vmatprep.mubr.f32.mxu0 %v4063
      %5235 = vmatmul.mubr.f32.gmra.mxu0 %v4062
      %v5236 = vpop.f32.mrf.mxu0
      %v5237 = vadd.f32 %v5127, %v5236
      %v5238 = vpop.f32.mrf.mxu0
      %5239 = vmatprep.mubr.f32.mxu0 %v4079
      %5240 = vmatmul.mubr.f32.gmra.mxu0 %v4078
      %v5241 = vpop.f32.mrf.mxu0
      %v5242 = vadd.f32 %v5132, %v5241
      %v5243 = vpop.f32.mrf.mxu0
      %5244 = vmatprep.mubr.f32.mxu0 %v4095
      %5245 = vmatmul.mubr.f32.gmra.mxu0 %v4094
      %v5246 = vpop.f32.mrf.mxu0
      %v5247 = vadd.f32 %v5137, %v5246
      %v5248 = vpop.f32.mrf.mxu0
      %5249 = vmatprep.mubr.f32.mxu0 %v4111
      %5250 = vmatmul.mubr.f32.gmra.mxu0 %v4110
      %v5251 = vpop.f32.mrf.mxu0
      %v5252 = vadd.f32 %v5142, %v5251
      %v5253 = vpop.f32.mrf.mxu0
      %5254 = vdwg.mxu0
      %v5255 = vadd.f32 %v2832, %v5212
      %v5256 = vadd.f32 %v2833, %v5217
      %v5257 = vadd.f32 %v2834, %v5222
      %v5258 = vadd.f32 %v2835, %v5227
      %v5259 = vadd.f32 %v2836, %v5232
      %v5260 = vadd.f32 %v2837, %v5237
      %v5261 = vadd.f32 %v2838, %v5242
      %v5262 = vadd.f32 %v2839, %v5247
      %v5263 = vadd.f32 %v2840, %v5252
      %v5264 = vld [vmem:[%s11] sm:$0x1]
      %v5265 = vld [vmem:[%s12] sm:$0x1]
      %v5266 = vsel %vm461, %v5255, 0.0
      %5267 = vadd.xlane.f32.xlu0 %v5266
      %v5268 = vpop.xlane.xlu0 %5267
      %v5269 = vsel %vm461, %v5256, 0.0
      %5270 = vadd.xlane.f32.xlu0 %v5269
      %v5271 = vpop.xlane.xlu0 %5270
      %v5272 = vsel %vm461, %v5257, 0.0
      %5273 = vadd.xlane.f32.xlu0 %v5272
      %v5274 = vpop.xlane.xlu0 %5273
      %v5275 = vsel %vm461, %v5258, 0.0
      %5276 = vadd.xlane.f32.xlu0 %v5275
      %v5277 = vpop.xlane.xlu0 %5276
      %v5278 = vsel %vm461, %v5259, 0.0
      %5279 = vadd.xlane.f32.xlu0 %v5278
      %v5280 = vpop.xlane.xlu0 %5279
      %v5281 = vsel %vm461, %v5260, 0.0
      %5282 = vadd.xlane.f32.xlu0 %v5281
      %v5283 = vpop.xlane.xlu0 %5282
      %v5284 = vsel %vm461, %v5261, 0.0
      %5285 = vadd.xlane.f32.xlu0 %v5284
      %v5286 = vpop.xlane.xlu0 %5285
      %v5287 = vsel %vm461, %v5262, 0.0
      %5288 = vadd.xlane.f32.xlu0 %v5287
      %v5289 = vpop.xlane.xlu0 %5288
      %v5290 = vsel %vm2716, %v5263, 0.0
      %5291 = vadd.xlane.f32.xlu0 %v5290
      %v5292 = vpop.xlane.xlu0 %5291
      %v5293 = vmul.f32 %v5268, %v2720
      %v5294 = vmul.f32 %v5271, %v2720
      %v5295 = vmul.f32 %v5274, %v2720
      %v5296 = vmul.f32 %v5277, %v2720
      %v5297 = vmul.f32 %v5280, %v2720
      %v5298 = vmul.f32 %v5283, %v2720
      %v5299 = vmul.f32 %v5286, %v2720
      %v5300 = vmul.f32 %v5289, %v2720
      %v5301 = vmul.f32 %v5292, %v2720
      %v5302 = vsub.f32 %v5255, %v5293
      %v5303 = vsub.f32 %v5256, %v5294
      %v5304 = vsub.f32 %v5257, %v5295
      %v5305 = vsub.f32 %v5258, %v5296
      %v5306 = vsub.f32 %v5259, %v5297
      %v5307 = vsub.f32 %v5260, %v5298
      %v5308 = vsub.f32 %v5261, %v5299
      %v5309 = vsub.f32 %v5262, %v5300
      %v5310 = vsub.f32 %v5263, %v5301
      %v5311 = vmul.f32 %v5302, %v5302
      %v5312 = vmul.f32 %v5303, %v5303
      %v5313 = vmul.f32 %v5304, %v5304
      %v5314 = vmul.f32 %v5305, %v5305
      %v5315 = vmul.f32 %v5306, %v5306
      %v5316 = vmul.f32 %v5307, %v5307
      %v5317 = vmul.f32 %v5308, %v5308
      %v5318 = vmul.f32 %v5309, %v5309
      %v5319 = vmul.f32 %v5310, %v5310
      %v5320 = vsel %vm461, %v5311, 0.0
      %5321 = vadd.xlane.f32.xlu0 %v5320
      %v5322 = vpop.xlane.xlu0 %5321
      %v5323 = vsel %vm461, %v5312, 0.0
      %5324 = vadd.xlane.f32.xlu0 %v5323
      %v5325 = vpop.xlane.xlu0 %5324
      %v5326 = vsel %vm461, %v5313, 0.0
      %5327 = vadd.xlane.f32.xlu0 %v5326
      %v5328 = vpop.xlane.xlu0 %5327
      %v5329 = vsel %vm461, %v5314, 0.0
      %5330 = vadd.xlane.f32.xlu0 %v5329
      %v5331 = vpop.xlane.xlu0 %5330
      %v5332 = vsel %vm461, %v5315, 0.0
      %5333 = vadd.xlane.f32.xlu0 %v5332
      %v5334 = vpop.xlane.xlu0 %5333
      %v5335 = vsel %vm461, %v5316, 0.0
      %5336 = vadd.xlane.f32.xlu0 %v5335
      %v5337 = vpop.xlane.xlu0 %5336
      %v5338 = vsel %vm461, %v5317, 0.0
      %5339 = vadd.xlane.f32.xlu0 %v5338
      %v5340 = vpop.xlane.xlu0 %5339
      %v5341 = vsel %vm461, %v5318, 0.0
      %5342 = vadd.xlane.f32.xlu0 %v5341
      %v5343 = vpop.xlane.xlu0 %5342
      %v5344 = vsel %vm2716, %v5319, 0.0
      %5345 = vadd.xlane.f32.xlu0 %v5344
      %v5346 = vpop.xlane.xlu0 %5345
      %v5347 = vmul.f32 %v5322, %v2720
      %v5348 = vmul.f32 %v5325, %v2720
      %v5349 = vmul.f32 %v5328, %v2720
      %v5350 = vmul.f32 %v5331, %v2720
      %v5351 = vmul.f32 %v5334, %v2720
      %v5352 = vmul.f32 %v5337, %v2720
      %v5353 = vmul.f32 %v5340, %v2720
      %v5354 = vmul.f32 %v5343, %v2720
      %v5355 = vmul.f32 %v5346, %v2720
      %v5356 = vadd.f32 %v5347, 1e-05
      %v5357 = vadd.f32 %v5348, 1e-05
      %v5358 = vadd.f32 %v5349, 1e-05
      %v5359 = vadd.f32 %v5350, 1e-05
      %v5360 = vadd.f32 %v5351, 1e-05
      %v5361 = vadd.f32 %v5352, 1e-05
      %v5362 = vadd.f32 %v5353, 1e-05
      %v5363 = vadd.f32 %v5354, 1e-05
      %v5364 = vadd.f32 %v5355, 1e-05
      %v5365 = vrsqrt.pop %v5356
      %v5366 = vrsqrt.pop %v5357
      %v5367 = vrsqrt.pop %v5358
      %v5368 = vrsqrt.pop %v5359
      %v5369 = vrsqrt.pop %v5360
      %v5370 = vrsqrt.pop %v5361
      %v5371 = vrsqrt.pop %v5362
      %v5372 = vrsqrt.pop %v5363
      %v5373 = vrsqrt.pop %v5364
      %v5374 = vmul.f32 %v5302, %v5365
      %v5375 = vmul.f32 %v5303, %v5366
      %v5376 = vmul.f32 %v5304, %v5367
      %v5377 = vmul.f32 %v5305, %v5368
      %v5378 = vmul.f32 %v5306, %v5369
      %v5379 = vmul.f32 %v5307, %v5370
      %v5380 = vmul.f32 %v5308, %v5371
      %v5381 = vmul.f32 %v5309, %v5372
      %v5382 = vmul.f32 %v5310, %v5373
      %v5384 = vlaneseq
      %v5385 = vshrl.u32 %v5384, 7
      %v5386 = vsub.s32 0, %v5385
      %v5387 = vrot.slane %v5264, %v5386
      %v5389 = vmul.f32 %v5374, %v5387
      %v5390 = vmul.f32 %v5375, %v5387
      %v5391 = vmul.f32 %v5376, %v5387
      %v5392 = vmul.f32 %v5377, %v5387
      %v5393 = vmul.f32 %v5378, %v5387
      %v5394 = vmul.f32 %v5379, %v5387
      %v5395 = vmul.f32 %v5380, %v5387
      %v5396 = vmul.f32 %v5381, %v5387
      %v5397 = vmul.f32 %v5382, %v5387
      %v5399 = vlaneseq
      %v5400 = vshrl.u32 %v5399, 7
      %v5401 = vsub.s32 0, %v5400
      %v5402 = vrot.slane %v5265, %v5401
      %v5404 = vadd.f32 %v5389, %v5402
      %v5405 = vadd.f32 %v5390, %v5402
      %v5406 = vadd.f32 %v5391, %v5402
      %v5407 = vadd.f32 %v5392, %v5402
      %v5408 = vadd.f32 %v5393, %v5402
      %v5409 = vadd.f32 %v5394, %v5402
      %v5410 = vadd.f32 %v5395, %v5402
      %v5411 = vadd.f32 %v5396, %v5402
      %v5412 = vadd.f32 %v5397, %v5402
      %5413 = vst.msk [vmem:[%s440] sm:$0xff] %vm461, %v5404
      %5414 = vst.msk [vmem:[%s440 + $0x8] sm:$0xff] %vm461, %v5405
      %5415 = vst.msk [vmem:[%s440 + $0x10] sm:$0xff] %vm461, %v5406
      %5416 = vst.msk [vmem:[%s440 + $0x18] sm:$0xff] %vm461, %v5407
      %5417 = vst.msk [vmem:[%s440 + $0x20] sm:$0xff] %vm461, %v5408
      %5418 = vst.msk [vmem:[%s440 + $0x28] sm:$0xff] %vm461, %v5409
      %5419 = vst.msk [vmem:[%s440 + $0x30] sm:$0xff] %vm461, %v5410
      %5420 = vst.msk [vmem:[%s440 + $0x38] sm:$0xff] %vm461, %v5411
      %5421 = vst.msk [vmem:[%s440 + $0x40] sm:$0x1] %vm2716, %v5412
      %p5422 = scmp.lt.s32.totalorder %s24, 1
      %s5423 = scalar_select %p5422, %s24, 1
      %s5424 = smul.addr %s5423, 9
      %s5425 = smul.addr %s5424, 8
      %s5426 = scalar_lea.vmem %s13, %s5425
      // Predicated region
      $region73: #{improved_location_predictor.6} parent=71 // pred_check
        %p5427 = pneg %p320
      $region74: #{improved_location_predictor.6} parent=71 // pred_check_branch
        %5429 = sbr.rel (%p5427) target = $region76
      $region75: #{improved_location_predictor.6} parent=71 // pred_region
        _
      $region76: #{improved_location_predictor.6} parent=71 // pred_fallthru
        _
    $region72: #{improved_location_predictor.6} parent=5 // pred_fallthru
      _
    %p5430 = scmp.le.s32.totalorder 2, %s19
    // Predicated region
    $region77: #{improved_location_predictor.6} parent=5 // pred_check
      %p5431 = pneg %p5430
    $region78: #{improved_location_predictor.6} parent=5 // pred_check_branch
      %5433 = sbr.rel (%p5431) target = $region80
    $region79: #{improved_location_predictor.6} parent=5 // pred_region
      %s5434 = ssub.s32 %s19, 2
      // Predicated region
      $region81: #{improved_location_predictor.6} parent=79 // pred_check
        %p5435 = pneg %p326
      $region82: #{improved_location_predictor.6} parent=79 // pred_check_branch
        %5437 = sbr.rel (%p5435) target = $region84
      $region83: #{improved_location_predictor.6} parent=79 // pred_region
        %p5438 = scmp.lt.s32.totalorder %s25, 1
        %s5439 = scalar_select %p5438, %s25, 1
        %s5440 = smul.addr %s5439, 9
        %s5441 = smul.addr %s5440, 8
        %s5442 = scalar_lea.vmem %s13, %s5441
      $region84: #{improved_location_predictor.6} parent=79 // pred_fallthru
        _
    $region80: #{improved_location_predictor.6} parent=5 // pred_fallthru
      _
  $region6: #{improved_location_predictor.6} parent=0 // loop_footer
    %s23 = sadd.s32 1, %s19
  $region7: #{improved_location_predictor.6} parent=0 // loop_footer_branch
    %18 = sbr.rel target = $region3
  $region8: #{improved_location_predictor.6} parent=0 // loop_exit
    _

</llo_original>
